<compile_context>
chip_gen: v6e
topology: v6e:2x2x1
jax: 0.10.0
libtpu: 0.0.40
codegen_flags: <defaults>
</compile_context>

<pallas_src>
import jax
import jax.numpy as jnp
from jax.experimental import pallas as pl
from jax.experimental.pallas import tpu as pltpu

# ----------------------------- config (small) -----------------------------
DRUG_N = 16        # args.drug_number
DIS_N = 16         # args.disease_number
PROT_N = 8         # args.protein_number
HGT_IN = 128       # args.hgt_in_dim
GT_OUT = 128       # args.gt_out_dim (== hgt output dim so shapes line up)
N_SAMPLE = 8       # number of (drug, disease) pairs in `sample`
MLP_OUT_PAD = 128  # logits lane-padded width; real logits are columns [:2]

f32 = jnp.float32
bf16 = jnp.bfloat16


# ----------------------------- fused Pallas kernel -----------------------------
def _fused_forward_kernel(
        sample_ref,                                      # SMEM (N_SAMPLE, 2) int32
        drug_feat_ref, prot_feat_ref, dis_feat_ref,      # raw node features
        dr_sim_ref, di_sim_ref,                          # graph-transformer stand-ins
        drug_w_ref, drug_b_ref, prot_w_ref, prot_b_ref,  # drug/protein linear
        fdr_w1_ref, fdr_b1_ref, fdr_w2_ref, fdr_b2_ref,  # drug AttentionFusion
        fdi_w1_ref, fdi_b1_ref, fdi_w2_ref, fdi_b2_ref,  # disease AttentionFusion
        m_w1_ref, m_b1_ref, m_w2_ref, m_b2_ref,
        m_w3_ref, m_b3_ref, m_w4_ref, m_b4_ref,          # MLP head
        dr_hgt_ref, prot_out_ref, logits_ref,            # outputs
        dr_scr, di_scr):                                 # VMEM scratch (fused dr/di)
    # ---- drug_linear / protein_linear (bf16 weights, f32 accumulation) ----
    drug_feat = (jnp.dot(drug_feat_ref[...].astype(bf16), drug_w_ref[...],
                         preferred_element_type=f32) + drug_b_ref[...])
    prot_feat = (jnp.dot(prot_feat_ref[...].astype(bf16), prot_w_ref[...],
                         preferred_element_type=f32) + prot_b_ref[...])
    dr_hgt_ref[...] = drug_feat
    prot_out_ref[...] = prot_feat

    # TODO(synk): dgl.to_homogeneous + stacked DGL HGTConv layers have no Pallas
    # equivalent; node features pass through unchanged as the hgt output.
    dr_hgt = drug_feat
    di_hgt = dis_feat_ref[...]

    # TODO(synk): drug_trans / disease_trans TransformerEncoder outputs are
    # discarded by the reference forward (dr/di immediately reassigned), so
    # they are omitted without changing returned-tensor semantics.

    # ---- AttentionFusion: cat([a,b]) @ W1, gate via VPU mul + lane reduce ----
    def attn_fusion(a, b, w1_ref, b1_ref, w2row_ref, b2_ref):
        fused = jnp.concatenate([a, b], axis=-1).astype(bf16)            # (N, 2D)
        h = jnp.tanh(jnp.dot(fused, w1_ref[...], preferred_element_type=f32)
                     + b1_ref[...])                                      # (N, D)
        gate_logit = (jnp.sum(h * w2row_ref[...], axis=-1, keepdims=True)
                      + b2_ref[...])                                     # (N, 1)
        w = jax.nn.sigmoid(gate_logit)
        return w * a + (1.0 - w) * b

    dr_scr[...] = attn_fusion(dr_hgt, dr_sim_ref[...],
                              fdr_w1_ref, fdr_b1_ref, fdr_w2_ref, fdr_b2_ref)
    di_scr[...] = attn_fusion(di_hgt, di_sim_ref[...],
                              fdi_w1_ref, fdi_b1_ref, fdi_w2_ref, fdi_b2_ref)

    # ---- in-kernel gather of the sampled (drug, disease) rows ----
    a_rows = []
    b_rows = []
    for s in range(N_SAMPLE):                      # static trip count
        a_rows.append(dr_scr[pl.ds(sample_ref[s, 0], 1), :])
        b_rows.append(di_scr[pl.ds(sample_ref[s, 1], 1), :])
    a = jnp.concatenate(a_rows, axis=0)            # (N_SAMPLE, D)
    b = jnp.concatenate(b_rows, axis=0)            # (N_SAMPLE, D)

    # ---- MLP head on cat([a, b, |a-b|, a*b]); single K=4D contraction ----
    # Dropout is eval-mode identity.
    x = jnp.concatenate([a, b, jnp.abs(a - b), a * b], axis=-1).astype(bf16)
    h = jnp.maximum(jnp.dot(x, m_w1_ref[...], preferred_element_type=f32)
                    + m_b1_ref[...], 0.0)
    h = jnp.maximum(jnp.dot(h.astype(bf16), m_w2_ref[...],
                            preferred_element_type=f32) + m_b2_ref[...], 0.0)
    h = jnp.maximum(jnp.dot(h.astype(bf16), m_w3_ref[...],
                            preferred_element_type=f32) + m_b3_ref[...], 0.0)
    # Final Linear(256, 2) is stored zero-padded to (256, 128) so the store is
    # lane-dense; real logits live in columns [:2] (sliced outside the kernel).
    logits_ref[...] = (jnp.dot(h.astype(bf16), m_w4_ref[...],
                               preferred_element_type=f32) + m_b4_ref[...])


def _full_spec(shape):
    rank = len(shape)
    # index_map receives (grid_idx, sample_prefetch_ref); always block (0, ...).
    return pl.BlockSpec(shape, lambda i, sample, _r=rank: (0,) * _r)


def fused_forward(params, drug_feature, disease_feature, protein_feature,
                  dr_sim, di_sim, sample):
    mlp = params["mlp"]
    fdr = params["drug_fusion"]
    fdi = params["disease_fusion"]
    inputs = (
        drug_feature, protein_feature, disease_feature, dr_sim, di_sim,
        params["drug_w"], params["drug_b"], params["prot_w"], params["prot_b"],
        fdr["w1"], fdr["b1"], fdr["w2"], fdr["b2"],
        fdi["w1"], fdi["b1"], fdi["w2"], fdi["b2"],
        mlp["w1"], mlp["b1"], mlp["w2"], mlp["b2"],
        mlp["w3"], mlp["b3"], mlp["w4"], mlp["b4"],
    )
    out_shape = (
        jax.ShapeDtypeStruct((DRUG_N, HGT_IN), f32),          # dr_hgt (HGT stand-in)
        jax.ShapeDtypeStruct((PROT_N, HGT_IN), f32),          # projected protein feats
        jax.ShapeDtypeStruct((N_SAMPLE, MLP_OUT_PAD), f32),   # lane-padded logits
    )
    grid_spec = pltpu.PrefetchScalarGridSpec(
        num_scalar_prefetch=1,                                # `sample` -> SMEM
        grid=(1,),
        in_specs=[_full_spec(x.shape) for x in inputs],
        out_specs=[_full_spec(s.shape) for s in out_shape],
        scratch_shapes=[pltpu.VMEM((DRUG_N, GT_OUT), f32),
                        pltpu.VMEM((DIS_N, GT_OUT), f32)],
    )
    return pl.pallas_call(
        _fused_forward_kernel,
        out_shape=out_shape,
        grid_spec=grid_spec,
        compiler_params=pltpu.CompilerParams(
            dimension_semantics=("arbitrary",)),
    )(sample, *inputs)


# ----------------------------- parameter init -----------------------------
def init_params(key):
    def nrm(k, shape, dtype=f32, scale=0.05):
        return (scale * jax.random.normal(k, shape, dtype=f32)).astype(dtype)

    ks = iter(jax.random.split(key, 40))
    p = {}
    # drug_linear: 300 -> HGT_IN ; protein_linear: 320 -> HGT_IN
    p["drug_w"] = nrm(next(ks), (300, HGT_IN), bf16)
    p["drug_b"] = nrm(next(ks), (1, HGT_IN))
    p["prot_w"] = nrm(next(ks), (320, HGT_IN), bf16)
    p["prot_b"] = nrm(next(ks), (1, HGT_IN))

    def fusion_params():
        return {
            "w1": nrm(next(ks), (2 * GT_OUT, GT_OUT), bf16),  # Linear(2d, d)
            "b1": nrm(next(ks), (1, GT_OUT)),
            "w2": nrm(next(ks), (1, GT_OUT)),                 # Linear(d, 1) as row (VPU path)
            "b2": nrm(next(ks), (1, 1)),
        }

    p["drug_fusion"] = fusion_params()
    p["disease_fusion"] = fusion_params()

    # MLP: Linear(4d,1024) ReLU Drop Linear(1024,1024) ReLU Drop
    #      Linear(1024,256) ReLU Drop Linear(256,2)
    w4 = nrm(next(ks), (256, 2))
    b4 = nrm(next(ks), (1, 2))
    w4_pad = jnp.zeros((256, MLP_OUT_PAD), bf16).at[:, :2].set(w4.astype(bf16))
    b4_pad = jnp.zeros((1, MLP_OUT_PAD), f32).at[:, :2].set(b4)
    p["mlp"] = {
        "w1": nrm(next(ks), (4 * GT_OUT, 1024), bf16),        # one K=4d contraction
        "b1": nrm(next(ks), (1, 1024)),
        "w2": nrm(next(ks), (1024, 1024), bf16),
        "b2": nrm(next(ks), (1, 1024)),
        "w3": nrm(next(ks), (1024, 256), bf16),
        "b3": nrm(next(ks), (1, 256)),
        "w4": w4_pad,                                         # lane-padded (256, 128)
        "b4": b4_pad,                                         # lane-padded (1, 128)
    }
    return p


# ----------------------------- forward pass -----------------------------
def dcldr_forward(params, drug_feature, disease_feature, protein_feature,
                  dr_sim, di_sim, sample):
    dr_hgt, _prot_feat, logits_pad = fused_forward(
        params, drug_feature, disease_feature, protein_feature,
        dr_sim, di_sim, sample)
    # TODO(synk): HGT stack is a passthrough stand-in, so di_hgt == disease_feature.
    di_hgt = disease_feature
    output = logits_pad[:, :2]
    return dr_hgt, di_hgt, dr_sim, di_sim, output


# ----------------------------- main -----------------------------
if __name__ == "__main__":
    key = jax.random.PRNGKey(0)
    k_par, k_drug, k_dis, k_prot, k_drs, k_dis_s, k_s0, k_s1 = jax.random.split(key, 8)

    params = init_params(k_par)

    drug_feature = jax.random.normal(k_drug, (DRUG_N, 300), dtype=f32)
    disease_feature = jax.random.normal(k_dis, (DIS_N, HGT_IN), dtype=f32)
    protein_feature = jax.random.normal(k_prot, (PROT_N, 320), dtype=f32)

    # TODO(synk): gt_net_drug / gt_net_disease GraphTransformer over the similarity
    # graphs has no Pallas equivalent; deterministic synthetic stand-ins are used.
    dr_sim = jax.random.normal(k_drs, (DRUG_N, GT_OUT), dtype=f32)
    di_sim = jax.random.normal(k_dis_s, (DIS_N, GT_OUT), dtype=f32)

    sample = jnp.stack(
        [
            jax.random.randint(k_s0, (N_SAMPLE,), 0, DRUG_N),
            jax.random.randint(k_s1, (N_SAMPLE,), 0, DIS_N),
        ],
        axis=1,
    ).astype(jnp.int32)

    outs = dcldr_forward(params, drug_feature, disease_feature, protein_feature,
                         dr_sim, di_sim, sample)
    jax.block_until_ready(outs)

    dr_hgt, di_hgt, dr_s, di_s, logits = outs
    assert dr_hgt.shape == (DRUG_N, GT_OUT)
    assert di_hgt.shape == (DIS_N, GT_OUT)
    assert logits.shape == (N_SAMPLE, 2)
    print("KERNEL_OK")
</pallas_src>

<mosaic_0001>
module attributes {stable_mosaic.version = 11 : i64} {
  func.func @_fused_forward_kernel(%arg0: i32, %arg1: memref<8x2xi32, #tpu.memory_space<smem>>, %arg2: memref<16x300xf32, #tpu.memory_space<vmem>>, %arg3: memref<8x320xf32, #tpu.memory_space<vmem>>, %arg4: memref<16x128xf32, #tpu.memory_space<vmem>>, %arg5: memref<16x128xf32, #tpu.memory_space<vmem>>, %arg6: memref<16x128xf32, #tpu.memory_space<vmem>>, %arg7: memref<300x128xbf16, #tpu.memory_space<vmem>>, %arg8: memref<1x128xf32, #tpu.memory_space<vmem>>, %arg9: memref<320x128xbf16, #tpu.memory_space<vmem>>, %arg10: memref<1x128xf32, #tpu.memory_space<vmem>>, %arg11: memref<256x128xbf16, #tpu.memory_space<vmem>>, %arg12: memref<1x128xf32, #tpu.memory_space<vmem>>, %arg13: memref<1x128xf32, #tpu.memory_space<vmem>>, %arg14: memref<1x1xf32, #tpu.memory_space<vmem>>, %arg15: memref<256x128xbf16, #tpu.memory_space<vmem>>, %arg16: memref<1x128xf32, #tpu.memory_space<vmem>>, %arg17: memref<1x128xf32, #tpu.memory_space<vmem>>, %arg18: memref<1x1xf32, #tpu.memory_space<vmem>>, %arg19: memref<512x1024xbf16, #tpu.memory_space<vmem>>, %arg20: memref<1x1024xf32, #tpu.memory_space<vmem>>, %arg21: memref<1024x1024xbf16, #tpu.memory_space<vmem>>, %arg22: memref<1x1024xf32, #tpu.memory_space<vmem>>, %arg23: memref<1024x256xbf16, #tpu.memory_space<vmem>>, %arg24: memref<1x256xf32, #tpu.memory_space<vmem>>, %arg25: memref<256x128xbf16, #tpu.memory_space<vmem>>, %arg26: memref<1x128xf32, #tpu.memory_space<vmem>>, %arg27: memref<16x128xf32, #tpu.memory_space<vmem>>, %arg28: memref<8x128xf32, #tpu.memory_space<vmem>>, %arg29: memref<8x128xf32, #tpu.memory_space<vmem>>, %arg30: memref<16x128xf32, #tpu.memory_space<vmem>>, %arg31: memref<16x128xf32, #tpu.memory_space<vmem>>) attributes {dimension_semantics = [#tpu.dimension_semantics<arbitrary>], iteration_bounds = array<i64: 1>, scalar_prefetch = 1 : i64, scratch_operands = 2 : i64, tpu.core_type = #tpu.core_type<tc>, window_params = [{pipeline_mode = #tpu.pipeline_mode<synchronous>, transform_indices = @transform_0, window_bounds = array<i64: 16, 300>}, {pipeline_mode = #tpu.pipeline_mode<synchronous>, transform_indices = @transform_1, window_bounds = array<i64: 8, 320>}, {pipeline_mode = #tpu.pipeline_mode<synchronous>, transform_indices = @transform_2, window_bounds = array<i64: 16, 128>}, {pipeline_mode = #tpu.pipeline_mode<synchronous>, transform_indices = @transform_3, window_bounds = array<i64: 16, 128>}, {pipeline_mode = #tpu.pipeline_mode<synchronous>, transform_indices = @transform_4, window_bounds = array<i64: 16, 128>}, {pipeline_mode = #tpu.pipeline_mode<synchronous>, transform_indices = @transform_5, window_bounds = array<i64: 300, 128>}, {pipeline_mode = #tpu.pipeline_mode<synchronous>, transform_indices = @transform_6, window_bounds = array<i64: 1, 128>}, {pipeline_mode = #tpu.pipeline_mode<synchronous>, transform_indices = @transform_7, window_bounds = array<i64: 320, 128>}, {pipeline_mode = #tpu.pipeline_mode<synchronous>, transform_indices = @transform_8, window_bounds = array<i64: 1, 128>}, {pipeline_mode = #tpu.pipeline_mode<synchronous>, transform_indices = @transform_9, window_bounds = array<i64: 256, 128>}, {pipeline_mode = #tpu.pipeline_mode<synchronous>, transform_indices = @transform_10, window_bounds = array<i64: 1, 128>}, {pipeline_mode = #tpu.pipeline_mode<synchronous>, transform_indices = @transform_11, window_bounds = array<i64: 1, 128>}, {pipeline_mode = #tpu.pipeline_mode<synchronous>, transform_indices = @transform_12, window_bounds = array<i64: 1, 1>}, {pipeline_mode = #tpu.pipeline_mode<synchronous>, transform_indices = @transform_13, window_bounds = array<i64: 256, 128>}, {pipeline_mode = #tpu.pipeline_mode<synchronous>, transform_indices = @transform_14, window_bounds = array<i64: 1, 128>}, {pipeline_mode = #tpu.pipeline_mode<synchronous>, transform_indices = @transform_15, window_bounds = array<i64: 1, 128>}, {pipeline_mode = #tpu.pipeline_mode<synchronous>, transform_indices = @transform_16, window_bounds = array<i64: 1, 1>}, {pipeline_mode = #tpu.pipeline_mode<synchronous>, transform_indices = @transform_17, window_bounds = array<i64: 512, 1024>}, {pipeline_mode = #tpu.pipeline_mode<synchronous>, transform_indices = @transform_18, window_bounds = array<i64: 1, 1024>}, {pipeline_mode = #tpu.pipeline_mode<synchronous>, transform_indices = @transform_19, window_bounds = array<i64: 1024, 1024>}, {pipeline_mode = #tpu.pipeline_mode<synchronous>, transform_indices = @transform_20, window_bounds = array<i64: 1, 1024>}, {pipeline_mode = #tpu.pipeline_mode<synchronous>, transform_indices = @transform_21, window_bounds = array<i64: 1024, 256>}, {pipeline_mode = #tpu.pipeline_mode<synchronous>, transform_indices = @transform_22, window_bounds = array<i64: 1, 256>}, {pipeline_mode = #tpu.pipeline_mode<synchronous>, transform_indices = @transform_23, window_bounds = array<i64: 256, 128>}, {pipeline_mode = #tpu.pipeline_mode<synchronous>, transform_indices = @transform_24, window_bounds = array<i64: 1, 128>}, {pipeline_mode = #tpu.pipeline_mode<synchronous>, transform_indices = @transform_25, window_bounds = array<i64: 16, 128>}, {pipeline_mode = #tpu.pipeline_mode<synchronous>, transform_indices = @transform_26, window_bounds = array<i64: 8, 128>}, {pipeline_mode = #tpu.pipeline_mode<synchronous>, transform_indices = @transform_27, window_bounds = array<i64: 8, 128>}]} {
    %c0 = arith.constant 0 : index
    %c0_0 = arith.constant 0 : index
    %0 = vector.load %arg2[%c0, %c0_0] : memref<16x300xf32, #tpu.memory_space<vmem>>, vector<16x300xf32>
    %1 = arith.truncf %0 : vector<16x300xf32> to vector<16x300xbf16>
    %c0_1 = arith.constant 0 : index
    %c0_2 = arith.constant 0 : index
    %2 = vector.load %arg7[%c0_1, %c0_2] : memref<300x128xbf16, #tpu.memory_space<vmem>>, vector<300x128xbf16>
    %cst = arith.constant dense<0.000000e+00> : vector<16x128xf32>
    %3 = tpu.matmul %1, %2, %cst {dimension_numbers = #tpu.dot_dimension_numbers<[1], [0], [0], [1], [0, 0, 1, 1], [], []>} : vector<16x300xbf16>, vector<300x128xbf16>, vector<16x128xf32> -> vector<16x128xf32>
    %c0_3 = arith.constant 0 : index
    %c0_4 = arith.constant 0 : index
    %4 = vector.load %arg8[%c0_3, %c0_4] : memref<1x128xf32, #tpu.memory_space<vmem>>, vector<1x128xf32>
    %5 = vector.broadcast %4 : vector<1x128xf32> to vector<16x128xf32>
    %6 = arith.addf %3, %5 : vector<16x128xf32>
    %c0_5 = arith.constant 0 : index
    %c0_6 = arith.constant 0 : index
    %7 = vector.load %arg3[%c0_5, %c0_6] : memref<8x320xf32, #tpu.memory_space<vmem>>, vector<8x320xf32>
    %8 = arith.truncf %7 : vector<8x320xf32> to vector<8x320xbf16>
    %c0_7 = arith.constant 0 : index
    %c0_8 = arith.constant 0 : index
    %9 = vector.load %arg9[%c0_7, %c0_8] : memref<320x128xbf16, #tpu.memory_space<vmem>>, vector<320x128xbf16>
    %cst_9 = arith.constant dense<0.000000e+00> : vector<8x128xf32>
    %10 = tpu.matmul %8, %9, %cst_9 {dimension_numbers = #tpu.dot_dimension_numbers<[1], [0], [0], [1], [0, 0, 1, 1], [], []>} : vector<8x320xbf16>, vector<320x128xbf16>, vector<8x128xf32> -> vector<8x128xf32>
    %c0_10 = arith.constant 0 : index
    %c0_11 = arith.constant 0 : index
    %11 = vector.load %arg10[%c0_10, %c0_11] : memref<1x128xf32, #tpu.memory_space<vmem>>, vector<1x128xf32>
    %12 = vector.broadcast %11 : vector<1x128xf32> to vector<8x128xf32>
    %13 = arith.addf %10, %12 : vector<8x128xf32>
    %c0_12 = arith.constant 0 : index
    %c0_13 = arith.constant 0 : index
    %14 = vector.load %arg27[%c0_12, %c0_13] : memref<16x128xf32, #tpu.memory_space<vmem>>, vector<16x128xf32>
    tpu.vector_store %arg27[%c0_12, %c0_13], %6 {strides = array<i32>} : memref<16x128xf32, #tpu.memory_space<vmem>>, vector<16x128xf32>,
    %c0_14 = arith.constant 0 : index
    %c0_15 = arith.constant 0 : index
    %15 = vector.load %arg28[%c0_14, %c0_15] : memref<8x128xf32, #tpu.memory_space<vmem>>, vector<8x128xf32>
    tpu.vector_store %arg28[%c0_14, %c0_15], %13 {strides = array<i32>} : memref<8x128xf32, #tpu.memory_space<vmem>>, vector<8x128xf32>,
    %c0_16 = arith.constant 0 : index
    %c0_17 = arith.constant 0 : index
    %16 = vector.load %arg4[%c0_16, %c0_17] : memref<16x128xf32, #tpu.memory_space<vmem>>, vector<16x128xf32>
    %c0_18 = arith.constant 0 : index
    %c0_19 = arith.constant 0 : index
    %17 = vector.load %arg5[%c0_18, %c0_19] : memref<16x128xf32, #tpu.memory_space<vmem>>, vector<16x128xf32>
    %18 = tpu.concatenate %6, %17 in 1 : vector<16x128xf32>, vector<16x128xf32> -> vector<16x256xf32>
    %19 = arith.truncf %18 : vector<16x256xf32> to vector<16x256xbf16>
    %c0_20 = arith.constant 0 : index
    %c0_21 = arith.constant 0 : index
    %20 = vector.load %arg11[%c0_20, %c0_21] : memref<256x128xbf16, #tpu.memory_space<vmem>>, vector<256x128xbf16>
    %cst_22 = arith.constant dense<0.000000e+00> : vector<16x128xf32>
    %21 = tpu.matmul %19, %20, %cst_22 {dimension_numbers = #tpu.dot_dimension_numbers<[1], [0], [0], [1], [0, 0, 1, 1], [], []>} : vector<16x256xbf16>, vector<256x128xbf16>, vector<16x128xf32> -> vector<16x128xf32>
    %c0_23 = arith.constant 0 : index
    %c0_24 = arith.constant 0 : index
    %22 = vector.load %arg12[%c0_23, %c0_24] : memref<1x128xf32, #tpu.memory_space<vmem>>, vector<1x128xf32>
    %23 = vector.broadcast %22 : vector<1x128xf32> to vector<16x128xf32>
    %24 = arith.addf %21, %23 : vector<16x128xf32>
    %25 = math.tanh %24 : vector<16x128xf32>
    %c0_25 = arith.constant 0 : index
    %c0_26 = arith.constant 0 : index
    %26 = vector.load %arg13[%c0_25, %c0_26] : memref<1x128xf32, #tpu.memory_space<vmem>>, vector<1x128xf32>
    %27 = vector.broadcast %26 : vector<1x128xf32> to vector<16x128xf32>
    %28 = arith.mulf %25, %27 : vector<16x128xf32>
    %cst_27 = arith.constant dense<0.000000e+00> : vector<16xf32>
    %29 = vector.multi_reduction <add>, %28, %cst_27 [1] : vector<16x128xf32> to vector<16xf32>
    %30 = vector.shape_cast %29 : vector<16xf32> to vector<16x1xf32>
    %c0_28 = arith.constant 0 : index
    %c0_29 = arith.constant 0 : index
    %31 = vector.load %arg14[%c0_28, %c0_29] : memref<1x1xf32, #tpu.memory_space<vmem>>, vector<1x1xf32>
    %32 = vector.broadcast %31 : vector<1x1xf32> to vector<16x1xf32>
    %33 = arith.addf %30, %32 : vector<16x1xf32>
    %34 = arith.negf %33 : vector<16x1xf32>
    %35 = math.exp %34 : vector<16x1xf32>
    %cst_30 = arith.constant 1.000000e+00 : f32
    %36 = vector.broadcast %cst_30 : f32 to vector<16x1xf32>
    %37 = arith.addf %36, %35 : vector<16x1xf32>
    %38 = arith.divf %36, %37 : vector<16x1xf32>
    %39 = vector.broadcast %38 : vector<16x1xf32> to vector<16x128xf32>
    %40 = arith.mulf %39, %6 : vector<16x128xf32>
    %cst_31 = arith.constant 1.000000e+00 : f32
    %41 = vector.broadcast %cst_31 : f32 to vector<16x1xf32>
    %42 = arith.subf %41, %38 : vector<16x1xf32>
    %43 = vector.broadcast %42 : vector<16x1xf32> to vector<16x128xf32>
    %44 = arith.mulf %43, %17 : vector<16x128xf32>
    %45 = arith.addf %40, %44 : vector<16x128xf32>
    %c0_32 = arith.constant 0 : index
    %c0_33 = arith.constant 0 : index
    %46 = vector.load %arg30[%c0_32, %c0_33] : memref<16x128xf32, #tpu.memory_space<vmem>>, vector<16x128xf32>
    tpu.vector_store %arg30[%c0_32, %c0_33], %45 {strides = array<i32>} : memref<16x128xf32, #tpu.memory_space<vmem>>, vector<16x128xf32>,
    %c0_34 = arith.constant 0 : index
    %c0_35 = arith.constant 0 : index
    %47 = vector.load %arg6[%c0_34, %c0_35] : memref<16x128xf32, #tpu.memory_space<vmem>>, vector<16x128xf32>
    %48 = tpu.concatenate %16, %47 in 1 : vector<16x128xf32>, vector<16x128xf32> -> vector<16x256xf32>
    %49 = arith.truncf %48 : vector<16x256xf32> to vector<16x256xbf16>
    %c0_36 = arith.constant 0 : index
    %c0_37 = arith.constant 0 : index
    %50 = vector.load %arg15[%c0_36, %c0_37] : memref<256x128xbf16, #tpu.memory_space<vmem>>, vector<256x128xbf16>
    %cst_38 = arith.constant dense<0.000000e+00> : vector<16x128xf32>
    %51 = tpu.matmul %49, %50, %cst_38 {dimension_numbers = #tpu.dot_dimension_numbers<[1], [0], [0], [1], [0, 0, 1, 1], [], []>} : vector<16x256xbf16>, vector<256x128xbf16>, vector<16x128xf32> -> vector<16x128xf32>
    %c0_39 = arith.constant 0 : index
    %c0_40 = arith.constant 0 : index
    %52 = vector.load %arg16[%c0_39, %c0_40] : memref<1x128xf32, #tpu.memory_space<vmem>>, vector<1x128xf32>
    %53 = vector.broadcast %52 : vector<1x128xf32> to vector<16x128xf32>
    %54 = arith.addf %51, %53 : vector<16x128xf32>
    %55 = math.tanh %54 : vector<16x128xf32>
    %c0_41 = arith.constant 0 : index
    %c0_42 = arith.constant 0 : index
    %56 = vector.load %arg17[%c0_41, %c0_42] : memref<1x128xf32, #tpu.memory_space<vmem>>, vector<1x128xf32>
    %57 = vector.broadcast %56 : vector<1x128xf32> to vector<16x128xf32>
    %58 = arith.mulf %55, %57 : vector<16x128xf32>
    %cst_43 = arith.constant dense<0.000000e+00> : vector<16xf32>
    %59 = vector.multi_reduction <add>, %58, %cst_43 [1] : vector<16x128xf32> to vector<16xf32>
    %60 = vector.shape_cast %59 : vector<16xf32> to vector<16x1xf32>
    %c0_44 = arith.constant 0 : index
    %c0_45 = arith.constant 0 : index
    %61 = vector.load %arg18[%c0_44, %c0_45] : memref<1x1xf32, #tpu.memory_space<vmem>>, vector<1x1xf32>
    %62 = vector.broadcast %61 : vector<1x1xf32> to vector<16x1xf32>
    %63 = arith.addf %60, %62 : vector<16x1xf32>
    %64 = arith.negf %63 : vector<16x1xf32>
    %65 = math.exp %64 : vector<16x1xf32>
    %cst_46 = arith.constant 1.000000e+00 : f32
    %66 = vector.broadcast %cst_46 : f32 to vector<16x1xf32>
    %67 = arith.addf %66, %65 : vector<16x1xf32>
    %68 = arith.divf %66, %67 : vector<16x1xf32>
    %69 = vector.broadcast %68 : vector<16x1xf32> to vector<16x128xf32>
    %70 = arith.mulf %69, %16 : vector<16x128xf32>
    %cst_47 = arith.constant 1.000000e+00 : f32
    %71 = vector.broadcast %cst_47 : f32 to vector<16x1xf32>
    %72 = arith.subf %71, %68 : vector<16x1xf32>
    %73 = vector.broadcast %72 : vector<16x1xf32> to vector<16x128xf32>
    %74 = arith.mulf %73, %47 : vector<16x128xf32>
    %75 = arith.addf %70, %74 : vector<16x128xf32>
    %c0_48 = arith.constant 0 : index
    %c0_49 = arith.constant 0 : index
    %76 = vector.load %arg31[%c0_48, %c0_49] : memref<16x128xf32, #tpu.memory_space<vmem>>, vector<16x128xf32>
    tpu.vector_store %arg31[%c0_48, %c0_49], %75 {strides = array<i32>} : memref<16x128xf32, #tpu.memory_space<vmem>>, vector<16x128xf32>,
    %c0_50 = arith.constant 0 : index
    %c0_51 = arith.constant 0 : index
    %77 = memref.load %arg1[%c0_50, %c0_51] : memref<8x2xi32, #tpu.memory_space<smem>>
    %78 = arith.index_cast %77 : i32 to index
    %c0_52 = arith.constant 0 : index
    %79 = vector.load %arg30[%78, %c0_52] : memref<16x128xf32, #tpu.memory_space<vmem>>, vector<1x128xf32>
    %c0_53 = arith.constant 0 : index
    %c1 = arith.constant 1 : index
    %80 = memref.load %arg1[%c0_53, %c1] : memref<8x2xi32, #tpu.memory_space<smem>>
    %81 = arith.index_cast %80 : i32 to index
    %c0_54 = arith.constant 0 : index
    %82 = vector.load %arg31[%81, %c0_54] : memref<16x128xf32, #tpu.memory_space<vmem>>, vector<1x128xf32>
    %c1_55 = arith.constant 1 : index
    %c0_56 = arith.constant 0 : index
    %83 = memref.load %arg1[%c1_55, %c0_56] : memref<8x2xi32, #tpu.memory_space<smem>>
    %84 = arith.index_cast %83 : i32 to index
    %c0_57 = arith.constant 0 : index
    %85 = vector.load %arg30[%84, %c0_57] : memref<16x128xf32, #tpu.memory_space<vmem>>, vector<1x128xf32>
    %c1_58 = arith.constant 1 : index
    %c1_59 = arith.constant 1 : index
    %86 = memref.load %arg1[%c1_58, %c1_59] : memref<8x2xi32, #tpu.memory_space<smem>>
    %87 = arith.index_cast %86 : i32 to index
    %c0_60 = arith.constant 0 : index
    %88 = vector.load %arg31[%87, %c0_60] : memref<16x128xf32, #tpu.memory_space<vmem>>, vector<1x128xf32>
    %c2 = arith.constant 2 : index
    %c0_61 = arith.constant 0 : index
    %89 = memref.load %arg1[%c2, %c0_61] : memref<8x2xi32, #tpu.memory_space<smem>>
    %90 = arith.index_cast %89 : i32 to index
    %c0_62 = arith.constant 0 : index
    %91 = vector.load %arg30[%90, %c0_62] : memref<16x128xf32, #tpu.memory_space<vmem>>, vector<1x128xf32>
    %c2_63 = arith.constant 2 : index
    %c1_64 = arith.constant 1 : index
    %92 = memref.load %arg1[%c2_63, %c1_64] : memref<8x2xi32, #tpu.memory_space<smem>>
    %93 = arith.index_cast %92 : i32 to index
    %c0_65 = arith.constant 0 : index
    %94 = vector.load %arg31[%93, %c0_65] : memref<16x128xf32, #tpu.memory_space<vmem>>, vector<1x128xf32>
    %c3 = arith.constant 3 : index
    %c0_66 = arith.constant 0 : index
    %95 = memref.load %arg1[%c3, %c0_66] : memref<8x2xi32, #tpu.memory_space<smem>>
    %96 = arith.index_cast %95 : i32 to index
    %c0_67 = arith.constant 0 : index
    %97 = vector.load %arg30[%96, %c0_67] : memref<16x128xf32, #tpu.memory_space<vmem>>, vector<1x128xf32>
    %c3_68 = arith.constant 3 : index
    %c1_69 = arith.constant 1 : index
    %98 = memref.load %arg1[%c3_68, %c1_69] : memref<8x2xi32, #tpu.memory_space<smem>>
    %99 = arith.index_cast %98 : i32 to index
    %c0_70 = arith.constant 0 : index
    %100 = vector.load %arg31[%99, %c0_70] : memref<16x128xf32, #tpu.memory_space<vmem>>, vector<1x128xf32>
    %c4 = arith.constant 4 : index
    %c0_71 = arith.constant 0 : index
    %101 = memref.load %arg1[%c4, %c0_71] : memref<8x2xi32, #tpu.memory_space<smem>>
    %102 = arith.index_cast %101 : i32 to index
    %c0_72 = arith.constant 0 : index
    %103 = vector.load %arg30[%102, %c0_72] : memref<16x128xf32, #tpu.memory_space<vmem>>, vector<1x128xf32>
    %c4_73 = arith.constant 4 : index
    %c1_74 = arith.constant 1 : index
    %104 = memref.load %arg1[%c4_73, %c1_74] : memref<8x2xi32, #tpu.memory_space<smem>>
    %105 = arith.index_cast %104 : i32 to index
    %c0_75 = arith.constant 0 : index
    %106 = vector.load %arg31[%105, %c0_75] : memref<16x128xf32, #tpu.memory_space<vmem>>, vector<1x128xf32>
    %c5 = arith.constant 5 : index
    %c0_76 = arith.constant 0 : index
    %107 = memref.load %arg1[%c5, %c0_76] : memref<8x2xi32, #tpu.memory_space<smem>>
    %108 = arith.index_cast %107 : i32 to index
    %c0_77 = arith.constant 0 : index
    %109 = vector.load %arg30[%108, %c0_77] : memref<16x128xf32, #tpu.memory_space<vmem>>, vector<1x128xf32>
    %c5_78 = arith.constant 5 : index
    %c1_79 = arith.constant 1 : index
    %110 = memref.load %arg1[%c5_78, %c1_79] : memref<8x2xi32, #tpu.memory_space<smem>>
    %111 = arith.index_cast %110 : i32 to index
    %c0_80 = arith.constant 0 : index
    %112 = vector.load %arg31[%111, %c0_80] : memref<16x128xf32, #tpu.memory_space<vmem>>, vector<1x128xf32>
    %c6 = arith.constant 6 : index
    %c0_81 = arith.constant 0 : index
    %113 = memref.load %arg1[%c6, %c0_81] : memref<8x2xi32, #tpu.memory_space<smem>>
    %114 = arith.index_cast %113 : i32 to index
    %c0_82 = arith.constant 0 : index
    %115 = vector.load %arg30[%114, %c0_82] : memref<16x128xf32, #tpu.memory_space<vmem>>, vector<1x128xf32>
    %c6_83 = arith.constant 6 : index
    %c1_84 = arith.constant 1 : index
    %116 = memref.load %arg1[%c6_83, %c1_84] : memref<8x2xi32, #tpu.memory_space<smem>>
    %117 = arith.index_cast %116 : i32 to index
    %c0_85 = arith.constant 0 : index
    %118 = vector.load %arg31[%117, %c0_85] : memref<16x128xf32, #tpu.memory_space<vmem>>, vector<1x128xf32>
    %c7 = arith.constant 7 : index
    %c0_86 = arith.constant 0 : index
    %119 = memref.load %arg1[%c7, %c0_86] : memref<8x2xi32, #tpu.memory_space<smem>>
    %120 = arith.index_cast %119 : i32 to index
    %c0_87 = arith.constant 0 : index
    %121 = vector.load %arg30[%120, %c0_87] : memref<16x128xf32, #tpu.memory_space<vmem>>, vector<1x128xf32>
    %c7_88 = arith.constant 7 : index
    %c1_89 = arith.constant 1 : index
    %122 = memref.load %arg1[%c7_88, %c1_89] : memref<8x2xi32, #tpu.memory_space<smem>>
    %123 = arith.index_cast %122 : i32 to index
    %c0_90 = arith.constant 0 : index
    %124 = vector.load %arg31[%123, %c0_90] : memref<16x128xf32, #tpu.memory_space<vmem>>, vector<1x128xf32>
    %125 = tpu.concatenate %79, %85, %91, %97, %103, %109, %115, %121 in 0 : vector<1x128xf32>, vector<1x128xf32>, vector<1x128xf32>, vector<1x128xf32>, vector<1x128xf32>, vector<1x128xf32>, vector<1x128xf32>, vector<1x128xf32> -> vector<8x128xf32>
    %126 = tpu.concatenate %82, %88, %94, %100, %106, %112, %118, %124 in 0 : vector<1x128xf32>, vector<1x128xf32>, vector<1x128xf32>, vector<1x128xf32>, vector<1x128xf32>, vector<1x128xf32>, vector<1x128xf32>, vector<1x128xf32> -> vector<8x128xf32>
    %127 = arith.subf %125, %126 : vector<8x128xf32>
    %128 = math.absf %127 : vector<8x128xf32>
    %129 = arith.mulf %125, %126 : vector<8x128xf32>
    %130 = tpu.concatenate %125, %126, %128, %129 in 1 : vector<8x128xf32>, vector<8x128xf32>, vector<8x128xf32>, vector<8x128xf32> -> vector<8x512xf32>
    %131 = arith.truncf %130 : vector<8x512xf32> to vector<8x512xbf16>
    %c0_91 = arith.constant 0 : index
    %c0_92 = arith.constant 0 : index
    %132 = vector.load %arg19[%c0_91, %c0_92] : memref<512x1024xbf16, #tpu.memory_space<vmem>>, vector<512x1024xbf16>
    %cst_93 = arith.constant dense<0.000000e+00> : vector<8x1024xf32>
    %133 = tpu.matmul %131, %132, %cst_93 {dimension_numbers = #tpu.dot_dimension_numbers<[1], [0], [0], [1], [0, 0, 1, 1], [], []>} : vector<8x512xbf16>, vector<512x1024xbf16>, vector<8x1024xf32> -> vector<8x1024xf32>
    %c0_94 = arith.constant 0 : index
    %c0_95 = arith.constant 0 : index
    %134 = vector.load %arg20[%c0_94, %c0_95] : memref<1x1024xf32, #tpu.memory_space<vmem>>, vector<1x1024xf32>
    %135 = vector.broadcast %134 : vector<1x1024xf32> to vector<8x1024xf32>
    %136 = arith.addf %133, %135 : vector<8x1024xf32>
    %cst_96 = arith.constant 0.000000e+00 : f32
    %137 = vector.broadcast %cst_96 : f32 to vector<8x1024xf32>
    %138 = arith.maximumf %136, %137 : vector<8x1024xf32>
    %139 = arith.truncf %138 : vector<8x1024xf32> to vector<8x1024xbf16>
    %c0_97 = arith.constant 0 : index
    %c0_98 = arith.constant 0 : index
    %140 = vector.load %arg21[%c0_97, %c0_98] : memref<1024x1024xbf16, #tpu.memory_space<vmem>>, vector<1024x1024xbf16>
    %cst_99 = arith.constant dense<0.000000e+00> : vector<8x1024xf32>
    %141 = tpu.matmul %139, %140, %cst_99 {dimension_numbers = #tpu.dot_dimension_numbers<[1], [0], [0], [1], [0, 0, 1, 1], [], []>} : vector<8x1024xbf16>, vector<1024x1024xbf16>, vector<8x1024xf32> -> vector<8x1024xf32>
    %c0_100 = arith.constant 0 : index
    %c0_101 = arith.constant 0 : index
    %142 = vector.load %arg22[%c0_100, %c0_101] : memref<1x1024xf32, #tpu.memory_space<vmem>>, vector<1x1024xf32>
    %143 = vector.broadcast %142 : vector<1x1024xf32> to vector<8x1024xf32>
    %144 = arith.addf %141, %143 : vector<8x1024xf32>
    %cst_102 = arith.constant 0.000000e+00 : f32
    %145 = vector.broadcast %cst_102 : f32 to vector<8x1024xf32>
    %146 = arith.maximumf %144, %145 : vector<8x1024xf32>
    %147 = arith.truncf %146 : vector<8x1024xf32> to vector<8x1024xbf16>
    %c0_103 = arith.constant 0 : index
    %c0_104 = arith.constant 0 : index
    %148 = vector.load %arg23[%c0_103, %c0_104] : memref<1024x256xbf16, #tpu.memory_space<vmem>>, vector<1024x256xbf16>
    %cst_105 = arith.constant dense<0.000000e+00> : vector<8x256xf32>
    %149 = tpu.matmul %147, %148, %cst_105 {dimension_numbers = #tpu.dot_dimension_numbers<[1], [0], [0], [1], [0, 0, 1, 1], [], []>} : vector<8x1024xbf16>, vector<1024x256xbf16>, vector<8x256xf32> -> vector<8x256xf32>
    %c0_106 = arith.constant 0 : index
    %c0_107 = arith.constant 0 : index
    %150 = vector.load %arg24[%c0_106, %c0_107] : memref<1x256xf32, #tpu.memory_space<vmem>>, vector<1x256xf32>
    %151 = vector.broadcast %150 : vector<1x256xf32> to vector<8x256xf32>
    %152 = arith.addf %149, %151 : vector<8x256xf32>
    %cst_108 = arith.constant 0.000000e+00 : f32
    %153 = vector.broadcast %cst_108 : f32 to vector<8x256xf32>
    %154 = arith.maximumf %152, %153 : vector<8x256xf32>
    %155 = arith.truncf %154 : vector<8x256xf32> to vector<8x256xbf16>
    %c0_109 = arith.constant 0 : index
    %c0_110 = arith.constant 0 : index
    %156 = vector.load %arg25[%c0_109, %c0_110] : memref<256x128xbf16, #tpu.memory_space<vmem>>, vector<256x128xbf16>
    %cst_111 = arith.constant dense<0.000000e+00> : vector<8x128xf32>
    %157 = tpu.matmul %155, %156, %cst_111 {dimension_numbers = #tpu.dot_dimension_numbers<[1], [0], [0], [1], [0, 0, 1, 1], [], []>} : vector<8x256xbf16>, vector<256x128xbf16>, vector<8x128xf32> -> vector<8x128xf32>
    %c0_112 = arith.constant 0 : index
    %c0_113 = arith.constant 0 : index
    %158 = vector.load %arg26[%c0_112, %c0_113] : memref<1x128xf32, #tpu.memory_space<vmem>>, vector<1x128xf32>
    %159 = vector.broadcast %158 : vector<1x128xf32> to vector<8x128xf32>
    %160 = arith.addf %157, %159 : vector<8x128xf32>
    %c0_114 = arith.constant 0 : index
    %c0_115 = arith.constant 0 : index
    %161 = vector.load %arg29[%c0_114, %c0_115] : memref<8x128xf32, #tpu.memory_space<vmem>>, vector<8x128xf32>
    tpu.vector_store %arg29[%c0_114, %c0_115], %160 {strides = array<i32>} : memref<8x128xf32, #tpu.memory_space<vmem>>, vector<8x128xf32>,
    return
  }
  func.func @transform_0(%arg0: i32, %arg1: memref<8x2xi32, #tpu.memory_space<smem>>) -> (i32, i32) {
    %c0_i32 = arith.constant 0 : i32
    %c0_i32_0 = arith.constant 0 : i32
    %c0_i32_1 = arith.constant 0 : i32
    return %c0_i32, %c0_i32_0 : i32, i32
  }
  func.func @transform_1(%arg0: i32, %arg1: memref<8x2xi32, #tpu.memory_space<smem>>) -> (i32, i32) {
    %c0_i32 = arith.constant 0 : i32
    %c0_i32_0 = arith.constant 0 : i32
    %c0_i32_1 = arith.constant 0 : i32
    return %c0_i32, %c0_i32_0 : i32, i32
  }
  func.func @transform_2(%arg0: i32, %arg1: memref<8x2xi32, #tpu.memory_space<smem>>) -> (i32, i32) {
    %c0_i32 = arith.constant 0 : i32
    %c0_i32_0 = arith.constant 0 : i32
    %c0_i32_1 = arith.constant 0 : i32
    return %c0_i32, %c0_i32_0 : i32, i32
  }
  func.func @transform_3(%arg0: i32, %arg1: memref<8x2xi32, #tpu.memory_space<smem>>) -> (i32, i32) {
    %c0_i32 = arith.constant 0 : i32
    %c0_i32_0 = arith.constant 0 : i32
    %c0_i32_1 = arith.constant 0 : i32
    return %c0_i32, %c0_i32_0 : i32, i32
  }
  func.func @transform_4(%arg0: i32, %arg1: memref<8x2xi32, #tpu.memory_space<smem>>) -> (i32, i32) {
    %c0_i32 = arith.constant 0 : i32
    %c0_i32_0 = arith.constant 0 : i32
    %c0_i32_1 = arith.constant 0 : i32
    return %c0_i32, %c0_i32_0 : i32, i32
  }
  func.func @transform_5(%arg0: i32, %arg1: memref<8x2xi32, #tpu.memory_space<smem>>) -> (i32, i32) {
    %c0_i32 = arith.constant 0 : i32
    %c0_i32_0 = arith.constant 0 : i32
    %c0_i32_1 = arith.constant 0 : i32
    return %c0_i32, %c0_i32_0 : i32, i32
  }
  func.func @transform_6(%arg0: i32, %arg1: memref<8x2xi32, #tpu.memory_space<smem>>) -> (i32, i32) {
    %c0_i32 = arith.constant 0 : i32
    %c0_i32_0 = arith.constant 0 : i32
    %c0_i32_1 = arith.constant 0 : i32
    return %c0_i32, %c0_i32_0 : i32, i32
  }
  func.func @transform_7(%arg0: i32, %arg1: memref<8x2xi32, #tpu.memory_space<smem>>) -> (i32, i32) {
    %c0_i32 = arith.constant 0 : i32
    %c0_i32_0 = arith.constant 0 : i32
    %c0_i32_1 = arith.constant 0 : i32
    return %c0_i32, %c0_i32_0 : i32, i32
  }
  func.func @transform_8(%arg0: i32, %arg1: memref<8x2xi32, #tpu.memory_space<smem>>) -> (i32, i32) {
    %c0_i32 = arith.constant 0 : i32
    %c0_i32_0 = arith.constant 0 : i32
    %c0_i32_1 = arith.constant 0 : i32
    return %c0_i32, %c0_i32_0 : i32, i32
  }
  func.func @transform_9(%arg0: i32, %arg1: memref<8x2xi32, #tpu.memory_space<smem>>) -> (i32, i32) {
    %c0_i32 = arith.constant 0 : i32
    %c0_i32_0 = arith.constant 0 : i32
    %c0_i32_1 = arith.constant 0 : i32
    return %c0_i32, %c0_i32_0 : i32, i32
  }
  func.func @transform_10(%arg0: i32, %arg1: memref<8x2xi32, #tpu.memory_space<smem>>) -> (i32, i32) {
    %c0_i32 = arith.constant 0 : i32
    %c0_i32_0 = arith.constant 0 : i32
    %c0_i32_1 = arith.constant 0 : i32
    return %c0_i32, %c0_i32_0 : i32, i32
  }
  func.func @transform_11(%arg0: i32, %arg1: memref<8x2xi32, #tpu.memory_space<smem>>) -> (i32, i32) {
    %c0_i32 = arith.constant 0 : i32
    %c0_i32_0 = arith.constant 0 : i32
    %c0_i32_1 = arith.constant 0 : i32
    return %c0_i32, %c0_i32_0 : i32, i32
  }
  func.func @transform_12(%arg0: i32, %arg1: memref<8x2xi32, #tpu.memory_space<smem>>) -> (i32, i32) {
    %c0_i32 = arith.constant 0 : i32
    %c0_i32_0 = arith.constant 0 : i32
    %c0_i32_1 = arith.constant 0 : i32
    return %c0_i32, %c0_i32_0 : i32, i32
  }
  func.func @transform_13(%arg0: i32, %arg1: memref<8x2xi32, #tpu.memory_space<smem>>) -> (i32, i32) {
    %c0_i32 = arith.constant 0 : i32
    %c0_i32_0 = arith.constant 0 : i32
    %c0_i32_1 = arith.constant 0 : i32
    return %c0_i32, %c0_i32_0 : i32, i32
  }
  func.func @transform_14(%arg0: i32, %arg1: memref<8x2xi32, #tpu.memory_space<smem>>) -> (i32, i32) {
    %c0_i32 = arith.constant 0 : i32
    %c0_i32_0 = arith.constant 0 : i32
    %c0_i32_1 = arith.constant 0 : i32
    return %c0_i32, %c0_i32_0 : i32, i32
  }
  func.func @transform_15(%arg0: i32, %arg1: memref<8x2xi32, #tpu.memory_space<smem>>) -> (i32, i32) {
    %c0_i32 = arith.constant 0 : i32
    %c0_i32_0 = arith.constant 0 : i32
    %c0_i32_1 = arith.constant 0 : i32
    return %c0_i32, %c0_i32_0 : i32, i32
  }
  func.func @transform_16(%arg0: i32, %arg1: memref<8x2xi32, #tpu.memory_space<smem>>) -> (i32, i32) {
    %c0_i32 = arith.constant 0 : i32
    %c0_i32_0 = arith.constant 0 : i32
    %c0_i32_1 = arith.constant 0 : i32
    return %c0_i32, %c0_i32_0 : i32, i32
  }
  func.func @transform_17(%arg0: i32, %arg1: memref<8x2xi32, #tpu.memory_space<smem>>) -> (i32, i32) {
    %c0_i32 = arith.constant 0 : i32
    %c0_i32_0 = arith.constant 0 : i32
    %c0_i32_1 = arith.constant 0 : i32
    return %c0_i32, %c0_i32_0 : i32, i32
  }
  func.func @transform_18(%arg0: i32, %arg1: memref<8x2xi32, #tpu.memory_space<smem>>) -> (i32, i32) {
    %c0_i32 = arith.constant 0 : i32
    %c0_i32_0 = arith.constant 0 : i32
    %c0_i32_1 = arith.constant 0 : i32
    return %c0_i32, %c0_i32_0 : i32, i32
  }
  func.func @transform_19(%arg0: i32, %arg1: memref<8x2xi32, #tpu.memory_space<smem>>) -> (i32, i32) {
    %c0_i32 = arith.constant 0 : i32
    %c0_i32_0 = arith.constant 0 : i32
    %c0_i32_1 = arith.constant 0 : i32
    return %c0_i32, %c0_i32_0 : i32, i32
  }
  func.func @transform_20(%arg0: i32, %arg1: memref<8x2xi32, #tpu.memory_space<smem>>) -> (i32, i32) {
    %c0_i32 = arith.constant 0 : i32
    %c0_i32_0 = arith.constant 0 : i32
    %c0_i32_1 = arith.constant 0 : i32
    return %c0_i32, %c0_i32_0 : i32, i32
  }
  func.func @transform_21(%arg0: i32, %arg1: memref<8x2xi32, #tpu.memory_space<smem>>) -> (i32, i32) {
    %c0_i32 = arith.constant 0 : i32
    %c0_i32_0 = arith.constant 0 : i32
    %c0_i32_1 = arith.constant 0 : i32
    return %c0_i32, %c0_i32_0 : i32, i32
  }
  func.func @transform_22(%arg0: i32, %arg1: memref<8x2xi32, #tpu.memory_space<smem>>) -> (i32, i32) {
    %c0_i32 = arith.constant 0 : i32
    %c0_i32_0 = arith.constant 0 : i32
    %c0_i32_1 = arith.constant 0 : i32
    return %c0_i32, %c0_i32_0 : i32, i32
  }
  func.func @transform_23(%arg0: i32, %arg1: memref<8x2xi32, #tpu.memory_space<smem>>) -> (i32, i32) {
    %c0_i32 = arith.constant 0 : i32
    %c0_i32_0 = arith.constant 0 : i32
    %c0_i32_1 = arith.constant 0 : i32
    return %c0_i32, %c0_i32_0 : i32, i32
  }
  func.func @transform_24(%arg0: i32, %arg1: memref<8x2xi32, #tpu.memory_space<smem>>) -> (i32, i32) {
    %c0_i32 = arith.constant 0 : i32
    %c0_i32_0 = arith.constant 0 : i32
    %c0_i32_1 = arith.constant 0 : i32
    return %c0_i32, %c0_i32_0 : i32, i32
  }
  func.func @transform_25(%arg0: i32, %arg1: memref<8x2xi32, #tpu.memory_space<smem>>) -> (i32, i32) {
    %c0_i32 = arith.constant 0 : i32
    %c0_i32_0 = arith.constant 0 : i32
    %c0_i32_1 = arith.constant 0 : i32
    return %c0_i32, %c0_i32_0 : i32, i32
  }
  func.func @transform_26(%arg0: i32, %arg1: memref<8x2xi32, #tpu.memory_space<smem>>) -> (i32, i32) {
    %c0_i32 = arith.constant 0 : i32
    %c0_i32_0 = arith.constant 0 : i32
    %c0_i32_1 = arith.constant 0 : i32
    return %c0_i32, %c0_i32_0 : i32, i32
  }
  func.func @transform_27(%arg0: i32, %arg1: memref<8x2xi32, #tpu.memory_space<smem>>) -> (i32, i32) {
    %c0_i32 = arith.constant 0 : i32
    %c0_i32_0 = arith.constant 0 : i32
    %c0_i32_1 = arith.constant 0 : i32
    return %c0_i32, %c0_i32_0 : i32, i32
  }
}

</mosaic_0001>

<llo_original>
// kernel: tpu_custom_call.1
$region0: #{tpu_custom_call.1}
  #allocation0 [shape = 'u32[]', space=smem, size = 0x4, offset = 0x4, fixed_abs, tag = 'smem constant byte address 0x4 - core index']
  #allocation1 [shape = 'u32[144,128]{1,0:T(1,128)}', space=vmem, size = 0x12000, scoped, tag = 'internal scratch']
  #allocation2 [shape = 'f32[16,128]{1,0:T(8,128)}', space=vmem, size = 0x2000, scoped, tag = 'scratch operand']
  #allocation3 [shape = 'f32[16,128]{1,0:T(8,128)}', space=vmem, size = 0x2000, scoped, tag = 'scratch operand']
  #allocation4 [shape = 's32[1]{0}', space=sflag, size = 0x4, scoped, tag = 'scoped memory for tpu_custom_call.1']
  #allocation5 [shape = 'u8[4096]{0}', space=smem, size = 0x1000, scoped, tag = 'prefetched SMEM operand 0']
  #allocation6 [shape = 'f32[1,1]{1,0:T(1,128)S(1)}', space=vmem, size = 0x200, scoped, tag = 'scoped memory for tpu_custom_call.1']
  #allocation7 [shape = 'f32[1,1]{1,0:T(1,128)S(1)}', space=vmem, size = 0x200, scoped, tag = 'scoped memory for tpu_custom_call.1']
  %s0 = inlined_call_operand.vmem [shape: s32[8,2], index: 0, kind: input, shape index: {}]
  %s1 = inlined_call_operand.hbm [shape: f32[16,300], index: 1, kind: input, shape index: {}]
  %s2 = inlined_call_operand.hbm [shape: f32[8,320], index: 2, kind: input, shape index: {}]
  %s3 = inlined_call_operand.hbm [shape: f32[16,128], index: 3, kind: input, shape index: {}]
  %s4 = inlined_call_operand.hbm [shape: f32[16,128], index: 4, kind: input, shape index: {}]
  %s5 = inlined_call_operand.hbm [shape: f32[16,128], index: 5, kind: input, shape index: {}]
  %s6 = inlined_call_operand.hbm [shape: bf16[300,128], index: 6, kind: input, shape index: {}]
  %s7 = inlined_call_operand.hbm [shape: f32[1,128], index: 7, kind: input, shape index: {}]
  %s8 = inlined_call_operand.hbm [shape: bf16[320,128], index: 8, kind: input, shape index: {}]
  %s9 = inlined_call_operand.hbm [shape: f32[1,128], index: 9, kind: input, shape index: {}]
  %s10 = inlined_call_operand.hbm [shape: bf16[256,128], index: 10, kind: input, shape index: {}]
  %s11 = inlined_call_operand.hbm [shape: f32[1,128], index: 11, kind: input, shape index: {}]
  %s12 = inlined_call_operand.hbm [shape: f32[1,128], index: 12, kind: input, shape index: {}]
  %s13 = inlined_call_operand.<no memory space> [shape: f32[1,1], index: 13, kind: input, shape index: {}]
  %s14 = inlined_call_operand.hbm [shape: bf16[256,128], index: 14, kind: input, shape index: {}]
  %s15 = inlined_call_operand.hbm [shape: f32[1,128], index: 15, kind: input, shape index: {}]
  %s16 = inlined_call_operand.hbm [shape: f32[1,128], index: 16, kind: input, shape index: {}]
  %s17 = inlined_call_operand.<no memory space> [shape: f32[1,1], index: 17, kind: input, shape index: {}]
  %s18 = inlined_call_operand.hbm [shape: bf16[512,1024], index: 18, kind: input, shape index: {}]
  %s19 = inlined_call_operand.hbm [shape: f32[1,1024], index: 19, kind: input, shape index: {}]
  %s20 = inlined_call_operand.hbm [shape: bf16[1024,1024], index: 20, kind: input, shape index: {}]
  %s21 = inlined_call_operand.hbm [shape: f32[1,1024], index: 21, kind: input, shape index: {}]
  %s22 = inlined_call_operand.hbm [shape: bf16[1024,256], index: 22, kind: input, shape index: {}]
  %s23 = inlined_call_operand.hbm [shape: f32[1,256], index: 23, kind: input, shape index: {}]
  %s24 = inlined_call_operand.hbm [shape: bf16[256,128], index: 24, kind: input, shape index: {}]
  %s25 = inlined_call_operand.hbm [shape: f32[1,128], index: 25, kind: input, shape index: {}]
  %s26 = inlined_call_operand.hbm [shape: f32[16,128], index: 26, kind: output, shape index: {0}]
  %s27 = inlined_call_operand.hbm [shape: f32[8,128], index: 27, kind: output, shape index: {1}]
  %s28 = inlined_call_operand.hbm [shape: f32[8,128], index: 28, kind: output, shape index: {2}]
  %29 = xla_tuple %s26, %s27, %s28
  %s30 = sld [smem:[#allocation0]]
  $region218: #{tpu_custom_call.1} parent=0
    _
  %s32 = ssub.s32 1, %s30
  %s33 = scalar_select 0, %s32, %s30
  %s34 = sshll.u32 %s0, 4
  %s35 = int_to_ptr.vmem [resolvable:$true] %s34
  %37 = dma.vmem_to_smem %s35, 128, [#allocation5], [#allocation4]
  %v38 = vstv %s13
  %39 = vst [vmem:[#allocation6] sm:$0x1] %v38
  %v40 = vstv %s17
  %41 = vst [vmem:[#allocation7] sm:$0x1] %v40
  %42 = dma.done [#allocation4], 128
  %43 = sfence
  $region1: #{tpu_custom_call.1} parent=0
    #allocation8 [shape = 'u8[24576]{0}', space=vmem, size = 0x6000, scoped, tag = 'input window, operand 1, single buffered']
    #allocation9 [shape = 's32[1]{0}', space=sflag, size = 0x4, scoped, tag = 'scoped memory for tpu_custom_call.1']
    #allocation10 [shape = 's32[1]{0}', space=sflag, size = 0x4, scoped, tag = 'scoped memory for tpu_custom_call.1']
    #allocation11 [shape = 'u8[12288]{0}', space=vmem, size = 0x3000, scoped, tag = 'input window, operand 2, single buffered']
    #allocation12 [shape = 's32[1]{0}', space=sflag, size = 0x4, scoped, tag = 'scoped memory for tpu_custom_call.1']
    #allocation13 [shape = 'u8[8192]{0}', space=vmem, size = 0x2000, scoped, tag = 'input window, operand 3, single buffered']
    #allocation14 [shape = 'u8[8192]{0}', space=vmem, size = 0x2000, scoped, tag = 'input window, operand 4, single buffered']
    #allocation15 [shape = 's32[1]{0}', space=sflag, size = 0x4, scoped, tag = 'scoped memory for tpu_custom_call.1']
    #allocation16 [shape = 'u8[8192]{0}', space=vmem, size = 0x2000, scoped, tag = 'input window, operand 5, single buffered']
    #allocation17 [shape = 'u8[77824]{0}', space=vmem, size = 0x13000, scoped, tag = 'input window, operand 6, single buffered']
    #allocation18 [shape = 's32[1]{0}', space=sflag, size = 0x4, scoped, tag = 'scoped memory for tpu_custom_call.1']
    #allocation19 [shape = 'u8[512]{0}', space=vmem, size = 0x400, scoped, tag = 'input window, operand 7, single buffered']
    #allocation20 [shape = 'u8[81920]{0}', space=vmem, size = 0x14000, scoped, tag = 'input window, operand 8, single buffered']
    #allocation21 [shape = 's32[1]{0}', space=sflag, size = 0x4, scoped, tag = 'scoped memory for tpu_custom_call.1']
    #allocation22 [shape = 'u8[512]{0}', space=vmem, size = 0x400, scoped, tag = 'input window, operand 9, single buffered']
    #allocation23 [shape = 'u8[65536]{0}', space=vmem, size = 0x10000, scoped, tag = 'input window, operand 10, single buffered']
    #allocation24 [shape = 's32[1]{0}', space=sflag, size = 0x4, scoped, tag = 'scoped memory for tpu_custom_call.1']
    #allocation25 [shape = 'u8[512]{0}', space=vmem, size = 0x400, scoped, tag = 'input window, operand 11, single buffered']
    #allocation26 [shape = 'u8[512]{0}', space=vmem, size = 0x400, scoped, tag = 'input window, operand 12, single buffered']
    #allocation27 [shape = 's32[1]{0}', space=sflag, size = 0x4, scoped, tag = 'scoped memory for tpu_custom_call.1']
    #allocation28 [shape = 'u8[65536]{0}', space=vmem, size = 0x10000, scoped, tag = 'input window, operand 14, single buffered']
    #allocation29 [shape = 'u8[512]{0}', space=vmem, size = 0x400, scoped, tag = 'input window, operand 15, single buffered']
    #allocation30 [shape = 's32[1]{0}', space=sflag, size = 0x4, scoped, tag = 'scoped memory for tpu_custom_call.1']
    #allocation31 [shape = 'u8[512]{0}', space=vmem, size = 0x400, scoped, tag = 'input window, operand 16, single buffered']
    #allocation32 [shape = 'u8[1048576]{0}', space=vmem, size = 0x100000, scoped, tag = 'input window, operand 18, single buffered']
    #allocation33 [shape = 's32[1]{0}', space=sflag, size = 0x4, scoped, tag = 'scoped memory for tpu_custom_call.1']
    #allocation34 [shape = 'u8[4096]{0}', space=vmem, size = 0x1000, scoped, tag = 'input window, operand 19, single buffered']
    #allocation35 [shape = 'u8[2097152]{0}', space=vmem, size = 0x200000, scoped, tag = 'input window, operand 20, single buffered']
    #allocation36 [shape = 's32[1]{0}', space=sflag, size = 0x4, scoped, tag = 'scoped memory for tpu_custom_call.1']
    #allocation37 [shape = 'u8[4096]{0}', space=vmem, size = 0x1000, scoped, tag = 'input window, operand 21, single buffered']
    #allocation38 [shape = 'u8[524288]{0}', space=vmem, size = 0x80000, scoped, tag = 'input window, operand 22, single buffered']
    #allocation39 [shape = 's32[1]{0}', space=sflag, size = 0x4, scoped, tag = 'scoped memory for tpu_custom_call.1']
    #allocation40 [shape = 'u8[1024]{0}', space=vmem, size = 0x400, scoped, tag = 'input window, operand 23, single buffered']
    #allocation41 [shape = 'u8[65536]{0}', space=vmem, size = 0x10000, scoped, tag = 'input window, operand 24, single buffered']
    #allocation42 [shape = 's32[1]{0}', space=sflag, size = 0x4, scoped, tag = 'scoped memory for tpu_custom_call.1']
    #allocation43 [shape = 'u8[512]{0}', space=vmem, size = 0x400, scoped, tag = 'input window, operand 25, single buffered']
    #allocation44 [shape = 'u8[8192]{0}', space=vmem, size = 0x2000, scoped, tag = 'output window, operand 0, single buffered']
    #allocation45 [shape = 'u8[4096]{0}', space=vmem, size = 0x1000, scoped, tag = 'output window, operand 1, single buffered']
    #allocation46 [shape = 's32[1]{0}', space=sflag, size = 0x4, scoped, tag = 'scoped memory for tpu_custom_call.1']
    #allocation47 [shape = 'u8[4096]{0}', space=vmem, size = 0x1000, scoped, tag = 'output window, operand 2, single buffered']
    %44 = vsyncpa [#allocation9], 0
    %45 = vsyncpa [#allocation12], 0
    %46 = vsyncpa [#allocation15], 0
    %47 = vsyncpa [#allocation18], 0
    %48 = vsyncpa [#allocation21], 0
    %49 = vsyncpa [#allocation24], 0
    %50 = vsyncpa [#allocation27], 0
    %51 = vsyncpa [#allocation30], 0
    %52 = vsyncpa [#allocation33], 0
    %53 = vsyncpa [#allocation36], 0
    %54 = vsyncpa [#allocation39], 0
    %55 = vsyncpa [#allocation42], 0
    %56 = vsyncpa [#allocation10], 0
    %57 = vsyncpa [#allocation46], 0
    // Predicated region
    $region2: #{tpu_custom_call.1} parent=1 // pred_check
      _
    $region3: #{tpu_custom_call.1} parent=1 // pred_check_branch
      %59 = sbr.rel (0) target = $region5
    $region4: #{tpu_custom_call.1} parent=1 // pred_region
      %s61 = ssub.s32 768, 768
      %62 = vsyncadd [#allocation9], %s61
      %s63 = sshll.u32 [#allocation8], 4
      %s64 = int_to_ptr.vmem [resolvable:$true] %s63
      %69 = dma.hbm_to_vmem [thread:$0]  %s1, 768, %s64, [#allocation9], 384, 384, 24
    $region5: #{tpu_custom_call.1} parent=1 // pred_fallthru
      _
    // Predicated region
    $region6: #{tpu_custom_call.1} parent=1 // pred_check
      _
    $region7: #{tpu_custom_call.1} parent=1 // pred_check_branch
      %71 = sbr.rel (0) target = $region9
    $region8: #{tpu_custom_call.1} parent=1 // pred_region
      %s73 = ssub.s32 384, 384
      %74 = vsyncadd [#allocation12], %s73
      %s76 = sshll.u32 [#allocation11], 4
      %s77 = int_to_ptr.vmem [resolvable:$true] %s76
      %79 = dma.hbm_to_vmem [thread:$0]  %s2, 384, %s77, [#allocation12]
    $region9: #{tpu_custom_call.1} parent=1 // pred_fallthru
      _
    // Predicated region
    $region10: #{tpu_custom_call.1} parent=1 // pred_check
      _
    $region11: #{tpu_custom_call.1} parent=1 // pred_check_branch
      %81 = sbr.rel (0) target = $region13
    $region12: #{tpu_custom_call.1} parent=1 // pred_region
      %s83 = ssub.s32 256, 256
      %84 = vsyncadd [#allocation12], %s83
      %s85 = sshll.u32 [#allocation13], 4
      %s86 = int_to_ptr.vmem [resolvable:$true] %s85
      %91 = dma.hbm_to_vmem [thread:$0]  %s3, 256, %s86, [#allocation12], 128, 128, 8
    $region13: #{tpu_custom_call.1} parent=1 // pred_fallthru
      _
    // Predicated region
    $region14: #{tpu_custom_call.1} parent=1 // pred_check
      _
    $region15: #{tpu_custom_call.1} parent=1 // pred_check_branch
      %93 = sbr.rel (0) target = $region17
    $region16: #{tpu_custom_call.1} parent=1 // pred_region
      %s95 = ssub.s32 256, 256
      %96 = vsyncadd [#allocation15], %s95
      %s97 = sshll.u32 [#allocation14], 4
      %s98 = int_to_ptr.vmem [resolvable:$true] %s97
      %103 = dma.hbm_to_vmem [thread:$0]  %s4, 256, %s98, [#allocation15], 128, 128, 8
    $region17: #{tpu_custom_call.1} parent=1 // pred_fallthru
      _
    // Predicated region
    $region18: #{tpu_custom_call.1} parent=1 // pred_check
      _
    $region19: #{tpu_custom_call.1} parent=1 // pred_check_branch
      %105 = sbr.rel (0) target = $region21
    $region20: #{tpu_custom_call.1} parent=1 // pred_region
      %s107 = ssub.s32 256, 256
      %108 = vsyncadd [#allocation15], %s107
      %s109 = sshll.u32 [#allocation16], 4
      %s110 = int_to_ptr.vmem [resolvable:$true] %s109
      %115 = dma.hbm_to_vmem [thread:$0]  %s5, 256, %s110, [#allocation15], 128, 128, 8
    $region21: #{tpu_custom_call.1} parent=1 // pred_fallthru
      _
    // Predicated region
    $region22: #{tpu_custom_call.1} parent=1 // pred_check
      _
    $region23: #{tpu_custom_call.1} parent=1 // pred_check_branch
      %117 = sbr.rel (0) target = $region25
    $region24: #{tpu_custom_call.1} parent=1 // pred_region
      %s119 = ssub.s32 2432, 2432
      %120 = vsyncadd [#allocation18], %s119
      %s121 = sshll.u32 [#allocation17], 4
      %s122 = int_to_ptr.vmem [resolvable:$true] %s121
      %127 = dma.hbm_to_vmem [thread:$0]  %s6, 2432, %s122, [#allocation18], 64, 64, 4
    $region25: #{tpu_custom_call.1} parent=1 // pred_fallthru
      _
    // Predicated region
    $region26: #{tpu_custom_call.1} parent=1 // pred_check
      _
    $region27: #{tpu_custom_call.1} parent=1 // pred_check_branch
      %129 = sbr.rel (0) target = $region29
    $region28: #{tpu_custom_call.1} parent=1 // pred_region
      %s131 = ssub.s32 16, 16
      %132 = vsyncadd [#allocation18], %s131
      %s134 = sshll.u32 [#allocation19], 4
      %s135 = int_to_ptr.vmem [resolvable:$true] %s134
      %137 = dma.hbm_to_vmem [thread:$0]  %s7, 16, %s135, [#allocation18]
    $region29: #{tpu_custom_call.1} parent=1 // pred_fallthru
      _
    // Predicated region
    $region30: #{tpu_custom_call.1} parent=1 // pred_check
      _
    $region31: #{tpu_custom_call.1} parent=1 // pred_check_branch
      %139 = sbr.rel (0) target = $region33
    $region32: #{tpu_custom_call.1} parent=1 // pred_region
      %s141 = ssub.s32 2560, 2560
      %142 = vsyncadd [#allocation21], %s141
      %s143 = sshll.u32 [#allocation20], 4
      %s144 = int_to_ptr.vmem [resolvable:$true] %s143
      %149 = dma.hbm_to_vmem [thread:$0]  %s8, 2560, %s144, [#allocation21], 64, 64, 4
    $region33: #{tpu_custom_call.1} parent=1 // pred_fallthru
      _
    // Predicated region
    $region34: #{tpu_custom_call.1} parent=1 // pred_check
      _
    $region35: #{tpu_custom_call.1} parent=1 // pred_check_branch
      %151 = sbr.rel (0) target = $region37
    $region36: #{tpu_custom_call.1} parent=1 // pred_region
      %s153 = ssub.s32 16, 16
      %154 = vsyncadd [#allocation21], %s153
      %s156 = sshll.u32 [#allocation22], 4
      %s157 = int_to_ptr.vmem [resolvable:$true] %s156
      %159 = dma.hbm_to_vmem [thread:$0]  %s9, 16, %s157, [#allocation21]
    $region37: #{tpu_custom_call.1} parent=1 // pred_fallthru
      _
    // Predicated region
    $region38: #{tpu_custom_call.1} parent=1 // pred_check
      _
    $region39: #{tpu_custom_call.1} parent=1 // pred_check_branch
      %161 = sbr.rel (0) target = $region41
    $region40: #{tpu_custom_call.1} parent=1 // pred_region
      %s163 = ssub.s32 2048, 2048
      %164 = vsyncadd [#allocation24], %s163
      %s165 = sshll.u32 [#allocation23], 4
      %s166 = int_to_ptr.vmem [resolvable:$true] %s165
      %171 = dma.hbm_to_vmem [thread:$0]  %s10, 2048, %s166, [#allocation24], 64, 64, 4
    $region41: #{tpu_custom_call.1} parent=1 // pred_fallthru
      _
    // Predicated region
    $region42: #{tpu_custom_call.1} parent=1 // pred_check
      _
    $region43: #{tpu_custom_call.1} parent=1 // pred_check_branch
      %173 = sbr.rel (0) target = $region45
    $region44: #{tpu_custom_call.1} parent=1 // pred_region
      %s175 = ssub.s32 16, 16
      %176 = vsyncadd [#allocation24], %s175
      %s178 = sshll.u32 [#allocation25], 4
      %s179 = int_to_ptr.vmem [resolvable:$true] %s178
      %181 = dma.hbm_to_vmem [thread:$0]  %s11, 16, %s179, [#allocation24]
    $region45: #{tpu_custom_call.1} parent=1 // pred_fallthru
      _
    // Predicated region
    $region46: #{tpu_custom_call.1} parent=1 // pred_check
      _
    $region47: #{tpu_custom_call.1} parent=1 // pred_check_branch
      %183 = sbr.rel (0) target = $region49
    $region48: #{tpu_custom_call.1} parent=1 // pred_region
      %s185 = ssub.s32 16, 16
      %186 = vsyncadd [#allocation27], %s185
      %s188 = sshll.u32 [#allocation26], 4
      %s189 = int_to_ptr.vmem [resolvable:$true] %s188
      %191 = dma.hbm_to_vmem [thread:$0]  %s12, 16, %s189, [#allocation27]
    $region49: #{tpu_custom_call.1} parent=1 // pred_fallthru
      _
    // Predicated region
    $region50: #{tpu_custom_call.1} parent=1 // pred_check
      _
    $region51: #{tpu_custom_call.1} parent=1 // pred_check_branch
      %193 = sbr.rel (0) target = $region53
    $region52: #{tpu_custom_call.1} parent=1 // pred_region
      _
    $region53: #{tpu_custom_call.1} parent=1 // pred_fallthru
      _
    // Predicated region
    $region54: #{tpu_custom_call.1} parent=1 // pred_check
      _
    $region55: #{tpu_custom_call.1} parent=1 // pred_check_branch
      %195 = sbr.rel (0) target = $region57
    $region56: #{tpu_custom_call.1} parent=1 // pred_region
      %s197 = ssub.s32 2048, 2048
      %198 = vsyncadd [#allocation27], %s197
      %s199 = sshll.u32 [#allocation28], 4
      %s200 = int_to_ptr.vmem [resolvable:$true] %s199
      %205 = dma.hbm_to_vmem [thread:$0]  %s14, 2048, %s200, [#allocation27], 64, 64, 4
    $region57: #{tpu_custom_call.1} parent=1 // pred_fallthru
      _
    // Predicated region
    $region58: #{tpu_custom_call.1} parent=1 // pred_check
      _
    $region59: #{tpu_custom_call.1} parent=1 // pred_check_branch
      %207 = sbr.rel (0) target = $region61
    $region60: #{tpu_custom_call.1} parent=1 // pred_region
      %s209 = ssub.s32 16, 16
      %210 = vsyncadd [#allocation30], %s209
      %s212 = sshll.u32 [#allocation29], 4
      %s213 = int_to_ptr.vmem [resolvable:$true] %s212
      %215 = dma.hbm_to_vmem [thread:$0]  %s15, 16, %s213, [#allocation30]
    $region61: #{tpu_custom_call.1} parent=1 // pred_fallthru
      _
    // Predicated region
    $region62: #{tpu_custom_call.1} parent=1 // pred_check
      _
    $region63: #{tpu_custom_call.1} parent=1 // pred_check_branch
      %217 = sbr.rel (0) target = $region65
    $region64: #{tpu_custom_call.1} parent=1 // pred_region
      %s219 = ssub.s32 16, 16
      %220 = vsyncadd [#allocation30], %s219
      %s222 = sshll.u32 [#allocation31], 4
      %s223 = int_to_ptr.vmem [resolvable:$true] %s222
      %225 = dma.hbm_to_vmem [thread:$0]  %s16, 16, %s223, [#allocation30]
    $region65: #{tpu_custom_call.1} parent=1 // pred_fallthru
      _
    // Predicated region
    $region66: #{tpu_custom_call.1} parent=1 // pred_check
      _
    $region67: #{tpu_custom_call.1} parent=1 // pred_check_branch
      %227 = sbr.rel (0) target = $region69
    $region68: #{tpu_custom_call.1} parent=1 // pred_region
      _
    $region69: #{tpu_custom_call.1} parent=1 // pred_fallthru
      _
    // Predicated region
    $region70: #{tpu_custom_call.1} parent=1 // pred_check
      _
    $region71: #{tpu_custom_call.1} parent=1 // pred_check_branch
      %229 = sbr.rel (0) target = $region73
    $region72: #{tpu_custom_call.1} parent=1 // pred_region
      %s231 = ssub.s32 32768, 32768
      %232 = vsyncadd [#allocation33], %s231
      %s233 = sshll.u32 [#allocation32], 4
      %s234 = int_to_ptr.vmem [resolvable:$true] %s233
      %239 = dma.hbm_to_vmem [thread:$0]  %s18, 32768, %s234, [#allocation33], 512, 512, 32
    $region73: #{tpu_custom_call.1} parent=1 // pred_fallthru
      _
    // Predicated region
    $region74: #{tpu_custom_call.1} parent=1 // pred_check
      _
    $region75: #{tpu_custom_call.1} parent=1 // pred_check_branch
      %241 = sbr.rel (0) target = $region77
    $region76: #{tpu_custom_call.1} parent=1 // pred_region
      %s243 = ssub.s32 128, 128
      %244 = vsyncadd [#allocation33], %s243
      %s246 = sshll.u32 [#allocation34], 4
      %s247 = int_to_ptr.vmem [resolvable:$true] %s246
      %249 = dma.hbm_to_vmem [thread:$0]  %s19, 128, %s247, [#allocation33]
    $region77: #{tpu_custom_call.1} parent=1 // pred_fallthru
      _
    // Predicated region
    $region78: #{tpu_custom_call.1} parent=1 // pred_check
      _
    $region79: #{tpu_custom_call.1} parent=1 // pred_check_branch
      %251 = sbr.rel (0) target = $region81
    $region80: #{tpu_custom_call.1} parent=1 // pred_region
      %s253 = ssub.s32 65536, 65536
      %254 = vsyncadd [#allocation36], %s253
      %s255 = sshll.u32 [#allocation35], 4
      %s256 = int_to_ptr.vmem [resolvable:$true] %s255
      %261 = dma.hbm_to_vmem [thread:$0]  %s20, 65536, %s256, [#allocation36], 512, 512, 32
    $region81: #{tpu_custom_call.1} parent=1 // pred_fallthru
      _
    // Predicated region
    $region82: #{tpu_custom_call.1} parent=1 // pred_check
      _
    $region83: #{tpu_custom_call.1} parent=1 // pred_check_branch
      %263 = sbr.rel (0) target = $region85
    $region84: #{tpu_custom_call.1} parent=1 // pred_region
      %s265 = ssub.s32 128, 128
      %266 = vsyncadd [#allocation36], %s265
      %s268 = sshll.u32 [#allocation37], 4
      %s269 = int_to_ptr.vmem [resolvable:$true] %s268
      %271 = dma.hbm_to_vmem [thread:$0]  %s21, 128, %s269, [#allocation36]
    $region85: #{tpu_custom_call.1} parent=1 // pred_fallthru
      _
    // Predicated region
    $region86: #{tpu_custom_call.1} parent=1 // pred_check
      _
    $region87: #{tpu_custom_call.1} parent=1 // pred_check_branch
      %273 = sbr.rel (0) target = $region89
    $region88: #{tpu_custom_call.1} parent=1 // pred_region
      %s275 = ssub.s32 16384, 16384
      %276 = vsyncadd [#allocation39], %s275
      %s277 = sshll.u32 [#allocation38], 4
      %s278 = int_to_ptr.vmem [resolvable:$true] %s277
      %283 = dma.hbm_to_vmem [thread:$0]  %s22, 16384, %s278, [#allocation39], 128, 128, 8
    $region89: #{tpu_custom_call.1} parent=1 // pred_fallthru
      _
    // Predicated region
    $region90: #{tpu_custom_call.1} parent=1 // pred_check
      _
    $region91: #{tpu_custom_call.1} parent=1 // pred_check_branch
      %285 = sbr.rel (0) target = $region93
    $region92: #{tpu_custom_call.1} parent=1 // pred_region
      %s287 = ssub.s32 32, 32
      %288 = vsyncadd [#allocation39], %s287
      %s290 = sshll.u32 [#allocation40], 4
      %s291 = int_to_ptr.vmem [resolvable:$true] %s290
      %293 = dma.hbm_to_vmem [thread:$0]  %s23, 32, %s291, [#allocation39]
    $region93: #{tpu_custom_call.1} parent=1 // pred_fallthru
      _
    // Predicated region
    $region94: #{tpu_custom_call.1} parent=1 // pred_check
      _
    $region95: #{tpu_custom_call.1} parent=1 // pred_check_branch
      %295 = sbr.rel (0) target = $region97
    $region96: #{tpu_custom_call.1} parent=1 // pred_region
      %s297 = ssub.s32 2048, 2048
      %298 = vsyncadd [#allocation42], %s297
      %s299 = sshll.u32 [#allocation41], 4
      %s300 = int_to_ptr.vmem [resolvable:$true] %s299
      %305 = dma.hbm_to_vmem [thread:$0]  %s24, 2048, %s300, [#allocation42], 64, 64, 4
    $region97: #{tpu_custom_call.1} parent=1 // pred_fallthru
      _
    // Predicated region
    $region98: #{tpu_custom_call.1} parent=1 // pred_check
      _
    $region99: #{tpu_custom_call.1} parent=1 // pred_check_branch
      %307 = sbr.rel (0) target = $region101
    $region100: #{tpu_custom_call.1} parent=1 // pred_region
      %s309 = ssub.s32 16, 16
      %310 = vsyncadd [#allocation42], %s309
      %s312 = sshll.u32 [#allocation43], 4
      %s313 = int_to_ptr.vmem [resolvable:$true] %s312
      %315 = dma.hbm_to_vmem [thread:$0]  %s25, 16, %s313, [#allocation42]
    $region101: #{tpu_custom_call.1} parent=1 // pred_fallthru
      _
    // Predicated region
    $region102: #{tpu_custom_call.1} parent=1 // pred_check
      _
    $region103: #{tpu_custom_call.1} parent=1 // pred_check_branch
      %317 = sbr.rel (0) target = $region105
    $region104: #{tpu_custom_call.1} parent=1 // pred_region
      %318 = dma.done [#allocation9], 768
    $region105: #{tpu_custom_call.1} parent=1 // pred_fallthru
      _
    // Predicated region
    $region106: #{tpu_custom_call.1} parent=1 // pred_check
      _
    $region107: #{tpu_custom_call.1} parent=1 // pred_check_branch
      %320 = sbr.rel (0) target = $region109
    $region108: #{tpu_custom_call.1} parent=1 // pred_region
      %321 = dma.done [#allocation12], 384
    $region109: #{tpu_custom_call.1} parent=1 // pred_fallthru
      _
    // Predicated region
    $region110: #{tpu_custom_call.1} parent=1 // pred_check
      _
    $region111: #{tpu_custom_call.1} parent=1 // pred_check_branch
      %323 = sbr.rel (0) target = $region113
    $region112: #{tpu_custom_call.1} parent=1 // pred_region
      %324 = dma.done [#allocation12], 256
    $region113: #{tpu_custom_call.1} parent=1 // pred_fallthru
      _
    // Predicated region
    $region114: #{tpu_custom_call.1} parent=1 // pred_check
      _
    $region115: #{tpu_custom_call.1} parent=1 // pred_check_branch
      %326 = sbr.rel (0) target = $region117
    $region116: #{tpu_custom_call.1} parent=1 // pred_region
      %327 = dma.done [#allocation15], 256
    $region117: #{tpu_custom_call.1} parent=1 // pred_fallthru
      _
    // Predicated region
    $region118: #{tpu_custom_call.1} parent=1 // pred_check
      _
    $region119: #{tpu_custom_call.1} parent=1 // pred_check_branch
      %329 = sbr.rel (0) target = $region121
    $region120: #{tpu_custom_call.1} parent=1 // pred_region
      %330 = dma.done [#allocation15], 256
    $region121: #{tpu_custom_call.1} parent=1 // pred_fallthru
      _
    // Predicated region
    $region122: #{tpu_custom_call.1} parent=1 // pred_check
      _
    $region123: #{tpu_custom_call.1} parent=1 // pred_check_branch
      %332 = sbr.rel (0) target = $region125
    $region124: #{tpu_custom_call.1} parent=1 // pred_region
      %333 = dma.done [#allocation18], 2432
    $region125: #{tpu_custom_call.1} parent=1 // pred_fallthru
      _
    // Predicated region
    $region126: #{tpu_custom_call.1} parent=1 // pred_check
      _
    $region127: #{tpu_custom_call.1} parent=1 // pred_check_branch
      %335 = sbr.rel (0) target = $region129
    $region128: #{tpu_custom_call.1} parent=1 // pred_region
      %336 = dma.done [#allocation18], 16
    $region129: #{tpu_custom_call.1} parent=1 // pred_fallthru
      _
    // Predicated region
    $region130: #{tpu_custom_call.1} parent=1 // pred_check
      _
    $region131: #{tpu_custom_call.1} parent=1 // pred_check_branch
      %338 = sbr.rel (0) target = $region133
    $region132: #{tpu_custom_call.1} parent=1 // pred_region
      %339 = dma.done [#allocation21], 2560
    $region133: #{tpu_custom_call.1} parent=1 // pred_fallthru
      _
    // Predicated region
    $region134: #{tpu_custom_call.1} parent=1 // pred_check
      _
    $region135: #{tpu_custom_call.1} parent=1 // pred_check_branch
      %341 = sbr.rel (0) target = $region137
    $region136: #{tpu_custom_call.1} parent=1 // pred_region
      %342 = dma.done [#allocation21], 16
    $region137: #{tpu_custom_call.1} parent=1 // pred_fallthru
      _
    // Predicated region
    $region138: #{tpu_custom_call.1} parent=1 // pred_check
      _
    $region139: #{tpu_custom_call.1} parent=1 // pred_check_branch
      %344 = sbr.rel (0) target = $region141
    $region140: #{tpu_custom_call.1} parent=1 // pred_region
      %345 = dma.done [#allocation24], 2048
    $region141: #{tpu_custom_call.1} parent=1 // pred_fallthru
      _
    // Predicated region
    $region142: #{tpu_custom_call.1} parent=1 // pred_check
      _
    $region143: #{tpu_custom_call.1} parent=1 // pred_check_branch
      %347 = sbr.rel (0) target = $region145
    $region144: #{tpu_custom_call.1} parent=1 // pred_region
      %348 = dma.done [#allocation24], 16
    $region145: #{tpu_custom_call.1} parent=1 // pred_fallthru
      _
    // Predicated region
    $region146: #{tpu_custom_call.1} parent=1 // pred_check
      _
    $region147: #{tpu_custom_call.1} parent=1 // pred_check_branch
      %350 = sbr.rel (0) target = $region149
    $region148: #{tpu_custom_call.1} parent=1 // pred_region
      %351 = dma.done [#allocation27], 16
    $region149: #{tpu_custom_call.1} parent=1 // pred_fallthru
      _
    // Predicated region
    $region150: #{tpu_custom_call.1} parent=1 // pred_check
      _
    $region151: #{tpu_custom_call.1} parent=1 // pred_check_branch
      %353 = sbr.rel (0) target = $region153
    $region152: #{tpu_custom_call.1} parent=1 // pred_region
      %354 = dma.done [#allocation27], 2048
    $region153: #{tpu_custom_call.1} parent=1 // pred_fallthru
      _
    // Predicated region
    $region154: #{tpu_custom_call.1} parent=1 // pred_check
      _
    $region155: #{tpu_custom_call.1} parent=1 // pred_check_branch
      %356 = sbr.rel (0) target = $region157
    $region156: #{tpu_custom_call.1} parent=1 // pred_region
      %357 = dma.done [#allocation30], 16
    $region157: #{tpu_custom_call.1} parent=1 // pred_fallthru
      _
    // Predicated region
    $region158: #{tpu_custom_call.1} parent=1 // pred_check
      _
    $region159: #{tpu_custom_call.1} parent=1 // pred_check_branch
      %359 = sbr.rel (0) target = $region161
    $region160: #{tpu_custom_call.1} parent=1 // pred_region
      %360 = dma.done [#allocation30], 16
    $region161: #{tpu_custom_call.1} parent=1 // pred_fallthru
      _
    // Predicated region
    $region162: #{tpu_custom_call.1} parent=1 // pred_check
      _
    $region163: #{tpu_custom_call.1} parent=1 // pred_check_branch
      %362 = sbr.rel (0) target = $region165
    $region164: #{tpu_custom_call.1} parent=1 // pred_region
      %363 = dma.done [#allocation33], 32768
    $region165: #{tpu_custom_call.1} parent=1 // pred_fallthru
      _
    // Predicated region
    $region166: #{tpu_custom_call.1} parent=1 // pred_check
      _
    $region167: #{tpu_custom_call.1} parent=1 // pred_check_branch
      %365 = sbr.rel (0) target = $region169
    $region168: #{tpu_custom_call.1} parent=1 // pred_region
      %366 = dma.done [#allocation33], 128
    $region169: #{tpu_custom_call.1} parent=1 // pred_fallthru
      _
    // Predicated region
    $region170: #{tpu_custom_call.1} parent=1 // pred_check
      _
    $region171: #{tpu_custom_call.1} parent=1 // pred_check_branch
      %368 = sbr.rel (0) target = $region173
    $region172: #{tpu_custom_call.1} parent=1 // pred_region
      %369 = dma.done [#allocation36], 65536
    $region173: #{tpu_custom_call.1} parent=1 // pred_fallthru
      _
    // Predicated region
    $region174: #{tpu_custom_call.1} parent=1 // pred_check
      _
    $region175: #{tpu_custom_call.1} parent=1 // pred_check_branch
      %371 = sbr.rel (0) target = $region177
    $region176: #{tpu_custom_call.1} parent=1 // pred_region
      %372 = dma.done [#allocation36], 128
    $region177: #{tpu_custom_call.1} parent=1 // pred_fallthru
      _
    // Predicated region
    $region178: #{tpu_custom_call.1} parent=1 // pred_check
      _
    $region179: #{tpu_custom_call.1} parent=1 // pred_check_branch
      %374 = sbr.rel (0) target = $region181
    $region180: #{tpu_custom_call.1} parent=1 // pred_region
      %375 = dma.done [#allocation39], 16384
    $region181: #{tpu_custom_call.1} parent=1 // pred_fallthru
      _
    // Predicated region
    $region182: #{tpu_custom_call.1} parent=1 // pred_check
      _
    $region183: #{tpu_custom_call.1} parent=1 // pred_check_branch
      %377 = sbr.rel (0) target = $region185
    $region184: #{tpu_custom_call.1} parent=1 // pred_region
      %378 = dma.done [#allocation39], 32
    $region185: #{tpu_custom_call.1} parent=1 // pred_fallthru
      _
    // Predicated region
    $region186: #{tpu_custom_call.1} parent=1 // pred_check
      _
    $region187: #{tpu_custom_call.1} parent=1 // pred_check_branch
      %380 = sbr.rel (0) target = $region189
    $region188: #{tpu_custom_call.1} parent=1 // pred_region
      %381 = dma.done [#allocation42], 2048
    $region189: #{tpu_custom_call.1} parent=1 // pred_fallthru
      _
    // Predicated region
    $region190: #{tpu_custom_call.1} parent=1 // pred_check
      _
    $region191: #{tpu_custom_call.1} parent=1 // pred_check_branch
      %383 = sbr.rel (0) target = $region193
    $region192: #{tpu_custom_call.1} parent=1 // pred_region
      %384 = dma.done [#allocation42], 16
    $region193: #{tpu_custom_call.1} parent=1 // pred_fallthru
      _
    %v386 = vld [vmem:[#allocation8] sm:$0xff]
    %v387 = vld [vmem:[#allocation8 + $0x8] sm:$0xff]
    %v388 = vld [vmem:[#allocation8 + $0x10] sm:$0xff]
    %v389 = vld [vmem:[#allocation8 + $0x18] sm:$0xff]
    %v390 = vld [vmem:[#allocation8 + $0x20] sm:$0xff]
    %v391 = vld [vmem:[#allocation8 + $0x28] sm:$0xff]
    %v392 = vpack.c.bf16 %v389, %v386
    %v393 = vpack.c.bf16 %v390, %v387
    %v394 = vpack.c.bf16 %v391, %v388
    %v395 = vld [vmem:[#allocation17] sm:$0xf]
    %v396 = vld [vmem:[#allocation17 + $0x4] sm:$0xf]
    %v397 = vld [vmem:[#allocation17 + $0x8] sm:$0xf]
    %v398 = vld [vmem:[#allocation17 + $0xc] sm:$0xf]
    %v399 = vld [vmem:[#allocation17 + $0x10] sm:$0xf]
    %v400 = vld [vmem:[#allocation17 + $0x14] sm:$0xf]
    %v401 = vld [vmem:[#allocation17 + $0x18] sm:$0xf]
    %v402 = vld [vmem:[#allocation17 + $0x1c] sm:$0xf]
    %v403 = vld [vmem:[#allocation17 + $0x20] sm:$0xf]
    %v404 = vld [vmem:[#allocation17 + $0x24] sm:$0xf]
    %v405 = vld [vmem:[#allocation17 + $0x28] sm:$0xf]
    %v406 = vld [vmem:[#allocation17 + $0x2c] sm:$0xf]
    %v407 = vld [vmem:[#allocation17 + $0x30] sm:$0xf]
    %v408 = vld [vmem:[#allocation17 + $0x34] sm:$0xf]
    %v409 = vld [vmem:[#allocation17 + $0x38] sm:$0xf]
    %v410 = vld [vmem:[#allocation17 + $0x3c] sm:$0xf]
    %v411 = vld [vmem:[#allocation17 + $0x40] sm:$0xf]
    %v412 = vld [vmem:[#allocation17 + $0x44] sm:$0xf]
    %v413 = vld [vmem:[#allocation17 + $0x48] sm:$0xf]
    %v414 = vld [vmem:[#allocation17 + $0x4c] sm:$0xf]
    %v415 = vld [vmem:[#allocation17 + $0x50] sm:$0xf]
    %v416 = vld [vmem:[#allocation17 + $0x54] sm:$0xf]
    %v417 = vld [vmem:[#allocation17 + $0x58] sm:$0xf]
    %v418 = vld [vmem:[#allocation17 + $0x5c] sm:$0xf]
    %v419 = vld [vmem:[#allocation17 + $0x60] sm:$0xf]
    %v420 = vld [vmem:[#allocation17 + $0x64] sm:$0xf]
    %v421 = vld [vmem:[#allocation17 + $0x68] sm:$0xf]
    %v422 = vld [vmem:[#allocation17 + $0x6c] sm:$0xf]
    %v423 = vld [vmem:[#allocation17 + $0x70] sm:$0xf]
    %v424 = vld [vmem:[#allocation17 + $0x74] sm:$0xf]
    %v425 = vld [vmem:[#allocation17 + $0x78] sm:$0xf]
    %v426 = vld [vmem:[#allocation17 + $0x7c] sm:$0xf]
    %v427 = vld [vmem:[#allocation17 + $0x80] sm:$0xf]
    %v428 = vld [vmem:[#allocation17 + $0x84] sm:$0xf]
    %v429 = vld [vmem:[#allocation17 + $0x88] sm:$0xf]
    %v430 = vld [vmem:[#allocation17 + $0x8c] sm:$0xf]
    %v431 = vld [vmem:[#allocation17 + $0x90] sm:$0xf]
    %v432 = vld [vmem:[#allocation17 + $0x94] sm:$0x3]
    %v433 = vld [vmem:[#allocation19] sm:$0x1]
    %v435 = vlaneseq
    %v436 = vshrl.u32 %v435, 7
    %v437 = vsub.s32 0, %v436
    %v438 = vrot.slane %v433, %v437
    %v478 = vunpack.c.l.b16 %v395
    %v479 = vunpack.c.l.b16 %v396
    %v480 = vunpack.c.l.b16 %v397
    %v481 = vunpack.c.l.b16 %v398
    %v482 = vunpack.c.l.b16 %v399
    %v483 = vunpack.c.l.b16 %v400
    %v484 = vunpack.c.l.b16 %v401
    %v485 = vunpack.c.l.b16 %v402
    %v486 = vunpack.c.l.b16 %v403
    %v487 = vunpack.c.l.b16 %v404
    %v488 = vunpack.c.l.b16 %v405
    %v489 = vunpack.c.l.b16 %v406
    %v490 = vunpack.c.l.b16 %v407
    %v491 = vunpack.c.l.b16 %v408
    %v492 = vunpack.c.l.b16 %v409
    %v493 = vunpack.c.l.b16 %v410
    %v494 = vunpack.c.l.b16 %v411
    %v495 = vunpack.c.l.b16 %v412
    %v496 = vunpack.c.l.b16 %v413
    %v497 = vunpack.c.l.b16 %v414
    %v498 = vunpack.c.l.b16 %v415
    %v499 = vunpack.c.l.b16 %v416
    %v500 = vunpack.c.l.b16 %v417
    %v501 = vunpack.c.l.b16 %v418
    %v502 = vunpack.c.l.b16 %v419
    %v503 = vunpack.c.l.b16 %v420
    %v504 = vunpack.c.l.b16 %v421
    %v505 = vunpack.c.l.b16 %v422
    %v506 = vunpack.c.l.b16 %v423
    %v507 = vunpack.c.l.b16 %v424
    %v508 = vunpack.c.l.b16 %v425
    %v509 = vunpack.c.l.b16 %v426
    %v510 = vunpack.c.l.b16 %v427
    %v511 = vunpack.c.l.b16 %v428
    %v512 = vunpack.c.l.b16 %v429
    %v513 = vunpack.c.l.b16 %v430
    %v514 = vunpack.c.l.b16 %v431
    %v515 = vunpack.c.l.b16 %v432
    %v516 = vpack.c.b16 %v479, %v478
    %v517 = vpack.c.b16 %v481, %v480
    %v518 = vpack.c.b16 %v483, %v482
    %v519 = vpack.c.b16 %v485, %v484
    %v520 = vpack.c.b16 %v487, %v486
    %v521 = vpack.c.b16 %v489, %v488
    %v522 = vpack.c.b16 %v491, %v490
    %v523 = vpack.c.b16 %v493, %v492
    %v524 = vpack.c.b16 %v495, %v494
    %v525 = vpack.c.b16 %v497, %v496
    %v526 = vpack.c.b16 %v499, %v498
    %v527 = vpack.c.b16 %v501, %v500
    %v528 = vpack.c.b16 %v503, %v502
    %v529 = vpack.c.b16 %v505, %v504
    %v530 = vpack.c.b16 %v507, %v506
    %v531 = vpack.c.b16 %v509, %v508
    %v532 = vpack.c.b16 %v511, %v510
    %v533 = vpack.c.b16 %v513, %v512
    %v534 = vpack.c.b16 %v515, %v514
    %vm553 = vcmask 359424
    %v555 = vsel %vm553, %v394, 0
    %vm557 = vcmask 1045504
    %v559 = vsel %vm557, %v534, 0
    %561 = vmatprep.subr.bf16.mxu0 0
    %562 = vmatpush1.bf16.msra.mxu0 %v523
    %563 = vmatprep.subr.bf16.mxu0 0
    %564 = vmatpush1.bf16.msra.mxu0 %v522
    %565 = vmatprep.subr.bf16.mxu0 0
    %566 = vmatpush1.bf16.msra.mxu0 %v521
    %567 = vmatprep.subr.bf16.mxu0 0
    %568 = vmatpush1.bf16.msra.mxu0 %v520
    %569 = vmatprep.subr.bf16.mxu0 0
    %570 = vmatpush1.bf16.msra.mxu0 %v519
    %571 = vmatprep.subr.bf16.mxu0 0
    %572 = vmatpush1.bf16.msra.mxu0 %v518
    %573 = vmatprep.subr.bf16.mxu0 0
    %574 = vmatpush1.bf16.msra.mxu0 %v517
    %575 = vmatprep.subr.bf16.mxu0 0
    %576 = vmatpush1.bf16.msra.mxu0 %v516
    %577 = vmatprep.subr.bf16.mxu0 0
    %578 = vmatpush2.bf16.msra.mxu0 %v531
    %579 = vmatprep.subr.bf16.mxu0 0
    %580 = vmatpush2.bf16.msra.mxu0 %v530
    %581 = vmatprep.subr.bf16.mxu0 0
    %582 = vmatpush2.bf16.msra.mxu0 %v529
    %583 = vmatprep.subr.bf16.mxu0 0
    %584 = vmatpush2.bf16.msra.mxu0 %v528
    %585 = vmatprep.subr.bf16.mxu0 0
    %586 = vmatpush2.bf16.msra.mxu0 %v527
    %587 = vmatprep.subr.bf16.mxu0 0
    %588 = vmatpush2.bf16.msra.mxu0 %v526
    %589 = vmatprep.subr.bf16.mxu0 0
    %590 = vmatpush2.bf16.msra.mxu0 %v525
    %591 = vmatprep.subr.bf16.mxu0 0
    %592 = vmatpush2.bf16.msra.mxu0 %v524
    %593 = vmatprep.mubr.bf16.mxu0 %v393
    %594 = vmatmul.mubr.bf16.gmra.mxu0 %v392
    %v595 = vpop.f32.mrf.mxu0
    %v596 = vadd.f32 %v438, %v595
    %v597 = vpop.f32.mrf.mxu0
    %v598 = vpop.f32.mrf.mxu0
    %v599 = vadd.f32 %v438, %v598
    %v600 = vpop.f32.mrf.mxu0
    %601 = vdwg.mxu0
    %602 = vmatprep.subr.bf16.mxu0 0
    %603 = vmatpush1.bf16.msra.mxu0 0
    %604 = vmatprep.subr.bf16.mxu0 0
    %605 = vmatpush1.bf16.msra.mxu0 0
    %606 = vmatprep.subr.bf16.mxu0 0
    %607 = vmatpush1.bf16.msra.mxu0 0
    %608 = vmatprep.subr.bf16.mxu0 0
    %609 = vmatpush1.bf16.msra.mxu0 0
    %610 = vmatprep.subr.bf16.mxu0 0
    %611 = vmatpush1.bf16.msra.mxu0 0
    %612 = vmatprep.subr.bf16.mxu0 0
    %613 = vmatpush1.bf16.msra.mxu0 %v559
    %614 = vmatprep.subr.bf16.mxu0 0
    %615 = vmatpush1.bf16.msra.mxu0 %v533
    %616 = vmatprep.subr.bf16.mxu0 0
    %617 = vmatpush1.bf16.msra.mxu0 %v532
    %618 = vmatprep.subr.bf16.mxu0 0
    %619 = vmatpush2.bf16.msra.mxu0 0
    %620 = vmatprep.subr.bf16.mxu0 0
    %621 = vmatpush2.bf16.msra.mxu0 0
    %622 = vmatprep.subr.bf16.mxu0 0
    %623 = vmatpush2.bf16.msra.mxu0 0
    %624 = vmatprep.subr.bf16.mxu0 0
    %625 = vmatpush2.bf16.msra.mxu0 0
    %626 = vmatprep.subr.bf16.mxu0 0
    %627 = vmatpush2.bf16.msra.mxu0 0
    %628 = vmatprep.subr.bf16.mxu0 0
    %629 = vmatpush2.bf16.msra.mxu0 0
    %630 = vmatprep.subr.bf16.mxu0 0
    %631 = vmatpush2.bf16.msra.mxu0 0
    %632 = vmatprep.subr.bf16.mxu0 0
    %633 = vmatpush2.bf16.msra.mxu0 0
    %634 = vmatprep.mubr.bf16.mxu0 0
    %635 = vmatmul.mubr.bf16.gmra.mxu0 %v555
    %v636 = vpop.f32.mrf.mxu0
    %v637 = vadd.f32 %v596, %v636
    %v638 = vpop.f32.mrf.mxu0
    %v639 = vpop.f32.mrf.mxu0
    %v640 = vadd.f32 %v599, %v639
    %v641 = vpop.f32.mrf.mxu0
    %642 = vdwg.mxu0
    %v643 = vld [vmem:[#allocation11] sm:$0xff]
    %v644 = vld [vmem:[#allocation11 + $0x8] sm:$0xff]
    %v645 = vld [vmem:[#allocation11 + $0x10] sm:$0xff]
    %v646 = vpack.c.bf16 %v643, %v643
    %v647 = vpack.c.bf16 %v644, %v644
    %v648 = vpack.c.bf16 %v645, %v645
    %v649 = vld [vmem:[#allocation20] sm:$0xf]
    %v650 = vld [vmem:[#allocation20 + $0x4] sm:$0xf]
    %v651 = vld [vmem:[#allocation20 + $0x8] sm:$0xf]
    %v652 = vld [vmem:[#allocation20 + $0xc] sm:$0xf]
    %v653 = vld [vmem:[#allocation20 + $0x10] sm:$0xf]
    %v654 = vld [vmem:[#allocation20 + $0x14] sm:$0xf]
    %v655 = vld [vmem:[#allocation20 + $0x18] sm:$0xf]
    %v656 = vld [vmem:[#allocation20 + $0x1c] sm:$0xf]
    %v657 = vld [vmem:[#allocation20 + $0x20] sm:$0xf]
    %v658 = vld [vmem:[#allocation20 + $0x24] sm:$0xf]
    %v659 = vld [vmem:[#allocation20 + $0x28] sm:$0xf]
    %v660 = vld [vmem:[#allocation20 + $0x2c] sm:$0xf]
    %v661 = vld [vmem:[#allocation20 + $0x30] sm:$0xf]
    %v662 = vld [vmem:[#allocation20 + $0x34] sm:$0xf]
    %v663 = vld [vmem:[#allocation20 + $0x38] sm:$0xf]
    %v664 = vld [vmem:[#allocation20 + $0x3c] sm:$0xf]
    %v665 = vld [vmem:[#allocation20 + $0x40] sm:$0xf]
    %v666 = vld [vmem:[#allocation20 + $0x44] sm:$0xf]
    %v667 = vld [vmem:[#allocation20 + $0x48] sm:$0xf]
    %v668 = vld [vmem:[#allocation20 + $0x4c] sm:$0xf]
    %v669 = vld [vmem:[#allocation20 + $0x50] sm:$0xf]
    %v670 = vld [vmem:[#allocation20 + $0x54] sm:$0xf]
    %v671 = vld [vmem:[#allocation20 + $0x58] sm:$0xf]
    %v672 = vld [vmem:[#allocation20 + $0x5c] sm:$0xf]
    %v673 = vld [vmem:[#allocation20 + $0x60] sm:$0xf]
    %v674 = vld [vmem:[#allocation20 + $0x64] sm:$0xf]
    %v675 = vld [vmem:[#allocation20 + $0x68] sm:$0xf]
    %v676 = vld [vmem:[#allocation20 + $0x6c] sm:$0xf]
    %v677 = vld [vmem:[#allocation20 + $0x70] sm:$0xf]
    %v678 = vld [vmem:[#allocation20 + $0x74] sm:$0xf]
    %v679 = vld [vmem:[#allocation20 + $0x78] sm:$0xf]
    %v680 = vld [vmem:[#allocation20 + $0x7c] sm:$0xf]
    %v681 = vld [vmem:[#allocation20 + $0x80] sm:$0xf]
    %v682 = vld [vmem:[#allocation20 + $0x84] sm:$0xf]
    %v683 = vld [vmem:[#allocation20 + $0x88] sm:$0xf]
    %v684 = vld [vmem:[#allocation20 + $0x8c] sm:$0xf]
    %v685 = vld [vmem:[#allocation20 + $0x90] sm:$0xf]
    %v686 = vld [vmem:[#allocation20 + $0x94] sm:$0xf]
    %v687 = vld [vmem:[#allocation20 + $0x98] sm:$0xf]
    %v688 = vld [vmem:[#allocation20 + $0x9c] sm:$0xf]
    %v689 = vld [vmem:[#allocation22] sm:$0x1]
    %v691 = vlaneseq
    %v692 = vshrl.u32 %v691, 7
    %v693 = vsub.s32 0, %v692
    %v694 = vrot.slane %v689, %v693
    %v736 = vunpack.c.l.b16 %v649
    %v737 = vunpack.c.l.b16 %v650
    %v738 = vunpack.c.l.b16 %v651
    %v739 = vunpack.c.l.b16 %v652
    %v740 = vunpack.c.l.b16 %v653
    %v741 = vunpack.c.l.b16 %v654
    %v742 = vunpack.c.l.b16 %v655
    %v743 = vunpack.c.l.b16 %v656
    %v744 = vunpack.c.l.b16 %v657
    %v745 = vunpack.c.l.b16 %v658
    %v746 = vunpack.c.l.b16 %v659
    %v747 = vunpack.c.l.b16 %v660
    %v748 = vunpack.c.l.b16 %v661
    %v749 = vunpack.c.l.b16 %v662
    %v750 = vunpack.c.l.b16 %v663
    %v751 = vunpack.c.l.b16 %v664
    %v752 = vunpack.c.l.b16 %v665
    %v753 = vunpack.c.l.b16 %v666
    %v754 = vunpack.c.l.b16 %v667
    %v755 = vunpack.c.l.b16 %v668
    %v756 = vunpack.c.l.b16 %v669
    %v757 = vunpack.c.l.b16 %v670
    %v758 = vunpack.c.l.b16 %v671
    %v759 = vunpack.c.l.b16 %v672
    %v760 = vunpack.c.l.b16 %v673
    %v761 = vunpack.c.l.b16 %v674
    %v762 = vunpack.c.l.b16 %v675
    %v763 = vunpack.c.l.b16 %v676
    %v764 = vunpack.c.l.b16 %v677
    %v765 = vunpack.c.l.b16 %v678
    %v766 = vunpack.c.l.b16 %v679
    %v767 = vunpack.c.l.b16 %v680
    %v768 = vunpack.c.l.b16 %v681
    %v769 = vunpack.c.l.b16 %v682
    %v770 = vunpack.c.l.b16 %v683
    %v771 = vunpack.c.l.b16 %v684
    %v772 = vunpack.c.l.b16 %v685
    %v773 = vunpack.c.l.b16 %v686
    %v774 = vunpack.c.l.b16 %v687
    %v775 = vunpack.c.l.b16 %v688
    %v776 = vpack.c.b16 %v737, %v736
    %v777 = vpack.c.b16 %v739, %v738
    %v778 = vpack.c.b16 %v741, %v740
    %v779 = vpack.c.b16 %v743, %v742
    %v780 = vpack.c.b16 %v745, %v744
    %v781 = vpack.c.b16 %v747, %v746
    %v782 = vpack.c.b16 %v749, %v748
    %v783 = vpack.c.b16 %v751, %v750
    %v784 = vpack.c.b16 %v753, %v752
    %v785 = vpack.c.b16 %v755, %v754
    %v786 = vpack.c.b16 %v757, %v756
    %v787 = vpack.c.b16 %v759, %v758
    %v788 = vpack.c.b16 %v761, %v760
    %v789 = vpack.c.b16 %v763, %v762
    %v790 = vpack.c.b16 %v765, %v764
    %v791 = vpack.c.b16 %v767, %v766
    %v792 = vpack.c.b16 %v769, %v768
    %v793 = vpack.c.b16 %v771, %v770
    %v794 = vpack.c.b16 %v773, %v772
    %v795 = vpack.c.b16 %v775, %v774
    %vm816 = vcmask 523264
    %v818 = vsel %vm816, %v648, 0
    %820 = vmatprep.subr.bf16.mxu0 0
    %821 = vmatpush1.bf16.msra.mxu0 %v783
    %822 = vmatprep.subr.bf16.mxu0 0
    %823 = vmatpush1.bf16.msra.mxu0 %v782
    %824 = vmatprep.subr.bf16.mxu0 0
    %825 = vmatpush1.bf16.msra.mxu0 %v781
    %826 = vmatprep.subr.bf16.mxu0 0
    %827 = vmatpush1.bf16.msra.mxu0 %v780
    %828 = vmatprep.subr.bf16.mxu0 0
    %829 = vmatpush1.bf16.msra.mxu0 %v779
    %830 = vmatprep.subr.bf16.mxu0 0
    %831 = vmatpush1.bf16.msra.mxu0 %v778
    %832 = vmatprep.subr.bf16.mxu0 0
    %833 = vmatpush1.bf16.msra.mxu0 %v777
    %834 = vmatprep.subr.bf16.mxu0 0
    %835 = vmatpush1.bf16.msra.mxu0 %v776
    %836 = vmatprep.subr.bf16.mxu0 0
    %837 = vmatpush2.bf16.msra.mxu0 %v791
    %838 = vmatprep.subr.bf16.mxu0 0
    %839 = vmatpush2.bf16.msra.mxu0 %v790
    %840 = vmatprep.subr.bf16.mxu0 0
    %841 = vmatpush2.bf16.msra.mxu0 %v789
    %842 = vmatprep.subr.bf16.mxu0 0
    %843 = vmatpush2.bf16.msra.mxu0 %v788
    %844 = vmatprep.subr.bf16.mxu0 0
    %845 = vmatpush2.bf16.msra.mxu0 %v787
    %846 = vmatprep.subr.bf16.mxu0 0
    %847 = vmatpush2.bf16.msra.mxu0 %v786
    %848 = vmatprep.subr.bf16.mxu0 0
    %849 = vmatpush2.bf16.msra.mxu0 %v785
    %850 = vmatprep.subr.bf16.mxu0 0
    %851 = vmatpush2.bf16.msra.mxu0 %v784
    %852 = vmatprep.mubr.bf16.mxu0 %v647
    %853 = vmatmul.mubr.bf16.gmra.mxu0 %v646
    %v854 = vpop.f32.mrf.mxu0
    %v855 = vadd.f32 %v694, %v854
    %v856 = vpop.f32.mrf.mxu0
    %v857 = vpop.f32.mrf.mxu0
    %v858 = vpop.f32.mrf.mxu0
    %859 = vdwg.mxu0
    %860 = vmatprep.subr.bf16.mxu0 0
    %861 = vmatpush1.bf16.msra.mxu0 0
    %862 = vmatprep.subr.bf16.mxu0 0
    %863 = vmatpush1.bf16.msra.mxu0 0
    %864 = vmatprep.subr.bf16.mxu0 0
    %865 = vmatpush1.bf16.msra.mxu0 0
    %866 = vmatprep.subr.bf16.mxu0 0
    %867 = vmatpush1.bf16.msra.mxu0 0
    %868 = vmatprep.subr.bf16.mxu0 0
    %869 = vmatpush1.bf16.msra.mxu0 %v795
    %870 = vmatprep.subr.bf16.mxu0 0
    %871 = vmatpush1.bf16.msra.mxu0 %v794
    %872 = vmatprep.subr.bf16.mxu0 0
    %873 = vmatpush1.bf16.msra.mxu0 %v793
    %874 = vmatprep.subr.bf16.mxu0 0
    %875 = vmatpush1.bf16.msra.mxu0 %v792
    %876 = vmatprep.subr.bf16.mxu0 0
    %877 = vmatpush2.bf16.msra.mxu0 0
    %878 = vmatprep.subr.bf16.mxu0 0
    %879 = vmatpush2.bf16.msra.mxu0 0
    %880 = vmatprep.subr.bf16.mxu0 0
    %881 = vmatpush2.bf16.msra.mxu0 0
    %882 = vmatprep.subr.bf16.mxu0 0
    %883 = vmatpush2.bf16.msra.mxu0 0
    %884 = vmatprep.subr.bf16.mxu0 0
    %885 = vmatpush2.bf16.msra.mxu0 0
    %886 = vmatprep.subr.bf16.mxu0 0
    %887 = vmatpush2.bf16.msra.mxu0 0
    %888 = vmatprep.subr.bf16.mxu0 0
    %889 = vmatpush2.bf16.msra.mxu0 0
    %890 = vmatprep.subr.bf16.mxu0 0
    %891 = vmatpush2.bf16.msra.mxu0 0
    %892 = vmatprep.mubr.bf16.mxu0 0
    %893 = vmatmul.mubr.bf16.gmra.mxu0 %v818
    %v894 = vpop.f32.mrf.mxu0
    %v895 = vadd.f32 %v855, %v894
    %v896 = vpop.f32.mrf.mxu0
    %v897 = vpop.f32.mrf.mxu0
    %v898 = vpop.f32.mrf.mxu0
    %899 = vdwg.mxu0
    %900 = vst [vmem:[#allocation44] sm:$0xff] %v637
    %901 = vst [vmem:[#allocation44 + $0x8] sm:$0xff] %v640
    %902 = vst [vmem:[#allocation45] sm:$0xff] %v895
    %v903 = vld [vmem:[#allocation13] sm:$0xff]
    %v904 = vld [vmem:[#allocation13 + $0x8] sm:$0xff]
    %v905 = vld [vmem:[#allocation14] sm:$0xff]
    %v906 = vld [vmem:[#allocation14 + $0x8] sm:$0xff]
    %v907 = vpack.c.bf16 %v640, %v637
    %v908 = vpack.c.bf16 %v906, %v905
    %v909 = vld [vmem:[#allocation23] sm:$0xf]
    %v910 = vld [vmem:[#allocation23 + $0x4] sm:$0xf]
    %v911 = vld [vmem:[#allocation23 + $0x8] sm:$0xf]
    %v912 = vld [vmem:[#allocation23 + $0xc] sm:$0xf]
    %v913 = vld [vmem:[#allocation23 + $0x10] sm:$0xf]
    %v914 = vld [vmem:[#allocation23 + $0x14] sm:$0xf]
    %v915 = vld [vmem:[#allocation23 + $0x18] sm:$0xf]
    %v916 = vld [vmem:[#allocation23 + $0x1c] sm:$0xf]
    %v917 = vld [vmem:[#allocation23 + $0x20] sm:$0xf]
    %v918 = vld [vmem:[#allocation23 + $0x24] sm:$0xf]
    %v919 = vld [vmem:[#allocation23 + $0x28] sm:$0xf]
    %v920 = vld [vmem:[#allocation23 + $0x2c] sm:$0xf]
    %v921 = vld [vmem:[#allocation23 + $0x30] sm:$0xf]
    %v922 = vld [vmem:[#allocation23 + $0x34] sm:$0xf]
    %v923 = vld [vmem:[#allocation23 + $0x38] sm:$0xf]
    %v924 = vld [vmem:[#allocation23 + $0x3c] sm:$0xf]
    %v925 = vld [vmem:[#allocation23 + $0x40] sm:$0xf]
    %v926 = vld [vmem:[#allocation23 + $0x44] sm:$0xf]
    %v927 = vld [vmem:[#allocation23 + $0x48] sm:$0xf]
    %v928 = vld [vmem:[#allocation23 + $0x4c] sm:$0xf]
    %v929 = vld [vmem:[#allocation23 + $0x50] sm:$0xf]
    %v930 = vld [vmem:[#allocation23 + $0x54] sm:$0xf]
    %v931 = vld [vmem:[#allocation23 + $0x58] sm:$0xf]
    %v932 = vld [vmem:[#allocation23 + $0x5c] sm:$0xf]
    %v933 = vld [vmem:[#allocation23 + $0x60] sm:$0xf]
    %v934 = vld [vmem:[#allocation23 + $0x64] sm:$0xf]
    %v935 = vld [vmem:[#allocation23 + $0x68] sm:$0xf]
    %v936 = vld [vmem:[#allocation23 + $0x6c] sm:$0xf]
    %v937 = vld [vmem:[#allocation23 + $0x70] sm:$0xf]
    %v938 = vld [vmem:[#allocation23 + $0x74] sm:$0xf]
    %v939 = vld [vmem:[#allocation23 + $0x78] sm:$0xf]
    %v940 = vld [vmem:[#allocation23 + $0x7c] sm:$0xf]
    %v941 = vld [vmem:[#allocation25] sm:$0x1]
    %v943 = vlaneseq
    %v944 = vshrl.u32 %v943, 7
    %v945 = vsub.s32 0, %v944
    %v946 = vrot.slane %v941, %v945
    %v980 = vunpack.c.l.b16 %v909
    %v981 = vunpack.c.l.b16 %v910
    %v982 = vunpack.c.l.b16 %v911
    %v983 = vunpack.c.l.b16 %v912
    %v984 = vunpack.c.l.b16 %v913
    %v985 = vunpack.c.l.b16 %v914
    %v986 = vunpack.c.l.b16 %v915
    %v987 = vunpack.c.l.b16 %v916
    %v988 = vunpack.c.l.b16 %v917
    %v989 = vunpack.c.l.b16 %v918
    %v990 = vunpack.c.l.b16 %v919
    %v991 = vunpack.c.l.b16 %v920
    %v992 = vunpack.c.l.b16 %v921
    %v993 = vunpack.c.l.b16 %v922
    %v994 = vunpack.c.l.b16 %v923
    %v995 = vunpack.c.l.b16 %v924
    %v996 = vunpack.c.l.b16 %v925
    %v997 = vunpack.c.l.b16 %v926
    %v998 = vunpack.c.l.b16 %v927
    %v999 = vunpack.c.l.b16 %v928
    %v1000 = vunpack.c.l.b16 %v929
    %v1001 = vunpack.c.l.b16 %v930
    %v1002 = vunpack.c.l.b16 %v931
    %v1003 = vunpack.c.l.b16 %v932
    %v1004 = vunpack.c.l.b16 %v933
    %v1005 = vunpack.c.l.b16 %v934
    %v1006 = vunpack.c.l.b16 %v935
    %v1007 = vunpack.c.l.b16 %v936
    %v1008 = vunpack.c.l.b16 %v937
    %v1009 = vunpack.c.l.b16 %v938
    %v1010 = vunpack.c.l.b16 %v939
    %v1011 = vunpack.c.l.b16 %v940
    %v1012 = vpack.c.b16 %v981, %v980
    %v1013 = vpack.c.b16 %v983, %v982
    %v1014 = vpack.c.b16 %v985, %v984
    %v1015 = vpack.c.b16 %v987, %v986
    %v1016 = vpack.c.b16 %v989, %v988
    %v1017 = vpack.c.b16 %v991, %v990
    %v1018 = vpack.c.b16 %v993, %v992
    %v1019 = vpack.c.b16 %v995, %v994
    %v1020 = vpack.c.b16 %v997, %v996
    %v1021 = vpack.c.b16 %v999, %v998
    %v1022 = vpack.c.b16 %v1001, %v1000
    %v1023 = vpack.c.b16 %v1003, %v1002
    %v1024 = vpack.c.b16 %v1005, %v1004
    %v1025 = vpack.c.b16 %v1007, %v1006
    %v1026 = vpack.c.b16 %v1009, %v1008
    %v1027 = vpack.c.b16 %v1011, %v1010
    %1044 = vmatprep.subr.bf16.mxu0 0
    %1045 = vmatpush1.bf16.msra.mxu0 %v1019
    %1046 = vmatprep.subr.bf16.mxu0 0
    %1047 = vmatpush1.bf16.msra.mxu0 %v1018
    %1048 = vmatprep.subr.bf16.mxu0 0
    %1049 = vmatpush1.bf16.msra.mxu0 %v1017
    %1050 = vmatprep.subr.bf16.mxu0 0
    %1051 = vmatpush1.bf16.msra.mxu0 %v1016
    %1052 = vmatprep.subr.bf16.mxu0 0
    %1053 = vmatpush1.bf16.msra.mxu0 %v1015
    %1054 = vmatprep.subr.bf16.mxu0 0
    %1055 = vmatpush1.bf16.msra.mxu0 %v1014
    %1056 = vmatprep.subr.bf16.mxu0 0
    %1057 = vmatpush1.bf16.msra.mxu0 %v1013
    %1058 = vmatprep.subr.bf16.mxu0 0
    %1059 = vmatpush1.bf16.msra.mxu0 %v1012
    %1060 = vmatprep.subr.bf16.mxu0 0
    %1061 = vmatpush2.bf16.msra.mxu0 %v1027
    %1062 = vmatprep.subr.bf16.mxu0 0
    %1063 = vmatpush2.bf16.msra.mxu0 %v1026
    %1064 = vmatprep.subr.bf16.mxu0 0
    %1065 = vmatpush2.bf16.msra.mxu0 %v1025
    %1066 = vmatprep.subr.bf16.mxu0 0
    %1067 = vmatpush2.bf16.msra.mxu0 %v1024
    %1068 = vmatprep.subr.bf16.mxu0 0
    %1069 = vmatpush2.bf16.msra.mxu0 %v1023
    %1070 = vmatprep.subr.bf16.mxu0 0
    %1071 = vmatpush2.bf16.msra.mxu0 %v1022
    %1072 = vmatprep.subr.bf16.mxu0 0
    %1073 = vmatpush2.bf16.msra.mxu0 %v1021
    %1074 = vmatprep.subr.bf16.mxu0 0
    %1075 = vmatpush2.bf16.msra.mxu0 %v1020
    %1076 = vmatprep.mubr.bf16.mxu0 %v908
    %1077 = vmatmul.mubr.bf16.gmra.mxu0 %v907
    %v1078 = vpop.f32.mrf.mxu0
    %v1079 = vadd.f32 %v946, %v1078
    %v1080 = vpop.f32.mrf.mxu0
    %v1081 = vpop.f32.mrf.mxu0
    %v1082 = vadd.f32 %v946, %v1081
    %v1083 = vpop.f32.mrf.mxu0
    %1084 = vdwg.mxu0
    %v1085 = vtanh.pop %v1079
    %v1086 = vtanh.pop %v1082
    %v1087 = vld [vmem:[#allocation26] sm:$0x1]
    %v1089 = vlaneseq
    %v1090 = vshrl.u32 %v1089, 7
    %v1091 = vsub.s32 0, %v1090
    %v1092 = vrot.slane %v1087, %v1091
    %v1094 = vmul.f32 %v1085, %v1092
    %v1095 = vmul.f32 %v1086, %v1092
    %1096 = vadd.xlane.f32.xlu0 %v1094
    %v1097 = vpop.xlane.xlu0 %1096
    %1098 = vadd.xlane.f32.xlu0 %v1095
    %v1099 = vpop.xlane.xlu0 %1098
    %v1100 = vld [vmem:[#allocation6] sm:$0x1]
    %v1102 = vlaneseq
    %v1103 = vshrl.u32 %v1102, 7
    %v1104 = vsub.s32 0, %v1103
    %v1105 = vrot.slane %v1100, %v1104
    %v1107 = vadd.f32 %v1097, %v1105
    %v1108 = vadd.f32 %v1099, %v1105
    %v1109 = vxor.u32 %v1107, 2147483648
    %v1110 = vxor.u32 %v1108, 2147483648
    %v1111 = vmul.f32 %v1109, 1.442695
    %v1112 = vpow.pop %v1111
    %v1113 = vmul.f32 %v1110, 1.442695
    %v1114 = vpow.pop %v1113
    %v1115 = vadd.f32 %v1112, 1.0
    %v1116 = vadd.f32 %v1114, 1.0
    %v1117 = vrcp.pop %v1115
    %v1118 = vmul.f32 1.0, %v1117
    %v1119 = vrcp.pop %v1116
    %v1120 = vmul.f32 1.0, %v1119
    %1122 = vset.pattern.permute.xlu0 0
    %1123 = vperm.xlu0 %1122, %v1118
    %v1124 = vpop.permute.xlu0 %1123
    %1127 = vset.pattern.permute.xlu0 0
    %1128 = vperm.xlu0 %1127, %v1120
    %v1129 = vpop.permute.xlu0 %1128
    %v1131 = vmul.f32 %v1124, %v637
    %v1132 = vmul.f32 %v1129, %v640
    %v1133 = vsub.f32 1.0, %v1118
    %v1134 = vsub.f32 1.0, %v1120
    %1136 = vset.pattern.permute.xlu0 0
    %1137 = vperm.xlu0 %1136, %v1133
    %v1138 = vpop.permute.xlu0 %1137
    %1141 = vset.pattern.permute.xlu0 0
    %1142 = vperm.xlu0 %1141, %v1134
    %v1143 = vpop.permute.xlu0 %1142
    %v1145 = vmul.f32 %v1138, %v905
    %v1146 = vmul.f32 %v1143, %v906
    %v1147 = vadd.f32 %v1131, %v1145
    %v1148 = vadd.f32 %v1132, %v1146
    %1149 = vst [vmem:[#allocation2] sm:$0xff] %v1147
    %1150 = vst [vmem:[#allocation2 + $0x8] sm:$0xff] %v1148
    %v1151 = vld [vmem:[#allocation16] sm:$0xff]
    %v1152 = vld [vmem:[#allocation16 + $0x8] sm:$0xff]
    %v1153 = vpack.c.bf16 %v904, %v903
    %v1154 = vpack.c.bf16 %v1152, %v1151
    %v1155 = vld [vmem:[#allocation28] sm:$0xf]
    %v1156 = vld [vmem:[#allocation28 + $0x4] sm:$0xf]
    %v1157 = vld [vmem:[#allocation28 + $0x8] sm:$0xf]
    %v1158 = vld [vmem:[#allocation28 + $0xc] sm:$0xf]
    %v1159 = vld [vmem:[#allocation28 + $0x10] sm:$0xf]
    %v1160 = vld [vmem:[#allocation28 + $0x14] sm:$0xf]
    %v1161 = vld [vmem:[#allocation28 + $0x18] sm:$0xf]
    %v1162 = vld [vmem:[#allocation28 + $0x1c] sm:$0xf]
    %v1163 = vld [vmem:[#allocation28 + $0x20] sm:$0xf]
    %v1164 = vld [vmem:[#allocation28 + $0x24] sm:$0xf]
    %v1165 = vld [vmem:[#allocation28 + $0x28] sm:$0xf]
    %v1166 = vld [vmem:[#allocation28 + $0x2c] sm:$0xf]
    %v1167 = vld [vmem:[#allocation28 + $0x30] sm:$0xf]
    %v1168 = vld [vmem:[#allocation28 + $0x34] sm:$0xf]
    %v1169 = vld [vmem:[#allocation28 + $0x38] sm:$0xf]
    %v1170 = vld [vmem:[#allocation28 + $0x3c] sm:$0xf]
    %v1171 = vld [vmem:[#allocation28 + $0x40] sm:$0xf]
    %v1172 = vld [vmem:[#allocation28 + $0x44] sm:$0xf]
    %v1173 = vld [vmem:[#allocation28 + $0x48] sm:$0xf]
    %v1174 = vld [vmem:[#allocation28 + $0x4c] sm:$0xf]
    %v1175 = vld [vmem:[#allocation28 + $0x50] sm:$0xf]
    %v1176 = vld [vmem:[#allocation28 + $0x54] sm:$0xf]
    %v1177 = vld [vmem:[#allocation28 + $0x58] sm:$0xf]
    %v1178 = vld [vmem:[#allocation28 + $0x5c] sm:$0xf]
    %v1179 = vld [vmem:[#allocation28 + $0x60] sm:$0xf]
    %v1180 = vld [vmem:[#allocation28 + $0x64] sm:$0xf]
    %v1181 = vld [vmem:[#allocation28 + $0x68] sm:$0xf]
    %v1182 = vld [vmem:[#allocation28 + $0x6c] sm:$0xf]
    %v1183 = vld [vmem:[#allocation28 + $0x70] sm:$0xf]
    %v1184 = vld [vmem:[#allocation28 + $0x74] sm:$0xf]
    %v1185 = vld [vmem:[#allocation28 + $0x78] sm:$0xf]
    %v1186 = vld [vmem:[#allocation28 + $0x7c] sm:$0xf]
    %v1187 = vld [vmem:[#allocation29] sm:$0x1]
    %v1189 = vlaneseq
    %v1190 = vshrl.u32 %v1189, 7
    %v1191 = vsub.s32 0, %v1190
    %v1192 = vrot.slane %v1187, %v1191
    %v1226 = vunpack.c.l.b16 %v1155
    %v1227 = vunpack.c.l.b16 %v1156
    %v1228 = vunpack.c.l.b16 %v1157
    %v1229 = vunpack.c.l.b16 %v1158
    %v1230 = vunpack.c.l.b16 %v1159
    %v1231 = vunpack.c.l.b16 %v1160
    %v1232 = vunpack.c.l.b16 %v1161
    %v1233 = vunpack.c.l.b16 %v1162
    %v1234 = vunpack.c.l.b16 %v1163
    %v1235 = vunpack.c.l.b16 %v1164
    %v1236 = vunpack.c.l.b16 %v1165
    %v1237 = vunpack.c.l.b16 %v1166
    %v1238 = vunpack.c.l.b16 %v1167
    %v1239 = vunpack.c.l.b16 %v1168
    %v1240 = vunpack.c.l.b16 %v1169
    %v1241 = vunpack.c.l.b16 %v1170
    %v1242 = vunpack.c.l.b16 %v1171
    %v1243 = vunpack.c.l.b16 %v1172
    %v1244 = vunpack.c.l.b16 %v1173
    %v1245 = vunpack.c.l.b16 %v1174
    %v1246 = vunpack.c.l.b16 %v1175
    %v1247 = vunpack.c.l.b16 %v1176
    %v1248 = vunpack.c.l.b16 %v1177
    %v1249 = vunpack.c.l.b16 %v1178
    %v1250 = vunpack.c.l.b16 %v1179
    %v1251 = vunpack.c.l.b16 %v1180
    %v1252 = vunpack.c.l.b16 %v1181
    %v1253 = vunpack.c.l.b16 %v1182
    %v1254 = vunpack.c.l.b16 %v1183
    %v1255 = vunpack.c.l.b16 %v1184
    %v1256 = vunpack.c.l.b16 %v1185
    %v1257 = vunpack.c.l.b16 %v1186
    %v1258 = vpack.c.b16 %v1227, %v1226
    %v1259 = vpack.c.b16 %v1229, %v1228
    %v1260 = vpack.c.b16 %v1231, %v1230
    %v1261 = vpack.c.b16 %v1233, %v1232
    %v1262 = vpack.c.b16 %v1235, %v1234
    %v1263 = vpack.c.b16 %v1237, %v1236
    %v1264 = vpack.c.b16 %v1239, %v1238
    %v1265 = vpack.c.b16 %v1241, %v1240
    %v1266 = vpack.c.b16 %v1243, %v1242
    %v1267 = vpack.c.b16 %v1245, %v1244
    %v1268 = vpack.c.b16 %v1247, %v1246
    %v1269 = vpack.c.b16 %v1249, %v1248
    %v1270 = vpack.c.b16 %v1251, %v1250
    %v1271 = vpack.c.b16 %v1253, %v1252
    %v1272 = vpack.c.b16 %v1255, %v1254
    %v1273 = vpack.c.b16 %v1257, %v1256
    %1290 = vmatprep.subr.bf16.mxu0 0
    %1291 = vmatpush1.bf16.msra.mxu0 %v1265
    %1292 = vmatprep.subr.bf16.mxu0 0
    %1293 = vmatpush1.bf16.msra.mxu0 %v1264
    %1294 = vmatprep.subr.bf16.mxu0 0
    %1295 = vmatpush1.bf16.msra.mxu0 %v1263
    %1296 = vmatprep.subr.bf16.mxu0 0
    %1297 = vmatpush1.bf16.msra.mxu0 %v1262
    %1298 = vmatprep.subr.bf16.mxu0 0
    %1299 = vmatpush1.bf16.msra.mxu0 %v1261
    %1300 = vmatprep.subr.bf16.mxu0 0
    %1301 = vmatpush1.bf16.msra.mxu0 %v1260
    %1302 = vmatprep.subr.bf16.mxu0 0
    %1303 = vmatpush1.bf16.msra.mxu0 %v1259
    %1304 = vmatprep.subr.bf16.mxu0 0
    %1305 = vmatpush1.bf16.msra.mxu0 %v1258
    %1306 = vmatprep.subr.bf16.mxu0 0
    %1307 = vmatpush2.bf16.msra.mxu0 %v1273
    %1308 = vmatprep.subr.bf16.mxu0 0
    %1309 = vmatpush2.bf16.msra.mxu0 %v1272
    %1310 = vmatprep.subr.bf16.mxu0 0
    %1311 = vmatpush2.bf16.msra.mxu0 %v1271
    %1312 = vmatprep.subr.bf16.mxu0 0
    %1313 = vmatpush2.bf16.msra.mxu0 %v1270
    %1314 = vmatprep.subr.bf16.mxu0 0
    %1315 = vmatpush2.bf16.msra.mxu0 %v1269
    %1316 = vmatprep.subr.bf16.mxu0 0
    %1317 = vmatpush2.bf16.msra.mxu0 %v1268
    %1318 = vmatprep.subr.bf16.mxu0 0
    %1319 = vmatpush2.bf16.msra.mxu0 %v1267
    %1320 = vmatprep.subr.bf16.mxu0 0
    %1321 = vmatpush2.bf16.msra.mxu0 %v1266
    %1322 = vmatprep.mubr.bf16.mxu0 %v1154
    %1323 = vmatmul.mubr.bf16.gmra.mxu0 %v1153
    %v1324 = vpop.f32.mrf.mxu0
    %v1325 = vadd.f32 %v1192, %v1324
    %v1326 = vpop.f32.mrf.mxu0
    %v1327 = vpop.f32.mrf.mxu0
    %v1328 = vadd.f32 %v1192, %v1327
    %v1329 = vpop.f32.mrf.mxu0
    %1330 = vdwg.mxu0
    %v1331 = vtanh.pop %v1325
    %v1332 = vtanh.pop %v1328
    %v1333 = vld [vmem:[#allocation31] sm:$0x1]
    %v1335 = vlaneseq
    %v1336 = vshrl.u32 %v1335, 7
    %v1337 = vsub.s32 0, %v1336
    %v1338 = vrot.slane %v1333, %v1337
    %v1340 = vmul.f32 %v1331, %v1338
    %v1341 = vmul.f32 %v1332, %v1338
    %1342 = vadd.xlane.f32.xlu0 %v1340
    %v1343 = vpop.xlane.xlu0 %1342
    %1344 = vadd.xlane.f32.xlu0 %v1341
    %v1345 = vpop.xlane.xlu0 %1344
    %v1346 = vld [vmem:[#allocation7] sm:$0x1]
    %v1348 = vlaneseq
    %v1349 = vshrl.u32 %v1348, 7
    %v1350 = vsub.s32 0, %v1349
    %v1351 = vrot.slane %v1346, %v1350
    %v1353 = vadd.f32 %v1343, %v1351
    %v1354 = vadd.f32 %v1345, %v1351
    %v1355 = vxor.u32 %v1353, 2147483648
    %v1356 = vxor.u32 %v1354, 2147483648
    %v1357 = vmul.f32 %v1355, 1.442695
    %v1358 = vpow.pop %v1357
    %v1359 = vmul.f32 %v1356, 1.442695
    %v1360 = vpow.pop %v1359
    %v1361 = vadd.f32 %v1358, 1.0
    %v1362 = vadd.f32 %v1360, 1.0
    %v1363 = vrcp.pop %v1361
    %v1364 = vmul.f32 1.0, %v1363
    %v1365 = vrcp.pop %v1362
    %v1366 = vmul.f32 1.0, %v1365
    %1368 = vset.pattern.permute.xlu0 0
    %1369 = vperm.xlu0 %1368, %v1364
    %v1370 = vpop.permute.xlu0 %1369
    %1373 = vset.pattern.permute.xlu0 0
    %1374 = vperm.xlu0 %1373, %v1366
    %v1375 = vpop.permute.xlu0 %1374
    %v1377 = vmul.f32 %v1370, %v903
    %v1378 = vmul.f32 %v1375, %v904
    %v1379 = vsub.f32 1.0, %v1364
    %v1380 = vsub.f32 1.0, %v1366
    %1382 = vset.pattern.permute.xlu0 0
    %1383 = vperm.xlu0 %1382, %v1379
    %v1384 = vpop.permute.xlu0 %1383
    %1387 = vset.pattern.permute.xlu0 0
    %1388 = vperm.xlu0 %1387, %v1380
    %v1389 = vpop.permute.xlu0 %1388
    %v1391 = vmul.f32 %v1384, %v1151
    %v1392 = vmul.f32 %v1389, %v1152
    %v1393 = vadd.f32 %v1377, %v1391
    %v1394 = vadd.f32 %v1378, %v1392
    %1395 = vst [vmem:[#allocation3] sm:$0xff] %v1393
    %1396 = vst [vmem:[#allocation3 + $0x8] sm:$0xff] %v1394
    %s1397 = sld [smem:[#allocation5]]
    %s1398 = scalar_lea.vmem [#allocation2], %s1397
    %v1399 = vld [vmem:[%s1398] sm:$0x1]
    %s1400 = sld [smem:[#allocation5 + $0x1]]
    %s1401 = scalar_lea.vmem [#allocation3], %s1400
    %v1402 = vld [vmem:[%s1401] sm:$0x1]
    %s1403 = sld [smem:[#allocation5 + $0x80]]
    %s1404 = scalar_lea.vmem [#allocation2], %s1403
    %v1405 = vld [vmem:[%s1404] sm:$0x1]
    %s1406 = sld [smem:[#allocation5 + $0x81]]
    %s1407 = scalar_lea.vmem [#allocation3], %s1406
    %v1408 = vld [vmem:[%s1407] sm:$0x1]
    %s1409 = sld [smem:[#allocation5 + $0x100]]
    %s1410 = scalar_lea.vmem [#allocation2], %s1409
    %v1411 = vld [vmem:[%s1410] sm:$0x1]
    %s1412 = sld [smem:[#allocation5 + $0x101]]
    %s1413 = scalar_lea.vmem [#allocation3], %s1412
    %v1414 = vld [vmem:[%s1413] sm:$0x1]
    %s1415 = sld [smem:[#allocation5 + $0x180]]
    %s1416 = scalar_lea.vmem [#allocation2], %s1415
    %v1417 = vld [vmem:[%s1416] sm:$0x1]
    %s1418 = sld [smem:[#allocation5 + $0x181]]
    %s1419 = scalar_lea.vmem [#allocation3], %s1418
    %v1420 = vld [vmem:[%s1419] sm:$0x1]
    %s1421 = sld [smem:[#allocation5 + $0x200]]
    %s1422 = scalar_lea.vmem [#allocation2], %s1421
    %v1423 = vld [vmem:[%s1422] sm:$0x1]
    %s1424 = sld [smem:[#allocation5 + $0x201]]
    %s1425 = scalar_lea.vmem [#allocation3], %s1424
    %v1426 = vld [vmem:[%s1425] sm:$0x1]
    %s1427 = sld [smem:[#allocation5 + $0x280]]
    %s1428 = scalar_lea.vmem [#allocation2], %s1427
    %v1429 = vld [vmem:[%s1428] sm:$0x1]
    %s1430 = sld [smem:[#allocation5 + $0x281]]
    %s1431 = scalar_lea.vmem [#allocation3], %s1430
    %v1432 = vld [vmem:[%s1431] sm:$0x1]
    %s1433 = sld [smem:[#allocation5 + $0x300]]
    %s1434 = scalar_lea.vmem [#allocation2], %s1433
    %v1435 = vld [vmem:[%s1434] sm:$0x1]
    %s1436 = sld [smem:[#allocation5 + $0x301]]
    %s1437 = scalar_lea.vmem [#allocation3], %s1436
    %v1438 = vld [vmem:[%s1437] sm:$0x1]
    %s1439 = sld [smem:[#allocation5 + $0x380]]
    %s1440 = scalar_lea.vmem [#allocation2], %s1439
    %v1441 = vld [vmem:[%s1440] sm:$0x1]
    %s1442 = sld [smem:[#allocation5 + $0x381]]
    %s1443 = scalar_lea.vmem [#allocation3], %s1442
    %v1444 = vld [vmem:[%s1443] sm:$0x1]
    %v1446 = vrot.slane %v1405, 7
    %v1449 = vrot.slane %v1411, 6
    %v1452 = vrot.slane %v1417, 5
    %v1455 = vrot.slane %v1423, 4
    %v1458 = vrot.slane %v1429, 3
    %v1461 = vrot.slane %v1435, 2
    %v1464 = vrot.slane %v1441, 1
    %vm1466 = vcmask 1040384
    %v1467 = vsel %vm1466, %v1399, %v1446
    %vm1468 = vcmask 1041408
    %v1469 = vsel %vm1468, %v1467, %v1449
    %vm1470 = vcmask 1042432
    %v1471 = vsel %vm1470, %v1469, %v1452
    %vm1472 = vcmask 1043456
    %v1473 = vsel %vm1472, %v1471, %v1455
    %vm1474 = vcmask 1044480
    %v1475 = vsel %vm1474, %v1473, %v1458
    %v1476 = vsel %vm557, %v1475, %v1461
    %vm1477 = vcmask 1046528
    %v1478 = vsel %vm1477, %v1476, %v1464
    %v1480 = vrot.slane %v1408, 7
    %v1483 = vrot.slane %v1414, 6
    %v1486 = vrot.slane %v1420, 5
    %v1489 = vrot.slane %v1426, 4
    %v1492 = vrot.slane %v1432, 3
    %v1495 = vrot.slane %v1438, 2
    %v1498 = vrot.slane %v1444, 1
    %v1500 = vsel %vm1466, %v1402, %v1480
    %v1501 = vsel %vm1468, %v1500, %v1483
    %v1502 = vsel %vm1470, %v1501, %v1486
    %v1503 = vsel %vm1472, %v1502, %v1489
    %v1504 = vsel %vm1474, %v1503, %v1492
    %v1505 = vsel %vm557, %v1504, %v1495
    %v1506 = vsel %vm1477, %v1505, %v1498
    %v1507 = vsub.f32 %v1478, %v1506
    %v1508 = vand.u32 2147483647, %v1507
    %v1509 = vmul.f32 %v1478, %v1506
    %v1510 = vpack.c.bf16 %v1478, %v1478
    %v1511 = vpack.c.bf16 %v1506, %v1506
    %v1512 = vpack.c.bf16 %v1508, %v1508
    %v1513 = vpack.c.bf16 %v1509, %v1509
    %v1514 = vld [vmem:[#allocation32] sm:$0xff]
    %v1515 = vld [vmem:[#allocation32 + $0x8] sm:$0xff]
    %v1516 = vld [vmem:[#allocation32 + $0x10] sm:$0xff]
    %v1517 = vld [vmem:[#allocation32 + $0x18] sm:$0xff]
    %v1518 = vld [vmem:[#allocation32 + $0x20] sm:$0xff]
    %v1519 = vld [vmem:[#allocation32 + $0x28] sm:$0xff]
    %v1520 = vld [vmem:[#allocation32 + $0x30] sm:$0xff]
    %v1521 = vld [vmem:[#allocation32 + $0x38] sm:$0xff]
    %v1522 = vld [vmem:[#allocation32 + $0x40] sm:$0xff]
    %v1523 = vld [vmem:[#allocation32 + $0x48] sm:$0xff]
    %v1524 = vld [vmem:[#allocation32 + $0x50] sm:$0xff]
    %v1525 = vld [vmem:[#allocation32 + $0x58] sm:$0xff]
    %v1526 = vld [vmem:[#allocation32 + $0x60] sm:$0xff]
    %v1527 = vld [vmem:[#allocation32 + $0x68] sm:$0xff]
    %v1528 = vld [vmem:[#allocation32 + $0x70] sm:$0xff]
    %v1529 = vld [vmem:[#allocation32 + $0x78] sm:$0xff]
    %v1530 = vld [vmem:[#allocation32 + $0x80] sm:$0xff]
    %v1531 = vld [vmem:[#allocation32 + $0x88] sm:$0xff]
    %v1532 = vld [vmem:[#allocation32 + $0x90] sm:$0xff]
    %v1533 = vld [vmem:[#allocation32 + $0x98] sm:$0xff]
    %v1534 = vld [vmem:[#allocation32 + $0xa0] sm:$0xff]
    %v1535 = vld [vmem:[#allocation32 + $0xa8] sm:$0xff]
    %v1536 = vld [vmem:[#allocation32 + $0xb0] sm:$0xff]
    %v1537 = vld [vmem:[#allocation32 + $0xb8] sm:$0xff]
    %v1538 = vld [vmem:[#allocation32 + $0xc0] sm:$0xff]
    %v1539 = vld [vmem:[#allocation32 + $0xc8] sm:$0xff]
    %v1540 = vld [vmem:[#allocation32 + $0xd0] sm:$0xff]
    %v1541 = vld [vmem:[#allocation32 + $0xd8] sm:$0xff]
    %v1542 = vld [vmem:[#allocation32 + $0xe0] sm:$0xff]
    %v1543 = vld [vmem:[#allocation32 + $0xe8] sm:$0xff]
    %v1544 = vld [vmem:[#allocation32 + $0xf0] sm:$0xff]
    %v1545 = vld [vmem:[#allocation32 + $0xf8] sm:$0xff]
    %v1546 = vld [vmem:[#allocation32 + $0x100] sm:$0xff]
    %v1547 = vld [vmem:[#allocation32 + $0x108] sm:$0xff]
    %v1548 = vld [vmem:[#allocation32 + $0x110] sm:$0xff]
    %v1549 = vld [vmem:[#allocation32 + $0x118] sm:$0xff]
    %v1550 = vld [vmem:[#allocation32 + $0x120] sm:$0xff]
    %v1551 = vld [vmem:[#allocation32 + $0x128] sm:$0xff]
    %v1552 = vld [vmem:[#allocation32 + $0x130] sm:$0xff]
    %v1553 = vld [vmem:[#allocation32 + $0x138] sm:$0xff]
    %v1554 = vld [vmem:[#allocation32 + $0x140] sm:$0xff]
    %v1555 = vld [vmem:[#allocation32 + $0x148] sm:$0xff]
    %v1556 = vld [vmem:[#allocation32 + $0x150] sm:$0xff]
    %v1557 = vld [vmem:[#allocation32 + $0x158] sm:$0xff]
    %v1558 = vld [vmem:[#allocation32 + $0x160] sm:$0xff]
    %v1559 = vld [vmem:[#allocation32 + $0x168] sm:$0xff]
    %v1560 = vld [vmem:[#allocation32 + $0x170] sm:$0xff]
    %v1561 = vld [vmem:[#allocation32 + $0x178] sm:$0xff]
    %v1562 = vld [vmem:[#allocation32 + $0x180] sm:$0xff]
    %v1563 = vld [vmem:[#allocation32 + $0x188] sm:$0xff]
    %v1564 = vld [vmem:[#allocation32 + $0x190] sm:$0xff]
    %v1565 = vld [vmem:[#allocation32 + $0x198] sm:$0xff]
    %v1566 = vld [vmem:[#allocation32 + $0x1a0] sm:$0xff]
    %v1567 = vld [vmem:[#allocation32 + $0x1a8] sm:$0xff]
    %v1568 = vld [vmem:[#allocation32 + $0x1b0] sm:$0xff]
    %v1569 = vld [vmem:[#allocation32 + $0x1b8] sm:$0xff]
    %v1570 = vld [vmem:[#allocation32 + $0x1c0] sm:$0xff]
    %v1571 = vld [vmem:[#allocation32 + $0x1c8] sm:$0xff]
    %v1572 = vld [vmem:[#allocation32 + $0x1d0] sm:$0xff]
    %v1573 = vld [vmem:[#allocation32 + $0x1d8] sm:$0xff]
    %v1574 = vld [vmem:[#allocation32 + $0x1e0] sm:$0xff]
    %v1575 = vld [vmem:[#allocation32 + $0x1e8] sm:$0xff]
    %v1576 = vld [vmem:[#allocation32 + $0x1f0] sm:$0xff]
    %v1577 = vld [vmem:[#allocation32 + $0x1f8] sm:$0xff]
    %v1578 = vld [vmem:[#allocation32 + $0x200] sm:$0xff]
    %v1579 = vld [vmem:[#allocation32 + $0x208] sm:$0xff]
    %v1580 = vld [vmem:[#allocation32 + $0x210] sm:$0xff]
    %v1581 = vld [vmem:[#allocation32 + $0x218] sm:$0xff]
    %v1582 = vld [vmem:[#allocation32 + $0x220] sm:$0xff]
    %v1583 = vld [vmem:[#allocation32 + $0x228] sm:$0xff]
    %v1584 = vld [vmem:[#allocation32 + $0x230] sm:$0xff]
    %v1585 = vld [vmem:[#allocation32 + $0x238] sm:$0xff]
    %v1586 = vld [vmem:[#allocation32 + $0x240] sm:$0xff]
    %v1587 = vld [vmem:[#allocation32 + $0x248] sm:$0xff]
    %v1588 = vld [vmem:[#allocation32 + $0x250] sm:$0xff]
    %v1589 = vld [vmem:[#allocation32 + $0x258] sm:$0xff]
    %v1590 = vld [vmem:[#allocation32 + $0x260] sm:$0xff]
    %v1591 = vld [vmem:[#allocation32 + $0x268] sm:$0xff]
    %v1592 = vld [vmem:[#allocation32 + $0x270] sm:$0xff]
    %v1593 = vld [vmem:[#allocation32 + $0x278] sm:$0xff]
    %v1594 = vld [vmem:[#allocation32 + $0x280] sm:$0xff]
    %v1595 = vld [vmem:[#allocation32 + $0x288] sm:$0xff]
    %v1596 = vld [vmem:[#allocation32 + $0x290] sm:$0xff]
    %v1597 = vld [vmem:[#allocation32 + $0x298] sm:$0xff]
    %v1598 = vld [vmem:[#allocation32 + $0x2a0] sm:$0xff]
    %v1599 = vld [vmem:[#allocation32 + $0x2a8] sm:$0xff]
    %v1600 = vld [vmem:[#allocation32 + $0x2b0] sm:$0xff]
    %v1601 = vld [vmem:[#allocation32 + $0x2b8] sm:$0xff]
    %v1602 = vld [vmem:[#allocation32 + $0x2c0] sm:$0xff]
    %v1603 = vld [vmem:[#allocation32 + $0x2c8] sm:$0xff]
    %v1604 = vld [vmem:[#allocation32 + $0x2d0] sm:$0xff]
    %v1605 = vld [vmem:[#allocation32 + $0x2d8] sm:$0xff]
    %v1606 = vld [vmem:[#allocation32 + $0x2e0] sm:$0xff]
    %v1607 = vld [vmem:[#allocation32 + $0x2e8] sm:$0xff]
    %v1608 = vld [vmem:[#allocation32 + $0x2f0] sm:$0xff]
    %v1609 = vld [vmem:[#allocation32 + $0x2f8] sm:$0xff]
    %v1610 = vld [vmem:[#allocation32 + $0x300] sm:$0xff]
    %v1611 = vld [vmem:[#allocation32 + $0x308] sm:$0xff]
    %v1612 = vld [vmem:[#allocation32 + $0x310] sm:$0xff]
    %v1613 = vld [vmem:[#allocation32 + $0x318] sm:$0xff]
    %v1614 = vld [vmem:[#allocation32 + $0x320] sm:$0xff]
    %v1615 = vld [vmem:[#allocation32 + $0x328] sm:$0xff]
    %v1616 = vld [vmem:[#allocation32 + $0x330] sm:$0xff]
    %v1617 = vld [vmem:[#allocation32 + $0x338] sm:$0xff]
    %v1618 = vld [vmem:[#allocation32 + $0x340] sm:$0xff]
    %v1619 = vld [vmem:[#allocation32 + $0x348] sm:$0xff]
    %v1620 = vld [vmem:[#allocation32 + $0x350] sm:$0xff]
    %v1621 = vld [vmem:[#allocation32 + $0x358] sm:$0xff]
    %v1622 = vld [vmem:[#allocation32 + $0x360] sm:$0xff]
    %v1623 = vld [vmem:[#allocation32 + $0x368] sm:$0xff]
    %v1624 = vld [vmem:[#allocation32 + $0x370] sm:$0xff]
    %v1625 = vld [vmem:[#allocation32 + $0x378] sm:$0xff]
    %v1626 = vld [vmem:[#allocation32 + $0x380] sm:$0xff]
    %v1627 = vld [vmem:[#allocation32 + $0x388] sm:$0xff]
    %v1628 = vld [vmem:[#allocation32 + $0x390] sm:$0xff]
    %v1629 = vld [vmem:[#allocation32 + $0x398] sm:$0xff]
    %v1630 = vld [vmem:[#allocation32 + $0x3a0] sm:$0xff]
    %v1631 = vld [vmem:[#allocation32 + $0x3a8] sm:$0xff]
    %v1632 = vld [vmem:[#allocation32 + $0x3b0] sm:$0xff]
    %v1633 = vld [vmem:[#allocation32 + $0x3b8] sm:$0xff]
    %v1634 = vld [vmem:[#allocation32 + $0x3c0] sm:$0xff]
    %v1635 = vld [vmem:[#allocation32 + $0x3c8] sm:$0xff]
    %v1636 = vld [vmem:[#allocation32 + $0x3d0] sm:$0xff]
    %v1637 = vld [vmem:[#allocation32 + $0x3d8] sm:$0xff]
    %v1638 = vld [vmem:[#allocation32 + $0x3e0] sm:$0xff]
    %v1639 = vld [vmem:[#allocation32 + $0x3e8] sm:$0xff]
    %v1640 = vld [vmem:[#allocation32 + $0x3f0] sm:$0xff]
    %v1641 = vld [vmem:[#allocation32 + $0x3f8] sm:$0xff]
    %v1642 = vld [vmem:[#allocation32 + $0x400] sm:$0xff]
    %v1643 = vld [vmem:[#allocation32 + $0x408] sm:$0xff]
    %v1644 = vld [vmem:[#allocation32 + $0x410] sm:$0xff]
    %v1645 = vld [vmem:[#allocation32 + $0x418] sm:$0xff]
    %v1646 = vld [vmem:[#allocation32 + $0x420] sm:$0xff]
    %v1647 = vld [vmem:[#allocation32 + $0x428] sm:$0xff]
    %v1648 = vld [vmem:[#allocation32 + $0x430] sm:$0xff]
    %v1649 = vld [vmem:[#allocation32 + $0x438] sm:$0xff]
    %v1650 = vld [vmem:[#allocation32 + $0x440] sm:$0xff]
    %v1651 = vld [vmem:[#allocation32 + $0x448] sm:$0xff]
    %v1652 = vld [vmem:[#allocation32 + $0x450] sm:$0xff]
    %v1653 = vld [vmem:[#allocation32 + $0x458] sm:$0xff]
    %v1654 = vld [vmem:[#allocation32 + $0x460] sm:$0xff]
    %v1655 = vld [vmem:[#allocation32 + $0x468] sm:$0xff]
    %v1656 = vld [vmem:[#allocation32 + $0x470] sm:$0xff]
    %v1657 = vld [vmem:[#allocation32 + $0x478] sm:$0xff]
    %v1658 = vld [vmem:[#allocation32 + $0x480] sm:$0xff]
    %v1659 = vld [vmem:[#allocation32 + $0x488] sm:$0xff]
    %v1660 = vld [vmem:[#allocation32 + $0x490] sm:$0xff]
    %v1661 = vld [vmem:[#allocation32 + $0x498] sm:$0xff]
    %v1662 = vld [vmem:[#allocation32 + $0x4a0] sm:$0xff]
    %v1663 = vld [vmem:[#allocation32 + $0x4a8] sm:$0xff]
    %v1664 = vld [vmem:[#allocation32 + $0x4b0] sm:$0xff]
    %v1665 = vld [vmem:[#allocation32 + $0x4b8] sm:$0xff]
    %v1666 = vld [vmem:[#allocation32 + $0x4c0] sm:$0xff]
    %v1667 = vld [vmem:[#allocation32 + $0x4c8] sm:$0xff]
    %v1668 = vld [vmem:[#allocation32 + $0x4d0] sm:$0xff]
    %v1669 = vld [vmem:[#allocation32 + $0x4d8] sm:$0xff]
    %v1670 = vld [vmem:[#allocation32 + $0x4e0] sm:$0xff]
    %v1671 = vld [vmem:[#allocation32 + $0x4e8] sm:$0xff]
    %v1672 = vld [vmem:[#allocation32 + $0x4f0] sm:$0xff]
    %v1673 = vld [vmem:[#allocation32 + $0x4f8] sm:$0xff]
    %v1674 = vld [vmem:[#allocation32 + $0x500] sm:$0xff]
    %v1675 = vld [vmem:[#allocation32 + $0x508] sm:$0xff]
    %v1676 = vld [vmem:[#allocation32 + $0x510] sm:$0xff]
    %v1677 = vld [vmem:[#allocation32 + $0x518] sm:$0xff]
    %v1678 = vld [vmem:[#allocation32 + $0x520] sm:$0xff]
    %v1679 = vld [vmem:[#allocation32 + $0x528] sm:$0xff]
    %v1680 = vld [vmem:[#allocation32 + $0x530] sm:$0xff]
    %v1681 = vld [vmem:[#allocation32 + $0x538] sm:$0xff]
    %v1682 = vld [vmem:[#allocation32 + $0x540] sm:$0xff]
    %v1683 = vld [vmem:[#allocation32 + $0x548] sm:$0xff]
    %v1684 = vld [vmem:[#allocation32 + $0x550] sm:$0xff]
    %v1685 = vld [vmem:[#allocation32 + $0x558] sm:$0xff]
    %v1686 = vld [vmem:[#allocation32 + $0x560] sm:$0xff]
    %v1687 = vld [vmem:[#allocation32 + $0x568] sm:$0xff]
    %v1688 = vld [vmem:[#allocation32 + $0x570] sm:$0xff]
    %v1689 = vld [vmem:[#allocation32 + $0x578] sm:$0xff]
    %v1690 = vld [vmem:[#allocation32 + $0x580] sm:$0xff]
    %v1691 = vld [vmem:[#allocation32 + $0x588] sm:$0xff]
    %v1692 = vld [vmem:[#allocation32 + $0x590] sm:$0xff]
    %v1693 = vld [vmem:[#allocation32 + $0x598] sm:$0xff]
    %v1694 = vld [vmem:[#allocation32 + $0x5a0] sm:$0xff]
    %v1695 = vld [vmem:[#allocation32 + $0x5a8] sm:$0xff]
    %v1696 = vld [vmem:[#allocation32 + $0x5b0] sm:$0xff]
    %v1697 = vld [vmem:[#allocation32 + $0x5b8] sm:$0xff]
    %v1698 = vld [vmem:[#allocation32 + $0x5c0] sm:$0xff]
    %v1699 = vld [vmem:[#allocation32 + $0x5c8] sm:$0xff]
    %v1700 = vld [vmem:[#allocation32 + $0x5d0] sm:$0xff]
    %v1701 = vld [vmem:[#allocation32 + $0x5d8] sm:$0xff]
    %v1702 = vld [vmem:[#allocation32 + $0x5e0] sm:$0xff]
    %v1703 = vld [vmem:[#allocation32 + $0x5e8] sm:$0xff]
    %v1704 = vld [vmem:[#allocation32 + $0x5f0] sm:$0xff]
    %v1705 = vld [vmem:[#allocation32 + $0x5f8] sm:$0xff]
    %v1706 = vld [vmem:[#allocation32 + $0x600] sm:$0xff]
    %v1707 = vld [vmem:[#allocation32 + $0x608] sm:$0xff]
    %v1708 = vld [vmem:[#allocation32 + $0x610] sm:$0xff]
    %v1709 = vld [vmem:[#allocation32 + $0x618] sm:$0xff]
    %v1710 = vld [vmem:[#allocation32 + $0x620] sm:$0xff]
    %v1711 = vld [vmem:[#allocation32 + $0x628] sm:$0xff]
    %v1712 = vld [vmem:[#allocation32 + $0x630] sm:$0xff]
    %v1713 = vld [vmem:[#allocation32 + $0x638] sm:$0xff]
    %v1714 = vld [vmem:[#allocation32 + $0x640] sm:$0xff]
    %v1715 = vld [vmem:[#allocation32 + $0x648] sm:$0xff]
    %v1716 = vld [vmem:[#allocation32 + $0x650] sm:$0xff]
    %v1717 = vld [vmem:[#allocation32 + $0x658] sm:$0xff]
    %v1718 = vld [vmem:[#allocation32 + $0x660] sm:$0xff]
    %v1719 = vld [vmem:[#allocation32 + $0x668] sm:$0xff]
    %v1720 = vld [vmem:[#allocation32 + $0x670] sm:$0xff]
    %v1721 = vld [vmem:[#allocation32 + $0x678] sm:$0xff]
    %v1722 = vld [vmem:[#allocation32 + $0x680] sm:$0xff]
    %v1723 = vld [vmem:[#allocation32 + $0x688] sm:$0xff]
    %v1724 = vld [vmem:[#allocation32 + $0x690] sm:$0xff]
    %v1725 = vld [vmem:[#allocation32 + $0x698] sm:$0xff]
    %v1726 = vld [vmem:[#allocation32 + $0x6a0] sm:$0xff]
    %v1727 = vld [vmem:[#allocation32 + $0x6a8] sm:$0xff]
    %v1728 = vld [vmem:[#allocation32 + $0x6b0] sm:$0xff]
    %v1729 = vld [vmem:[#allocation32 + $0x6b8] sm:$0xff]
    %v1730 = vld [vmem:[#allocation32 + $0x6c0] sm:$0xff]
    %v1731 = vld [vmem:[#allocation32 + $0x6c8] sm:$0xff]
    %v1732 = vld [vmem:[#allocation32 + $0x6d0] sm:$0xff]
    %v1733 = vld [vmem:[#allocation32 + $0x6d8] sm:$0xff]
    %v1734 = vld [vmem:[#allocation32 + $0x6e0] sm:$0xff]
    %v1735 = vld [vmem:[#allocation32 + $0x6e8] sm:$0xff]
    %v1736 = vld [vmem:[#allocation32 + $0x6f0] sm:$0xff]
    %v1737 = vld [vmem:[#allocation32 + $0x6f8] sm:$0xff]
    %v1738 = vld [vmem:[#allocation32 + $0x700] sm:$0xff]
    %v1739 = vld [vmem:[#allocation32 + $0x708] sm:$0xff]
    %v1740 = vld [vmem:[#allocation32 + $0x710] sm:$0xff]
    %v1741 = vld [vmem:[#allocation32 + $0x718] sm:$0xff]
    %v1742 = vld [vmem:[#allocation32 + $0x720] sm:$0xff]
    %v1743 = vld [vmem:[#allocation32 + $0x728] sm:$0xff]
    %v1744 = vld [vmem:[#allocation32 + $0x730] sm:$0xff]
    %v1745 = vld [vmem:[#allocation32 + $0x738] sm:$0xff]
    %v1746 = vld [vmem:[#allocation32 + $0x740] sm:$0xff]
    %v1747 = vld [vmem:[#allocation32 + $0x748] sm:$0xff]
    %v1748 = vld [vmem:[#allocation32 + $0x750] sm:$0xff]
    %v1749 = vld [vmem:[#allocation32 + $0x758] sm:$0xff]
    %v1750 = vld [vmem:[#allocation32 + $0x760] sm:$0xff]
    %v1751 = vld [vmem:[#allocation32 + $0x768] sm:$0xff]
    %v1752 = vld [vmem:[#allocation32 + $0x770] sm:$0xff]
    %v1753 = vld [vmem:[#allocation32 + $0x778] sm:$0xff]
    %v1754 = vld [vmem:[#allocation32 + $0x780] sm:$0xff]
    %v1755 = vld [vmem:[#allocation32 + $0x788] sm:$0xff]
    %v1756 = vld [vmem:[#allocation32 + $0x790] sm:$0xff]
    %v1757 = vld [vmem:[#allocation32 + $0x798] sm:$0xff]
    %v1758 = vld [vmem:[#allocation32 + $0x7a0] sm:$0xff]
    %v1759 = vld [vmem:[#allocation32 + $0x7a8] sm:$0xff]
    %v1760 = vld [vmem:[#allocation32 + $0x7b0] sm:$0xff]
    %v1761 = vld [vmem:[#allocation32 + $0x7b8] sm:$0xff]
    %v1762 = vld [vmem:[#allocation32 + $0x7c0] sm:$0xff]
    %v1763 = vld [vmem:[#allocation32 + $0x7c8] sm:$0xff]
    %v1764 = vld [vmem:[#allocation32 + $0x7d0] sm:$0xff]
    %v1765 = vld [vmem:[#allocation32 + $0x7d8] sm:$0xff]
    %v1766 = vld [vmem:[#allocation32 + $0x7e0] sm:$0xff]
    %v1767 = vld [vmem:[#allocation32 + $0x7e8] sm:$0xff]
    %v1768 = vld [vmem:[#allocation32 + $0x7f0] sm:$0xff]
    %v1769 = vld [vmem:[#allocation32 + $0x7f8] sm:$0xff]
    %v1770 = vld [vmem:[#allocation34] sm:$0xff]
    %v1772 = vlaneseq
    %v1773 = vshrl.u32 %v1772, 7
    %v1774 = vsub.s32 0, %v1773
    %v1775 = vrot.slane %v1770, %v1774
    %v1776 = vlaneseq
    %v1777 = vshrl.u32 %v1776, 7
    %v1778 = vsub.s32 1, %v1777
    %v1779 = vrot.slane %v1770, %v1778
    %v1780 = vlaneseq
    %v1781 = vshrl.u32 %v1780, 7
    %v1782 = vsub.s32 2, %v1781
    %v1783 = vrot.slane %v1770, %v1782
    %v1784 = vlaneseq
    %v1785 = vshrl.u32 %v1784, 7
    %v1786 = vsub.s32 3, %v1785
    %v1787 = vrot.slane %v1770, %v1786
    %v1788 = vlaneseq
    %v1789 = vshrl.u32 %v1788, 7
    %v1790 = vsub.s32 4, %v1789
    %v1791 = vrot.slane %v1770, %v1790
    %v1792 = vlaneseq
    %v1793 = vshrl.u32 %v1792, 7
    %v1794 = vsub.s32 5, %v1793
    %v1795 = vrot.slane %v1770, %v1794
    %v1796 = vlaneseq
    %v1797 = vshrl.u32 %v1796, 7
    %v1798 = vsub.s32 6, %v1797
    %v1799 = vrot.slane %v1770, %v1798
    %v1800 = vlaneseq
    %v1801 = vshrl.u32 %v1800, 7
    %v1802 = vsub.s32 7, %v1801
    %v1803 = vrot.slane %v1770, %v1802
    %v2068 = vunpack.c.l.b16 %v1514
    %v2069 = vunpack.c.h.b16 %v1514
    %v2070 = vunpack.c.l.b16 %v1515
    %v2071 = vunpack.c.h.b16 %v1515
    %v2072 = vunpack.c.l.b16 %v1516
    %v2073 = vunpack.c.h.b16 %v1516
    %v2074 = vunpack.c.l.b16 %v1517
    %v2075 = vunpack.c.h.b16 %v1517
    %v2076 = vunpack.c.l.b16 %v1518
    %v2077 = vunpack.c.h.b16 %v1518
    %v2078 = vunpack.c.l.b16 %v1519
    %v2079 = vunpack.c.h.b16 %v1519
    %v2080 = vunpack.c.l.b16 %v1520
    %v2081 = vunpack.c.h.b16 %v1520
    %v2082 = vunpack.c.l.b16 %v1521
    %v2083 = vunpack.c.h.b16 %v1521
    %v2084 = vunpack.c.l.b16 %v1522
    %v2085 = vunpack.c.h.b16 %v1522
    %v2086 = vunpack.c.l.b16 %v1523
    %v2087 = vunpack.c.h.b16 %v1523
    %v2088 = vunpack.c.l.b16 %v1524
    %v2089 = vunpack.c.h.b16 %v1524
    %v2090 = vunpack.c.l.b16 %v1525
    %v2091 = vunpack.c.h.b16 %v1525
    %v2092 = vunpack.c.l.b16 %v1526
    %v2093 = vunpack.c.h.b16 %v1526
    %v2094 = vunpack.c.l.b16 %v1527
    %v2095 = vunpack.c.h.b16 %v1527
    %v2096 = vunpack.c.l.b16 %v1528
    %v2097 = vunpack.c.h.b16 %v1528
    %v2098 = vunpack.c.l.b16 %v1529
    %v2099 = vunpack.c.h.b16 %v1529
    %v2100 = vunpack.c.l.b16 %v1530
    %v2101 = vunpack.c.h.b16 %v1530
    %v2102 = vunpack.c.l.b16 %v1531
    %v2103 = vunpack.c.h.b16 %v1531
    %v2104 = vunpack.c.l.b16 %v1532
    %v2105 = vunpack.c.h.b16 %v1532
    %v2106 = vunpack.c.l.b16 %v1533
    %v2107 = vunpack.c.h.b16 %v1533
    %v2108 = vunpack.c.l.b16 %v1534
    %v2109 = vunpack.c.h.b16 %v1534
    %v2110 = vunpack.c.l.b16 %v1535
    %v2111 = vunpack.c.h.b16 %v1535
    %v2112 = vunpack.c.l.b16 %v1536
    %v2113 = vunpack.c.h.b16 %v1536
    %v2114 = vunpack.c.l.b16 %v1537
    %v2115 = vunpack.c.h.b16 %v1537
    %v2116 = vunpack.c.l.b16 %v1538
    %v2117 = vunpack.c.h.b16 %v1538
    %v2118 = vunpack.c.l.b16 %v1539
    %v2119 = vunpack.c.h.b16 %v1539
    %v2120 = vunpack.c.l.b16 %v1540
    %v2121 = vunpack.c.h.b16 %v1540
    %v2122 = vunpack.c.l.b16 %v1541
    %v2123 = vunpack.c.h.b16 %v1541
    %v2124 = vunpack.c.l.b16 %v1542
    %v2125 = vunpack.c.h.b16 %v1542
    %v2126 = vunpack.c.l.b16 %v1543
    %v2127 = vunpack.c.h.b16 %v1543
    %v2128 = vunpack.c.l.b16 %v1544
    %v2129 = vunpack.c.h.b16 %v1544
    %v2130 = vunpack.c.l.b16 %v1545
    %v2131 = vunpack.c.h.b16 %v1545
    %v2132 = vunpack.c.l.b16 %v1546
    %v2133 = vunpack.c.h.b16 %v1546
    %v2134 = vunpack.c.l.b16 %v1547
    %v2135 = vunpack.c.h.b16 %v1547
    %v2136 = vunpack.c.l.b16 %v1548
    %v2137 = vunpack.c.h.b16 %v1548
    %v2138 = vunpack.c.l.b16 %v1549
    %v2139 = vunpack.c.h.b16 %v1549
    %v2140 = vunpack.c.l.b16 %v1550
    %v2141 = vunpack.c.h.b16 %v1550
    %v2142 = vunpack.c.l.b16 %v1551
    %v2143 = vunpack.c.h.b16 %v1551
    %v2144 = vunpack.c.l.b16 %v1552
    %v2145 = vunpack.c.h.b16 %v1552
    %v2146 = vunpack.c.l.b16 %v1553
    %v2147 = vunpack.c.h.b16 %v1553
    %v2148 = vunpack.c.l.b16 %v1554
    %v2149 = vunpack.c.h.b16 %v1554
    %v2150 = vunpack.c.l.b16 %v1555
    %v2151 = vunpack.c.h.b16 %v1555
    %v2152 = vunpack.c.l.b16 %v1556
    %v2153 = vunpack.c.h.b16 %v1556
    %v2154 = vunpack.c.l.b16 %v1557
    %v2155 = vunpack.c.h.b16 %v1557
    %v2156 = vunpack.c.l.b16 %v1558
    %v2157 = vunpack.c.h.b16 %v1558
    %v2158 = vunpack.c.l.b16 %v1559
    %v2159 = vunpack.c.h.b16 %v1559
    %v2160 = vunpack.c.l.b16 %v1560
    %v2161 = vunpack.c.h.b16 %v1560
    %v2162 = vunpack.c.l.b16 %v1561
    %v2163 = vunpack.c.h.b16 %v1561
    %v2164 = vunpack.c.l.b16 %v1562
    %v2165 = vunpack.c.h.b16 %v1562
    %v2166 = vunpack.c.l.b16 %v1563
    %v2167 = vunpack.c.h.b16 %v1563
    %v2168 = vunpack.c.l.b16 %v1564
    %v2169 = vunpack.c.h.b16 %v1564
    %v2170 = vunpack.c.l.b16 %v1565
    %v2171 = vunpack.c.h.b16 %v1565
    %v2172 = vunpack.c.l.b16 %v1566
    %v2173 = vunpack.c.h.b16 %v1566
    %v2174 = vunpack.c.l.b16 %v1567
    %v2175 = vunpack.c.h.b16 %v1567
    %v2176 = vunpack.c.l.b16 %v1568
    %v2177 = vunpack.c.h.b16 %v1568
    %v2178 = vunpack.c.l.b16 %v1569
    %v2179 = vunpack.c.h.b16 %v1569
    %v2180 = vunpack.c.l.b16 %v1570
    %v2181 = vunpack.c.h.b16 %v1570
    %v2182 = vunpack.c.l.b16 %v1571
    %v2183 = vunpack.c.h.b16 %v1571
    %v2184 = vunpack.c.l.b16 %v1572
    %v2185 = vunpack.c.h.b16 %v1572
    %v2186 = vunpack.c.l.b16 %v1573
    %v2187 = vunpack.c.h.b16 %v1573
    %v2188 = vunpack.c.l.b16 %v1574
    %v2189 = vunpack.c.h.b16 %v1574
    %v2190 = vunpack.c.l.b16 %v1575
    %v2191 = vunpack.c.h.b16 %v1575
    %v2192 = vunpack.c.l.b16 %v1576
    %v2193 = vunpack.c.h.b16 %v1576
    %v2194 = vunpack.c.l.b16 %v1577
    %v2195 = vunpack.c.h.b16 %v1577
    %v2196 = vunpack.c.l.b16 %v1578
    %v2197 = vunpack.c.h.b16 %v1578
    %v2198 = vunpack.c.l.b16 %v1579
    %v2199 = vunpack.c.h.b16 %v1579
    %v2200 = vunpack.c.l.b16 %v1580
    %v2201 = vunpack.c.h.b16 %v1580
    %v2202 = vunpack.c.l.b16 %v1581
    %v2203 = vunpack.c.h.b16 %v1581
    %v2204 = vunpack.c.l.b16 %v1582
    %v2205 = vunpack.c.h.b16 %v1582
    %v2206 = vunpack.c.l.b16 %v1583
    %v2207 = vunpack.c.h.b16 %v1583
    %v2208 = vunpack.c.l.b16 %v1584
    %v2209 = vunpack.c.h.b16 %v1584
    %v2210 = vunpack.c.l.b16 %v1585
    %v2211 = vunpack.c.h.b16 %v1585
    %v2212 = vunpack.c.l.b16 %v1586
    %v2213 = vunpack.c.h.b16 %v1586
    %v2214 = vunpack.c.l.b16 %v1587
    %v2215 = vunpack.c.h.b16 %v1587
    %v2216 = vunpack.c.l.b16 %v1588
    %v2217 = vunpack.c.h.b16 %v1588
    %v2218 = vunpack.c.l.b16 %v1589
    %v2219 = vunpack.c.h.b16 %v1589
    %v2220 = vunpack.c.l.b16 %v1590
    %v2221 = vunpack.c.h.b16 %v1590
    %v2222 = vunpack.c.l.b16 %v1591
    %v2223 = vunpack.c.h.b16 %v1591
    %v2224 = vunpack.c.l.b16 %v1592
    %v2225 = vunpack.c.h.b16 %v1592
    %v2226 = vunpack.c.l.b16 %v1593
    %v2227 = vunpack.c.h.b16 %v1593
    %v2228 = vunpack.c.l.b16 %v1594
    %v2229 = vunpack.c.h.b16 %v1594
    %v2230 = vunpack.c.l.b16 %v1595
    %v2231 = vunpack.c.h.b16 %v1595
    %v2232 = vunpack.c.l.b16 %v1596
    %v2233 = vunpack.c.h.b16 %v1596
    %v2234 = vunpack.c.l.b16 %v1597
    %v2235 = vunpack.c.h.b16 %v1597
    %v2236 = vunpack.c.l.b16 %v1598
    %v2237 = vunpack.c.h.b16 %v1598
    %v2238 = vunpack.c.l.b16 %v1599
    %v2239 = vunpack.c.h.b16 %v1599
    %v2240 = vunpack.c.l.b16 %v1600
    %v2241 = vunpack.c.h.b16 %v1600
    %v2242 = vunpack.c.l.b16 %v1601
    %v2243 = vunpack.c.h.b16 %v1601
    %v2244 = vunpack.c.l.b16 %v1602
    %v2245 = vunpack.c.h.b16 %v1602
    %v2246 = vunpack.c.l.b16 %v1603
    %v2247 = vunpack.c.h.b16 %v1603
    %v2248 = vunpack.c.l.b16 %v1604
    %v2249 = vunpack.c.h.b16 %v1604
    %v2250 = vunpack.c.l.b16 %v1605
    %v2251 = vunpack.c.h.b16 %v1605
    %v2252 = vunpack.c.l.b16 %v1606
    %v2253 = vunpack.c.h.b16 %v1606
    %v2254 = vunpack.c.l.b16 %v1607
    %v2255 = vunpack.c.h.b16 %v1607
    %v2256 = vunpack.c.l.b16 %v1608
    %v2257 = vunpack.c.h.b16 %v1608
    %v2258 = vunpack.c.l.b16 %v1609
    %v2259 = vunpack.c.h.b16 %v1609
    %v2260 = vunpack.c.l.b16 %v1610
    %v2261 = vunpack.c.h.b16 %v1610
    %v2262 = vunpack.c.l.b16 %v1611
    %v2263 = vunpack.c.h.b16 %v1611
    %v2264 = vunpack.c.l.b16 %v1612
    %v2265 = vunpack.c.h.b16 %v1612
    %v2266 = vunpack.c.l.b16 %v1613
    %v2267 = vunpack.c.h.b16 %v1613
    %v2268 = vunpack.c.l.b16 %v1614
    %v2269 = vunpack.c.h.b16 %v1614
    %v2270 = vunpack.c.l.b16 %v1615
    %v2271 = vunpack.c.h.b16 %v1615
    %v2272 = vunpack.c.l.b16 %v1616
    %v2273 = vunpack.c.h.b16 %v1616
    %v2274 = vunpack.c.l.b16 %v1617
    %v2275 = vunpack.c.h.b16 %v1617
    %v2276 = vunpack.c.l.b16 %v1618
    %v2277 = vunpack.c.h.b16 %v1618
    %v2278 = vunpack.c.l.b16 %v1619
    %v2279 = vunpack.c.h.b16 %v1619
    %v2280 = vunpack.c.l.b16 %v1620
    %v2281 = vunpack.c.h.b16 %v1620
    %v2282 = vunpack.c.l.b16 %v1621
    %v2283 = vunpack.c.h.b16 %v1621
    %v2284 = vunpack.c.l.b16 %v1622
    %v2285 = vunpack.c.h.b16 %v1622
    %v2286 = vunpack.c.l.b16 %v1623
    %v2287 = vunpack.c.h.b16 %v1623
    %v2288 = vunpack.c.l.b16 %v1624
    %v2289 = vunpack.c.h.b16 %v1624
    %v2290 = vunpack.c.l.b16 %v1625
    %v2291 = vunpack.c.h.b16 %v1625
    %v2292 = vunpack.c.l.b16 %v1626
    %v2293 = vunpack.c.h.b16 %v1626
    %v2294 = vunpack.c.l.b16 %v1627
    %v2295 = vunpack.c.h.b16 %v1627
    %v2296 = vunpack.c.l.b16 %v1628
    %v2297 = vunpack.c.h.b16 %v1628
    %v2298 = vunpack.c.l.b16 %v1629
    %v2299 = vunpack.c.h.b16 %v1629
    %v2300 = vunpack.c.l.b16 %v1630
    %v2301 = vunpack.c.h.b16 %v1630
    %v2302 = vunpack.c.l.b16 %v1631
    %v2303 = vunpack.c.h.b16 %v1631
    %v2304 = vunpack.c.l.b16 %v1632
    %v2305 = vunpack.c.h.b16 %v1632
    %v2306 = vunpack.c.l.b16 %v1633
    %v2307 = vunpack.c.h.b16 %v1633
    %v2308 = vunpack.c.l.b16 %v1634
    %v2309 = vunpack.c.h.b16 %v1634
    %v2310 = vunpack.c.l.b16 %v1635
    %v2311 = vunpack.c.h.b16 %v1635
    %v2312 = vunpack.c.l.b16 %v1636
    %v2313 = vunpack.c.h.b16 %v1636
    %v2314 = vunpack.c.l.b16 %v1637
    %v2315 = vunpack.c.h.b16 %v1637
    %v2316 = vunpack.c.l.b16 %v1638
    %v2317 = vunpack.c.h.b16 %v1638
    %v2318 = vunpack.c.l.b16 %v1639
    %v2319 = vunpack.c.h.b16 %v1639
    %v2320 = vunpack.c.l.b16 %v1640
    %v2321 = vunpack.c.h.b16 %v1640
    %v2322 = vunpack.c.l.b16 %v1641
    %v2323 = vunpack.c.h.b16 %v1641
    %v2324 = vunpack.c.l.b16 %v1642
    %v2325 = vunpack.c.h.b16 %v1642
    %v2326 = vunpack.c.l.b16 %v1643
    %v2327 = vunpack.c.h.b16 %v1643
    %v2328 = vunpack.c.l.b16 %v1644
    %v2329 = vunpack.c.h.b16 %v1644
    %v2330 = vunpack.c.l.b16 %v1645
    %v2331 = vunpack.c.h.b16 %v1645
    %v2332 = vunpack.c.l.b16 %v1646
    %v2333 = vunpack.c.h.b16 %v1646
    %v2334 = vunpack.c.l.b16 %v1647
    %v2335 = vunpack.c.h.b16 %v1647
    %v2336 = vunpack.c.l.b16 %v1648
    %v2337 = vunpack.c.h.b16 %v1648
    %v2338 = vunpack.c.l.b16 %v1649
    %v2339 = vunpack.c.h.b16 %v1649
    %v2340 = vunpack.c.l.b16 %v1650
    %v2341 = vunpack.c.h.b16 %v1650
    %v2342 = vunpack.c.l.b16 %v1651
    %v2343 = vunpack.c.h.b16 %v1651
    %v2344 = vunpack.c.l.b16 %v1652
    %v2345 = vunpack.c.h.b16 %v1652
    %v2346 = vunpack.c.l.b16 %v1653
    %v2347 = vunpack.c.h.b16 %v1653
    %v2348 = vunpack.c.l.b16 %v1654
    %v2349 = vunpack.c.h.b16 %v1654
    %v2350 = vunpack.c.l.b16 %v1655
    %v2351 = vunpack.c.h.b16 %v1655
    %v2352 = vunpack.c.l.b16 %v1656
    %v2353 = vunpack.c.h.b16 %v1656
    %v2354 = vunpack.c.l.b16 %v1657
    %v2355 = vunpack.c.h.b16 %v1657
    %v2356 = vunpack.c.l.b16 %v1658
    %v2357 = vunpack.c.h.b16 %v1658
    %v2358 = vunpack.c.l.b16 %v1659
    %v2359 = vunpack.c.h.b16 %v1659
    %v2360 = vunpack.c.l.b16 %v1660
    %v2361 = vunpack.c.h.b16 %v1660
    %v2362 = vunpack.c.l.b16 %v1661
    %v2363 = vunpack.c.h.b16 %v1661
    %v2364 = vunpack.c.l.b16 %v1662
    %v2365 = vunpack.c.h.b16 %v1662
    %v2366 = vunpack.c.l.b16 %v1663
    %v2367 = vunpack.c.h.b16 %v1663
    %v2368 = vunpack.c.l.b16 %v1664
    %v2369 = vunpack.c.h.b16 %v1664
    %v2370 = vunpack.c.l.b16 %v1665
    %v2371 = vunpack.c.h.b16 %v1665
    %v2372 = vunpack.c.l.b16 %v1666
    %v2373 = vunpack.c.h.b16 %v1666
    %v2374 = vunpack.c.l.b16 %v1667
    %v2375 = vunpack.c.h.b16 %v1667
    %v2376 = vunpack.c.l.b16 %v1668
    %v2377 = vunpack.c.h.b16 %v1668
    %v2378 = vunpack.c.l.b16 %v1669
    %v2379 = vunpack.c.h.b16 %v1669
    %v2380 = vunpack.c.l.b16 %v1670
    %v2381 = vunpack.c.h.b16 %v1670
    %v2382 = vunpack.c.l.b16 %v1671
    %v2383 = vunpack.c.h.b16 %v1671
    %v2384 = vunpack.c.l.b16 %v1672
    %v2385 = vunpack.c.h.b16 %v1672
    %v2386 = vunpack.c.l.b16 %v1673
    %v2387 = vunpack.c.h.b16 %v1673
    %v2388 = vunpack.c.l.b16 %v1674
    %v2389 = vunpack.c.h.b16 %v1674
    %v2390 = vunpack.c.l.b16 %v1675
    %v2391 = vunpack.c.h.b16 %v1675
    %v2392 = vunpack.c.l.b16 %v1676
    %v2393 = vunpack.c.h.b16 %v1676
    %v2394 = vunpack.c.l.b16 %v1677
    %v2395 = vunpack.c.h.b16 %v1677
    %v2396 = vunpack.c.l.b16 %v1678
    %v2397 = vunpack.c.h.b16 %v1678
    %v2398 = vunpack.c.l.b16 %v1679
    %v2399 = vunpack.c.h.b16 %v1679
    %v2400 = vunpack.c.l.b16 %v1680
    %v2401 = vunpack.c.h.b16 %v1680
    %v2402 = vunpack.c.l.b16 %v1681
    %v2403 = vunpack.c.h.b16 %v1681
    %v2404 = vunpack.c.l.b16 %v1682
    %v2405 = vunpack.c.h.b16 %v1682
    %v2406 = vunpack.c.l.b16 %v1683
    %v2407 = vunpack.c.h.b16 %v1683
    %v2408 = vunpack.c.l.b16 %v1684
    %v2409 = vunpack.c.h.b16 %v1684
    %v2410 = vunpack.c.l.b16 %v1685
    %v2411 = vunpack.c.h.b16 %v1685
    %v2412 = vunpack.c.l.b16 %v1686
    %v2413 = vunpack.c.h.b16 %v1686
    %v2414 = vunpack.c.l.b16 %v1687
    %v2415 = vunpack.c.h.b16 %v1687
    %v2416 = vunpack.c.l.b16 %v1688
    %v2417 = vunpack.c.h.b16 %v1688
    %v2418 = vunpack.c.l.b16 %v1689
    %v2419 = vunpack.c.h.b16 %v1689
    %v2420 = vunpack.c.l.b16 %v1690
    %v2421 = vunpack.c.h.b16 %v1690
    %v2422 = vunpack.c.l.b16 %v1691
    %v2423 = vunpack.c.h.b16 %v1691
    %v2424 = vunpack.c.l.b16 %v1692
    %v2425 = vunpack.c.h.b16 %v1692
    %v2426 = vunpack.c.l.b16 %v1693
    %v2427 = vunpack.c.h.b16 %v1693
    %v2428 = vunpack.c.l.b16 %v1694
    %v2429 = vunpack.c.h.b16 %v1694
    %v2430 = vunpack.c.l.b16 %v1695
    %v2431 = vunpack.c.h.b16 %v1695
    %v2432 = vunpack.c.l.b16 %v1696
    %v2433 = vunpack.c.h.b16 %v1696
    %v2434 = vunpack.c.l.b16 %v1697
    %v2435 = vunpack.c.h.b16 %v1697
    %v2436 = vunpack.c.l.b16 %v1698
    %v2437 = vunpack.c.h.b16 %v1698
    %v2438 = vunpack.c.l.b16 %v1699
    %v2439 = vunpack.c.h.b16 %v1699
    %v2440 = vunpack.c.l.b16 %v1700
    %v2441 = vunpack.c.h.b16 %v1700
    %v2442 = vunpack.c.l.b16 %v1701
    %v2443 = vunpack.c.h.b16 %v1701
    %v2444 = vunpack.c.l.b16 %v1702
    %v2445 = vunpack.c.h.b16 %v1702
    %v2446 = vunpack.c.l.b16 %v1703
    %v2447 = vunpack.c.h.b16 %v1703
    %v2448 = vunpack.c.l.b16 %v1704
    %v2449 = vunpack.c.h.b16 %v1704
    %v2450 = vunpack.c.l.b16 %v1705
    %v2451 = vunpack.c.h.b16 %v1705
    %v2452 = vunpack.c.l.b16 %v1706
    %v2453 = vunpack.c.h.b16 %v1706
    %v2454 = vunpack.c.l.b16 %v1707
    %v2455 = vunpack.c.h.b16 %v1707
    %v2456 = vunpack.c.l.b16 %v1708
    %v2457 = vunpack.c.h.b16 %v1708
    %v2458 = vunpack.c.l.b16 %v1709
    %v2459 = vunpack.c.h.b16 %v1709
    %v2460 = vunpack.c.l.b16 %v1710
    %v2461 = vunpack.c.h.b16 %v1710
    %v2462 = vunpack.c.l.b16 %v1711
    %v2463 = vunpack.c.h.b16 %v1711
    %v2464 = vunpack.c.l.b16 %v1712
    %v2465 = vunpack.c.h.b16 %v1712
    %v2466 = vunpack.c.l.b16 %v1713
    %v2467 = vunpack.c.h.b16 %v1713
    %v2468 = vunpack.c.l.b16 %v1714
    %v2469 = vunpack.c.h.b16 %v1714
    %v2470 = vunpack.c.l.b16 %v1715
    %v2471 = vunpack.c.h.b16 %v1715
    %v2472 = vunpack.c.l.b16 %v1716
    %v2473 = vunpack.c.h.b16 %v1716
    %v2474 = vunpack.c.l.b16 %v1717
    %v2475 = vunpack.c.h.b16 %v1717
    %v2476 = vunpack.c.l.b16 %v1718
    %v2477 = vunpack.c.h.b16 %v1718
    %v2478 = vunpack.c.l.b16 %v1719
    %v2479 = vunpack.c.h.b16 %v1719
    %v2480 = vunpack.c.l.b16 %v1720
    %v2481 = vunpack.c.h.b16 %v1720
    %v2482 = vunpack.c.l.b16 %v1721
    %v2483 = vunpack.c.h.b16 %v1721
    %v2484 = vunpack.c.l.b16 %v1722
    %v2485 = vunpack.c.h.b16 %v1722
    %v2486 = vunpack.c.l.b16 %v1723
    %v2487 = vunpack.c.h.b16 %v1723
    %v2488 = vunpack.c.l.b16 %v1724
    %v2489 = vunpack.c.h.b16 %v1724
    %v2490 = vunpack.c.l.b16 %v1725
    %v2491 = vunpack.c.h.b16 %v1725
    %v2492 = vunpack.c.l.b16 %v1726
    %v2493 = vunpack.c.h.b16 %v1726
    %v2494 = vunpack.c.l.b16 %v1727
    %v2495 = vunpack.c.h.b16 %v1727
    %v2496 = vunpack.c.l.b16 %v1728
    %v2497 = vunpack.c.h.b16 %v1728
    %v2498 = vunpack.c.l.b16 %v1729
    %v2499 = vunpack.c.h.b16 %v1729
    %v2500 = vunpack.c.l.b16 %v1730
    %v2501 = vunpack.c.h.b16 %v1730
    %v2502 = vunpack.c.l.b16 %v1731
    %v2503 = vunpack.c.h.b16 %v1731
    %v2504 = vunpack.c.l.b16 %v1732
    %v2505 = vunpack.c.h.b16 %v1732
    %v2506 = vunpack.c.l.b16 %v1733
    %v2507 = vunpack.c.h.b16 %v1733
    %v2508 = vunpack.c.l.b16 %v1734
    %v2509 = vunpack.c.h.b16 %v1734
    %v2510 = vunpack.c.l.b16 %v1735
    %v2511 = vunpack.c.h.b16 %v1735
    %v2512 = vunpack.c.l.b16 %v1736
    %v2513 = vunpack.c.h.b16 %v1736
    %v2514 = vunpack.c.l.b16 %v1737
    %v2515 = vunpack.c.h.b16 %v1737
    %v2516 = vunpack.c.l.b16 %v1738
    %v2517 = vunpack.c.h.b16 %v1738
    %v2518 = vunpack.c.l.b16 %v1739
    %v2519 = vunpack.c.h.b16 %v1739
    %v2520 = vunpack.c.l.b16 %v1740
    %v2521 = vunpack.c.h.b16 %v1740
    %v2522 = vunpack.c.l.b16 %v1741
    %v2523 = vunpack.c.h.b16 %v1741
    %v2524 = vunpack.c.l.b16 %v1742
    %v2525 = vunpack.c.h.b16 %v1742
    %v2526 = vunpack.c.l.b16 %v1743
    %v2527 = vunpack.c.h.b16 %v1743
    %v2528 = vunpack.c.l.b16 %v1744
    %v2529 = vunpack.c.h.b16 %v1744
    %v2530 = vunpack.c.l.b16 %v1745
    %v2531 = vunpack.c.h.b16 %v1745
    %v2532 = vunpack.c.l.b16 %v1746
    %v2533 = vunpack.c.h.b16 %v1746
    %v2534 = vunpack.c.l.b16 %v1747
    %v2535 = vunpack.c.h.b16 %v1747
    %v2536 = vunpack.c.l.b16 %v1748
    %v2537 = vunpack.c.h.b16 %v1748
    %v2538 = vunpack.c.l.b16 %v1749
    %v2539 = vunpack.c.h.b16 %v1749
    %v2540 = vunpack.c.l.b16 %v1750
    %v2541 = vunpack.c.h.b16 %v1750
    %v2542 = vunpack.c.l.b16 %v1751
    %v2543 = vunpack.c.h.b16 %v1751
    %v2544 = vunpack.c.l.b16 %v1752
    %v2545 = vunpack.c.h.b16 %v1752
    %v2546 = vunpack.c.l.b16 %v1753
    %v2547 = vunpack.c.h.b16 %v1753
    %v2548 = vunpack.c.l.b16 %v1754
    %v2549 = vunpack.c.h.b16 %v1754
    %v2550 = vunpack.c.l.b16 %v1755
    %v2551 = vunpack.c.h.b16 %v1755
    %v2552 = vunpack.c.l.b16 %v1756
    %v2553 = vunpack.c.h.b16 %v1756
    %v2554 = vunpack.c.l.b16 %v1757
    %v2555 = vunpack.c.h.b16 %v1757
    %v2556 = vunpack.c.l.b16 %v1758
    %v2557 = vunpack.c.h.b16 %v1758
    %v2558 = vunpack.c.l.b16 %v1759
    %v2559 = vunpack.c.h.b16 %v1759
    %v2560 = vunpack.c.l.b16 %v1760
    %v2561 = vunpack.c.h.b16 %v1760
    %v2562 = vunpack.c.l.b16 %v1761
    %v2563 = vunpack.c.h.b16 %v1761
    %v2564 = vunpack.c.l.b16 %v1762
    %v2565 = vunpack.c.h.b16 %v1762
    %v2566 = vunpack.c.l.b16 %v1763
    %v2567 = vunpack.c.h.b16 %v1763
    %v2568 = vunpack.c.l.b16 %v1764
    %v2569 = vunpack.c.h.b16 %v1764
    %v2570 = vunpack.c.l.b16 %v1765
    %v2571 = vunpack.c.h.b16 %v1765
    %v2572 = vunpack.c.l.b16 %v1766
    %v2573 = vunpack.c.h.b16 %v1766
    %v2574 = vunpack.c.l.b16 %v1767
    %v2575 = vunpack.c.h.b16 %v1767
    %v2576 = vunpack.c.l.b16 %v1768
    %v2577 = vunpack.c.h.b16 %v1768
    %v2578 = vunpack.c.l.b16 %v1769
    %v2579 = vunpack.c.h.b16 %v1769
    %v2580 = vpack.c.b16 %v2076, %v2068
    %v2581 = vpack.c.b16 %v2077, %v2069
    %v2582 = vpack.c.b16 %v2078, %v2070
    %v2583 = vpack.c.b16 %v2079, %v2071
    %v2584 = vpack.c.b16 %v2080, %v2072
    %v2585 = vpack.c.b16 %v2081, %v2073
    %v2586 = vpack.c.b16 %v2082, %v2074
    %v2587 = vpack.c.b16 %v2083, %v2075
    %v2588 = vpack.c.b16 %v2092, %v2084
    %v2589 = vpack.c.b16 %v2093, %v2085
    %v2590 = vpack.c.b16 %v2094, %v2086
    %v2591 = vpack.c.b16 %v2095, %v2087
    %v2592 = vpack.c.b16 %v2096, %v2088
    %v2593 = vpack.c.b16 %v2097, %v2089
    %v2594 = vpack.c.b16 %v2098, %v2090
    %v2595 = vpack.c.b16 %v2099, %v2091
    %v2596 = vpack.c.b16 %v2108, %v2100
    %v2597 = vpack.c.b16 %v2109, %v2101
    %v2598 = vpack.c.b16 %v2110, %v2102
    %v2599 = vpack.c.b16 %v2111, %v2103
    %v2600 = vpack.c.b16 %v2112, %v2104
    %v2601 = vpack.c.b16 %v2113, %v2105
    %v2602 = vpack.c.b16 %v2114, %v2106
    %v2603 = vpack.c.b16 %v2115, %v2107
    %v2604 = vpack.c.b16 %v2124, %v2116
    %v2605 = vpack.c.b16 %v2125, %v2117
    %v2606 = vpack.c.b16 %v2126, %v2118
    %v2607 = vpack.c.b16 %v2127, %v2119
    %v2608 = vpack.c.b16 %v2128, %v2120
    %v2609 = vpack.c.b16 %v2129, %v2121
    %v2610 = vpack.c.b16 %v2130, %v2122
    %v2611 = vpack.c.b16 %v2131, %v2123
    %v2612 = vpack.c.b16 %v2140, %v2132
    %v2613 = vpack.c.b16 %v2141, %v2133
    %v2614 = vpack.c.b16 %v2142, %v2134
    %v2615 = vpack.c.b16 %v2143, %v2135
    %v2616 = vpack.c.b16 %v2144, %v2136
    %v2617 = vpack.c.b16 %v2145, %v2137
    %v2618 = vpack.c.b16 %v2146, %v2138
    %v2619 = vpack.c.b16 %v2147, %v2139
    %v2620 = vpack.c.b16 %v2156, %v2148
    %v2621 = vpack.c.b16 %v2157, %v2149
    %v2622 = vpack.c.b16 %v2158, %v2150
    %v2623 = vpack.c.b16 %v2159, %v2151
    %v2624 = vpack.c.b16 %v2160, %v2152
    %v2625 = vpack.c.b16 %v2161, %v2153
    %v2626 = vpack.c.b16 %v2162, %v2154
    %v2627 = vpack.c.b16 %v2163, %v2155
    %v2628 = vpack.c.b16 %v2172, %v2164
    %v2629 = vpack.c.b16 %v2173, %v2165
    %v2630 = vpack.c.b16 %v2174, %v2166
    %v2631 = vpack.c.b16 %v2175, %v2167
    %v2632 = vpack.c.b16 %v2176, %v2168
    %v2633 = vpack.c.b16 %v2177, %v2169
    %v2634 = vpack.c.b16 %v2178, %v2170
    %v2635 = vpack.c.b16 %v2179, %v2171
    %v2636 = vpack.c.b16 %v2188, %v2180
    %v2637 = vpack.c.b16 %v2189, %v2181
    %v2638 = vpack.c.b16 %v2190, %v2182
    %v2639 = vpack.c.b16 %v2191, %v2183
    %v2640 = vpack.c.b16 %v2192, %v2184
    %v2641 = vpack.c.b16 %v2193, %v2185
    %v2642 = vpack.c.b16 %v2194, %v2186
    %v2643 = vpack.c.b16 %v2195, %v2187
    %v2644 = vpack.c.b16 %v2204, %v2196
    %v2645 = vpack.c.b16 %v2205, %v2197
    %v2646 = vpack.c.b16 %v2206, %v2198
    %v2647 = vpack.c.b16 %v2207, %v2199
    %v2648 = vpack.c.b16 %v2208, %v2200
    %v2649 = vpack.c.b16 %v2209, %v2201
    %v2650 = vpack.c.b16 %v2210, %v2202
    %v2651 = vpack.c.b16 %v2211, %v2203
    %v2652 = vpack.c.b16 %v2220, %v2212
    %v2653 = vpack.c.b16 %v2221, %v2213
    %v2654 = vpack.c.b16 %v2222, %v2214
    %v2655 = vpack.c.b16 %v2223, %v2215
    %v2656 = vpack.c.b16 %v2224, %v2216
    %v2657 = vpack.c.b16 %v2225, %v2217
    %v2658 = vpack.c.b16 %v2226, %v2218
    %v2659 = vpack.c.b16 %v2227, %v2219
    %v2660 = vpack.c.b16 %v2236, %v2228
    %v2661 = vpack.c.b16 %v2237, %v2229
    %v2662 = vpack.c.b16 %v2238, %v2230
    %v2663 = vpack.c.b16 %v2239, %v2231
    %v2664 = vpack.c.b16 %v2240, %v2232
    %v2665 = vpack.c.b16 %v2241, %v2233
    %v2666 = vpack.c.b16 %v2242, %v2234
    %v2667 = vpack.c.b16 %v2243, %v2235
    %v2668 = vpack.c.b16 %v2252, %v2244
    %v2669 = vpack.c.b16 %v2253, %v2245
    %v2670 = vpack.c.b16 %v2254, %v2246
    %v2671 = vpack.c.b16 %v2255, %v2247
    %v2672 = vpack.c.b16 %v2256, %v2248
    %v2673 = vpack.c.b16 %v2257, %v2249
    %v2674 = vpack.c.b16 %v2258, %v2250
    %v2675 = vpack.c.b16 %v2259, %v2251
    %v2676 = vpack.c.b16 %v2268, %v2260
    %v2677 = vpack.c.b16 %v2269, %v2261
    %v2678 = vpack.c.b16 %v2270, %v2262
    %v2679 = vpack.c.b16 %v2271, %v2263
    %v2680 = vpack.c.b16 %v2272, %v2264
    %v2681 = vpack.c.b16 %v2273, %v2265
    %v2682 = vpack.c.b16 %v2274, %v2266
    %v2683 = vpack.c.b16 %v2275, %v2267
    %v2684 = vpack.c.b16 %v2284, %v2276
    %v2685 = vpack.c.b16 %v2285, %v2277
    %v2686 = vpack.c.b16 %v2286, %v2278
    %v2687 = vpack.c.b16 %v2287, %v2279
    %v2688 = vpack.c.b16 %v2288, %v2280
    %v2689 = vpack.c.b16 %v2289, %v2281
    %v2690 = vpack.c.b16 %v2290, %v2282
    %v2691 = vpack.c.b16 %v2291, %v2283
    %v2692 = vpack.c.b16 %v2300, %v2292
    %v2693 = vpack.c.b16 %v2301, %v2293
    %v2694 = vpack.c.b16 %v2302, %v2294
    %v2695 = vpack.c.b16 %v2303, %v2295
    %v2696 = vpack.c.b16 %v2304, %v2296
    %v2697 = vpack.c.b16 %v2305, %v2297
    %v2698 = vpack.c.b16 %v2306, %v2298
    %v2699 = vpack.c.b16 %v2307, %v2299
    %v2700 = vpack.c.b16 %v2316, %v2308
    %v2701 = vpack.c.b16 %v2317, %v2309
    %v2702 = vpack.c.b16 %v2318, %v2310
    %v2703 = vpack.c.b16 %v2319, %v2311
    %v2704 = vpack.c.b16 %v2320, %v2312
    %v2705 = vpack.c.b16 %v2321, %v2313
    %v2706 = vpack.c.b16 %v2322, %v2314
    %v2707 = vpack.c.b16 %v2323, %v2315
    %v2708 = vpack.c.b16 %v2332, %v2324
    %v2709 = vpack.c.b16 %v2333, %v2325
    %v2710 = vpack.c.b16 %v2334, %v2326
    %v2711 = vpack.c.b16 %v2335, %v2327
    %v2712 = vpack.c.b16 %v2336, %v2328
    %v2713 = vpack.c.b16 %v2337, %v2329
    %v2714 = vpack.c.b16 %v2338, %v2330
    %v2715 = vpack.c.b16 %v2339, %v2331
    %v2716 = vpack.c.b16 %v2348, %v2340
    %v2717 = vpack.c.b16 %v2349, %v2341
    %v2718 = vpack.c.b16 %v2350, %v2342
    %v2719 = vpack.c.b16 %v2351, %v2343
    %v2720 = vpack.c.b16 %v2352, %v2344
    %v2721 = vpack.c.b16 %v2353, %v2345
    %v2722 = vpack.c.b16 %v2354, %v2346
    %v2723 = vpack.c.b16 %v2355, %v2347
    %v2724 = vpack.c.b16 %v2364, %v2356
    %v2725 = vpack.c.b16 %v2365, %v2357
    %v2726 = vpack.c.b16 %v2366, %v2358
    %v2727 = vpack.c.b16 %v2367, %v2359
    %v2728 = vpack.c.b16 %v2368, %v2360
    %v2729 = vpack.c.b16 %v2369, %v2361
    %v2730 = vpack.c.b16 %v2370, %v2362
    %v2731 = vpack.c.b16 %v2371, %v2363
    %v2732 = vpack.c.b16 %v2380, %v2372
    %v2733 = vpack.c.b16 %v2381, %v2373
    %v2734 = vpack.c.b16 %v2382, %v2374
    %v2735 = vpack.c.b16 %v2383, %v2375
    %v2736 = vpack.c.b16 %v2384, %v2376
    %v2737 = vpack.c.b16 %v2385, %v2377
    %v2738 = vpack.c.b16 %v2386, %v2378
    %v2739 = vpack.c.b16 %v2387, %v2379
    %v2740 = vpack.c.b16 %v2396, %v2388
    %v2741 = vpack.c.b16 %v2397, %v2389
    %v2742 = vpack.c.b16 %v2398, %v2390
    %v2743 = vpack.c.b16 %v2399, %v2391
    %v2744 = vpack.c.b16 %v2400, %v2392
    %v2745 = vpack.c.b16 %v2401, %v2393
    %v2746 = vpack.c.b16 %v2402, %v2394
    %v2747 = vpack.c.b16 %v2403, %v2395
    %v2748 = vpack.c.b16 %v2412, %v2404
    %v2749 = vpack.c.b16 %v2413, %v2405
    %v2750 = vpack.c.b16 %v2414, %v2406
    %v2751 = vpack.c.b16 %v2415, %v2407
    %v2752 = vpack.c.b16 %v2416, %v2408
    %v2753 = vpack.c.b16 %v2417, %v2409
    %v2754 = vpack.c.b16 %v2418, %v2410
    %v2755 = vpack.c.b16 %v2419, %v2411
    %v2756 = vpack.c.b16 %v2428, %v2420
    %v2757 = vpack.c.b16 %v2429, %v2421
    %v2758 = vpack.c.b16 %v2430, %v2422
    %v2759 = vpack.c.b16 %v2431, %v2423
    %v2760 = vpack.c.b16 %v2432, %v2424
    %v2761 = vpack.c.b16 %v2433, %v2425
    %v2762 = vpack.c.b16 %v2434, %v2426
    %v2763 = vpack.c.b16 %v2435, %v2427
    %v2764 = vpack.c.b16 %v2444, %v2436
    %v2765 = vpack.c.b16 %v2445, %v2437
    %v2766 = vpack.c.b16 %v2446, %v2438
    %v2767 = vpack.c.b16 %v2447, %v2439
    %v2768 = vpack.c.b16 %v2448, %v2440
    %v2769 = vpack.c.b16 %v2449, %v2441
    %v2770 = vpack.c.b16 %v2450, %v2442
    %v2771 = vpack.c.b16 %v2451, %v2443
    %v2772 = vpack.c.b16 %v2460, %v2452
    %v2773 = vpack.c.b16 %v2461, %v2453
    %v2774 = vpack.c.b16 %v2462, %v2454
    %v2775 = vpack.c.b16 %v2463, %v2455
    %v2776 = vpack.c.b16 %v2464, %v2456
    %v2777 = vpack.c.b16 %v2465, %v2457
    %v2778 = vpack.c.b16 %v2466, %v2458
    %v2779 = vpack.c.b16 %v2467, %v2459
    %v2780 = vpack.c.b16 %v2476, %v2468
    %v2781 = vpack.c.b16 %v2477, %v2469
    %v2782 = vpack.c.b16 %v2478, %v2470
    %v2783 = vpack.c.b16 %v2479, %v2471
    %v2784 = vpack.c.b16 %v2480, %v2472
    %v2785 = vpack.c.b16 %v2481, %v2473
    %v2786 = vpack.c.b16 %v2482, %v2474
    %v2787 = vpack.c.b16 %v2483, %v2475
    %v2788 = vpack.c.b16 %v2492, %v2484
    %v2789 = vpack.c.b16 %v2493, %v2485
    %v2790 = vpack.c.b16 %v2494, %v2486
    %v2791 = vpack.c.b16 %v2495, %v2487
    %v2792 = vpack.c.b16 %v2496, %v2488
    %v2793 = vpack.c.b16 %v2497, %v2489
    %v2794 = vpack.c.b16 %v2498, %v2490
    %v2795 = vpack.c.b16 %v2499, %v2491
    %v2796 = vpack.c.b16 %v2508, %v2500
    %v2797 = vpack.c.b16 %v2509, %v2501
    %v2798 = vpack.c.b16 %v2510, %v2502
    %v2799 = vpack.c.b16 %v2511, %v2503
    %v2800 = vpack.c.b16 %v2512, %v2504
    %v2801 = vpack.c.b16 %v2513, %v2505
    %v2802 = vpack.c.b16 %v2514, %v2506
    %v2803 = vpack.c.b16 %v2515, %v2507
    %v2804 = vpack.c.b16 %v2524, %v2516
    %v2805 = vpack.c.b16 %v2525, %v2517
    %v2806 = vpack.c.b16 %v2526, %v2518
    %v2807 = vpack.c.b16 %v2527, %v2519
    %v2808 = vpack.c.b16 %v2528, %v2520
    %v2809 = vpack.c.b16 %v2529, %v2521
    %v2810 = vpack.c.b16 %v2530, %v2522
    %v2811 = vpack.c.b16 %v2531, %v2523
    %v2812 = vpack.c.b16 %v2540, %v2532
    %v2813 = vpack.c.b16 %v2541, %v2533
    %v2814 = vpack.c.b16 %v2542, %v2534
    %v2815 = vpack.c.b16 %v2543, %v2535
    %v2816 = vpack.c.b16 %v2544, %v2536
    %v2817 = vpack.c.b16 %v2545, %v2537
    %v2818 = vpack.c.b16 %v2546, %v2538
    %v2819 = vpack.c.b16 %v2547, %v2539
    %v2820 = vpack.c.b16 %v2556, %v2548
    %v2821 = vpack.c.b16 %v2557, %v2549
    %v2822 = vpack.c.b16 %v2558, %v2550
    %v2823 = vpack.c.b16 %v2559, %v2551
    %v2824 = vpack.c.b16 %v2560, %v2552
    %v2825 = vpack.c.b16 %v2561, %v2553
    %v2826 = vpack.c.b16 %v2562, %v2554
    %v2827 = vpack.c.b16 %v2563, %v2555
    %v2828 = vpack.c.b16 %v2572, %v2564
    %v2829 = vpack.c.b16 %v2573, %v2565
    %v2830 = vpack.c.b16 %v2574, %v2566
    %v2831 = vpack.c.b16 %v2575, %v2567
    %v2832 = vpack.c.b16 %v2576, %v2568
    %v2833 = vpack.c.b16 %v2577, %v2569
    %v2834 = vpack.c.b16 %v2578, %v2570
    %v2835 = vpack.c.b16 %v2579, %v2571
    %3092 = vmatprep.subr.bf16.mxu0 %v2637
    %3093 = vmatpush1.bf16.msra.mxu0 %v2636
    %3094 = vmatprep.subr.bf16.mxu0 %v2629
    %3095 = vmatpush1.bf16.msra.mxu0 %v2628
    %3096 = vmatprep.subr.bf16.mxu0 %v2621
    %3097 = vmatpush1.bf16.msra.mxu0 %v2620
    %3098 = vmatprep.subr.bf16.mxu0 %v2613
    %3099 = vmatpush1.bf16.msra.mxu0 %v2612
    %3100 = vmatprep.subr.bf16.mxu0 %v2605
    %3101 = vmatpush1.bf16.msra.mxu0 %v2604
    %3102 = vmatprep.subr.bf16.mxu0 %v2597
    %3103 = vmatpush1.bf16.msra.mxu0 %v2596
    %3104 = vmatprep.subr.bf16.mxu0 %v2589
    %3105 = vmatpush1.bf16.msra.mxu0 %v2588
    %3106 = vmatprep.subr.bf16.mxu0 %v2581
    %3107 = vmatpush1.bf16.msra.mxu0 %v2580
    %3108 = vmatprep.subr.bf16.mxu0 %v2701
    %3109 = vmatpush2.bf16.msra.mxu0 %v2700
    %3110 = vmatprep.subr.bf16.mxu0 %v2693
    %3111 = vmatpush2.bf16.msra.mxu0 %v2692
    %3112 = vmatprep.subr.bf16.mxu0 %v2685
    %3113 = vmatpush2.bf16.msra.mxu0 %v2684
    %3114 = vmatprep.subr.bf16.mxu0 %v2677
    %3115 = vmatpush2.bf16.msra.mxu0 %v2676
    %3116 = vmatprep.subr.bf16.mxu0 %v2669
    %3117 = vmatpush2.bf16.msra.mxu0 %v2668
    %3118 = vmatprep.subr.bf16.mxu0 %v2661
    %3119 = vmatpush2.bf16.msra.mxu0 %v2660
    %3120 = vmatprep.subr.bf16.mxu0 %v2653
    %3121 = vmatpush2.bf16.msra.mxu0 %v2652
    %3122 = vmatprep.subr.bf16.mxu0 %v2645
    %3123 = vmatpush2.bf16.msra.mxu0 %v2644
    %3124 = vmatprep.mubr.bf16.mxu0 %v1511
    %3125 = vmatmul.mubr.bf16.gmra.mxu0 %v1510
    %v3126 = vpop.f32.mrf.mxu0
    %v3127 = vadd.f32 %v1775, %v3126
    %v3128 = vpop.f32.mrf.mxu0
    %v3129 = vadd.f32 %v1779, %v3128
    %v3130 = vpop.f32.mrf.mxu0
    %v3131 = vpop.f32.mrf.mxu0
    %3132 = vdwg.mxu0
    %3133 = vmatprep.subr.bf16.mxu0 %v2765
    %3134 = vmatpush1.bf16.msra.mxu0 %v2764
    %3135 = vmatprep.subr.bf16.mxu0 %v2757
    %3136 = vmatpush1.bf16.msra.mxu0 %v2756
    %3137 = vmatprep.subr.bf16.mxu0 %v2749
    %3138 = vmatpush1.bf16.msra.mxu0 %v2748
    %3139 = vmatprep.subr.bf16.mxu0 %v2741
    %3140 = vmatpush1.bf16.msra.mxu0 %v2740
    %3141 = vmatprep.subr.bf16.mxu0 %v2733
    %3142 = vmatpush1.bf16.msra.mxu0 %v2732
    %3143 = vmatprep.subr.bf16.mxu0 %v2725
    %3144 = vmatpush1.bf16.msra.mxu0 %v2724
    %3145 = vmatprep.subr.bf16.mxu0 %v2717
    %3146 = vmatpush1.bf16.msra.mxu0 %v2716
    %3147 = vmatprep.subr.bf16.mxu0 %v2709
    %3148 = vmatpush1.bf16.msra.mxu0 %v2708
    %3149 = vmatprep.subr.bf16.mxu0 %v2829
    %3150 = vmatpush2.bf16.msra.mxu0 %v2828
    %3151 = vmatprep.subr.bf16.mxu0 %v2821
    %3152 = vmatpush2.bf16.msra.mxu0 %v2820
    %3153 = vmatprep.subr.bf16.mxu0 %v2813
    %3154 = vmatpush2.bf16.msra.mxu0 %v2812
    %3155 = vmatprep.subr.bf16.mxu0 %v2805
    %3156 = vmatpush2.bf16.msra.mxu0 %v2804
    %3157 = vmatprep.subr.bf16.mxu0 %v2797
    %3158 = vmatpush2.bf16.msra.mxu0 %v2796
    %3159 = vmatprep.subr.bf16.mxu0 %v2789
    %3160 = vmatpush2.bf16.msra.mxu0 %v2788
    %3161 = vmatprep.subr.bf16.mxu0 %v2781
    %3162 = vmatpush2.bf16.msra.mxu0 %v2780
    %3163 = vmatprep.subr.bf16.mxu0 %v2773
    %3164 = vmatpush2.bf16.msra.mxu0 %v2772
    %3165 = vmatprep.mubr.bf16.mxu0 %v1513
    %3166 = vmatmul.mubr.bf16.gmra.mxu0 %v1512
    %v3167 = vpop.f32.mrf.mxu0
    %v3168 = vadd.f32 %v3127, %v3167
    %v3169 = vpop.f32.mrf.mxu0
    %v3170 = vadd.f32 %v3129, %v3169
    %v3171 = vpop.f32.mrf.mxu0
    %v3172 = vpop.f32.mrf.mxu0
    %3173 = vdwg.mxu0
    %3174 = vmatprep.subr.bf16.mxu0 %v2639
    %3175 = vmatpush1.bf16.msra.mxu0 %v2638
    %3176 = vmatprep.subr.bf16.mxu0 %v2631
    %3177 = vmatpush1.bf16.msra.mxu0 %v2630
    %3178 = vmatprep.subr.bf16.mxu0 %v2623
    %3179 = vmatpush1.bf16.msra.mxu0 %v2622
    %3180 = vmatprep.subr.bf16.mxu0 %v2615
    %3181 = vmatpush1.bf16.msra.mxu0 %v2614
    %3182 = vmatprep.subr.bf16.mxu0 %v2607
    %3183 = vmatpush1.bf16.msra.mxu0 %v2606
    %3184 = vmatprep.subr.bf16.mxu0 %v2599
    %3185 = vmatpush1.bf16.msra.mxu0 %v2598
    %3186 = vmatprep.subr.bf16.mxu0 %v2591
    %3187 = vmatpush1.bf16.msra.mxu0 %v2590
    %3188 = vmatprep.subr.bf16.mxu0 %v2583
    %3189 = vmatpush1.bf16.msra.mxu0 %v2582
    %3190 = vmatprep.subr.bf16.mxu0 %v2703
    %3191 = vmatpush2.bf16.msra.mxu0 %v2702
    %3192 = vmatprep.subr.bf16.mxu0 %v2695
    %3193 = vmatpush2.bf16.msra.mxu0 %v2694
    %3194 = vmatprep.subr.bf16.mxu0 %v2687
    %3195 = vmatpush2.bf16.msra.mxu0 %v2686
    %3196 = vmatprep.subr.bf16.mxu0 %v2679
    %3197 = vmatpush2.bf16.msra.mxu0 %v2678
    %3198 = vmatprep.subr.bf16.mxu0 %v2671
    %3199 = vmatpush2.bf16.msra.mxu0 %v2670
    %3200 = vmatprep.subr.bf16.mxu0 %v2663
    %3201 = vmatpush2.bf16.msra.mxu0 %v2662
    %3202 = vmatprep.subr.bf16.mxu0 %v2655
    %3203 = vmatpush2.bf16.msra.mxu0 %v2654
    %3204 = vmatprep.subr.bf16.mxu0 %v2647
    %3205 = vmatpush2.bf16.msra.mxu0 %v2646
    %3206 = vmatprep.mubr.bf16.mxu0 %v1511
    %3207 = vmatmul.mubr.bf16.gmra.mxu0 %v1510
    %v3208 = vpop.f32.mrf.mxu0
    %v3209 = vadd.f32 %v1783, %v3208
    %v3210 = vpop.f32.mrf.mxu0
    %v3211 = vadd.f32 %v1787, %v3210
    %v3212 = vpop.f32.mrf.mxu0
    %v3213 = vpop.f32.mrf.mxu0
    %3214 = vdwg.mxu0
    %3215 = vmatprep.subr.bf16.mxu0 %v2767
    %3216 = vmatpush1.bf16.msra.mxu0 %v2766
    %3217 = vmatprep.subr.bf16.mxu0 %v2759
    %3218 = vmatpush1.bf16.msra.mxu0 %v2758
    %3219 = vmatprep.subr.bf16.mxu0 %v2751
    %3220 = vmatpush1.bf16.msra.mxu0 %v2750
    %3221 = vmatprep.subr.bf16.mxu0 %v2743
    %3222 = vmatpush1.bf16.msra.mxu0 %v2742
    %3223 = vmatprep.subr.bf16.mxu0 %v2735
    %3224 = vmatpush1.bf16.msra.mxu0 %v2734
    %3225 = vmatprep.subr.bf16.mxu0 %v2727
    %3226 = vmatpush1.bf16.msra.mxu0 %v2726
    %3227 = vmatprep.subr.bf16.mxu0 %v2719
    %3228 = vmatpush1.bf16.msra.mxu0 %v2718
    %3229 = vmatprep.subr.bf16.mxu0 %v2711
    %3230 = vmatpush1.bf16.msra.mxu0 %v2710
    %3231 = vmatprep.subr.bf16.mxu0 %v2831
    %3232 = vmatpush2.bf16.msra.mxu0 %v2830
    %3233 = vmatprep.subr.bf16.mxu0 %v2823
    %3234 = vmatpush2.bf16.msra.mxu0 %v2822
    %3235 = vmatprep.subr.bf16.mxu0 %v2815
    %3236 = vmatpush2.bf16.msra.mxu0 %v2814
    %3237 = vmatprep.subr.bf16.mxu0 %v2807
    %3238 = vmatpush2.bf16.msra.mxu0 %v2806
    %3239 = vmatprep.subr.bf16.mxu0 %v2799
    %3240 = vmatpush2.bf16.msra.mxu0 %v2798
    %3241 = vmatprep.subr.bf16.mxu0 %v2791
    %3242 = vmatpush2.bf16.msra.mxu0 %v2790
    %3243 = vmatprep.subr.bf16.mxu0 %v2783
    %3244 = vmatpush2.bf16.msra.mxu0 %v2782
    %3245 = vmatprep.subr.bf16.mxu0 %v2775
    %3246 = vmatpush2.bf16.msra.mxu0 %v2774
    %3247 = vmatprep.mubr.bf16.mxu0 %v1513
    %3248 = vmatmul.mubr.bf16.gmra.mxu0 %v1512
    %v3249 = vpop.f32.mrf.mxu0
    %v3250 = vadd.f32 %v3209, %v3249
    %v3251 = vpop.f32.mrf.mxu0
    %v3252 = vadd.f32 %v3211, %v3251
    %v3253 = vpop.f32.mrf.mxu0
    %v3254 = vpop.f32.mrf.mxu0
    %3255 = vdwg.mxu0
    %3256 = vmatprep.subr.bf16.mxu0 %v2641
    %3257 = vmatpush1.bf16.msra.mxu0 %v2640
    %3258 = vmatprep.subr.bf16.mxu0 %v2633
    %3259 = vmatpush1.bf16.msra.mxu0 %v2632
    %3260 = vmatprep.subr.bf16.mxu0 %v2625
    %3261 = vmatpush1.bf16.msra.mxu0 %v2624
    %3262 = vmatprep.subr.bf16.mxu0 %v2617
    %3263 = vmatpush1.bf16.msra.mxu0 %v2616
    %3264 = vmatprep.subr.bf16.mxu0 %v2609
    %3265 = vmatpush1.bf16.msra.mxu0 %v2608
    %3266 = vmatprep.subr.bf16.mxu0 %v2601
    %3267 = vmatpush1.bf16.msra.mxu0 %v2600
    %3268 = vmatprep.subr.bf16.mxu0 %v2593
    %3269 = vmatpush1.bf16.msra.mxu0 %v2592
    %3270 = vmatprep.subr.bf16.mxu0 %v2585
    %3271 = vmatpush1.bf16.msra.mxu0 %v2584
    %3272 = vmatprep.subr.bf16.mxu0 %v2705
    %3273 = vmatpush2.bf16.msra.mxu0 %v2704
    %3274 = vmatprep.subr.bf16.mxu0 %v2697
    %3275 = vmatpush2.bf16.msra.mxu0 %v2696
    %3276 = vmatprep.subr.bf16.mxu0 %v2689
    %3277 = vmatpush2.bf16.msra.mxu0 %v2688
    %3278 = vmatprep.subr.bf16.mxu0 %v2681
    %3279 = vmatpush2.bf16.msra.mxu0 %v2680
    %3280 = vmatprep.subr.bf16.mxu0 %v2673
    %3281 = vmatpush2.bf16.msra.mxu0 %v2672
    %3282 = vmatprep.subr.bf16.mxu0 %v2665
    %3283 = vmatpush2.bf16.msra.mxu0 %v2664
    %3284 = vmatprep.subr.bf16.mxu0 %v2657
    %3285 = vmatpush2.bf16.msra.mxu0 %v2656
    %3286 = vmatprep.subr.bf16.mxu0 %v2649
    %3287 = vmatpush2.bf16.msra.mxu0 %v2648
    %3288 = vmatprep.mubr.bf16.mxu0 %v1511
    %3289 = vmatmul.mubr.bf16.gmra.mxu0 %v1510
    %v3290 = vpop.f32.mrf.mxu0
    %v3291 = vadd.f32 %v1791, %v3290
    %v3292 = vpop.f32.mrf.mxu0
    %v3293 = vadd.f32 %v1795, %v3292
    %v3294 = vpop.f32.mrf.mxu0
    %v3295 = vpop.f32.mrf.mxu0
    %3296 = vdwg.mxu0
    %3297 = vmatprep.subr.bf16.mxu0 %v2769
    %3298 = vmatpush1.bf16.msra.mxu0 %v2768
    %3299 = vmatprep.subr.bf16.mxu0 %v2761
    %3300 = vmatpush1.bf16.msra.mxu0 %v2760
    %3301 = vmatprep.subr.bf16.mxu0 %v2753
    %3302 = vmatpush1.bf16.msra.mxu0 %v2752
    %3303 = vmatprep.subr.bf16.mxu0 %v2745
    %3304 = vmatpush1.bf16.msra.mxu0 %v2744
    %3305 = vmatprep.subr.bf16.mxu0 %v2737
    %3306 = vmatpush1.bf16.msra.mxu0 %v2736
    %3307 = vmatprep.subr.bf16.mxu0 %v2729
    %3308 = vmatpush1.bf16.msra.mxu0 %v2728
    %3309 = vmatprep.subr.bf16.mxu0 %v2721
    %3310 = vmatpush1.bf16.msra.mxu0 %v2720
    %3311 = vmatprep.subr.bf16.mxu0 %v2713
    %3312 = vmatpush1.bf16.msra.mxu0 %v2712
    %3313 = vmatprep.subr.bf16.mxu0 %v2833
    %3314 = vmatpush2.bf16.msra.mxu0 %v2832
    %3315 = vmatprep.subr.bf16.mxu0 %v2825
    %3316 = vmatpush2.bf16.msra.mxu0 %v2824
    %3317 = vmatprep.subr.bf16.mxu0 %v2817
    %3318 = vmatpush2.bf16.msra.mxu0 %v2816
    %3319 = vmatprep.subr.bf16.mxu0 %v2809
    %3320 = vmatpush2.bf16.msra.mxu0 %v2808
    %3321 = vmatprep.subr.bf16.mxu0 %v2801
    %3322 = vmatpush2.bf16.msra.mxu0 %v2800
    %3323 = vmatprep.subr.bf16.mxu0 %v2793
    %3324 = vmatpush2.bf16.msra.mxu0 %v2792
    %3325 = vmatprep.subr.bf16.mxu0 %v2785
    %3326 = vmatpush2.bf16.msra.mxu0 %v2784
    %3327 = vmatprep.subr.bf16.mxu0 %v2777
    %3328 = vmatpush2.bf16.msra.mxu0 %v2776
    %3329 = vmatprep.mubr.bf16.mxu0 %v1513
    %3330 = vmatmul.mubr.bf16.gmra.mxu0 %v1512
    %v3331 = vpop.f32.mrf.mxu0
    %v3332 = vadd.f32 %v3291, %v3331
    %v3333 = vpop.f32.mrf.mxu0
    %v3334 = vadd.f32 %v3293, %v3333
    %v3335 = vpop.f32.mrf.mxu0
    %v3336 = vpop.f32.mrf.mxu0
    %3337 = vdwg.mxu0
    %3338 = vmatprep.subr.bf16.mxu0 %v2643
    %3339 = vmatpush1.bf16.msra.mxu0 %v2642
    %3340 = vmatprep.subr.bf16.mxu0 %v2635
    %3341 = vmatpush1.bf16.msra.mxu0 %v2634
    %3342 = vmatprep.subr.bf16.mxu0 %v2627
    %3343 = vmatpush1.bf16.msra.mxu0 %v2626
    %3344 = vmatprep.subr.bf16.mxu0 %v2619
    %3345 = vmatpush1.bf16.msra.mxu0 %v2618
    %3346 = vmatprep.subr.bf16.mxu0 %v2611
    %3347 = vmatpush1.bf16.msra.mxu0 %v2610
    %3348 = vmatprep.subr.bf16.mxu0 %v2603
    %3349 = vmatpush1.bf16.msra.mxu0 %v2602
    %3350 = vmatprep.subr.bf16.mxu0 %v2595
    %3351 = vmatpush1.bf16.msra.mxu0 %v2594
    %3352 = vmatprep.subr.bf16.mxu0 %v2587
    %3353 = vmatpush1.bf16.msra.mxu0 %v2586
    %3354 = vmatprep.subr.bf16.mxu0 %v2707
    %3355 = vmatpush2.bf16.msra.mxu0 %v2706
    %3356 = vmatprep.subr.bf16.mxu0 %v2699
    %3357 = vmatpush2.bf16.msra.mxu0 %v2698
    %3358 = vmatprep.subr.bf16.mxu0 %v2691
    %3359 = vmatpush2.bf16.msra.mxu0 %v2690
    %3360 = vmatprep.subr.bf16.mxu0 %v2683
    %3361 = vmatpush2.bf16.msra.mxu0 %v2682
    %3362 = vmatprep.subr.bf16.mxu0 %v2675
    %3363 = vmatpush2.bf16.msra.mxu0 %v2674
    %3364 = vmatprep.subr.bf16.mxu0 %v2667
    %3365 = vmatpush2.bf16.msra.mxu0 %v2666
    %3366 = vmatprep.subr.bf16.mxu0 %v2659
    %3367 = vmatpush2.bf16.msra.mxu0 %v2658
    %3368 = vmatprep.subr.bf16.mxu0 %v2651
    %3369 = vmatpush2.bf16.msra.mxu0 %v2650
    %3370 = vmatprep.mubr.bf16.mxu0 %v1511
    %3371 = vmatmul.mubr.bf16.gmra.mxu0 %v1510
    %v3372 = vpop.f32.mrf.mxu0
    %v3373 = vadd.f32 %v1799, %v3372
    %v3374 = vpop.f32.mrf.mxu0
    %v3375 = vadd.f32 %v1803, %v3374
    %v3376 = vpop.f32.mrf.mxu0
    %v3377 = vpop.f32.mrf.mxu0
    %3378 = vdwg.mxu0
    %3379 = vmatprep.subr.bf16.mxu0 %v2771
    %3380 = vmatpush1.bf16.msra.mxu0 %v2770
    %3381 = vmatprep.subr.bf16.mxu0 %v2763
    %3382 = vmatpush1.bf16.msra.mxu0 %v2762
    %3383 = vmatprep.subr.bf16.mxu0 %v2755
    %3384 = vmatpush1.bf16.msra.mxu0 %v2754
    %3385 = vmatprep.subr.bf16.mxu0 %v2747
    %3386 = vmatpush1.bf16.msra.mxu0 %v2746
    %3387 = vmatprep.subr.bf16.mxu0 %v2739
    %3388 = vmatpush1.bf16.msra.mxu0 %v2738
    %3389 = vmatprep.subr.bf16.mxu0 %v2731
    %3390 = vmatpush1.bf16.msra.mxu0 %v2730
    %3391 = vmatprep.subr.bf16.mxu0 %v2723
    %3392 = vmatpush1.bf16.msra.mxu0 %v2722
    %3393 = vmatprep.subr.bf16.mxu0 %v2715
    %3394 = vmatpush1.bf16.msra.mxu0 %v2714
    %3395 = vmatprep.subr.bf16.mxu0 %v2835
    %3396 = vmatpush2.bf16.msra.mxu0 %v2834
    %3397 = vmatprep.subr.bf16.mxu0 %v2827
    %3398 = vmatpush2.bf16.msra.mxu0 %v2826
    %3399 = vmatprep.subr.bf16.mxu0 %v2819
    %3400 = vmatpush2.bf16.msra.mxu0 %v2818
    %3401 = vmatprep.subr.bf16.mxu0 %v2811
    %3402 = vmatpush2.bf16.msra.mxu0 %v2810
    %3403 = vmatprep.subr.bf16.mxu0 %v2803
    %3404 = vmatpush2.bf16.msra.mxu0 %v2802
    %3405 = vmatprep.subr.bf16.mxu0 %v2795
    %3406 = vmatpush2.bf16.msra.mxu0 %v2794
    %3407 = vmatprep.subr.bf16.mxu0 %v2787
    %3408 = vmatpush2.bf16.msra.mxu0 %v2786
    %3409 = vmatprep.subr.bf16.mxu0 %v2779
    %3410 = vmatpush2.bf16.msra.mxu0 %v2778
    %3411 = vmatprep.mubr.bf16.mxu0 %v1513
    %3412 = vmatmul.mubr.bf16.gmra.mxu0 %v1512
    %v3413 = vpop.f32.mrf.mxu0
    %v3414 = vadd.f32 %v3373, %v3413
    %v3415 = vpop.f32.mrf.mxu0
    %v3416 = vadd.f32 %v3375, %v3415
    %v3417 = vpop.f32.mrf.mxu0
    %v3418 = vpop.f32.mrf.mxu0
    %3419 = vdwg.mxu0
    %v3420 = vmax.f32 %v3168, 0.0
    %v3421 = vmax.f32 %v3170, 0.0
    %v3422 = vmax.f32 %v3250, 0.0
    %v3423 = vmax.f32 %v3252, 0.0
    %v3424 = vmax.f32 %v3332, 0.0
    %v3425 = vmax.f32 %v3334, 0.0
    %v3426 = vmax.f32 %v3414, 0.0
    %v3427 = vmax.f32 %v3416, 0.0
    %v3428 = vpack.c.bf16 %v3420, %v3420
    %v3429 = vpack.c.bf16 %v3421, %v3421
    %v3430 = vpack.c.bf16 %v3422, %v3422
    %v3431 = vpack.c.bf16 %v3423, %v3423
    %v3432 = vpack.c.bf16 %v3424, %v3424
    %v3433 = vpack.c.bf16 %v3425, %v3425
    %v3434 = vpack.c.bf16 %v3426, %v3426
    %v3435 = vpack.c.bf16 %v3427, %v3427
    %v3436 = vld [vmem:[#allocation35] sm:$0xff]
    %v3437 = vld [vmem:[#allocation35 + $0x8] sm:$0xff]
    %v3438 = vld [vmem:[#allocation35 + $0x10] sm:$0xff]
    %v3439 = vld [vmem:[#allocation35 + $0x18] sm:$0xff]
    %v3440 = vld [vmem:[#allocation35 + $0x20] sm:$0xff]
    %v3441 = vld [vmem:[#allocation35 + $0x28] sm:$0xff]
    %v3442 = vld [vmem:[#allocation35 + $0x30] sm:$0xff]
    %v3443 = vld [vmem:[#allocation35 + $0x38] sm:$0xff]
    %v3444 = vld [vmem:[#allocation35 + $0x40] sm:$0xff]
    %v3445 = vld [vmem:[#allocation35 + $0x48] sm:$0xff]
    %v3446 = vld [vmem:[#allocation35 + $0x50] sm:$0xff]
    %v3447 = vld [vmem:[#allocation35 + $0x58] sm:$0xff]
    %v3448 = vld [vmem:[#allocation35 + $0x60] sm:$0xff]
    %v3449 = vld [vmem:[#allocation35 + $0x68] sm:$0xff]
    %v3450 = vld [vmem:[#allocation35 + $0x70] sm:$0xff]
    %v3451 = vld [vmem:[#allocation35 + $0x78] sm:$0xff]
    %v3452 = vld [vmem:[#allocation35 + $0x80] sm:$0xff]
    %v3453 = vld [vmem:[#allocation35 + $0x88] sm:$0xff]
    %v3454 = vld [vmem:[#allocation35 + $0x90] sm:$0xff]
    %v3455 = vld [vmem:[#allocation35 + $0x98] sm:$0xff]
    %v3456 = vld [vmem:[#allocation35 + $0xa0] sm:$0xff]
    %v3457 = vld [vmem:[#allocation35 + $0xa8] sm:$0xff]
    %v3458 = vld [vmem:[#allocation35 + $0xb0] sm:$0xff]
    %v3459 = vld [vmem:[#allocation35 + $0xb8] sm:$0xff]
    %v3460 = vld [vmem:[#allocation35 + $0xc0] sm:$0xff]
    %v3461 = vld [vmem:[#allocation35 + $0xc8] sm:$0xff]
    %v3462 = vld [vmem:[#allocation35 + $0xd0] sm:$0xff]
    %v3463 = vld [vmem:[#allocation35 + $0xd8] sm:$0xff]
    %v3464 = vld [vmem:[#allocation35 + $0xe0] sm:$0xff]
    %v3465 = vld [vmem:[#allocation35 + $0xe8] sm:$0xff]
    %v3466 = vld [vmem:[#allocation35 + $0xf0] sm:$0xff]
    %v3467 = vld [vmem:[#allocation35 + $0xf8] sm:$0xff]
    %v3468 = vld [vmem:[#allocation35 + $0x100] sm:$0xff]
    %v3469 = vld [vmem:[#allocation35 + $0x108] sm:$0xff]
    %v3470 = vld [vmem:[#allocation35 + $0x110] sm:$0xff]
    %v3471 = vld [vmem:[#allocation35 + $0x118] sm:$0xff]
    %v3472 = vld [vmem:[#allocation35 + $0x120] sm:$0xff]
    %v3473 = vld [vmem:[#allocation35 + $0x128] sm:$0xff]
    %v3474 = vld [vmem:[#allocation35 + $0x130] sm:$0xff]
    %v3475 = vld [vmem:[#allocation35 + $0x138] sm:$0xff]
    %v3476 = vld [vmem:[#allocation35 + $0x140] sm:$0xff]
    %v3477 = vld [vmem:[#allocation35 + $0x148] sm:$0xff]
    %v3478 = vld [vmem:[#allocation35 + $0x150] sm:$0xff]
    %v3479 = vld [vmem:[#allocation35 + $0x158] sm:$0xff]
    %v3480 = vld [vmem:[#allocation35 + $0x160] sm:$0xff]
    %v3481 = vld [vmem:[#allocation35 + $0x168] sm:$0xff]
    %v3482 = vld [vmem:[#allocation35 + $0x170] sm:$0xff]
    %v3483 = vld [vmem:[#allocation35 + $0x178] sm:$0xff]
    %v3484 = vld [vmem:[#allocation35 + $0x180] sm:$0xff]
    %v3485 = vld [vmem:[#allocation35 + $0x188] sm:$0xff]
    %v3486 = vld [vmem:[#allocation35 + $0x190] sm:$0xff]
    %v3487 = vld [vmem:[#allocation35 + $0x198] sm:$0xff]
    %v3488 = vld [vmem:[#allocation35 + $0x1a0] sm:$0xff]
    %v3489 = vld [vmem:[#allocation35 + $0x1a8] sm:$0xff]
    %v3490 = vld [vmem:[#allocation35 + $0x1b0] sm:$0xff]
    %v3491 = vld [vmem:[#allocation35 + $0x1b8] sm:$0xff]
    %v3492 = vld [vmem:[#allocation35 + $0x1c0] sm:$0xff]
    %v3493 = vld [vmem:[#allocation35 + $0x1c8] sm:$0xff]
    %v3494 = vld [vmem:[#allocation35 + $0x1d0] sm:$0xff]
    %v3495 = vld [vmem:[#allocation35 + $0x1d8] sm:$0xff]
    %v3496 = vld [vmem:[#allocation35 + $0x1e0] sm:$0xff]
    %v3497 = vld [vmem:[#allocation35 + $0x1e8] sm:$0xff]
    %v3498 = vld [vmem:[#allocation35 + $0x1f0] sm:$0xff]
    %v3499 = vld [vmem:[#allocation35 + $0x1f8] sm:$0xff]
    %v3500 = vld [vmem:[#allocation35 + $0x200] sm:$0xff]
    %v3501 = vld [vmem:[#allocation35 + $0x208] sm:$0xff]
    %v3502 = vld [vmem:[#allocation35 + $0x210] sm:$0xff]
    %v3503 = vld [vmem:[#allocation35 + $0x218] sm:$0xff]
    %v3504 = vld [vmem:[#allocation35 + $0x220] sm:$0xff]
    %v3505 = vld [vmem:[#allocation35 + $0x228] sm:$0xff]
    %v3506 = vld [vmem:[#allocation35 + $0x230] sm:$0xff]
    %v3507 = vld [vmem:[#allocation35 + $0x238] sm:$0xff]
    %v3508 = vld [vmem:[#allocation35 + $0x240] sm:$0xff]
    %v3509 = vld [vmem:[#allocation35 + $0x248] sm:$0xff]
    %v3510 = vld [vmem:[#allocation35 + $0x250] sm:$0xff]
    %v3511 = vld [vmem:[#allocation35 + $0x258] sm:$0xff]
    %v3512 = vld [vmem:[#allocation35 + $0x260] sm:$0xff]
    %v3513 = vld [vmem:[#allocation35 + $0x268] sm:$0xff]
    %v3514 = vld [vmem:[#allocation35 + $0x270] sm:$0xff]
    %v3515 = vld [vmem:[#allocation35 + $0x278] sm:$0xff]
    %v3516 = vld [vmem:[#allocation35 + $0x280] sm:$0xff]
    %v3517 = vld [vmem:[#allocation35 + $0x288] sm:$0xff]
    %v3518 = vld [vmem:[#allocation35 + $0x290] sm:$0xff]
    %v3519 = vld [vmem:[#allocation35 + $0x298] sm:$0xff]
    %v3520 = vld [vmem:[#allocation35 + $0x2a0] sm:$0xff]
    %v3521 = vld [vmem:[#allocation35 + $0x2a8] sm:$0xff]
    %v3522 = vld [vmem:[#allocation35 + $0x2b0] sm:$0xff]
    %v3523 = vld [vmem:[#allocation35 + $0x2b8] sm:$0xff]
    %v3524 = vld [vmem:[#allocation35 + $0x2c0] sm:$0xff]
    %v3525 = vld [vmem:[#allocation35 + $0x2c8] sm:$0xff]
    %v3526 = vld [vmem:[#allocation35 + $0x2d0] sm:$0xff]
    %v3527 = vld [vmem:[#allocation35 + $0x2d8] sm:$0xff]
    %v3528 = vld [vmem:[#allocation35 + $0x2e0] sm:$0xff]
    %v3529 = vld [vmem:[#allocation35 + $0x2e8] sm:$0xff]
    %v3530 = vld [vmem:[#allocation35 + $0x2f0] sm:$0xff]
    %v3531 = vld [vmem:[#allocation35 + $0x2f8] sm:$0xff]
    %v3532 = vld [vmem:[#allocation35 + $0x300] sm:$0xff]
    %v3533 = vld [vmem:[#allocation35 + $0x308] sm:$0xff]
    %v3534 = vld [vmem:[#allocation35 + $0x310] sm:$0xff]
    %v3535 = vld [vmem:[#allocation35 + $0x318] sm:$0xff]
    %v3536 = vld [vmem:[#allocation35 + $0x320] sm:$0xff]
    %v3537 = vld [vmem:[#allocation35 + $0x328] sm:$0xff]
    %v3538 = vld [vmem:[#allocation35 + $0x330] sm:$0xff]
    %v3539 = vld [vmem:[#allocation35 + $0x338] sm:$0xff]
    %v3540 = vld [vmem:[#allocation35 + $0x340] sm:$0xff]
    %v3541 = vld [vmem:[#allocation35 + $0x348] sm:$0xff]
    %v3542 = vld [vmem:[#allocation35 + $0x350] sm:$0xff]
    %v3543 = vld [vmem:[#allocation35 + $0x358] sm:$0xff]
    %v3544 = vld [vmem:[#allocation35 + $0x360] sm:$0xff]
    %v3545 = vld [vmem:[#allocation35 + $0x368] sm:$0xff]
    %v3546 = vld [vmem:[#allocation35 + $0x370] sm:$0xff]
    %v3547 = vld [vmem:[#allocation35 + $0x378] sm:$0xff]
    %v3548 = vld [vmem:[#allocation35 + $0x380] sm:$0xff]
    %v3549 = vld [vmem:[#allocation35 + $0x388] sm:$0xff]
    %v3550 = vld [vmem:[#allocation35 + $0x390] sm:$0xff]
    %v3551 = vld [vmem:[#allocation35 + $0x398] sm:$0xff]
    %v3552 = vld [vmem:[#allocation35 + $0x3a0] sm:$0xff]
    %v3553 = vld [vmem:[#allocation35 + $0x3a8] sm:$0xff]
    %v3554 = vld [vmem:[#allocation35 + $0x3b0] sm:$0xff]
    %v3555 = vld [vmem:[#allocation35 + $0x3b8] sm:$0xff]
    %v3556 = vld [vmem:[#allocation35 + $0x3c0] sm:$0xff]
    %v3557 = vld [vmem:[#allocation35 + $0x3c8] sm:$0xff]
    %v3558 = vld [vmem:[#allocation35 + $0x3d0] sm:$0xff]
    %v3559 = vld [vmem:[#allocation35 + $0x3d8] sm:$0xff]
    %v3560 = vld [vmem:[#allocation35 + $0x3e0] sm:$0xff]
    %v3561 = vld [vmem:[#allocation35 + $0x3e8] sm:$0xff]
    %v3562 = vld [vmem:[#allocation35 + $0x3f0] sm:$0xff]
    %v3563 = vld [vmem:[#allocation35 + $0x3f8] sm:$0xff]
    %v3564 = vld [vmem:[#allocation35 + $0x400] sm:$0xff]
    %v3565 = vld [vmem:[#allocation35 + $0x408] sm:$0xff]
    %v3566 = vld [vmem:[#allocation35 + $0x410] sm:$0xff]
    %v3567 = vld [vmem:[#allocation35 + $0x418] sm:$0xff]
    %v3568 = vld [vmem:[#allocation35 + $0x420] sm:$0xff]
    %v3569 = vld [vmem:[#allocation35 + $0x428] sm:$0xff]
    %v3570 = vld [vmem:[#allocation35 + $0x430] sm:$0xff]
    %v3571 = vld [vmem:[#allocation35 + $0x438] sm:$0xff]
    %v3572 = vld [vmem:[#allocation35 + $0x440] sm:$0xff]
    %v3573 = vld [vmem:[#allocation35 + $0x448] sm:$0xff]
    %v3574 = vld [vmem:[#allocation35 + $0x450] sm:$0xff]
    %v3575 = vld [vmem:[#allocation35 + $0x458] sm:$0xff]
    %v3576 = vld [vmem:[#allocation35 + $0x460] sm:$0xff]
    %v3577 = vld [vmem:[#allocation35 + $0x468] sm:$0xff]
    %v3578 = vld [vmem:[#allocation35 + $0x470] sm:$0xff]
    %v3579 = vld [vmem:[#allocation35 + $0x478] sm:$0xff]
    %v3580 = vld [vmem:[#allocation35 + $0x480] sm:$0xff]
    %v3581 = vld [vmem:[#allocation35 + $0x488] sm:$0xff]
    %v3582 = vld [vmem:[#allocation35 + $0x490] sm:$0xff]
    %v3583 = vld [vmem:[#allocation35 + $0x498] sm:$0xff]
    %v3584 = vld [vmem:[#allocation35 + $0x4a0] sm:$0xff]
    %v3585 = vld [vmem:[#allocation35 + $0x4a8] sm:$0xff]
    %v3586 = vld [vmem:[#allocation35 + $0x4b0] sm:$0xff]
    %v3587 = vld [vmem:[#allocation35 + $0x4b8] sm:$0xff]
    %v3588 = vld [vmem:[#allocation35 + $0x4c0] sm:$0xff]
    %v3589 = vld [vmem:[#allocation35 + $0x4c8] sm:$0xff]
    %v3590 = vld [vmem:[#allocation35 + $0x4d0] sm:$0xff]
    %v3591 = vld [vmem:[#allocation35 + $0x4d8] sm:$0xff]
    %v3592 = vld [vmem:[#allocation35 + $0x4e0] sm:$0xff]
    %v3593 = vld [vmem:[#allocation35 + $0x4e8] sm:$0xff]
    %v3594 = vld [vmem:[#allocation35 + $0x4f0] sm:$0xff]
    %v3595 = vld [vmem:[#allocation35 + $0x4f8] sm:$0xff]
    %v3596 = vld [vmem:[#allocation35 + $0x500] sm:$0xff]
    %v3597 = vld [vmem:[#allocation35 + $0x508] sm:$0xff]
    %v3598 = vld [vmem:[#allocation35 + $0x510] sm:$0xff]
    %v3599 = vld [vmem:[#allocation35 + $0x518] sm:$0xff]
    %v3600 = vld [vmem:[#allocation35 + $0x520] sm:$0xff]
    %v3601 = vld [vmem:[#allocation35 + $0x528] sm:$0xff]
    %v3602 = vld [vmem:[#allocation35 + $0x530] sm:$0xff]
    %v3603 = vld [vmem:[#allocation35 + $0x538] sm:$0xff]
    %v3604 = vld [vmem:[#allocation35 + $0x540] sm:$0xff]
    %v3605 = vld [vmem:[#allocation35 + $0x548] sm:$0xff]
    %v3606 = vld [vmem:[#allocation35 + $0x550] sm:$0xff]
    %v3607 = vld [vmem:[#allocation35 + $0x558] sm:$0xff]
    %v3608 = vld [vmem:[#allocation35 + $0x560] sm:$0xff]
    %v3609 = vld [vmem:[#allocation35 + $0x568] sm:$0xff]
    %v3610 = vld [vmem:[#allocation35 + $0x570] sm:$0xff]
    %v3611 = vld [vmem:[#allocation35 + $0x578] sm:$0xff]
    %v3612 = vld [vmem:[#allocation35 + $0x580] sm:$0xff]
    %v3613 = vld [vmem:[#allocation35 + $0x588] sm:$0xff]
    %v3614 = vld [vmem:[#allocation35 + $0x590] sm:$0xff]
    %v3615 = vld [vmem:[#allocation35 + $0x598] sm:$0xff]
    %v3616 = vld [vmem:[#allocation35 + $0x5a0] sm:$0xff]
    %v3617 = vld [vmem:[#allocation35 + $0x5a8] sm:$0xff]
    %v3618 = vld [vmem:[#allocation35 + $0x5b0] sm:$0xff]
    %v3619 = vld [vmem:[#allocation35 + $0x5b8] sm:$0xff]
    %v3620 = vld [vmem:[#allocation35 + $0x5c0] sm:$0xff]
    %v3621 = vld [vmem:[#allocation35 + $0x5c8] sm:$0xff]
    %v3622 = vld [vmem:[#allocation35 + $0x5d0] sm:$0xff]
    %v3623 = vld [vmem:[#allocation35 + $0x5d8] sm:$0xff]
    %v3624 = vld [vmem:[#allocation35 + $0x5e0] sm:$0xff]
    %v3625 = vld [vmem:[#allocation35 + $0x5e8] sm:$0xff]
    %v3626 = vld [vmem:[#allocation35 + $0x5f0] sm:$0xff]
    %v3627 = vld [vmem:[#allocation35 + $0x5f8] sm:$0xff]
    %v3628 = vld [vmem:[#allocation35 + $0x600] sm:$0xff]
    %v3629 = vld [vmem:[#allocation35 + $0x608] sm:$0xff]
    %v3630 = vld [vmem:[#allocation35 + $0x610] sm:$0xff]
    %v3631 = vld [vmem:[#allocation35 + $0x618] sm:$0xff]
    %v3632 = vld [vmem:[#allocation35 + $0x620] sm:$0xff]
    %v3633 = vld [vmem:[#allocation35 + $0x628] sm:$0xff]
    %v3634 = vld [vmem:[#allocation35 + $0x630] sm:$0xff]
    %v3635 = vld [vmem:[#allocation35 + $0x638] sm:$0xff]
    %v3636 = vld [vmem:[#allocation35 + $0x640] sm:$0xff]
    %v3637 = vld [vmem:[#allocation35 + $0x648] sm:$0xff]
    %v3638 = vld [vmem:[#allocation35 + $0x650] sm:$0xff]
    %v3639 = vld [vmem:[#allocation35 + $0x658] sm:$0xff]
    %v3640 = vld [vmem:[#allocation35 + $0x660] sm:$0xff]
    %v3641 = vld [vmem:[#allocation35 + $0x668] sm:$0xff]
    %v3642 = vld [vmem:[#allocation35 + $0x670] sm:$0xff]
    %v3643 = vld [vmem:[#allocation35 + $0x678] sm:$0xff]
    %v3644 = vld [vmem:[#allocation35 + $0x680] sm:$0xff]
    %v3645 = vld [vmem:[#allocation35 + $0x688] sm:$0xff]
    %v3646 = vld [vmem:[#allocation35 + $0x690] sm:$0xff]
    %v3647 = vld [vmem:[#allocation35 + $0x698] sm:$0xff]
    %v3648 = vld [vmem:[#allocation35 + $0x6a0] sm:$0xff]
    %v3649 = vld [vmem:[#allocation35 + $0x6a8] sm:$0xff]
    %v3650 = vld [vmem:[#allocation35 + $0x6b0] sm:$0xff]
    %v3651 = vld [vmem:[#allocation35 + $0x6b8] sm:$0xff]
    %v3652 = vld [vmem:[#allocation35 + $0x6c0] sm:$0xff]
    %v3653 = vld [vmem:[#allocation35 + $0x6c8] sm:$0xff]
    %v3654 = vld [vmem:[#allocation35 + $0x6d0] sm:$0xff]
    %v3655 = vld [vmem:[#allocation35 + $0x6d8] sm:$0xff]
    %v3656 = vld [vmem:[#allocation35 + $0x6e0] sm:$0xff]
    %v3657 = vld [vmem:[#allocation35 + $0x6e8] sm:$0xff]
    %v3658 = vld [vmem:[#allocation35 + $0x6f0] sm:$0xff]
    %v3659 = vld [vmem:[#allocation35 + $0x6f8] sm:$0xff]
    %v3660 = vld [vmem:[#allocation35 + $0x700] sm:$0xff]
    %v3661 = vld [vmem:[#allocation35 + $0x708] sm:$0xff]
    %v3662 = vld [vmem:[#allocation35 + $0x710] sm:$0xff]
    %v3663 = vld [vmem:[#allocation35 + $0x718] sm:$0xff]
    %v3664 = vld [vmem:[#allocation35 + $0x720] sm:$0xff]
    %v3665 = vld [vmem:[#allocation35 + $0x728] sm:$0xff]
    %v3666 = vld [vmem:[#allocation35 + $0x730] sm:$0xff]
    %v3667 = vld [vmem:[#allocation35 + $0x738] sm:$0xff]
    %v3668 = vld [vmem:[#allocation35 + $0x740] sm:$0xff]
    %v3669 = vld [vmem:[#allocation35 + $0x748] sm:$0xff]
    %v3670 = vld [vmem:[#allocation35 + $0x750] sm:$0xff]
    %v3671 = vld [vmem:[#allocation35 + $0x758] sm:$0xff]
    %v3672 = vld [vmem:[#allocation35 + $0x760] sm:$0xff]
    %v3673 = vld [vmem:[#allocation35 + $0x768] sm:$0xff]
    %v3674 = vld [vmem:[#allocation35 + $0x770] sm:$0xff]
    %v3675 = vld [vmem:[#allocation35 + $0x778] sm:$0xff]
    %v3676 = vld [vmem:[#allocation35 + $0x780] sm:$0xff]
    %v3677 = vld [vmem:[#allocation35 + $0x788] sm:$0xff]
    %v3678 = vld [vmem:[#allocation35 + $0x790] sm:$0xff]
    %v3679 = vld [vmem:[#allocation35 + $0x798] sm:$0xff]
    %v3680 = vld [vmem:[#allocation35 + $0x7a0] sm:$0xff]
    %v3681 = vld [vmem:[#allocation35 + $0x7a8] sm:$0xff]
    %v3682 = vld [vmem:[#allocation35 + $0x7b0] sm:$0xff]
    %v3683 = vld [vmem:[#allocation35 + $0x7b8] sm:$0xff]
    %v3684 = vld [vmem:[#allocation35 + $0x7c0] sm:$0xff]
    %v3685 = vld [vmem:[#allocation35 + $0x7c8] sm:$0xff]
    %v3686 = vld [vmem:[#allocation35 + $0x7d0] sm:$0xff]
    %v3687 = vld [vmem:[#allocation35 + $0x7d8] sm:$0xff]
    %v3688 = vld [vmem:[#allocation35 + $0x7e0] sm:$0xff]
    %v3689 = vld [vmem:[#allocation35 + $0x7e8] sm:$0xff]
    %v3690 = vld [vmem:[#allocation35 + $0x7f0] sm:$0xff]
    %v3691 = vld [vmem:[#allocation35 + $0x7f8] sm:$0xff]
    %v3692 = vld [vmem:[#allocation35 + $0x800] sm:$0xff]
    %v3693 = vld [vmem:[#allocation35 + $0x808] sm:$0xff]
    %v3694 = vld [vmem:[#allocation35 + $0x810] sm:$0xff]
    %v3695 = vld [vmem:[#allocation35 + $0x818] sm:$0xff]
    %v3696 = vld [vmem:[#allocation35 + $0x820] sm:$0xff]
    %v3697 = vld [vmem:[#allocation35 + $0x828] sm:$0xff]
    %v3698 = vld [vmem:[#allocation35 + $0x830] sm:$0xff]
    %v3699 = vld [vmem:[#allocation35 + $0x838] sm:$0xff]
    %v3700 = vld [vmem:[#allocation35 + $0x840] sm:$0xff]
    %v3701 = vld [vmem:[#allocation35 + $0x848] sm:$0xff]
    %v3702 = vld [vmem:[#allocation35 + $0x850] sm:$0xff]
    %v3703 = vld [vmem:[#allocation35 + $0x858] sm:$0xff]
    %v3704 = vld [vmem:[#allocation35 + $0x860] sm:$0xff]
    %v3705 = vld [vmem:[#allocation35 + $0x868] sm:$0xff]
    %v3706 = vld [vmem:[#allocation35 + $0x870] sm:$0xff]
    %v3707 = vld [vmem:[#allocation35 + $0x878] sm:$0xff]
    %v3708 = vld [vmem:[#allocation35 + $0x880] sm:$0xff]
    %v3709 = vld [vmem:[#allocation35 + $0x888] sm:$0xff]
    %v3710 = vld [vmem:[#allocation35 + $0x890] sm:$0xff]
    %v3711 = vld [vmem:[#allocation35 + $0x898] sm:$0xff]
    %v3712 = vld [vmem:[#allocation35 + $0x8a0] sm:$0xff]
    %v3713 = vld [vmem:[#allocation35 + $0x8a8] sm:$0xff]
    %v3714 = vld [vmem:[#allocation35 + $0x8b0] sm:$0xff]
    %v3715 = vld [vmem:[#allocation35 + $0x8b8] sm:$0xff]
    %v3716 = vld [vmem:[#allocation35 + $0x8c0] sm:$0xff]
    %v3717 = vld [vmem:[#allocation35 + $0x8c8] sm:$0xff]
    %v3718 = vld [vmem:[#allocation35 + $0x8d0] sm:$0xff]
    %v3719 = vld [vmem:[#allocation35 + $0x8d8] sm:$0xff]
    %v3720 = vld [vmem:[#allocation35 + $0x8e0] sm:$0xff]
    %v3721 = vld [vmem:[#allocation35 + $0x8e8] sm:$0xff]
    %v3722 = vld [vmem:[#allocation35 + $0x8f0] sm:$0xff]
    %v3723 = vld [vmem:[#allocation35 + $0x8f8] sm:$0xff]
    %v3724 = vld [vmem:[#allocation35 + $0x900] sm:$0xff]
    %v3725 = vld [vmem:[#allocation35 + $0x908] sm:$0xff]
    %v3726 = vld [vmem:[#allocation35 + $0x910] sm:$0xff]
    %v3727 = vld [vmem:[#allocation35 + $0x918] sm:$0xff]
    %v3728 = vld [vmem:[#allocation35 + $0x920] sm:$0xff]
    %v3729 = vld [vmem:[#allocation35 + $0x928] sm:$0xff]
    %v3730 = vld [vmem:[#allocation35 + $0x930] sm:$0xff]
    %v3731 = vld [vmem:[#allocation35 + $0x938] sm:$0xff]
    %v3732 = vld [vmem:[#allocation35 + $0x940] sm:$0xff]
    %v3733 = vld [vmem:[#allocation35 + $0x948] sm:$0xff]
    %v3734 = vld [vmem:[#allocation35 + $0x950] sm:$0xff]
    %v3735 = vld [vmem:[#allocation35 + $0x958] sm:$0xff]
    %v3736 = vld [vmem:[#allocation35 + $0x960] sm:$0xff]
    %v3737 = vld [vmem:[#allocation35 + $0x968] sm:$0xff]
    %v3738 = vld [vmem:[#allocation35 + $0x970] sm:$0xff]
    %v3739 = vld [vmem:[#allocation35 + $0x978] sm:$0xff]
    %v3740 = vld [vmem:[#allocation35 + $0x980] sm:$0xff]
    %v3741 = vld [vmem:[#allocation35 + $0x988] sm:$0xff]
    %v3742 = vld [vmem:[#allocation35 + $0x990] sm:$0xff]
    %v3743 = vld [vmem:[#allocation35 + $0x998] sm:$0xff]
    %v3744 = vld [vmem:[#allocation35 + $0x9a0] sm:$0xff]
    %v3745 = vld [vmem:[#allocation35 + $0x9a8] sm:$0xff]
    %v3746 = vld [vmem:[#allocation35 + $0x9b0] sm:$0xff]
    %v3747 = vld [vmem:[#allocation35 + $0x9b8] sm:$0xff]
    %v3748 = vld [vmem:[#allocation35 + $0x9c0] sm:$0xff]
    %v3749 = vld [vmem:[#allocation35 + $0x9c8] sm:$0xff]
    %v3750 = vld [vmem:[#allocation35 + $0x9d0] sm:$0xff]
    %v3751 = vld [vmem:[#allocation35 + $0x9d8] sm:$0xff]
    %v3752 = vld [vmem:[#allocation35 + $0x9e0] sm:$0xff]
    %v3753 = vld [vmem:[#allocation35 + $0x9e8] sm:$0xff]
    %v3754 = vld [vmem:[#allocation35 + $0x9f0] sm:$0xff]
    %v3755 = vld [vmem:[#allocation35 + $0x9f8] sm:$0xff]
    %v3756 = vld [vmem:[#allocation35 + $0xa00] sm:$0xff]
    %v3757 = vld [vmem:[#allocation35 + $0xa08] sm:$0xff]
    %v3758 = vld [vmem:[#allocation35 + $0xa10] sm:$0xff]
    %v3759 = vld [vmem:[#allocation35 + $0xa18] sm:$0xff]
    %v3760 = vld [vmem:[#allocation35 + $0xa20] sm:$0xff]
    %v3761 = vld [vmem:[#allocation35 + $0xa28] sm:$0xff]
    %v3762 = vld [vmem:[#allocation35 + $0xa30] sm:$0xff]
    %v3763 = vld [vmem:[#allocation35 + $0xa38] sm:$0xff]
    %v3764 = vld [vmem:[#allocation35 + $0xa40] sm:$0xff]
    %v3765 = vld [vmem:[#allocation35 + $0xa48] sm:$0xff]
    %v3766 = vld [vmem:[#allocation35 + $0xa50] sm:$0xff]
    %v3767 = vld [vmem:[#allocation35 + $0xa58] sm:$0xff]
    %v3768 = vld [vmem:[#allocation35 + $0xa60] sm:$0xff]
    %v3769 = vld [vmem:[#allocation35 + $0xa68] sm:$0xff]
    %v3770 = vld [vmem:[#allocation35 + $0xa70] sm:$0xff]
    %v3771 = vld [vmem:[#allocation35 + $0xa78] sm:$0xff]
    %v3772 = vld [vmem:[#allocation35 + $0xa80] sm:$0xff]
    %v3773 = vld [vmem:[#allocation35 + $0xa88] sm:$0xff]
    %v3774 = vld [vmem:[#allocation35 + $0xa90] sm:$0xff]
    %v3775 = vld [vmem:[#allocation35 + $0xa98] sm:$0xff]
    %v3776 = vld [vmem:[#allocation35 + $0xaa0] sm:$0xff]
    %v3777 = vld [vmem:[#allocation35 + $0xaa8] sm:$0xff]
    %v3778 = vld [vmem:[#allocation35 + $0xab0] sm:$0xff]
    %v3779 = vld [vmem:[#allocation35 + $0xab8] sm:$0xff]
    %v3780 = vld [vmem:[#allocation35 + $0xac0] sm:$0xff]
    %v3781 = vld [vmem:[#allocation35 + $0xac8] sm:$0xff]
    %v3782 = vld [vmem:[#allocation35 + $0xad0] sm:$0xff]
    %v3783 = vld [vmem:[#allocation35 + $0xad8] sm:$0xff]
    %v3784 = vld [vmem:[#allocation35 + $0xae0] sm:$0xff]
    %v3785 = vld [vmem:[#allocation35 + $0xae8] sm:$0xff]
    %v3786 = vld [vmem:[#allocation35 + $0xaf0] sm:$0xff]
    %v3787 = vld [vmem:[#allocation35 + $0xaf8] sm:$0xff]
    %v3788 = vld [vmem:[#allocation35 + $0xb00] sm:$0xff]
    %v3789 = vld [vmem:[#allocation35 + $0xb08] sm:$0xff]
    %v3790 = vld [vmem:[#allocation35 + $0xb10] sm:$0xff]
    %v3791 = vld [vmem:[#allocation35 + $0xb18] sm:$0xff]
    %v3792 = vld [vmem:[#allocation35 + $0xb20] sm:$0xff]
    %v3793 = vld [vmem:[#allocation35 + $0xb28] sm:$0xff]
    %v3794 = vld [vmem:[#allocation35 + $0xb30] sm:$0xff]
    %v3795 = vld [vmem:[#allocation35 + $0xb38] sm:$0xff]
    %v3796 = vld [vmem:[#allocation35 + $0xb40] sm:$0xff]
    %v3797 = vld [vmem:[#allocation35 + $0xb48] sm:$0xff]
    %v3798 = vld [vmem:[#allocation35 + $0xb50] sm:$0xff]
    %v3799 = vld [vmem:[#allocation35 + $0xb58] sm:$0xff]
    %v3800 = vld [vmem:[#allocation35 + $0xb60] sm:$0xff]
    %v3801 = vld [vmem:[#allocation35 + $0xb68] sm:$0xff]
    %v3802 = vld [vmem:[#allocation35 + $0xb70] sm:$0xff]
    %v3803 = vld [vmem:[#allocation35 + $0xb78] sm:$0xff]
    %v3804 = vld [vmem:[#allocation35 + $0xb80] sm:$0xff]
    %v3805 = vld [vmem:[#allocation35 + $0xb88] sm:$0xff]
    %v3806 = vld [vmem:[#allocation35 + $0xb90] sm:$0xff]
    %v3807 = vld [vmem:[#allocation35 + $0xb98] sm:$0xff]
    %v3808 = vld [vmem:[#allocation35 + $0xba0] sm:$0xff]
    %v3809 = vld [vmem:[#allocation35 + $0xba8] sm:$0xff]
    %v3810 = vld [vmem:[#allocation35 + $0xbb0] sm:$0xff]
    %v3811 = vld [vmem:[#allocation35 + $0xbb8] sm:$0xff]
    %v3812 = vld [vmem:[#allocation35 + $0xbc0] sm:$0xff]
    %v3813 = vld [vmem:[#allocation35 + $0xbc8] sm:$0xff]
    %v3814 = vld [vmem:[#allocation35 + $0xbd0] sm:$0xff]
    %v3815 = vld [vmem:[#allocation35 + $0xbd8] sm:$0xff]
    %v3816 = vld [vmem:[#allocation35 + $0xbe0] sm:$0xff]
    %v3817 = vld [vmem:[#allocation35 + $0xbe8] sm:$0xff]
    %v3818 = vld [vmem:[#allocation35 + $0xbf0] sm:$0xff]
    %v3819 = vld [vmem:[#allocation35 + $0xbf8] sm:$0xff]
    %v3820 = vld [vmem:[#allocation35 + $0xc00] sm:$0xff]
    %v3821 = vld [vmem:[#allocation35 + $0xc08] sm:$0xff]
    %v3822 = vld [vmem:[#allocation35 + $0xc10] sm:$0xff]
    %v3823 = vld [vmem:[#allocation35 + $0xc18] sm:$0xff]
    %v3824 = vld [vmem:[#allocation35 + $0xc20] sm:$0xff]
    %v3825 = vld [vmem:[#allocation35 + $0xc28] sm:$0xff]
    %v3826 = vld [vmem:[#allocation35 + $0xc30] sm:$0xff]
    %v3827 = vld [vmem:[#allocation35 + $0xc38] sm:$0xff]
    %v3828 = vld [vmem:[#allocation35 + $0xc40] sm:$0xff]
    %v3829 = vld [vmem:[#allocation35 + $0xc48] sm:$0xff]
    %v3830 = vld [vmem:[#allocation35 + $0xc50] sm:$0xff]
    %v3831 = vld [vmem:[#allocation35 + $0xc58] sm:$0xff]
    %v3832 = vld [vmem:[#allocation35 + $0xc60] sm:$0xff]
    %v3833 = vld [vmem:[#allocation35 + $0xc68] sm:$0xff]
    %v3834 = vld [vmem:[#allocation35 + $0xc70] sm:$0xff]
    %v3835 = vld [vmem:[#allocation35 + $0xc78] sm:$0xff]
    %v3836 = vld [vmem:[#allocation35 + $0xc80] sm:$0xff]
    %v3837 = vld [vmem:[#allocation35 + $0xc88] sm:$0xff]
    %v3838 = vld [vmem:[#allocation35 + $0xc90] sm:$0xff]
    %v3839 = vld [vmem:[#allocation35 + $0xc98] sm:$0xff]
    %v3840 = vld [vmem:[#allocation35 + $0xca0] sm:$0xff]
    %v3841 = vld [vmem:[#allocation35 + $0xca8] sm:$0xff]
    %v3842 = vld [vmem:[#allocation35 + $0xcb0] sm:$0xff]
    %v3843 = vld [vmem:[#allocation35 + $0xcb8] sm:$0xff]
    %v3844 = vld [vmem:[#allocation35 + $0xcc0] sm:$0xff]
    %v3845 = vld [vmem:[#allocation35 + $0xcc8] sm:$0xff]
    %v3846 = vld [vmem:[#allocation35 + $0xcd0] sm:$0xff]
    %v3847 = vld [vmem:[#allocation35 + $0xcd8] sm:$0xff]
    %v3848 = vld [vmem:[#allocation35 + $0xce0] sm:$0xff]
    %v3849 = vld [vmem:[#allocation35 + $0xce8] sm:$0xff]
    %v3850 = vld [vmem:[#allocation35 + $0xcf0] sm:$0xff]
    %v3851 = vld [vmem:[#allocation35 + $0xcf8] sm:$0xff]
    %v3852 = vld [vmem:[#allocation35 + $0xd00] sm:$0xff]
    %v3853 = vld [vmem:[#allocation35 + $0xd08] sm:$0xff]
    %v3854 = vld [vmem:[#allocation35 + $0xd10] sm:$0xff]
    %v3855 = vld [vmem:[#allocation35 + $0xd18] sm:$0xff]
    %v3856 = vld [vmem:[#allocation35 + $0xd20] sm:$0xff]
    %v3857 = vld [vmem:[#allocation35 + $0xd28] sm:$0xff]
    %v3858 = vld [vmem:[#allocation35 + $0xd30] sm:$0xff]
    %v3859 = vld [vmem:[#allocation35 + $0xd38] sm:$0xff]
    %v3860 = vld [vmem:[#allocation35 + $0xd40] sm:$0xff]
    %v3861 = vld [vmem:[#allocation35 + $0xd48] sm:$0xff]
    %v3862 = vld [vmem:[#allocation35 + $0xd50] sm:$0xff]
    %v3863 = vld [vmem:[#allocation35 + $0xd58] sm:$0xff]
    %v3864 = vld [vmem:[#allocation35 + $0xd60] sm:$0xff]
    %v3865 = vld [vmem:[#allocation35 + $0xd68] sm:$0xff]
    %v3866 = vld [vmem:[#allocation35 + $0xd70] sm:$0xff]
    %v3867 = vld [vmem:[#allocation35 + $0xd78] sm:$0xff]
    %v3868 = vld [vmem:[#allocation35 + $0xd80] sm:$0xff]
    %v3869 = vld [vmem:[#allocation35 + $0xd88] sm:$0xff]
    %v3870 = vld [vmem:[#allocation35 + $0xd90] sm:$0xff]
    %v3871 = vld [vmem:[#allocation35 + $0xd98] sm:$0xff]
    %v3872 = vld [vmem:[#allocation35 + $0xda0] sm:$0xff]
    %v3873 = vld [vmem:[#allocation35 + $0xda8] sm:$0xff]
    %v3874 = vld [vmem:[#allocation35 + $0xdb0] sm:$0xff]
    %v3875 = vld [vmem:[#allocation35 + $0xdb8] sm:$0xff]
    %v3876 = vld [vmem:[#allocation35 + $0xdc0] sm:$0xff]
    %v3877 = vld [vmem:[#allocation35 + $0xdc8] sm:$0xff]
    %v3878 = vld [vmem:[#allocation35 + $0xdd0] sm:$0xff]
    %v3879 = vld [vmem:[#allocation35 + $0xdd8] sm:$0xff]
    %v3880 = vld [vmem:[#allocation35 + $0xde0] sm:$0xff]
    %v3881 = vld [vmem:[#allocation35 + $0xde8] sm:$0xff]
    %v3882 = vld [vmem:[#allocation35 + $0xdf0] sm:$0xff]
    %v3883 = vld [vmem:[#allocation35 + $0xdf8] sm:$0xff]
    %v3884 = vld [vmem:[#allocation35 + $0xe00] sm:$0xff]
    %v3885 = vld [vmem:[#allocation35 + $0xe08] sm:$0xff]
    %v3886 = vld [vmem:[#allocation35 + $0xe10] sm:$0xff]
    %v3887 = vld [vmem:[#allocation35 + $0xe18] sm:$0xff]
    %v3888 = vld [vmem:[#allocation35 + $0xe20] sm:$0xff]
    %v3889 = vld [vmem:[#allocation35 + $0xe28] sm:$0xff]
    %v3890 = vld [vmem:[#allocation35 + $0xe30] sm:$0xff]
    %v3891 = vld [vmem:[#allocation35 + $0xe38] sm:$0xff]
    %v3892 = vld [vmem:[#allocation35 + $0xe40] sm:$0xff]
    %v3893 = vld [vmem:[#allocation35 + $0xe48] sm:$0xff]
    %v3894 = vld [vmem:[#allocation35 + $0xe50] sm:$0xff]
    %v3895 = vld [vmem:[#allocation35 + $0xe58] sm:$0xff]
    %v3896 = vld [vmem:[#allocation35 + $0xe60] sm:$0xff]
    %v3897 = vld [vmem:[#allocation35 + $0xe68] sm:$0xff]
    %v3898 = vld [vmem:[#allocation35 + $0xe70] sm:$0xff]
    %v3899 = vld [vmem:[#allocation35 + $0xe78] sm:$0xff]
    %v3900 = vld [vmem:[#allocation35 + $0xe80] sm:$0xff]
    %v3901 = vld [vmem:[#allocation35 + $0xe88] sm:$0xff]
    %v3902 = vld [vmem:[#allocation35 + $0xe90] sm:$0xff]
    %v3903 = vld [vmem:[#allocation35 + $0xe98] sm:$0xff]
    %v3904 = vld [vmem:[#allocation35 + $0xea0] sm:$0xff]
    %v3905 = vld [vmem:[#allocation35 + $0xea8] sm:$0xff]
    %v3906 = vld [vmem:[#allocation35 + $0xeb0] sm:$0xff]
    %v3907 = vld [vmem:[#allocation35 + $0xeb8] sm:$0xff]
    %v3908 = vld [vmem:[#allocation35 + $0xec0] sm:$0xff]
    %v3909 = vld [vmem:[#allocation35 + $0xec8] sm:$0xff]
    %v3910 = vld [vmem:[#allocation35 + $0xed0] sm:$0xff]
    %v3911 = vld [vmem:[#allocation35 + $0xed8] sm:$0xff]
    %v3912 = vld [vmem:[#allocation35 + $0xee0] sm:$0xff]
    %v3913 = vld [vmem:[#allocation35 + $0xee8] sm:$0xff]
    %v3914 = vld [vmem:[#allocation35 + $0xef0] sm:$0xff]
    %v3915 = vld [vmem:[#allocation35 + $0xef8] sm:$0xff]
    %v3916 = vld [vmem:[#allocation35 + $0xf00] sm:$0xff]
    %v3917 = vld [vmem:[#allocation35 + $0xf08] sm:$0xff]
    %v3918 = vld [vmem:[#allocation35 + $0xf10] sm:$0xff]
    %v3919 = vld [vmem:[#allocation35 + $0xf18] sm:$0xff]
    %v3920 = vld [vmem:[#allocation35 + $0xf20] sm:$0xff]
    %v3921 = vld [vmem:[#allocation35 + $0xf28] sm:$0xff]
    %v3922 = vld [vmem:[#allocation35 + $0xf30] sm:$0xff]
    %v3923 = vld [vmem:[#allocation35 + $0xf38] sm:$0xff]
    %v3924 = vld [vmem:[#allocation35 + $0xf40] sm:$0xff]
    %v3925 = vld [vmem:[#allocation35 + $0xf48] sm:$0xff]
    %v3926 = vld [vmem:[#allocation35 + $0xf50] sm:$0xff]
    %v3927 = vld [vmem:[#allocation35 + $0xf58] sm:$0xff]
    %v3928 = vld [vmem:[#allocation35 + $0xf60] sm:$0xff]
    %v3929 = vld [vmem:[#allocation35 + $0xf68] sm:$0xff]
    %v3930 = vld [vmem:[#allocation35 + $0xf70] sm:$0xff]
    %v3931 = vld [vmem:[#allocation35 + $0xf78] sm:$0xff]
    %v3932 = vld [vmem:[#allocation35 + $0xf80] sm:$0xff]
    %v3933 = vld [vmem:[#allocation35 + $0xf88] sm:$0xff]
    %v3934 = vld [vmem:[#allocation35 + $0xf90] sm:$0xff]
    %v3935 = vld [vmem:[#allocation35 + $0xf98] sm:$0xff]
    %v3936 = vld [vmem:[#allocation35 + $0xfa0] sm:$0xff]
    %v3937 = vld [vmem:[#allocation35 + $0xfa8] sm:$0xff]
    %v3938 = vld [vmem:[#allocation35 + $0xfb0] sm:$0xff]
    %v3939 = vld [vmem:[#allocation35 + $0xfb8] sm:$0xff]
    %v3940 = vld [vmem:[#allocation35 + $0xfc0] sm:$0xff]
    %v3941 = vld [vmem:[#allocation35 + $0xfc8] sm:$0xff]
    %v3942 = vld [vmem:[#allocation35 + $0xfd0] sm:$0xff]
    %v3943 = vld [vmem:[#allocation35 + $0xfd8] sm:$0xff]
    %v3944 = vld [vmem:[#allocation35 + $0xfe0] sm:$0xff]
    %v3945 = vld [vmem:[#allocation35 + $0xfe8] sm:$0xff]
    %v3946 = vld [vmem:[#allocation35 + $0xff0] sm:$0xff]
    %v3947 = vld [vmem:[#allocation35 + $0xff8] sm:$0xff]
    %v3948 = vld [vmem:[#allocation37] sm:$0xff]
    %v3950 = vlaneseq
    %v3951 = vshrl.u32 %v3950, 7
    %v3952 = vsub.s32 0, %v3951
    %v3953 = vrot.slane %v3948, %v3952
    %v3954 = vlaneseq
    %v3955 = vshrl.u32 %v3954, 7
    %v3956 = vsub.s32 1, %v3955
    %v3957 = vrot.slane %v3948, %v3956
    %v3958 = vlaneseq
    %v3959 = vshrl.u32 %v3958, 7
    %v3960 = vsub.s32 2, %v3959
    %v3961 = vrot.slane %v3948, %v3960
    %v3962 = vlaneseq
    %v3963 = vshrl.u32 %v3962, 7
    %v3964 = vsub.s32 3, %v3963
    %v3965 = vrot.slane %v3948, %v3964
    %v3966 = vlaneseq
    %v3967 = vshrl.u32 %v3966, 7
    %v3968 = vsub.s32 4, %v3967
    %v3969 = vrot.slane %v3948, %v3968
    %v3970 = vlaneseq
    %v3971 = vshrl.u32 %v3970, 7
    %v3972 = vsub.s32 5, %v3971
    %v3973 = vrot.slane %v3948, %v3972
    %v3974 = vlaneseq
    %v3975 = vshrl.u32 %v3974, 7
    %v3976 = vsub.s32 6, %v3975
    %v3977 = vrot.slane %v3948, %v3976
    %v3978 = vlaneseq
    %v3979 = vshrl.u32 %v3978, 7
    %v3980 = vsub.s32 7, %v3979
    %v3981 = vrot.slane %v3948, %v3980
    %v4502 = vunpack.c.l.b16 %v3436
    %v4503 = vunpack.c.h.b16 %v3436
    %v4504 = vunpack.c.l.b16 %v3437
    %v4505 = vunpack.c.h.b16 %v3437
    %v4506 = vunpack.c.l.b16 %v3438
    %v4507 = vunpack.c.h.b16 %v3438
    %v4508 = vunpack.c.l.b16 %v3439
    %v4509 = vunpack.c.h.b16 %v3439
    %v4510 = vunpack.c.l.b16 %v3440
    %v4511 = vunpack.c.h.b16 %v3440
    %v4512 = vunpack.c.l.b16 %v3441
    %v4513 = vunpack.c.h.b16 %v3441
    %v4514 = vunpack.c.l.b16 %v3442
    %v4515 = vunpack.c.h.b16 %v3442
    %v4516 = vunpack.c.l.b16 %v3443
    %v4517 = vunpack.c.h.b16 %v3443
    %v4518 = vunpack.c.l.b16 %v3444
    %v4519 = vunpack.c.h.b16 %v3444
    %v4520 = vunpack.c.l.b16 %v3445
    %v4521 = vunpack.c.h.b16 %v3445
    %v4522 = vunpack.c.l.b16 %v3446
    %v4523 = vunpack.c.h.b16 %v3446
    %v4524 = vunpack.c.l.b16 %v3447
    %v4525 = vunpack.c.h.b16 %v3447
    %v4526 = vunpack.c.l.b16 %v3448
    %v4527 = vunpack.c.h.b16 %v3448
    %v4528 = vunpack.c.l.b16 %v3449
    %v4529 = vunpack.c.h.b16 %v3449
    %v4530 = vunpack.c.l.b16 %v3450
    %v4531 = vunpack.c.h.b16 %v3450
    %v4532 = vunpack.c.l.b16 %v3451
    %v4533 = vunpack.c.h.b16 %v3451
    %v4534 = vunpack.c.l.b16 %v3452
    %v4535 = vunpack.c.h.b16 %v3452
    %v4536 = vunpack.c.l.b16 %v3453
    %v4537 = vunpack.c.h.b16 %v3453
    %v4538 = vunpack.c.l.b16 %v3454
    %v4539 = vunpack.c.h.b16 %v3454
    %v4540 = vunpack.c.l.b16 %v3455
    %v4541 = vunpack.c.h.b16 %v3455
    %v4542 = vunpack.c.l.b16 %v3456
    %v4543 = vunpack.c.h.b16 %v3456
    %v4544 = vunpack.c.l.b16 %v3457
    %v4545 = vunpack.c.h.b16 %v3457
    %v4546 = vunpack.c.l.b16 %v3458
    %v4547 = vunpack.c.h.b16 %v3458
    %v4548 = vunpack.c.l.b16 %v3459
    %v4549 = vunpack.c.h.b16 %v3459
    %v4550 = vunpack.c.l.b16 %v3460
    %v4551 = vunpack.c.h.b16 %v3460
    %v4552 = vunpack.c.l.b16 %v3461
    %v4553 = vunpack.c.h.b16 %v3461
    %v4554 = vunpack.c.l.b16 %v3462
    %v4555 = vunpack.c.h.b16 %v3462
    %v4556 = vunpack.c.l.b16 %v3463
    %v4557 = vunpack.c.h.b16 %v3463
    %v4558 = vunpack.c.l.b16 %v3464
    %v4559 = vunpack.c.h.b16 %v3464
    %v4560 = vunpack.c.l.b16 %v3465
    %v4561 = vunpack.c.h.b16 %v3465
    %v4562 = vunpack.c.l.b16 %v3466
    %v4563 = vunpack.c.h.b16 %v3466
    %v4564 = vunpack.c.l.b16 %v3467
    %v4565 = vunpack.c.h.b16 %v3467
    %v4566 = vunpack.c.l.b16 %v3468
    %v4567 = vunpack.c.h.b16 %v3468
    %v4568 = vunpack.c.l.b16 %v3469
    %v4569 = vunpack.c.h.b16 %v3469
    %v4570 = vunpack.c.l.b16 %v3470
    %v4571 = vunpack.c.h.b16 %v3470
    %v4572 = vunpack.c.l.b16 %v3471
    %v4573 = vunpack.c.h.b16 %v3471
    %v4574 = vunpack.c.l.b16 %v3472
    %v4575 = vunpack.c.h.b16 %v3472
    %v4576 = vunpack.c.l.b16 %v3473
    %v4577 = vunpack.c.h.b16 %v3473
    %v4578 = vunpack.c.l.b16 %v3474
    %v4579 = vunpack.c.h.b16 %v3474
    %v4580 = vunpack.c.l.b16 %v3475
    %v4581 = vunpack.c.h.b16 %v3475
    %v4582 = vunpack.c.l.b16 %v3476
    %v4583 = vunpack.c.h.b16 %v3476
    %v4584 = vunpack.c.l.b16 %v3477
    %v4585 = vunpack.c.h.b16 %v3477
    %v4586 = vunpack.c.l.b16 %v3478
    %v4587 = vunpack.c.h.b16 %v3478
    %v4588 = vunpack.c.l.b16 %v3479
    %v4589 = vunpack.c.h.b16 %v3479
    %v4590 = vunpack.c.l.b16 %v3480
    %v4591 = vunpack.c.h.b16 %v3480
    %v4592 = vunpack.c.l.b16 %v3481
    %v4593 = vunpack.c.h.b16 %v3481
    %v4594 = vunpack.c.l.b16 %v3482
    %v4595 = vunpack.c.h.b16 %v3482
    %v4596 = vunpack.c.l.b16 %v3483
    %v4597 = vunpack.c.h.b16 %v3483
    %v4598 = vunpack.c.l.b16 %v3484
    %v4599 = vunpack.c.h.b16 %v3484
    %v4600 = vunpack.c.l.b16 %v3485
    %v4601 = vunpack.c.h.b16 %v3485
    %v4602 = vunpack.c.l.b16 %v3486
    %v4603 = vunpack.c.h.b16 %v3486
    %v4604 = vunpack.c.l.b16 %v3487
    %v4605 = vunpack.c.h.b16 %v3487
    %v4606 = vunpack.c.l.b16 %v3488
    %v4607 = vunpack.c.h.b16 %v3488
    %v4608 = vunpack.c.l.b16 %v3489
    %v4609 = vunpack.c.h.b16 %v3489
    %v4610 = vunpack.c.l.b16 %v3490
    %v4611 = vunpack.c.h.b16 %v3490
    %v4612 = vunpack.c.l.b16 %v3491
    %v4613 = vunpack.c.h.b16 %v3491
    %v4614 = vunpack.c.l.b16 %v3492
    %v4615 = vunpack.c.h.b16 %v3492
    %v4616 = vunpack.c.l.b16 %v3493
    %v4617 = vunpack.c.h.b16 %v3493
    %v4618 = vunpack.c.l.b16 %v3494
    %v4619 = vunpack.c.h.b16 %v3494
    %v4620 = vunpack.c.l.b16 %v3495
    %v4621 = vunpack.c.h.b16 %v3495
    %v4622 = vunpack.c.l.b16 %v3496
    %v4623 = vunpack.c.h.b16 %v3496
    %v4624 = vunpack.c.l.b16 %v3497
    %v4625 = vunpack.c.h.b16 %v3497
    %v4626 = vunpack.c.l.b16 %v3498
    %v4627 = vunpack.c.h.b16 %v3498
    %v4628 = vunpack.c.l.b16 %v3499
    %v4629 = vunpack.c.h.b16 %v3499
    %v4630 = vunpack.c.l.b16 %v3500
    %v4631 = vunpack.c.h.b16 %v3500
    %v4632 = vunpack.c.l.b16 %v3501
    %v4633 = vunpack.c.h.b16 %v3501
    %v4634 = vunpack.c.l.b16 %v3502
    %v4635 = vunpack.c.h.b16 %v3502
    %v4636 = vunpack.c.l.b16 %v3503
    %v4637 = vunpack.c.h.b16 %v3503
    %v4638 = vunpack.c.l.b16 %v3504
    %v4639 = vunpack.c.h.b16 %v3504
    %v4640 = vunpack.c.l.b16 %v3505
    %v4641 = vunpack.c.h.b16 %v3505
    %v4642 = vunpack.c.l.b16 %v3506
    %v4643 = vunpack.c.h.b16 %v3506
    %v4644 = vunpack.c.l.b16 %v3507
    %v4645 = vunpack.c.h.b16 %v3507
    %v4646 = vunpack.c.l.b16 %v3508
    %v4647 = vunpack.c.h.b16 %v3508
    %v4648 = vunpack.c.l.b16 %v3509
    %v4649 = vunpack.c.h.b16 %v3509
    %v4650 = vunpack.c.l.b16 %v3510
    %v4651 = vunpack.c.h.b16 %v3510
    %v4652 = vunpack.c.l.b16 %v3511
    %v4653 = vunpack.c.h.b16 %v3511
    %v4654 = vunpack.c.l.b16 %v3512
    %v4655 = vunpack.c.h.b16 %v3512
    %v4656 = vunpack.c.l.b16 %v3513
    %v4657 = vunpack.c.h.b16 %v3513
    %v4658 = vunpack.c.l.b16 %v3514
    %v4659 = vunpack.c.h.b16 %v3514
    %v4660 = vunpack.c.l.b16 %v3515
    %v4661 = vunpack.c.h.b16 %v3515
    %v4662 = vunpack.c.l.b16 %v3516
    %v4663 = vunpack.c.h.b16 %v3516
    %v4664 = vunpack.c.l.b16 %v3517
    %v4665 = vunpack.c.h.b16 %v3517
    %v4666 = vunpack.c.l.b16 %v3518
    %v4667 = vunpack.c.h.b16 %v3518
    %v4668 = vunpack.c.l.b16 %v3519
    %v4669 = vunpack.c.h.b16 %v3519
    %v4670 = vunpack.c.l.b16 %v3520
    %v4671 = vunpack.c.h.b16 %v3520
    %v4672 = vunpack.c.l.b16 %v3521
    %v4673 = vunpack.c.h.b16 %v3521
    %v4674 = vunpack.c.l.b16 %v3522
    %v4675 = vunpack.c.h.b16 %v3522
    %v4676 = vunpack.c.l.b16 %v3523
    %v4677 = vunpack.c.h.b16 %v3523
    %v4678 = vunpack.c.l.b16 %v3524
    %v4679 = vunpack.c.h.b16 %v3524
    %v4680 = vunpack.c.l.b16 %v3525
    %v4681 = vunpack.c.h.b16 %v3525
    %v4682 = vunpack.c.l.b16 %v3526
    %v4683 = vunpack.c.h.b16 %v3526
    %v4684 = vunpack.c.l.b16 %v3527
    %v4685 = vunpack.c.h.b16 %v3527
    %v4686 = vunpack.c.l.b16 %v3528
    %v4687 = vunpack.c.h.b16 %v3528
    %v4688 = vunpack.c.l.b16 %v3529
    %v4689 = vunpack.c.h.b16 %v3529
    %v4690 = vunpack.c.l.b16 %v3530
    %v4691 = vunpack.c.h.b16 %v3530
    %v4692 = vunpack.c.l.b16 %v3531
    %v4693 = vunpack.c.h.b16 %v3531
    %v4694 = vunpack.c.l.b16 %v3532
    %v4695 = vunpack.c.h.b16 %v3532
    %v4696 = vunpack.c.l.b16 %v3533
    %v4697 = vunpack.c.h.b16 %v3533
    %v4698 = vunpack.c.l.b16 %v3534
    %v4699 = vunpack.c.h.b16 %v3534
    %v4700 = vunpack.c.l.b16 %v3535
    %v4701 = vunpack.c.h.b16 %v3535
    %v4702 = vunpack.c.l.b16 %v3536
    %v4703 = vunpack.c.h.b16 %v3536
    %v4704 = vunpack.c.l.b16 %v3537
    %v4705 = vunpack.c.h.b16 %v3537
    %v4706 = vunpack.c.l.b16 %v3538
    %v4707 = vunpack.c.h.b16 %v3538
    %v4708 = vunpack.c.l.b16 %v3539
    %v4709 = vunpack.c.h.b16 %v3539
    %v4710 = vunpack.c.l.b16 %v3540
    %v4711 = vunpack.c.h.b16 %v3540
    %v4712 = vunpack.c.l.b16 %v3541
    %v4713 = vunpack.c.h.b16 %v3541
    %v4714 = vunpack.c.l.b16 %v3542
    %v4715 = vunpack.c.h.b16 %v3542
    %v4716 = vunpack.c.l.b16 %v3543
    %v4717 = vunpack.c.h.b16 %v3543
    %v4718 = vunpack.c.l.b16 %v3544
    %v4719 = vunpack.c.h.b16 %v3544
    %v4720 = vunpack.c.l.b16 %v3545
    %v4721 = vunpack.c.h.b16 %v3545
    %v4722 = vunpack.c.l.b16 %v3546
    %v4723 = vunpack.c.h.b16 %v3546
    %v4724 = vunpack.c.l.b16 %v3547
    %v4725 = vunpack.c.h.b16 %v3547
    %v4726 = vunpack.c.l.b16 %v3548
    %v4727 = vunpack.c.h.b16 %v3548
    %v4728 = vunpack.c.l.b16 %v3549
    %v4729 = vunpack.c.h.b16 %v3549
    %v4730 = vunpack.c.l.b16 %v3550
    %v4731 = vunpack.c.h.b16 %v3550
    %v4732 = vunpack.c.l.b16 %v3551
    %v4733 = vunpack.c.h.b16 %v3551
    %v4734 = vunpack.c.l.b16 %v3552
    %v4735 = vunpack.c.h.b16 %v3552
    %v4736 = vunpack.c.l.b16 %v3553
    %v4737 = vunpack.c.h.b16 %v3553
    %v4738 = vunpack.c.l.b16 %v3554
    %v4739 = vunpack.c.h.b16 %v3554
    %v4740 = vunpack.c.l.b16 %v3555
    %v4741 = vunpack.c.h.b16 %v3555
    %v4742 = vunpack.c.l.b16 %v3556
    %v4743 = vunpack.c.h.b16 %v3556
    %v4744 = vunpack.c.l.b16 %v3557
    %v4745 = vunpack.c.h.b16 %v3557
    %v4746 = vunpack.c.l.b16 %v3558
    %v4747 = vunpack.c.h.b16 %v3558
    %v4748 = vunpack.c.l.b16 %v3559
    %v4749 = vunpack.c.h.b16 %v3559
    %v4750 = vunpack.c.l.b16 %v3560
    %v4751 = vunpack.c.h.b16 %v3560
    %v4752 = vunpack.c.l.b16 %v3561
    %v4753 = vunpack.c.h.b16 %v3561
    %v4754 = vunpack.c.l.b16 %v3562
    %v4755 = vunpack.c.h.b16 %v3562
    %v4756 = vunpack.c.l.b16 %v3563
    %v4757 = vunpack.c.h.b16 %v3563
    %v4758 = vunpack.c.l.b16 %v3564
    %v4759 = vunpack.c.h.b16 %v3564
    %v4760 = vunpack.c.l.b16 %v3565
    %v4761 = vunpack.c.h.b16 %v3565
    %v4762 = vunpack.c.l.b16 %v3566
    %v4763 = vunpack.c.h.b16 %v3566
    %v4764 = vunpack.c.l.b16 %v3567
    %v4765 = vunpack.c.h.b16 %v3567
    %v4766 = vunpack.c.l.b16 %v3568
    %v4767 = vunpack.c.h.b16 %v3568
    %v4768 = vunpack.c.l.b16 %v3569
    %v4769 = vunpack.c.h.b16 %v3569
    %v4770 = vunpack.c.l.b16 %v3570
    %v4771 = vunpack.c.h.b16 %v3570
    %v4772 = vunpack.c.l.b16 %v3571
    %v4773 = vunpack.c.h.b16 %v3571
    %v4774 = vunpack.c.l.b16 %v3572
    %v4775 = vunpack.c.h.b16 %v3572
    %v4776 = vunpack.c.l.b16 %v3573
    %v4777 = vunpack.c.h.b16 %v3573
    %v4778 = vunpack.c.l.b16 %v3574
    %v4779 = vunpack.c.h.b16 %v3574
    %v4780 = vunpack.c.l.b16 %v3575
    %v4781 = vunpack.c.h.b16 %v3575
    %v4782 = vunpack.c.l.b16 %v3576
    %v4783 = vunpack.c.h.b16 %v3576
    %v4784 = vunpack.c.l.b16 %v3577
    %v4785 = vunpack.c.h.b16 %v3577
    %v4786 = vunpack.c.l.b16 %v3578
    %v4787 = vunpack.c.h.b16 %v3578
    %v4788 = vunpack.c.l.b16 %v3579
    %v4789 = vunpack.c.h.b16 %v3579
    %v4790 = vunpack.c.l.b16 %v3580
    %v4791 = vunpack.c.h.b16 %v3580
    %v4792 = vunpack.c.l.b16 %v3581
    %v4793 = vunpack.c.h.b16 %v3581
    %v4794 = vunpack.c.l.b16 %v3582
    %v4795 = vunpack.c.h.b16 %v3582
    %v4796 = vunpack.c.l.b16 %v3583
    %v4797 = vunpack.c.h.b16 %v3583
    %v4798 = vunpack.c.l.b16 %v3584
    %v4799 = vunpack.c.h.b16 %v3584
    %v4800 = vunpack.c.l.b16 %v3585
    %v4801 = vunpack.c.h.b16 %v3585
    %v4802 = vunpack.c.l.b16 %v3586
    %v4803 = vunpack.c.h.b16 %v3586
    %v4804 = vunpack.c.l.b16 %v3587
    %v4805 = vunpack.c.h.b16 %v3587
    %v4806 = vunpack.c.l.b16 %v3588
    %v4807 = vunpack.c.h.b16 %v3588
    %v4808 = vunpack.c.l.b16 %v3589
    %v4809 = vunpack.c.h.b16 %v3589
    %v4810 = vunpack.c.l.b16 %v3590
    %v4811 = vunpack.c.h.b16 %v3590
    %v4812 = vunpack.c.l.b16 %v3591
    %v4813 = vunpack.c.h.b16 %v3591
    %v4814 = vunpack.c.l.b16 %v3592
    %v4815 = vunpack.c.h.b16 %v3592
    %v4816 = vunpack.c.l.b16 %v3593
    %v4817 = vunpack.c.h.b16 %v3593
    %v4818 = vunpack.c.l.b16 %v3594
    %v4819 = vunpack.c.h.b16 %v3594
    %v4820 = vunpack.c.l.b16 %v3595
    %v4821 = vunpack.c.h.b16 %v3595
    %v4822 = vunpack.c.l.b16 %v3596
    %v4823 = vunpack.c.h.b16 %v3596
    %v4824 = vunpack.c.l.b16 %v3597
    %v4825 = vunpack.c.h.b16 %v3597
    %v4826 = vunpack.c.l.b16 %v3598
    %v4827 = vunpack.c.h.b16 %v3598
    %v4828 = vunpack.c.l.b16 %v3599
    %v4829 = vunpack.c.h.b16 %v3599
    %v4830 = vunpack.c.l.b16 %v3600
    %v4831 = vunpack.c.h.b16 %v3600
    %v4832 = vunpack.c.l.b16 %v3601
    %v4833 = vunpack.c.h.b16 %v3601
    %v4834 = vunpack.c.l.b16 %v3602
    %v4835 = vunpack.c.h.b16 %v3602
    %v4836 = vunpack.c.l.b16 %v3603
    %v4837 = vunpack.c.h.b16 %v3603
    %v4838 = vunpack.c.l.b16 %v3604
    %v4839 = vunpack.c.h.b16 %v3604
    %v4840 = vunpack.c.l.b16 %v3605
    %v4841 = vunpack.c.h.b16 %v3605
    %v4842 = vunpack.c.l.b16 %v3606
    %v4843 = vunpack.c.h.b16 %v3606
    %v4844 = vunpack.c.l.b16 %v3607
    %v4845 = vunpack.c.h.b16 %v3607
    %v4846 = vunpack.c.l.b16 %v3608
    %v4847 = vunpack.c.h.b16 %v3608
    %v4848 = vunpack.c.l.b16 %v3609
    %v4849 = vunpack.c.h.b16 %v3609
    %v4850 = vunpack.c.l.b16 %v3610
    %v4851 = vunpack.c.h.b16 %v3610
    %v4852 = vunpack.c.l.b16 %v3611
    %v4853 = vunpack.c.h.b16 %v3611
    %v4854 = vunpack.c.l.b16 %v3612
    %v4855 = vunpack.c.h.b16 %v3612
    %v4856 = vunpack.c.l.b16 %v3613
    %v4857 = vunpack.c.h.b16 %v3613
    %v4858 = vunpack.c.l.b16 %v3614
    %v4859 = vunpack.c.h.b16 %v3614
    %v4860 = vunpack.c.l.b16 %v3615
    %v4861 = vunpack.c.h.b16 %v3615
    %v4862 = vunpack.c.l.b16 %v3616
    %v4863 = vunpack.c.h.b16 %v3616
    %v4864 = vunpack.c.l.b16 %v3617
    %v4865 = vunpack.c.h.b16 %v3617
    %v4866 = vunpack.c.l.b16 %v3618
    %v4867 = vunpack.c.h.b16 %v3618
    %v4868 = vunpack.c.l.b16 %v3619
    %v4869 = vunpack.c.h.b16 %v3619
    %v4870 = vunpack.c.l.b16 %v3620
    %v4871 = vunpack.c.h.b16 %v3620
    %v4872 = vunpack.c.l.b16 %v3621
    %v4873 = vunpack.c.h.b16 %v3621
    %v4874 = vunpack.c.l.b16 %v3622
    %v4875 = vunpack.c.h.b16 %v3622
    %v4876 = vunpack.c.l.b16 %v3623
    %v4877 = vunpack.c.h.b16 %v3623
    %v4878 = vunpack.c.l.b16 %v3624
    %v4879 = vunpack.c.h.b16 %v3624
    %v4880 = vunpack.c.l.b16 %v3625
    %v4881 = vunpack.c.h.b16 %v3625
    %v4882 = vunpack.c.l.b16 %v3626
    %v4883 = vunpack.c.h.b16 %v3626
    %v4884 = vunpack.c.l.b16 %v3627
    %v4885 = vunpack.c.h.b16 %v3627
    %v4886 = vunpack.c.l.b16 %v3628
    %v4887 = vunpack.c.h.b16 %v3628
    %v4888 = vunpack.c.l.b16 %v3629
    %v4889 = vunpack.c.h.b16 %v3629
    %v4890 = vunpack.c.l.b16 %v3630
    %v4891 = vunpack.c.h.b16 %v3630
    %v4892 = vunpack.c.l.b16 %v3631
    %v4893 = vunpack.c.h.b16 %v3631
    %v4894 = vunpack.c.l.b16 %v3632
    %v4895 = vunpack.c.h.b16 %v3632
    %v4896 = vunpack.c.l.b16 %v3633
    %v4897 = vunpack.c.h.b16 %v3633
    %v4898 = vunpack.c.l.b16 %v3634
    %v4899 = vunpack.c.h.b16 %v3634
    %v4900 = vunpack.c.l.b16 %v3635
    %v4901 = vunpack.c.h.b16 %v3635
    %v4902 = vunpack.c.l.b16 %v3636
    %v4903 = vunpack.c.h.b16 %v3636
    %v4904 = vunpack.c.l.b16 %v3637
    %v4905 = vunpack.c.h.b16 %v3637
    %v4906 = vunpack.c.l.b16 %v3638
    %v4907 = vunpack.c.h.b16 %v3638
    %v4908 = vunpack.c.l.b16 %v3639
    %v4909 = vunpack.c.h.b16 %v3639
    %v4910 = vunpack.c.l.b16 %v3640
    %v4911 = vunpack.c.h.b16 %v3640
    %v4912 = vunpack.c.l.b16 %v3641
    %v4913 = vunpack.c.h.b16 %v3641
    %v4914 = vunpack.c.l.b16 %v3642
    %v4915 = vunpack.c.h.b16 %v3642
    %v4916 = vunpack.c.l.b16 %v3643
    %v4917 = vunpack.c.h.b16 %v3643
    %v4918 = vunpack.c.l.b16 %v3644
    %v4919 = vunpack.c.h.b16 %v3644
    %v4920 = vunpack.c.l.b16 %v3645
    %v4921 = vunpack.c.h.b16 %v3645
    %v4922 = vunpack.c.l.b16 %v3646
    %v4923 = vunpack.c.h.b16 %v3646
    %v4924 = vunpack.c.l.b16 %v3647
    %v4925 = vunpack.c.h.b16 %v3647
    %v4926 = vunpack.c.l.b16 %v3648
    %v4927 = vunpack.c.h.b16 %v3648
    %v4928 = vunpack.c.l.b16 %v3649
    %v4929 = vunpack.c.h.b16 %v3649
    %v4930 = vunpack.c.l.b16 %v3650
    %v4931 = vunpack.c.h.b16 %v3650
    %v4932 = vunpack.c.l.b16 %v3651
    %v4933 = vunpack.c.h.b16 %v3651
    %v4934 = vunpack.c.l.b16 %v3652
    %v4935 = vunpack.c.h.b16 %v3652
    %v4936 = vunpack.c.l.b16 %v3653
    %v4937 = vunpack.c.h.b16 %v3653
    %v4938 = vunpack.c.l.b16 %v3654
    %v4939 = vunpack.c.h.b16 %v3654
    %v4940 = vunpack.c.l.b16 %v3655
    %v4941 = vunpack.c.h.b16 %v3655
    %v4942 = vunpack.c.l.b16 %v3656
    %v4943 = vunpack.c.h.b16 %v3656
    %v4944 = vunpack.c.l.b16 %v3657
    %v4945 = vunpack.c.h.b16 %v3657
    %v4946 = vunpack.c.l.b16 %v3658
    %v4947 = vunpack.c.h.b16 %v3658
    %v4948 = vunpack.c.l.b16 %v3659
    %v4949 = vunpack.c.h.b16 %v3659
    %v4950 = vunpack.c.l.b16 %v3660
    %v4951 = vunpack.c.h.b16 %v3660
    %v4952 = vunpack.c.l.b16 %v3661
    %v4953 = vunpack.c.h.b16 %v3661
    %v4954 = vunpack.c.l.b16 %v3662
    %v4955 = vunpack.c.h.b16 %v3662
    %v4956 = vunpack.c.l.b16 %v3663
    %v4957 = vunpack.c.h.b16 %v3663
    %v4958 = vunpack.c.l.b16 %v3664
    %v4959 = vunpack.c.h.b16 %v3664
    %v4960 = vunpack.c.l.b16 %v3665
    %v4961 = vunpack.c.h.b16 %v3665
    %v4962 = vunpack.c.l.b16 %v3666
    %v4963 = vunpack.c.h.b16 %v3666
    %v4964 = vunpack.c.l.b16 %v3667
    %v4965 = vunpack.c.h.b16 %v3667
    %v4966 = vunpack.c.l.b16 %v3668
    %v4967 = vunpack.c.h.b16 %v3668
    %v4968 = vunpack.c.l.b16 %v3669
    %v4969 = vunpack.c.h.b16 %v3669
    %v4970 = vunpack.c.l.b16 %v3670
    %v4971 = vunpack.c.h.b16 %v3670
    %v4972 = vunpack.c.l.b16 %v3671
    %v4973 = vunpack.c.h.b16 %v3671
    %v4974 = vunpack.c.l.b16 %v3672
    %v4975 = vunpack.c.h.b16 %v3672
    %v4976 = vunpack.c.l.b16 %v3673
    %v4977 = vunpack.c.h.b16 %v3673
    %v4978 = vunpack.c.l.b16 %v3674
    %v4979 = vunpack.c.h.b16 %v3674
    %v4980 = vunpack.c.l.b16 %v3675
    %v4981 = vunpack.c.h.b16 %v3675
    %v4982 = vunpack.c.l.b16 %v3676
    %v4983 = vunpack.c.h.b16 %v3676
    %v4984 = vunpack.c.l.b16 %v3677
    %v4985 = vunpack.c.h.b16 %v3677
    %v4986 = vunpack.c.l.b16 %v3678
    %v4987 = vunpack.c.h.b16 %v3678
    %v4988 = vunpack.c.l.b16 %v3679
    %v4989 = vunpack.c.h.b16 %v3679
    %v4990 = vunpack.c.l.b16 %v3680
    %v4991 = vunpack.c.h.b16 %v3680
    %v4992 = vunpack.c.l.b16 %v3681
    %v4993 = vunpack.c.h.b16 %v3681
    %v4994 = vunpack.c.l.b16 %v3682
    %v4995 = vunpack.c.h.b16 %v3682
    %v4996 = vunpack.c.l.b16 %v3683
    %v4997 = vunpack.c.h.b16 %v3683
    %v4998 = vunpack.c.l.b16 %v3684
    %v4999 = vunpack.c.h.b16 %v3684
    %v5000 = vunpack.c.l.b16 %v3685
    %v5001 = vunpack.c.h.b16 %v3685
    %v5002 = vunpack.c.l.b16 %v3686
    %v5003 = vunpack.c.h.b16 %v3686
    %v5004 = vunpack.c.l.b16 %v3687
    %v5005 = vunpack.c.h.b16 %v3687
    %v5006 = vunpack.c.l.b16 %v3688
    %v5007 = vunpack.c.h.b16 %v3688
    %v5008 = vunpack.c.l.b16 %v3689
    %v5009 = vunpack.c.h.b16 %v3689
    %v5010 = vunpack.c.l.b16 %v3690
    %v5011 = vunpack.c.h.b16 %v3690
    %v5012 = vunpack.c.l.b16 %v3691
    %v5013 = vunpack.c.h.b16 %v3691
    %v5014 = vunpack.c.l.b16 %v3692
    %v5015 = vunpack.c.h.b16 %v3692
    %v5016 = vunpack.c.l.b16 %v3693
    %v5017 = vunpack.c.h.b16 %v3693
    %v5018 = vunpack.c.l.b16 %v3694
    %v5019 = vunpack.c.h.b16 %v3694
    %v5020 = vunpack.c.l.b16 %v3695
    %v5021 = vunpack.c.h.b16 %v3695
    %v5022 = vunpack.c.l.b16 %v3696
    %v5023 = vunpack.c.h.b16 %v3696
    %v5024 = vunpack.c.l.b16 %v3697
    %v5025 = vunpack.c.h.b16 %v3697
    %v5026 = vunpack.c.l.b16 %v3698
    %v5027 = vunpack.c.h.b16 %v3698
    %v5028 = vunpack.c.l.b16 %v3699
    %v5029 = vunpack.c.h.b16 %v3699
    %v5030 = vunpack.c.l.b16 %v3700
    %v5031 = vunpack.c.h.b16 %v3700
    %v5032 = vunpack.c.l.b16 %v3701
    %v5033 = vunpack.c.h.b16 %v3701
    %v5034 = vunpack.c.l.b16 %v3702
    %v5035 = vunpack.c.h.b16 %v3702
    %v5036 = vunpack.c.l.b16 %v3703
    %v5037 = vunpack.c.h.b16 %v3703
    %v5038 = vunpack.c.l.b16 %v3704
    %v5039 = vunpack.c.h.b16 %v3704
    %v5040 = vunpack.c.l.b16 %v3705
    %v5041 = vunpack.c.h.b16 %v3705
    %v5042 = vunpack.c.l.b16 %v3706
    %v5043 = vunpack.c.h.b16 %v3706
    %v5044 = vunpack.c.l.b16 %v3707
    %v5045 = vunpack.c.h.b16 %v3707
    %v5046 = vunpack.c.l.b16 %v3708
    %v5047 = vunpack.c.h.b16 %v3708
    %v5048 = vunpack.c.l.b16 %v3709
    %v5049 = vunpack.c.h.b16 %v3709
    %v5050 = vunpack.c.l.b16 %v3710
    %v5051 = vunpack.c.h.b16 %v3710
    %v5052 = vunpack.c.l.b16 %v3711
    %v5053 = vunpack.c.h.b16 %v3711
    %v5054 = vunpack.c.l.b16 %v3712
    %v5055 = vunpack.c.h.b16 %v3712
    %v5056 = vunpack.c.l.b16 %v3713
    %v5057 = vunpack.c.h.b16 %v3713
    %v5058 = vunpack.c.l.b16 %v3714
    %v5059 = vunpack.c.h.b16 %v3714
    %v5060 = vunpack.c.l.b16 %v3715
    %v5061 = vunpack.c.h.b16 %v3715
    %v5062 = vunpack.c.l.b16 %v3716
    %v5063 = vunpack.c.h.b16 %v3716
    %v5064 = vunpack.c.l.b16 %v3717
    %v5065 = vunpack.c.h.b16 %v3717
    %v5066 = vunpack.c.l.b16 %v3718
    %v5067 = vunpack.c.h.b16 %v3718
    %v5068 = vunpack.c.l.b16 %v3719
    %v5069 = vunpack.c.h.b16 %v3719
    %v5070 = vunpack.c.l.b16 %v3720
    %v5071 = vunpack.c.h.b16 %v3720
    %v5072 = vunpack.c.l.b16 %v3721
    %v5073 = vunpack.c.h.b16 %v3721
    %v5074 = vunpack.c.l.b16 %v3722
    %v5075 = vunpack.c.h.b16 %v3722
    %v5076 = vunpack.c.l.b16 %v3723
    %v5077 = vunpack.c.h.b16 %v3723
    %v5078 = vunpack.c.l.b16 %v3724
    %v5079 = vunpack.c.h.b16 %v3724
    %v5080 = vunpack.c.l.b16 %v3725
    %v5081 = vunpack.c.h.b16 %v3725
    %v5082 = vunpack.c.l.b16 %v3726
    %v5083 = vunpack.c.h.b16 %v3726
    %v5084 = vunpack.c.l.b16 %v3727
    %v5085 = vunpack.c.h.b16 %v3727
    %v5086 = vunpack.c.l.b16 %v3728
    %v5087 = vunpack.c.h.b16 %v3728
    %v5088 = vunpack.c.l.b16 %v3729
    %v5089 = vunpack.c.h.b16 %v3729
    %v5090 = vunpack.c.l.b16 %v3730
    %v5091 = vunpack.c.h.b16 %v3730
    %v5092 = vunpack.c.l.b16 %v3731
    %v5093 = vunpack.c.h.b16 %v3731
    %v5094 = vunpack.c.l.b16 %v3732
    %v5095 = vunpack.c.h.b16 %v3732
    %v5096 = vunpack.c.l.b16 %v3733
    %v5097 = vunpack.c.h.b16 %v3733
    %v5098 = vunpack.c.l.b16 %v3734
    %v5099 = vunpack.c.h.b16 %v3734
    %v5100 = vunpack.c.l.b16 %v3735
    %v5101 = vunpack.c.h.b16 %v3735
    %v5102 = vunpack.c.l.b16 %v3736
    %v5103 = vunpack.c.h.b16 %v3736
    %v5104 = vunpack.c.l.b16 %v3737
    %v5105 = vunpack.c.h.b16 %v3737
    %v5106 = vunpack.c.l.b16 %v3738
    %v5107 = vunpack.c.h.b16 %v3738
    %v5108 = vunpack.c.l.b16 %v3739
    %v5109 = vunpack.c.h.b16 %v3739
    %v5110 = vunpack.c.l.b16 %v3740
    %v5111 = vunpack.c.h.b16 %v3740
    %v5112 = vunpack.c.l.b16 %v3741
    %v5113 = vunpack.c.h.b16 %v3741
    %v5114 = vunpack.c.l.b16 %v3742
    %v5115 = vunpack.c.h.b16 %v3742
    %v5116 = vunpack.c.l.b16 %v3743
    %v5117 = vunpack.c.h.b16 %v3743
    %v5118 = vunpack.c.l.b16 %v3744
    %v5119 = vunpack.c.h.b16 %v3744
    %v5120 = vunpack.c.l.b16 %v3745
    %v5121 = vunpack.c.h.b16 %v3745
    %v5122 = vunpack.c.l.b16 %v3746
    %v5123 = vunpack.c.h.b16 %v3746
    %v5124 = vunpack.c.l.b16 %v3747
    %v5125 = vunpack.c.h.b16 %v3747
    %v5126 = vunpack.c.l.b16 %v3748
    %v5127 = vunpack.c.h.b16 %v3748
    %v5128 = vunpack.c.l.b16 %v3749
    %v5129 = vunpack.c.h.b16 %v3749
    %v5130 = vunpack.c.l.b16 %v3750
    %v5131 = vunpack.c.h.b16 %v3750
    %v5132 = vunpack.c.l.b16 %v3751
    %v5133 = vunpack.c.h.b16 %v3751
    %v5134 = vunpack.c.l.b16 %v3752
    %v5135 = vunpack.c.h.b16 %v3752
    %v5136 = vunpack.c.l.b16 %v3753
    %v5137 = vunpack.c.h.b16 %v3753
    %v5138 = vunpack.c.l.b16 %v3754
    %v5139 = vunpack.c.h.b16 %v3754
    %v5140 = vunpack.c.l.b16 %v3755
    %v5141 = vunpack.c.h.b16 %v3755
    %v5142 = vunpack.c.l.b16 %v3756
    %v5143 = vunpack.c.h.b16 %v3756
    %v5144 = vunpack.c.l.b16 %v3757
    %v5145 = vunpack.c.h.b16 %v3757
    %v5146 = vunpack.c.l.b16 %v3758
    %v5147 = vunpack.c.h.b16 %v3758
    %v5148 = vunpack.c.l.b16 %v3759
    %v5149 = vunpack.c.h.b16 %v3759
    %v5150 = vunpack.c.l.b16 %v3760
    %v5151 = vunpack.c.h.b16 %v3760
    %v5152 = vunpack.c.l.b16 %v3761
    %v5153 = vunpack.c.h.b16 %v3761
    %v5154 = vunpack.c.l.b16 %v3762
    %v5155 = vunpack.c.h.b16 %v3762
    %v5156 = vunpack.c.l.b16 %v3763
    %v5157 = vunpack.c.h.b16 %v3763
    %v5158 = vunpack.c.l.b16 %v3764
    %v5159 = vunpack.c.h.b16 %v3764
    %v5160 = vunpack.c.l.b16 %v3765
    %v5161 = vunpack.c.h.b16 %v3765
    %v5162 = vunpack.c.l.b16 %v3766
    %v5163 = vunpack.c.h.b16 %v3766
    %v5164 = vunpack.c.l.b16 %v3767
    %v5165 = vunpack.c.h.b16 %v3767
    %v5166 = vunpack.c.l.b16 %v3768
    %v5167 = vunpack.c.h.b16 %v3768
    %v5168 = vunpack.c.l.b16 %v3769
    %v5169 = vunpack.c.h.b16 %v3769
    %v5170 = vunpack.c.l.b16 %v3770
    %v5171 = vunpack.c.h.b16 %v3770
    %v5172 = vunpack.c.l.b16 %v3771
    %v5173 = vunpack.c.h.b16 %v3771
    %v5174 = vunpack.c.l.b16 %v3772
    %v5175 = vunpack.c.h.b16 %v3772
    %v5176 = vunpack.c.l.b16 %v3773
    %v5177 = vunpack.c.h.b16 %v3773
    %v5178 = vunpack.c.l.b16 %v3774
    %v5179 = vunpack.c.h.b16 %v3774
    %v5180 = vunpack.c.l.b16 %v3775
    %v5181 = vunpack.c.h.b16 %v3775
    %v5182 = vunpack.c.l.b16 %v3776
    %v5183 = vunpack.c.h.b16 %v3776
    %v5184 = vunpack.c.l.b16 %v3777
    %v5185 = vunpack.c.h.b16 %v3777
    %v5186 = vunpack.c.l.b16 %v3778
    %v5187 = vunpack.c.h.b16 %v3778
    %v5188 = vunpack.c.l.b16 %v3779
    %v5189 = vunpack.c.h.b16 %v3779
    %v5190 = vunpack.c.l.b16 %v3780
    %v5191 = vunpack.c.h.b16 %v3780
    %v5192 = vunpack.c.l.b16 %v3781
    %v5193 = vunpack.c.h.b16 %v3781
    %v5194 = vunpack.c.l.b16 %v3782
    %v5195 = vunpack.c.h.b16 %v3782
    %v5196 = vunpack.c.l.b16 %v3783
    %v5197 = vunpack.c.h.b16 %v3783
    %v5198 = vunpack.c.l.b16 %v3784
    %v5199 = vunpack.c.h.b16 %v3784
    %v5200 = vunpack.c.l.b16 %v3785
    %v5201 = vunpack.c.h.b16 %v3785
    %v5202 = vunpack.c.l.b16 %v3786
    %v5203 = vunpack.c.h.b16 %v3786
    %v5204 = vunpack.c.l.b16 %v3787
    %v5205 = vunpack.c.h.b16 %v3787
    %v5206 = vunpack.c.l.b16 %v3788
    %v5207 = vunpack.c.h.b16 %v3788
    %v5208 = vunpack.c.l.b16 %v3789
    %v5209 = vunpack.c.h.b16 %v3789
    %v5210 = vunpack.c.l.b16 %v3790
    %v5211 = vunpack.c.h.b16 %v3790
    %v5212 = vunpack.c.l.b16 %v3791
    %v5213 = vunpack.c.h.b16 %v3791
    %v5214 = vunpack.c.l.b16 %v3792
    %v5215 = vunpack.c.h.b16 %v3792
    %v5216 = vunpack.c.l.b16 %v3793
    %v5217 = vunpack.c.h.b16 %v3793
    %v5218 = vunpack.c.l.b16 %v3794
    %v5219 = vunpack.c.h.b16 %v3794
    %v5220 = vunpack.c.l.b16 %v3795
    %v5221 = vunpack.c.h.b16 %v3795
    %v5222 = vunpack.c.l.b16 %v3796
    %v5223 = vunpack.c.h.b16 %v3796
    %v5224 = vunpack.c.l.b16 %v3797
    %v5225 = vunpack.c.h.b16 %v3797
    %v5226 = vunpack.c.l.b16 %v3798
    %v5227 = vunpack.c.h.b16 %v3798
    %v5228 = vunpack.c.l.b16 %v3799
    %v5229 = vunpack.c.h.b16 %v3799
    %v5230 = vunpack.c.l.b16 %v3800
    %v5231 = vunpack.c.h.b16 %v3800
    %v5232 = vunpack.c.l.b16 %v3801
    %v5233 = vunpack.c.h.b16 %v3801
    %v5234 = vunpack.c.l.b16 %v3802
    %v5235 = vunpack.c.h.b16 %v3802
    %v5236 = vunpack.c.l.b16 %v3803
    %v5237 = vunpack.c.h.b16 %v3803
    %v5238 = vunpack.c.l.b16 %v3804
    %v5239 = vunpack.c.h.b16 %v3804
    %v5240 = vunpack.c.l.b16 %v3805
    %v5241 = vunpack.c.h.b16 %v3805
    %v5242 = vunpack.c.l.b16 %v3806
    %v5243 = vunpack.c.h.b16 %v3806
    %v5244 = vunpack.c.l.b16 %v3807
    %v5245 = vunpack.c.h.b16 %v3807
    %v5246 = vunpack.c.l.b16 %v3808
    %v5247 = vunpack.c.h.b16 %v3808
    %v5248 = vunpack.c.l.b16 %v3809
    %v5249 = vunpack.c.h.b16 %v3809
    %v5250 = vunpack.c.l.b16 %v3810
    %v5251 = vunpack.c.h.b16 %v3810
    %v5252 = vunpack.c.l.b16 %v3811
    %v5253 = vunpack.c.h.b16 %v3811
    %v5254 = vunpack.c.l.b16 %v3812
    %v5255 = vunpack.c.h.b16 %v3812
    %v5256 = vunpack.c.l.b16 %v3813
    %v5257 = vunpack.c.h.b16 %v3813
    %v5258 = vunpack.c.l.b16 %v3814
    %v5259 = vunpack.c.h.b16 %v3814
    %v5260 = vunpack.c.l.b16 %v3815
    %v5261 = vunpack.c.h.b16 %v3815
    %v5262 = vunpack.c.l.b16 %v3816
    %v5263 = vunpack.c.h.b16 %v3816
    %v5264 = vunpack.c.l.b16 %v3817
    %v5265 = vunpack.c.h.b16 %v3817
    %v5266 = vunpack.c.l.b16 %v3818
    %v5267 = vunpack.c.h.b16 %v3818
    %v5268 = vunpack.c.l.b16 %v3819
    %v5269 = vunpack.c.h.b16 %v3819
    %v5270 = vunpack.c.l.b16 %v3820
    %v5271 = vunpack.c.h.b16 %v3820
    %v5272 = vunpack.c.l.b16 %v3821
    %v5273 = vunpack.c.h.b16 %v3821
    %v5274 = vunpack.c.l.b16 %v3822
    %v5275 = vunpack.c.h.b16 %v3822
    %v5276 = vunpack.c.l.b16 %v3823
    %v5277 = vunpack.c.h.b16 %v3823
    %v5278 = vunpack.c.l.b16 %v3824
    %v5279 = vunpack.c.h.b16 %v3824
    %v5280 = vunpack.c.l.b16 %v3825
    %v5281 = vunpack.c.h.b16 %v3825
    %v5282 = vunpack.c.l.b16 %v3826
    %v5283 = vunpack.c.h.b16 %v3826
    %v5284 = vunpack.c.l.b16 %v3827
    %v5285 = vunpack.c.h.b16 %v3827
    %v5286 = vunpack.c.l.b16 %v3828
    %v5287 = vunpack.c.h.b16 %v3828
    %v5288 = vunpack.c.l.b16 %v3829
    %v5289 = vunpack.c.h.b16 %v3829
    %v5290 = vunpack.c.l.b16 %v3830
    %v5291 = vunpack.c.h.b16 %v3830
    %v5292 = vunpack.c.l.b16 %v3831
    %v5293 = vunpack.c.h.b16 %v3831
    %v5294 = vunpack.c.l.b16 %v3832
    %v5295 = vunpack.c.h.b16 %v3832
    %v5296 = vunpack.c.l.b16 %v3833
    %v5297 = vunpack.c.h.b16 %v3833
    %v5298 = vunpack.c.l.b16 %v3834
    %v5299 = vunpack.c.h.b16 %v3834
    %v5300 = vunpack.c.l.b16 %v3835
    %v5301 = vunpack.c.h.b16 %v3835
    %v5302 = vunpack.c.l.b16 %v3836
    %v5303 = vunpack.c.h.b16 %v3836
    %v5304 = vunpack.c.l.b16 %v3837
    %v5305 = vunpack.c.h.b16 %v3837
    %v5306 = vunpack.c.l.b16 %v3838
    %v5307 = vunpack.c.h.b16 %v3838
    %v5308 = vunpack.c.l.b16 %v3839
    %v5309 = vunpack.c.h.b16 %v3839
    %v5310 = vunpack.c.l.b16 %v3840
    %v5311 = vunpack.c.h.b16 %v3840
    %v5312 = vunpack.c.l.b16 %v3841
    %v5313 = vunpack.c.h.b16 %v3841
    %v5314 = vunpack.c.l.b16 %v3842
    %v5315 = vunpack.c.h.b16 %v3842
    %v5316 = vunpack.c.l.b16 %v3843
    %v5317 = vunpack.c.h.b16 %v3843
    %v5318 = vunpack.c.l.b16 %v3844
    %v5319 = vunpack.c.h.b16 %v3844
    %v5320 = vunpack.c.l.b16 %v3845
    %v5321 = vunpack.c.h.b16 %v3845
    %v5322 = vunpack.c.l.b16 %v3846
    %v5323 = vunpack.c.h.b16 %v3846
    %v5324 = vunpack.c.l.b16 %v3847
    %v5325 = vunpack.c.h.b16 %v3847
    %v5326 = vunpack.c.l.b16 %v3848
    %v5327 = vunpack.c.h.b16 %v3848
    %v5328 = vunpack.c.l.b16 %v3849
    %v5329 = vunpack.c.h.b16 %v3849
    %v5330 = vunpack.c.l.b16 %v3850
    %v5331 = vunpack.c.h.b16 %v3850
    %v5332 = vunpack.c.l.b16 %v3851
    %v5333 = vunpack.c.h.b16 %v3851
    %v5334 = vunpack.c.l.b16 %v3852
    %v5335 = vunpack.c.h.b16 %v3852
    %v5336 = vunpack.c.l.b16 %v3853
    %v5337 = vunpack.c.h.b16 %v3853
    %v5338 = vunpack.c.l.b16 %v3854
    %v5339 = vunpack.c.h.b16 %v3854
    %v5340 = vunpack.c.l.b16 %v3855
    %v5341 = vunpack.c.h.b16 %v3855
    %v5342 = vunpack.c.l.b16 %v3856
    %v5343 = vunpack.c.h.b16 %v3856
    %v5344 = vunpack.c.l.b16 %v3857
    %v5345 = vunpack.c.h.b16 %v3857
    %v5346 = vunpack.c.l.b16 %v3858
    %v5347 = vunpack.c.h.b16 %v3858
    %v5348 = vunpack.c.l.b16 %v3859
    %v5349 = vunpack.c.h.b16 %v3859
    %v5350 = vunpack.c.l.b16 %v3860
    %v5351 = vunpack.c.h.b16 %v3860
    %v5352 = vunpack.c.l.b16 %v3861
    %v5353 = vunpack.c.h.b16 %v3861
    %v5354 = vunpack.c.l.b16 %v3862
    %v5355 = vunpack.c.h.b16 %v3862
    %v5356 = vunpack.c.l.b16 %v3863
    %v5357 = vunpack.c.h.b16 %v3863
    %v5358 = vunpack.c.l.b16 %v3864
    %v5359 = vunpack.c.h.b16 %v3864
    %v5360 = vunpack.c.l.b16 %v3865
    %v5361 = vunpack.c.h.b16 %v3865
    %v5362 = vunpack.c.l.b16 %v3866
    %v5363 = vunpack.c.h.b16 %v3866
    %v5364 = vunpack.c.l.b16 %v3867
    %v5365 = vunpack.c.h.b16 %v3867
    %v5366 = vunpack.c.l.b16 %v3868
    %v5367 = vunpack.c.h.b16 %v3868
    %v5368 = vunpack.c.l.b16 %v3869
    %v5369 = vunpack.c.h.b16 %v3869
    %v5370 = vunpack.c.l.b16 %v3870
    %v5371 = vunpack.c.h.b16 %v3870
    %v5372 = vunpack.c.l.b16 %v3871
    %v5373 = vunpack.c.h.b16 %v3871
    %v5374 = vunpack.c.l.b16 %v3872
    %v5375 = vunpack.c.h.b16 %v3872
    %v5376 = vunpack.c.l.b16 %v3873
    %v5377 = vunpack.c.h.b16 %v3873
    %v5378 = vunpack.c.l.b16 %v3874
    %v5379 = vunpack.c.h.b16 %v3874
    %v5380 = vunpack.c.l.b16 %v3875
    %v5381 = vunpack.c.h.b16 %v3875
    %v5382 = vunpack.c.l.b16 %v3876
    %v5383 = vunpack.c.h.b16 %v3876
    %v5384 = vunpack.c.l.b16 %v3877
    %v5385 = vunpack.c.h.b16 %v3877
    %v5386 = vunpack.c.l.b16 %v3878
    %v5387 = vunpack.c.h.b16 %v3878
    %v5388 = vunpack.c.l.b16 %v3879
    %v5389 = vunpack.c.h.b16 %v3879
    %v5390 = vunpack.c.l.b16 %v3880
    %v5391 = vunpack.c.h.b16 %v3880
    %v5392 = vunpack.c.l.b16 %v3881
    %v5393 = vunpack.c.h.b16 %v3881
    %v5394 = vunpack.c.l.b16 %v3882
    %v5395 = vunpack.c.h.b16 %v3882
    %v5396 = vunpack.c.l.b16 %v3883
    %v5397 = vunpack.c.h.b16 %v3883
    %v5398 = vunpack.c.l.b16 %v3884
    %v5399 = vunpack.c.h.b16 %v3884
    %v5400 = vunpack.c.l.b16 %v3885
    %v5401 = vunpack.c.h.b16 %v3885
    %v5402 = vunpack.c.l.b16 %v3886
    %v5403 = vunpack.c.h.b16 %v3886
    %v5404 = vunpack.c.l.b16 %v3887
    %v5405 = vunpack.c.h.b16 %v3887
    %v5406 = vunpack.c.l.b16 %v3888
    %v5407 = vunpack.c.h.b16 %v3888
    %v5408 = vunpack.c.l.b16 %v3889
    %v5409 = vunpack.c.h.b16 %v3889
    %v5410 = vunpack.c.l.b16 %v3890
    %v5411 = vunpack.c.h.b16 %v3890
    %v5412 = vunpack.c.l.b16 %v3891
    %v5413 = vunpack.c.h.b16 %v3891
    %v5414 = vunpack.c.l.b16 %v3892
    %v5415 = vunpack.c.h.b16 %v3892
    %v5416 = vunpack.c.l.b16 %v3893
    %v5417 = vunpack.c.h.b16 %v3893
    %v5418 = vunpack.c.l.b16 %v3894
    %v5419 = vunpack.c.h.b16 %v3894
    %v5420 = vunpack.c.l.b16 %v3895
    %v5421 = vunpack.c.h.b16 %v3895
    %v5422 = vunpack.c.l.b16 %v3896
    %v5423 = vunpack.c.h.b16 %v3896
    %v5424 = vunpack.c.l.b16 %v3897
    %v5425 = vunpack.c.h.b16 %v3897
    %v5426 = vunpack.c.l.b16 %v3898
    %v5427 = vunpack.c.h.b16 %v3898
    %v5428 = vunpack.c.l.b16 %v3899
    %v5429 = vunpack.c.h.b16 %v3899
    %v5430 = vunpack.c.l.b16 %v3900
    %v5431 = vunpack.c.h.b16 %v3900
    %v5432 = vunpack.c.l.b16 %v3901
    %v5433 = vunpack.c.h.b16 %v3901
    %v5434 = vunpack.c.l.b16 %v3902
    %v5435 = vunpack.c.h.b16 %v3902
    %v5436 = vunpack.c.l.b16 %v3903
    %v5437 = vunpack.c.h.b16 %v3903
    %v5438 = vunpack.c.l.b16 %v3904
    %v5439 = vunpack.c.h.b16 %v3904
    %v5440 = vunpack.c.l.b16 %v3905
    %v5441 = vunpack.c.h.b16 %v3905
    %v5442 = vunpack.c.l.b16 %v3906
    %v5443 = vunpack.c.h.b16 %v3906
    %v5444 = vunpack.c.l.b16 %v3907
    %v5445 = vunpack.c.h.b16 %v3907
    %v5446 = vunpack.c.l.b16 %v3908
    %v5447 = vunpack.c.h.b16 %v3908
    %v5448 = vunpack.c.l.b16 %v3909
    %v5449 = vunpack.c.h.b16 %v3909
    %v5450 = vunpack.c.l.b16 %v3910
    %v5451 = vunpack.c.h.b16 %v3910
    %v5452 = vunpack.c.l.b16 %v3911
    %v5453 = vunpack.c.h.b16 %v3911
    %v5454 = vunpack.c.l.b16 %v3912
    %v5455 = vunpack.c.h.b16 %v3912
    %v5456 = vunpack.c.l.b16 %v3913
    %v5457 = vunpack.c.h.b16 %v3913
    %v5458 = vunpack.c.l.b16 %v3914
    %v5459 = vunpack.c.h.b16 %v3914
    %v5460 = vunpack.c.l.b16 %v3915
    %v5461 = vunpack.c.h.b16 %v3915
    %v5462 = vunpack.c.l.b16 %v3916
    %v5463 = vunpack.c.h.b16 %v3916
    %v5464 = vunpack.c.l.b16 %v3917
    %v5465 = vunpack.c.h.b16 %v3917
    %v5466 = vunpack.c.l.b16 %v3918
    %v5467 = vunpack.c.h.b16 %v3918
    %v5468 = vunpack.c.l.b16 %v3919
    %v5469 = vunpack.c.h.b16 %v3919
    %v5470 = vunpack.c.l.b16 %v3920
    %v5471 = vunpack.c.h.b16 %v3920
    %v5472 = vunpack.c.l.b16 %v3921
    %v5473 = vunpack.c.h.b16 %v3921
    %v5474 = vunpack.c.l.b16 %v3922
    %v5475 = vunpack.c.h.b16 %v3922
    %v5476 = vunpack.c.l.b16 %v3923
    %v5477 = vunpack.c.h.b16 %v3923
    %v5478 = vunpack.c.l.b16 %v3924
    %v5479 = vunpack.c.h.b16 %v3924
    %v5480 = vunpack.c.l.b16 %v3925
    %v5481 = vunpack.c.h.b16 %v3925
    %v5482 = vunpack.c.l.b16 %v3926
    %v5483 = vunpack.c.h.b16 %v3926
    %v5484 = vunpack.c.l.b16 %v3927
    %v5485 = vunpack.c.h.b16 %v3927
    %v5486 = vunpack.c.l.b16 %v3928
    %v5487 = vunpack.c.h.b16 %v3928
    %v5488 = vunpack.c.l.b16 %v3929
    %v5489 = vunpack.c.h.b16 %v3929
    %v5490 = vunpack.c.l.b16 %v3930
    %v5491 = vunpack.c.h.b16 %v3930
    %v5492 = vunpack.c.l.b16 %v3931
    %v5493 = vunpack.c.h.b16 %v3931
    %v5494 = vunpack.c.l.b16 %v3932
    %v5495 = vunpack.c.h.b16 %v3932
    %v5496 = vunpack.c.l.b16 %v3933
    %v5497 = vunpack.c.h.b16 %v3933
    %v5498 = vunpack.c.l.b16 %v3934
    %v5499 = vunpack.c.h.b16 %v3934
    %v5500 = vunpack.c.l.b16 %v3935
    %v5501 = vunpack.c.h.b16 %v3935
    %v5502 = vunpack.c.l.b16 %v3936
    %v5503 = vunpack.c.h.b16 %v3936
    %v5504 = vunpack.c.l.b16 %v3937
    %v5505 = vunpack.c.h.b16 %v3937
    %v5506 = vunpack.c.l.b16 %v3938
    %v5507 = vunpack.c.h.b16 %v3938
    %v5508 = vunpack.c.l.b16 %v3939
    %v5509 = vunpack.c.h.b16 %v3939
    %v5510 = vunpack.c.l.b16 %v3940
    %v5511 = vunpack.c.h.b16 %v3940
    %v5512 = vunpack.c.l.b16 %v3941
    %v5513 = vunpack.c.h.b16 %v3941
    %v5514 = vunpack.c.l.b16 %v3942
    %v5515 = vunpack.c.h.b16 %v3942
    %v5516 = vunpack.c.l.b16 %v3943
    %v5517 = vunpack.c.h.b16 %v3943
    %v5518 = vunpack.c.l.b16 %v3944
    %v5519 = vunpack.c.h.b16 %v3944
    %v5520 = vunpack.c.l.b16 %v3945
    %v5521 = vunpack.c.h.b16 %v3945
    %v5522 = vunpack.c.l.b16 %v3946
    %v5523 = vunpack.c.h.b16 %v3946
    %v5524 = vunpack.c.l.b16 %v3947
    %v5525 = vunpack.c.h.b16 %v3947
    %v5526 = vpack.c.b16 %v4510, %v4502
    %v5527 = vpack.c.b16 %v4511, %v4503
    %v5528 = vpack.c.b16 %v4512, %v4504
    %v5529 = vpack.c.b16 %v4513, %v4505
    %v5530 = vpack.c.b16 %v4514, %v4506
    %v5531 = vpack.c.b16 %v4515, %v4507
    %v5532 = vpack.c.b16 %v4516, %v4508
    %v5533 = vpack.c.b16 %v4517, %v4509
    %v5534 = vpack.c.b16 %v4526, %v4518
    %v5535 = vpack.c.b16 %v4527, %v4519
    %v5536 = vpack.c.b16 %v4528, %v4520
    %v5537 = vpack.c.b16 %v4529, %v4521
    %v5538 = vpack.c.b16 %v4530, %v4522
    %v5539 = vpack.c.b16 %v4531, %v4523
    %v5540 = vpack.c.b16 %v4532, %v4524
    %v5541 = vpack.c.b16 %v4533, %v4525
    %v5542 = vpack.c.b16 %v4542, %v4534
    %v5543 = vpack.c.b16 %v4543, %v4535
    %v5544 = vpack.c.b16 %v4544, %v4536
    %v5545 = vpack.c.b16 %v4545, %v4537
    %v5546 = vpack.c.b16 %v4546, %v4538
    %v5547 = vpack.c.b16 %v4547, %v4539
    %v5548 = vpack.c.b16 %v4548, %v4540
    %v5549 = vpack.c.b16 %v4549, %v4541
    %v5550 = vpack.c.b16 %v4558, %v4550
    %v5551 = vpack.c.b16 %v4559, %v4551
    %v5552 = vpack.c.b16 %v4560, %v4552
    %v5553 = vpack.c.b16 %v4561, %v4553
    %v5554 = vpack.c.b16 %v4562, %v4554
    %v5555 = vpack.c.b16 %v4563, %v4555
    %v5556 = vpack.c.b16 %v4564, %v4556
    %v5557 = vpack.c.b16 %v4565, %v4557
    %v5558 = vpack.c.b16 %v4574, %v4566
    %v5559 = vpack.c.b16 %v4575, %v4567
    %v5560 = vpack.c.b16 %v4576, %v4568
    %v5561 = vpack.c.b16 %v4577, %v4569
    %v5562 = vpack.c.b16 %v4578, %v4570
    %v5563 = vpack.c.b16 %v4579, %v4571
    %v5564 = vpack.c.b16 %v4580, %v4572
    %v5565 = vpack.c.b16 %v4581, %v4573
    %v5566 = vpack.c.b16 %v4590, %v4582
    %v5567 = vpack.c.b16 %v4591, %v4583
    %v5568 = vpack.c.b16 %v4592, %v4584
    %v5569 = vpack.c.b16 %v4593, %v4585
    %v5570 = vpack.c.b16 %v4594, %v4586
    %v5571 = vpack.c.b16 %v4595, %v4587
    %v5572 = vpack.c.b16 %v4596, %v4588
    %v5573 = vpack.c.b16 %v4597, %v4589
    %v5574 = vpack.c.b16 %v4606, %v4598
    %v5575 = vpack.c.b16 %v4607, %v4599
    %v5576 = vpack.c.b16 %v4608, %v4600
    %v5577 = vpack.c.b16 %v4609, %v4601
    %v5578 = vpack.c.b16 %v4610, %v4602
    %v5579 = vpack.c.b16 %v4611, %v4603
    %v5580 = vpack.c.b16 %v4612, %v4604
    %v5581 = vpack.c.b16 %v4613, %v4605
    %v5582 = vpack.c.b16 %v4622, %v4614
    %v5583 = vpack.c.b16 %v4623, %v4615
    %v5584 = vpack.c.b16 %v4624, %v4616
    %v5585 = vpack.c.b16 %v4625, %v4617
    %v5586 = vpack.c.b16 %v4626, %v4618
    %v5587 = vpack.c.b16 %v4627, %v4619
    %v5588 = vpack.c.b16 %v4628, %v4620
    %v5589 = vpack.c.b16 %v4629, %v4621
    %v5590 = vpack.c.b16 %v4638, %v4630
    %v5591 = vpack.c.b16 %v4639, %v4631
    %v5592 = vpack.c.b16 %v4640, %v4632
    %v5593 = vpack.c.b16 %v4641, %v4633
    %v5594 = vpack.c.b16 %v4642, %v4634
    %v5595 = vpack.c.b16 %v4643, %v4635
    %v5596 = vpack.c.b16 %v4644, %v4636
    %v5597 = vpack.c.b16 %v4645, %v4637
    %v5598 = vpack.c.b16 %v4654, %v4646
    %v5599 = vpack.c.b16 %v4655, %v4647
    %v5600 = vpack.c.b16 %v4656, %v4648
    %v5601 = vpack.c.b16 %v4657, %v4649
    %v5602 = vpack.c.b16 %v4658, %v4650
    %v5603 = vpack.c.b16 %v4659, %v4651
    %v5604 = vpack.c.b16 %v4660, %v4652
    %v5605 = vpack.c.b16 %v4661, %v4653
    %v5606 = vpack.c.b16 %v4670, %v4662
    %v5607 = vpack.c.b16 %v4671, %v4663
    %v5608 = vpack.c.b16 %v4672, %v4664
    %v5609 = vpack.c.b16 %v4673, %v4665
    %v5610 = vpack.c.b16 %v4674, %v4666
    %v5611 = vpack.c.b16 %v4675, %v4667
    %v5612 = vpack.c.b16 %v4676, %v4668
    %v5613 = vpack.c.b16 %v4677, %v4669
    %v5614 = vpack.c.b16 %v4686, %v4678
    %v5615 = vpack.c.b16 %v4687, %v4679
    %v5616 = vpack.c.b16 %v4688, %v4680
    %v5617 = vpack.c.b16 %v4689, %v4681
    %v5618 = vpack.c.b16 %v4690, %v4682
    %v5619 = vpack.c.b16 %v4691, %v4683
    %v5620 = vpack.c.b16 %v4692, %v4684
    %v5621 = vpack.c.b16 %v4693, %v4685
    %v5622 = vpack.c.b16 %v4702, %v4694
    %v5623 = vpack.c.b16 %v4703, %v4695
    %v5624 = vpack.c.b16 %v4704, %v4696
    %v5625 = vpack.c.b16 %v4705, %v4697
    %v5626 = vpack.c.b16 %v4706, %v4698
    %v5627 = vpack.c.b16 %v4707, %v4699
    %v5628 = vpack.c.b16 %v4708, %v4700
    %v5629 = vpack.c.b16 %v4709, %v4701
    %v5630 = vpack.c.b16 %v4718, %v4710
    %v5631 = vpack.c.b16 %v4719, %v4711
    %v5632 = vpack.c.b16 %v4720, %v4712
    %v5633 = vpack.c.b16 %v4721, %v4713
    %v5634 = vpack.c.b16 %v4722, %v4714
    %v5635 = vpack.c.b16 %v4723, %v4715
    %v5636 = vpack.c.b16 %v4724, %v4716
    %v5637 = vpack.c.b16 %v4725, %v4717
    %v5638 = vpack.c.b16 %v4734, %v4726
    %v5639 = vpack.c.b16 %v4735, %v4727
    %v5640 = vpack.c.b16 %v4736, %v4728
    %v5641 = vpack.c.b16 %v4737, %v4729
    %v5642 = vpack.c.b16 %v4738, %v4730
    %v5643 = vpack.c.b16 %v4739, %v4731
    %v5644 = vpack.c.b16 %v4740, %v4732
    %v5645 = vpack.c.b16 %v4741, %v4733
    %v5646 = vpack.c.b16 %v4750, %v4742
    %v5647 = vpack.c.b16 %v4751, %v4743
    %v5648 = vpack.c.b16 %v4752, %v4744
    %v5649 = vpack.c.b16 %v4753, %v4745
    %v5650 = vpack.c.b16 %v4754, %v4746
    %v5651 = vpack.c.b16 %v4755, %v4747
    %v5652 = vpack.c.b16 %v4756, %v4748
    %v5653 = vpack.c.b16 %v4757, %v4749
    %v5654 = vpack.c.b16 %v4766, %v4758
    %v5655 = vpack.c.b16 %v4767, %v4759
    %v5656 = vpack.c.b16 %v4768, %v4760
    %v5657 = vpack.c.b16 %v4769, %v4761
    %v5658 = vpack.c.b16 %v4770, %v4762
    %v5659 = vpack.c.b16 %v4771, %v4763
    %v5660 = vpack.c.b16 %v4772, %v4764
    %v5661 = vpack.c.b16 %v4773, %v4765
    %v5662 = vpack.c.b16 %v4782, %v4774
    %v5663 = vpack.c.b16 %v4783, %v4775
    %v5664 = vpack.c.b16 %v4784, %v4776
    %v5665 = vpack.c.b16 %v4785, %v4777
    %v5666 = vpack.c.b16 %v4786, %v4778
    %v5667 = vpack.c.b16 %v4787, %v4779
    %v5668 = vpack.c.b16 %v4788, %v4780
    %v5669 = vpack.c.b16 %v4789, %v4781
    %v5670 = vpack.c.b16 %v4798, %v4790
    %v5671 = vpack.c.b16 %v4799, %v4791
    %v5672 = vpack.c.b16 %v4800, %v4792
    %v5673 = vpack.c.b16 %v4801, %v4793
    %v5674 = vpack.c.b16 %v4802, %v4794
    %v5675 = vpack.c.b16 %v4803, %v4795
    %v5676 = vpack.c.b16 %v4804, %v4796
    %v5677 = vpack.c.b16 %v4805, %v4797
    %v5678 = vpack.c.b16 %v4814, %v4806
    %v5679 = vpack.c.b16 %v4815, %v4807
    %v5680 = vpack.c.b16 %v4816, %v4808
    %v5681 = vpack.c.b16 %v4817, %v4809
    %v5682 = vpack.c.b16 %v4818, %v4810
    %v5683 = vpack.c.b16 %v4819, %v4811
    %v5684 = vpack.c.b16 %v4820, %v4812
    %v5685 = vpack.c.b16 %v4821, %v4813
    %v5686 = vpack.c.b16 %v4830, %v4822
    %v5687 = vpack.c.b16 %v4831, %v4823
    %v5688 = vpack.c.b16 %v4832, %v4824
    %v5689 = vpack.c.b16 %v4833, %v4825
    %v5690 = vpack.c.b16 %v4834, %v4826
    %v5691 = vpack.c.b16 %v4835, %v4827
    %v5692 = vpack.c.b16 %v4836, %v4828
    %v5693 = vpack.c.b16 %v4837, %v4829
    %v5694 = vpack.c.b16 %v4846, %v4838
    %v5695 = vpack.c.b16 %v4847, %v4839
    %v5696 = vpack.c.b16 %v4848, %v4840
    %v5697 = vpack.c.b16 %v4849, %v4841
    %v5698 = vpack.c.b16 %v4850, %v4842
    %v5699 = vpack.c.b16 %v4851, %v4843
    %v5700 = vpack.c.b16 %v4852, %v4844
    %v5701 = vpack.c.b16 %v4853, %v4845
    %v5702 = vpack.c.b16 %v4862, %v4854
    %v5703 = vpack.c.b16 %v4863, %v4855
    %v5704 = vpack.c.b16 %v4864, %v4856
    %v5705 = vpack.c.b16 %v4865, %v4857
    %v5706 = vpack.c.b16 %v4866, %v4858
    %v5707 = vpack.c.b16 %v4867, %v4859
    %v5708 = vpack.c.b16 %v4868, %v4860
    %v5709 = vpack.c.b16 %v4869, %v4861
    %v5710 = vpack.c.b16 %v4878, %v4870
    %v5711 = vpack.c.b16 %v4879, %v4871
    %v5712 = vpack.c.b16 %v4880, %v4872
    %v5713 = vpack.c.b16 %v4881, %v4873
    %v5714 = vpack.c.b16 %v4882, %v4874
    %v5715 = vpack.c.b16 %v4883, %v4875
    %v5716 = vpack.c.b16 %v4884, %v4876
    %v5717 = vpack.c.b16 %v4885, %v4877
    %v5718 = vpack.c.b16 %v4894, %v4886
    %v5719 = vpack.c.b16 %v4895, %v4887
    %v5720 = vpack.c.b16 %v4896, %v4888
    %v5721 = vpack.c.b16 %v4897, %v4889
    %v5722 = vpack.c.b16 %v4898, %v4890
    %v5723 = vpack.c.b16 %v4899, %v4891
    %v5724 = vpack.c.b16 %v4900, %v4892
    %v5725 = vpack.c.b16 %v4901, %v4893
    %v5726 = vpack.c.b16 %v4910, %v4902
    %v5727 = vpack.c.b16 %v4911, %v4903
    %v5728 = vpack.c.b16 %v4912, %v4904
    %v5729 = vpack.c.b16 %v4913, %v4905
    %v5730 = vpack.c.b16 %v4914, %v4906
    %v5731 = vpack.c.b16 %v4915, %v4907
    %v5732 = vpack.c.b16 %v4916, %v4908
    %v5733 = vpack.c.b16 %v4917, %v4909
    %v5734 = vpack.c.b16 %v4926, %v4918
    %v5735 = vpack.c.b16 %v4927, %v4919
    %v5736 = vpack.c.b16 %v4928, %v4920
    %v5737 = vpack.c.b16 %v4929, %v4921
    %v5738 = vpack.c.b16 %v4930, %v4922
    %v5739 = vpack.c.b16 %v4931, %v4923
    %v5740 = vpack.c.b16 %v4932, %v4924
    %v5741 = vpack.c.b16 %v4933, %v4925
    %v5742 = vpack.c.b16 %v4942, %v4934
    %v5743 = vpack.c.b16 %v4943, %v4935
    %v5744 = vpack.c.b16 %v4944, %v4936
    %v5745 = vpack.c.b16 %v4945, %v4937
    %v5746 = vpack.c.b16 %v4946, %v4938
    %v5747 = vpack.c.b16 %v4947, %v4939
    %v5748 = vpack.c.b16 %v4948, %v4940
    %v5749 = vpack.c.b16 %v4949, %v4941
    %v5750 = vpack.c.b16 %v4958, %v4950
    %v5751 = vpack.c.b16 %v4959, %v4951
    %v5752 = vpack.c.b16 %v4960, %v4952
    %v5753 = vpack.c.b16 %v4961, %v4953
    %v5754 = vpack.c.b16 %v4962, %v4954
    %v5755 = vpack.c.b16 %v4963, %v4955
    %v5756 = vpack.c.b16 %v4964, %v4956
    %v5757 = vpack.c.b16 %v4965, %v4957
    %v5758 = vpack.c.b16 %v4974, %v4966
    %v5759 = vpack.c.b16 %v4975, %v4967
    %v5760 = vpack.c.b16 %v4976, %v4968
    %v5761 = vpack.c.b16 %v4977, %v4969
    %v5762 = vpack.c.b16 %v4978, %v4970
    %v5763 = vpack.c.b16 %v4979, %v4971
    %v5764 = vpack.c.b16 %v4980, %v4972
    %v5765 = vpack.c.b16 %v4981, %v4973
    %v5766 = vpack.c.b16 %v4990, %v4982
    %v5767 = vpack.c.b16 %v4991, %v4983
    %v5768 = vpack.c.b16 %v4992, %v4984
    %v5769 = vpack.c.b16 %v4993, %v4985
    %v5770 = vpack.c.b16 %v4994, %v4986
    %v5771 = vpack.c.b16 %v4995, %v4987
    %v5772 = vpack.c.b16 %v4996, %v4988
    %v5773 = vpack.c.b16 %v4997, %v4989
    %v5774 = vpack.c.b16 %v5006, %v4998
    %v5775 = vpack.c.b16 %v5007, %v4999
    %v5776 = vpack.c.b16 %v5008, %v5000
    %v5777 = vpack.c.b16 %v5009, %v5001
    %v5778 = vpack.c.b16 %v5010, %v5002
    %v5779 = vpack.c.b16 %v5011, %v5003
    %v5780 = vpack.c.b16 %v5012, %v5004
    %v5781 = vpack.c.b16 %v5013, %v5005
    %v5782 = vpack.c.b16 %v5022, %v5014
    %v5783 = vpack.c.b16 %v5023, %v5015
    %v5784 = vpack.c.b16 %v5024, %v5016
    %v5785 = vpack.c.b16 %v5025, %v5017
    %v5786 = vpack.c.b16 %v5026, %v5018
    %v5787 = vpack.c.b16 %v5027, %v5019
    %v5788 = vpack.c.b16 %v5028, %v5020
    %v5789 = vpack.c.b16 %v5029, %v5021
    %v5790 = vpack.c.b16 %v5038, %v5030
    %v5791 = vpack.c.b16 %v5039, %v5031
    %v5792 = vpack.c.b16 %v5040, %v5032
    %v5793 = vpack.c.b16 %v5041, %v5033
    %v5794 = vpack.c.b16 %v5042, %v5034
    %v5795 = vpack.c.b16 %v5043, %v5035
    %v5796 = vpack.c.b16 %v5044, %v5036
    %v5797 = vpack.c.b16 %v5045, %v5037
    %v5798 = vpack.c.b16 %v5054, %v5046
    %v5799 = vpack.c.b16 %v5055, %v5047
    %v5800 = vpack.c.b16 %v5056, %v5048
    %v5801 = vpack.c.b16 %v5057, %v5049
    %v5802 = vpack.c.b16 %v5058, %v5050
    %v5803 = vpack.c.b16 %v5059, %v5051
    %v5804 = vpack.c.b16 %v5060, %v5052
    %v5805 = vpack.c.b16 %v5061, %v5053
    %v5806 = vpack.c.b16 %v5070, %v5062
    %v5807 = vpack.c.b16 %v5071, %v5063
    %v5808 = vpack.c.b16 %v5072, %v5064
    %v5809 = vpack.c.b16 %v5073, %v5065
    %v5810 = vpack.c.b16 %v5074, %v5066
    %v5811 = vpack.c.b16 %v5075, %v5067
    %v5812 = vpack.c.b16 %v5076, %v5068
    %v5813 = vpack.c.b16 %v5077, %v5069
    %v5814 = vpack.c.b16 %v5086, %v5078
    %v5815 = vpack.c.b16 %v5087, %v5079
    %v5816 = vpack.c.b16 %v5088, %v5080
    %v5817 = vpack.c.b16 %v5089, %v5081
    %v5818 = vpack.c.b16 %v5090, %v5082
    %v5819 = vpack.c.b16 %v5091, %v5083
    %v5820 = vpack.c.b16 %v5092, %v5084
    %v5821 = vpack.c.b16 %v5093, %v5085
    %v5822 = vpack.c.b16 %v5102, %v5094
    %v5823 = vpack.c.b16 %v5103, %v5095
    %v5824 = vpack.c.b16 %v5104, %v5096
    %v5825 = vpack.c.b16 %v5105, %v5097
    %v5826 = vpack.c.b16 %v5106, %v5098
    %v5827 = vpack.c.b16 %v5107, %v5099
    %v5828 = vpack.c.b16 %v5108, %v5100
    %v5829 = vpack.c.b16 %v5109, %v5101
    %v5830 = vpack.c.b16 %v5118, %v5110
    %v5831 = vpack.c.b16 %v5119, %v5111
    %v5832 = vpack.c.b16 %v5120, %v5112
    %v5833 = vpack.c.b16 %v5121, %v5113
    %v5834 = vpack.c.b16 %v5122, %v5114
    %v5835 = vpack.c.b16 %v5123, %v5115
    %v5836 = vpack.c.b16 %v5124, %v5116
    %v5837 = vpack.c.b16 %v5125, %v5117
    %v5838 = vpack.c.b16 %v5134, %v5126
    %v5839 = vpack.c.b16 %v5135, %v5127
    %v5840 = vpack.c.b16 %v5136, %v5128
    %v5841 = vpack.c.b16 %v5137, %v5129
    %v5842 = vpack.c.b16 %v5138, %v5130
    %v5843 = vpack.c.b16 %v5139, %v5131
    %v5844 = vpack.c.b16 %v5140, %v5132
    %v5845 = vpack.c.b16 %v5141, %v5133
    %v5846 = vpack.c.b16 %v5150, %v5142
    %v5847 = vpack.c.b16 %v5151, %v5143
    %v5848 = vpack.c.b16 %v5152, %v5144
    %v5849 = vpack.c.b16 %v5153, %v5145
    %v5850 = vpack.c.b16 %v5154, %v5146
    %v5851 = vpack.c.b16 %v5155, %v5147
    %v5852 = vpack.c.b16 %v5156, %v5148
    %v5853 = vpack.c.b16 %v5157, %v5149
    %v5854 = vpack.c.b16 %v5166, %v5158
    %v5855 = vpack.c.b16 %v5167, %v5159
    %v5856 = vpack.c.b16 %v5168, %v5160
    %v5857 = vpack.c.b16 %v5169, %v5161
    %v5858 = vpack.c.b16 %v5170, %v5162
    %v5859 = vpack.c.b16 %v5171, %v5163
    %v5860 = vpack.c.b16 %v5172, %v5164
    %v5861 = vpack.c.b16 %v5173, %v5165
    %v5862 = vpack.c.b16 %v5182, %v5174
    %v5863 = vpack.c.b16 %v5183, %v5175
    %v5864 = vpack.c.b16 %v5184, %v5176
    %v5865 = vpack.c.b16 %v5185, %v5177
    %v5866 = vpack.c.b16 %v5186, %v5178
    %v5867 = vpack.c.b16 %v5187, %v5179
    %v5868 = vpack.c.b16 %v5188, %v5180
    %v5869 = vpack.c.b16 %v5189, %v5181
    %v5870 = vpack.c.b16 %v5198, %v5190
    %v5871 = vpack.c.b16 %v5199, %v5191
    %v5872 = vpack.c.b16 %v5200, %v5192
    %v5873 = vpack.c.b16 %v5201, %v5193
    %v5874 = vpack.c.b16 %v5202, %v5194
    %v5875 = vpack.c.b16 %v5203, %v5195
    %v5876 = vpack.c.b16 %v5204, %v5196
    %v5877 = vpack.c.b16 %v5205, %v5197
    %v5878 = vpack.c.b16 %v5214, %v5206
    %v5879 = vpack.c.b16 %v5215, %v5207
    %v5880 = vpack.c.b16 %v5216, %v5208
    %v5881 = vpack.c.b16 %v5217, %v5209
    %v5882 = vpack.c.b16 %v5218, %v5210
    %v5883 = vpack.c.b16 %v5219, %v5211
    %v5884 = vpack.c.b16 %v5220, %v5212
    %v5885 = vpack.c.b16 %v5221, %v5213
    %v5886 = vpack.c.b16 %v5230, %v5222
    %v5887 = vpack.c.b16 %v5231, %v5223
    %v5888 = vpack.c.b16 %v5232, %v5224
    %v5889 = vpack.c.b16 %v5233, %v5225
    %v5890 = vpack.c.b16 %v5234, %v5226
    %v5891 = vpack.c.b16 %v5235, %v5227
    %v5892 = vpack.c.b16 %v5236, %v5228
    %v5893 = vpack.c.b16 %v5237, %v5229
    %v5894 = vpack.c.b16 %v5246, %v5238
    %v5895 = vpack.c.b16 %v5247, %v5239
    %v5896 = vpack.c.b16 %v5248, %v5240
    %v5897 = vpack.c.b16 %v5249, %v5241
    %v5898 = vpack.c.b16 %v5250, %v5242
    %v5899 = vpack.c.b16 %v5251, %v5243
    %v5900 = vpack.c.b16 %v5252, %v5244
    %v5901 = vpack.c.b16 %v5253, %v5245
    %v5902 = vpack.c.b16 %v5262, %v5254
    %v5903 = vpack.c.b16 %v5263, %v5255
    %v5904 = vpack.c.b16 %v5264, %v5256
    %v5905 = vpack.c.b16 %v5265, %v5257
    %v5906 = vpack.c.b16 %v5266, %v5258
    %v5907 = vpack.c.b16 %v5267, %v5259
    %v5908 = vpack.c.b16 %v5268, %v5260
    %v5909 = vpack.c.b16 %v5269, %v5261
    %v5910 = vpack.c.b16 %v5278, %v5270
    %v5911 = vpack.c.b16 %v5279, %v5271
    %v5912 = vpack.c.b16 %v5280, %v5272
    %v5913 = vpack.c.b16 %v5281, %v5273
    %v5914 = vpack.c.b16 %v5282, %v5274
    %v5915 = vpack.c.b16 %v5283, %v5275
    %v5916 = vpack.c.b16 %v5284, %v5276
    %v5917 = vpack.c.b16 %v5285, %v5277
    %v5918 = vpack.c.b16 %v5294, %v5286
    %v5919 = vpack.c.b16 %v5295, %v5287
    %v5920 = vpack.c.b16 %v5296, %v5288
    %v5921 = vpack.c.b16 %v5297, %v5289
    %v5922 = vpack.c.b16 %v5298, %v5290
    %v5923 = vpack.c.b16 %v5299, %v5291
    %v5924 = vpack.c.b16 %v5300, %v5292
    %v5925 = vpack.c.b16 %v5301, %v5293
    %v5926 = vpack.c.b16 %v5310, %v5302
    %v5927 = vpack.c.b16 %v5311, %v5303
    %v5928 = vpack.c.b16 %v5312, %v5304
    %v5929 = vpack.c.b16 %v5313, %v5305
    %v5930 = vpack.c.b16 %v5314, %v5306
    %v5931 = vpack.c.b16 %v5315, %v5307
    %v5932 = vpack.c.b16 %v5316, %v5308
    %v5933 = vpack.c.b16 %v5317, %v5309
    %v5934 = vpack.c.b16 %v5326, %v5318
    %v5935 = vpack.c.b16 %v5327, %v5319
    %v5936 = vpack.c.b16 %v5328, %v5320
    %v5937 = vpack.c.b16 %v5329, %v5321
    %v5938 = vpack.c.b16 %v5330, %v5322
    %v5939 = vpack.c.b16 %v5331, %v5323
    %v5940 = vpack.c.b16 %v5332, %v5324
    %v5941 = vpack.c.b16 %v5333, %v5325
    %v5942 = vpack.c.b16 %v5342, %v5334
    %v5943 = vpack.c.b16 %v5343, %v5335
    %v5944 = vpack.c.b16 %v5344, %v5336
    %v5945 = vpack.c.b16 %v5345, %v5337
    %v5946 = vpack.c.b16 %v5346, %v5338
    %v5947 = vpack.c.b16 %v5347, %v5339
    %v5948 = vpack.c.b16 %v5348, %v5340
    %v5949 = vpack.c.b16 %v5349, %v5341
    %v5950 = vpack.c.b16 %v5358, %v5350
    %v5951 = vpack.c.b16 %v5359, %v5351
    %v5952 = vpack.c.b16 %v5360, %v5352
    %v5953 = vpack.c.b16 %v5361, %v5353
    %v5954 = vpack.c.b16 %v5362, %v5354
    %v5955 = vpack.c.b16 %v5363, %v5355
    %v5956 = vpack.c.b16 %v5364, %v5356
    %v5957 = vpack.c.b16 %v5365, %v5357
    %v5958 = vpack.c.b16 %v5374, %v5366
    %v5959 = vpack.c.b16 %v5375, %v5367
    %v5960 = vpack.c.b16 %v5376, %v5368
    %v5961 = vpack.c.b16 %v5377, %v5369
    %v5962 = vpack.c.b16 %v5378, %v5370
    %v5963 = vpack.c.b16 %v5379, %v5371
    %v5964 = vpack.c.b16 %v5380, %v5372
    %v5965 = vpack.c.b16 %v5381, %v5373
    %v5966 = vpack.c.b16 %v5390, %v5382
    %v5967 = vpack.c.b16 %v5391, %v5383
    %v5968 = vpack.c.b16 %v5392, %v5384
    %v5969 = vpack.c.b16 %v5393, %v5385
    %v5970 = vpack.c.b16 %v5394, %v5386
    %v5971 = vpack.c.b16 %v5395, %v5387
    %v5972 = vpack.c.b16 %v5396, %v5388
    %v5973 = vpack.c.b16 %v5397, %v5389
    %v5974 = vpack.c.b16 %v5406, %v5398
    %v5975 = vpack.c.b16 %v5407, %v5399
    %v5976 = vpack.c.b16 %v5408, %v5400
    %v5977 = vpack.c.b16 %v5409, %v5401
    %v5978 = vpack.c.b16 %v5410, %v5402
    %v5979 = vpack.c.b16 %v5411, %v5403
    %v5980 = vpack.c.b16 %v5412, %v5404
    %v5981 = vpack.c.b16 %v5413, %v5405
    %v5982 = vpack.c.b16 %v5422, %v5414
    %v5983 = vpack.c.b16 %v5423, %v5415
    %v5984 = vpack.c.b16 %v5424, %v5416
    %v5985 = vpack.c.b16 %v5425, %v5417
    %v5986 = vpack.c.b16 %v5426, %v5418
    %v5987 = vpack.c.b16 %v5427, %v5419
    %v5988 = vpack.c.b16 %v5428, %v5420
    %v5989 = vpack.c.b16 %v5429, %v5421
    %v5990 = vpack.c.b16 %v5438, %v5430
    %v5991 = vpack.c.b16 %v5439, %v5431
    %v5992 = vpack.c.b16 %v5440, %v5432
    %v5993 = vpack.c.b16 %v5441, %v5433
    %v5994 = vpack.c.b16 %v5442, %v5434
    %v5995 = vpack.c.b16 %v5443, %v5435
    %v5996 = vpack.c.b16 %v5444, %v5436
    %v5997 = vpack.c.b16 %v5445, %v5437
    %v5998 = vpack.c.b16 %v5454, %v5446
    %v5999 = vpack.c.b16 %v5455, %v5447
    %v6000 = vpack.c.b16 %v5456, %v5448
    %v6001 = vpack.c.b16 %v5457, %v5449
    %v6002 = vpack.c.b16 %v5458, %v5450
    %v6003 = vpack.c.b16 %v5459, %v5451
    %v6004 = vpack.c.b16 %v5460, %v5452
    %v6005 = vpack.c.b16 %v5461, %v5453
    %v6006 = vpack.c.b16 %v5470, %v5462
    %v6007 = vpack.c.b16 %v5471, %v5463
    %v6008 = vpack.c.b16 %v5472, %v5464
    %v6009 = vpack.c.b16 %v5473, %v5465
    %v6010 = vpack.c.b16 %v5474, %v5466
    %v6011 = vpack.c.b16 %v5475, %v5467
    %v6012 = vpack.c.b16 %v5476, %v5468
    %v6013 = vpack.c.b16 %v5477, %v5469
    %v6014 = vpack.c.b16 %v5486, %v5478
    %v6015 = vpack.c.b16 %v5487, %v5479
    %v6016 = vpack.c.b16 %v5488, %v5480
    %v6017 = vpack.c.b16 %v5489, %v5481
    %v6018 = vpack.c.b16 %v5490, %v5482
    %v6019 = vpack.c.b16 %v5491, %v5483
    %v6020 = vpack.c.b16 %v5492, %v5484
    %v6021 = vpack.c.b16 %v5493, %v5485
    %v6022 = vpack.c.b16 %v5502, %v5494
    %v6023 = vpack.c.b16 %v5503, %v5495
    %v6024 = vpack.c.b16 %v5504, %v5496
    %v6025 = vpack.c.b16 %v5505, %v5497
    %v6026 = vpack.c.b16 %v5506, %v5498
    %v6027 = vpack.c.b16 %v5507, %v5499
    %v6028 = vpack.c.b16 %v5508, %v5500
    %v6029 = vpack.c.b16 %v5509, %v5501
    %v6030 = vpack.c.b16 %v5518, %v5510
    %v6031 = vpack.c.b16 %v5519, %v5511
    %v6032 = vpack.c.b16 %v5520, %v5512
    %v6033 = vpack.c.b16 %v5521, %v5513
    %v6034 = vpack.c.b16 %v5522, %v5514
    %v6035 = vpack.c.b16 %v5523, %v5515
    %v6036 = vpack.c.b16 %v5524, %v5516
    %v6037 = vpack.c.b16 %v5525, %v5517
    %6550 = vmatprep.subr.bf16.mxu0 %v5583
    %6551 = vmatpush1.bf16.msra.mxu0 %v5582
    %6552 = vmatprep.subr.bf16.mxu0 %v5575
    %6553 = vmatpush1.bf16.msra.mxu0 %v5574
    %6554 = vmatprep.subr.bf16.mxu0 %v5567
    %6555 = vmatpush1.bf16.msra.mxu0 %v5566
    %6556 = vmatprep.subr.bf16.mxu0 %v5559
    %6557 = vmatpush1.bf16.msra.mxu0 %v5558
    %6558 = vmatprep.subr.bf16.mxu0 %v5551
    %6559 = vmatpush1.bf16.msra.mxu0 %v5550
    %6560 = vmatprep.subr.bf16.mxu0 %v5543
    %6561 = vmatpush1.bf16.msra.mxu0 %v5542
    %6562 = vmatprep.subr.bf16.mxu0 %v5535
    %6563 = vmatpush1.bf16.msra.mxu0 %v5534
    %6564 = vmatprep.subr.bf16.mxu0 %v5527
    %6565 = vmatpush1.bf16.msra.mxu0 %v5526
    %6566 = vmatprep.subr.bf16.mxu0 %v5647
    %6567 = vmatpush2.bf16.msra.mxu0 %v5646
    %6568 = vmatprep.subr.bf16.mxu0 %v5639
    %6569 = vmatpush2.bf16.msra.mxu0 %v5638
    %6570 = vmatprep.subr.bf16.mxu0 %v5631
    %6571 = vmatpush2.bf16.msra.mxu0 %v5630
    %6572 = vmatprep.subr.bf16.mxu0 %v5623
    %6573 = vmatpush2.bf16.msra.mxu0 %v5622
    %6574 = vmatprep.subr.bf16.mxu0 %v5615
    %6575 = vmatpush2.bf16.msra.mxu0 %v5614
    %6576 = vmatprep.subr.bf16.mxu0 %v5607
    %6577 = vmatpush2.bf16.msra.mxu0 %v5606
    %6578 = vmatprep.subr.bf16.mxu0 %v5599
    %6579 = vmatpush2.bf16.msra.mxu0 %v5598
    %6580 = vmatprep.subr.bf16.mxu0 %v5591
    %6581 = vmatpush2.bf16.msra.mxu0 %v5590
    %6582 = vmatprep.mubr.bf16.mxu0 %v3429
    %6583 = vmatmul.mubr.bf16.gmra.mxu0 %v3428
    %v6584 = vpop.f32.mrf.mxu0
    %v6585 = vadd.f32 %v3953, %v6584
    %v6586 = vpop.f32.mrf.mxu0
    %v6587 = vadd.f32 %v3957, %v6586
    %v6588 = vpop.f32.mrf.mxu0
    %v6589 = vpop.f32.mrf.mxu0
    %6590 = vdwg.mxu0
    %6591 = vmatprep.subr.bf16.mxu0 %v5711
    %6592 = vmatpush1.bf16.msra.mxu0 %v5710
    %6593 = vmatprep.subr.bf16.mxu0 %v5703
    %6594 = vmatpush1.bf16.msra.mxu0 %v5702
    %6595 = vmatprep.subr.bf16.mxu0 %v5695
    %6596 = vmatpush1.bf16.msra.mxu0 %v5694
    %6597 = vmatprep.subr.bf16.mxu0 %v5687
    %6598 = vmatpush1.bf16.msra.mxu0 %v5686
    %6599 = vmatprep.subr.bf16.mxu0 %v5679
    %6600 = vmatpush1.bf16.msra.mxu0 %v5678
    %6601 = vmatprep.subr.bf16.mxu0 %v5671
    %6602 = vmatpush1.bf16.msra.mxu0 %v5670
    %6603 = vmatprep.subr.bf16.mxu0 %v5663
    %6604 = vmatpush1.bf16.msra.mxu0 %v5662
    %6605 = vmatprep.subr.bf16.mxu0 %v5655
    %6606 = vmatpush1.bf16.msra.mxu0 %v5654
    %6607 = vmatprep.subr.bf16.mxu0 %v5775
    %6608 = vmatpush2.bf16.msra.mxu0 %v5774
    %6609 = vmatprep.subr.bf16.mxu0 %v5767
    %6610 = vmatpush2.bf16.msra.mxu0 %v5766
    %6611 = vmatprep.subr.bf16.mxu0 %v5759
    %6612 = vmatpush2.bf16.msra.mxu0 %v5758
    %6613 = vmatprep.subr.bf16.mxu0 %v5751
    %6614 = vmatpush2.bf16.msra.mxu0 %v5750
    %6615 = vmatprep.subr.bf16.mxu0 %v5743
    %6616 = vmatpush2.bf16.msra.mxu0 %v5742
    %6617 = vmatprep.subr.bf16.mxu0 %v5735
    %6618 = vmatpush2.bf16.msra.mxu0 %v5734
    %6619 = vmatprep.subr.bf16.mxu0 %v5727
    %6620 = vmatpush2.bf16.msra.mxu0 %v5726
    %6621 = vmatprep.subr.bf16.mxu0 %v5719
    %6622 = vmatpush2.bf16.msra.mxu0 %v5718
    %6623 = vmatprep.mubr.bf16.mxu0 %v3431
    %6624 = vmatmul.mubr.bf16.gmra.mxu0 %v3430
    %v6625 = vpop.f32.mrf.mxu0
    %v6626 = vadd.f32 %v6585, %v6625
    %v6627 = vpop.f32.mrf.mxu0
    %v6628 = vadd.f32 %v6587, %v6627
    %v6629 = vpop.f32.mrf.mxu0
    %v6630 = vpop.f32.mrf.mxu0
    %6631 = vdwg.mxu0
    %6632 = vmatprep.subr.bf16.mxu0 %v5839
    %6633 = vmatpush1.bf16.msra.mxu0 %v5838
    %6634 = vmatprep.subr.bf16.mxu0 %v5831
    %6635 = vmatpush1.bf16.msra.mxu0 %v5830
    %6636 = vmatprep.subr.bf16.mxu0 %v5823
    %6637 = vmatpush1.bf16.msra.mxu0 %v5822
    %6638 = vmatprep.subr.bf16.mxu0 %v5815
    %6639 = vmatpush1.bf16.msra.mxu0 %v5814
    %6640 = vmatprep.subr.bf16.mxu0 %v5807
    %6641 = vmatpush1.bf16.msra.mxu0 %v5806
    %6642 = vmatprep.subr.bf16.mxu0 %v5799
    %6643 = vmatpush1.bf16.msra.mxu0 %v5798
    %6644 = vmatprep.subr.bf16.mxu0 %v5791
    %6645 = vmatpush1.bf16.msra.mxu0 %v5790
    %6646 = vmatprep.subr.bf16.mxu0 %v5783
    %6647 = vmatpush1.bf16.msra.mxu0 %v5782
    %6648 = vmatprep.subr.bf16.mxu0 %v5903
    %6649 = vmatpush2.bf16.msra.mxu0 %v5902
    %6650 = vmatprep.subr.bf16.mxu0 %v5895
    %6651 = vmatpush2.bf16.msra.mxu0 %v5894
    %6652 = vmatprep.subr.bf16.mxu0 %v5887
    %6653 = vmatpush2.bf16.msra.mxu0 %v5886
    %6654 = vmatprep.subr.bf16.mxu0 %v5879
    %6655 = vmatpush2.bf16.msra.mxu0 %v5878
    %6656 = vmatprep.subr.bf16.mxu0 %v5871
    %6657 = vmatpush2.bf16.msra.mxu0 %v5870
    %6658 = vmatprep.subr.bf16.mxu0 %v5863
    %6659 = vmatpush2.bf16.msra.mxu0 %v5862
    %6660 = vmatprep.subr.bf16.mxu0 %v5855
    %6661 = vmatpush2.bf16.msra.mxu0 %v5854
    %6662 = vmatprep.subr.bf16.mxu0 %v5847
    %6663 = vmatpush2.bf16.msra.mxu0 %v5846
    %6664 = vmatprep.mubr.bf16.mxu0 %v3433
    %6665 = vmatmul.mubr.bf16.gmra.mxu0 %v3432
    %v6666 = vpop.f32.mrf.mxu0
    %v6667 = vadd.f32 %v6626, %v6666
    %v6668 = vpop.f32.mrf.mxu0
    %v6669 = vadd.f32 %v6628, %v6668
    %v6670 = vpop.f32.mrf.mxu0
    %v6671 = vpop.f32.mrf.mxu0
    %6672 = vdwg.mxu0
    %6673 = vmatprep.subr.bf16.mxu0 %v5967
    %6674 = vmatpush1.bf16.msra.mxu0 %v5966
    %6675 = vmatprep.subr.bf16.mxu0 %v5959
    %6676 = vmatpush1.bf16.msra.mxu0 %v5958
    %6677 = vmatprep.subr.bf16.mxu0 %v5951
    %6678 = vmatpush1.bf16.msra.mxu0 %v5950
    %6679 = vmatprep.subr.bf16.mxu0 %v5943
    %6680 = vmatpush1.bf16.msra.mxu0 %v5942
    %6681 = vmatprep.subr.bf16.mxu0 %v5935
    %6682 = vmatpush1.bf16.msra.mxu0 %v5934
    %6683 = vmatprep.subr.bf16.mxu0 %v5927
    %6684 = vmatpush1.bf16.msra.mxu0 %v5926
    %6685 = vmatprep.subr.bf16.mxu0 %v5919
    %6686 = vmatpush1.bf16.msra.mxu0 %v5918
    %6687 = vmatprep.subr.bf16.mxu0 %v5911
    %6688 = vmatpush1.bf16.msra.mxu0 %v5910
    %6689 = vmatprep.subr.bf16.mxu0 %v6031
    %6690 = vmatpush2.bf16.msra.mxu0 %v6030
    %6691 = vmatprep.subr.bf16.mxu0 %v6023
    %6692 = vmatpush2.bf16.msra.mxu0 %v6022
    %6693 = vmatprep.subr.bf16.mxu0 %v6015
    %6694 = vmatpush2.bf16.msra.mxu0 %v6014
    %6695 = vmatprep.subr.bf16.mxu0 %v6007
    %6696 = vmatpush2.bf16.msra.mxu0 %v6006
    %6697 = vmatprep.subr.bf16.mxu0 %v5999
    %6698 = vmatpush2.bf16.msra.mxu0 %v5998
    %6699 = vmatprep.subr.bf16.mxu0 %v5991
    %6700 = vmatpush2.bf16.msra.mxu0 %v5990
    %6701 = vmatprep.subr.bf16.mxu0 %v5983
    %6702 = vmatpush2.bf16.msra.mxu0 %v5982
    %6703 = vmatprep.subr.bf16.mxu0 %v5975
    %6704 = vmatpush2.bf16.msra.mxu0 %v5974
    %6705 = vmatprep.mubr.bf16.mxu0 %v3435
    %6706 = vmatmul.mubr.bf16.gmra.mxu0 %v3434
    %v6707 = vpop.f32.mrf.mxu0
    %v6708 = vadd.f32 %v6667, %v6707
    %v6709 = vpop.f32.mrf.mxu0
    %v6710 = vadd.f32 %v6669, %v6709
    %v6711 = vpop.f32.mrf.mxu0
    %v6712 = vpop.f32.mrf.mxu0
    %6713 = vdwg.mxu0
    %6714 = vmatprep.subr.bf16.mxu0 %v5585
    %6715 = vmatpush1.bf16.msra.mxu0 %v5584
    %6716 = vmatprep.subr.bf16.mxu0 %v5577
    %6717 = vmatpush1.bf16.msra.mxu0 %v5576
    %6718 = vmatprep.subr.bf16.mxu0 %v5569
    %6719 = vmatpush1.bf16.msra.mxu0 %v5568
    %6720 = vmatprep.subr.bf16.mxu0 %v5561
    %6721 = vmatpush1.bf16.msra.mxu0 %v5560
    %6722 = vmatprep.subr.bf16.mxu0 %v5553
    %6723 = vmatpush1.bf16.msra.mxu0 %v5552
    %6724 = vmatprep.subr.bf16.mxu0 %v5545
    %6725 = vmatpush1.bf16.msra.mxu0 %v5544
    %6726 = vmatprep.subr.bf16.mxu0 %v5537
    %6727 = vmatpush1.bf16.msra.mxu0 %v5536
    %6728 = vmatprep.subr.bf16.mxu0 %v5529
    %6729 = vmatpush1.bf16.msra.mxu0 %v5528
    %6730 = vmatprep.subr.bf16.mxu0 %v5649
    %6731 = vmatpush2.bf16.msra.mxu0 %v5648
    %6732 = vmatprep.subr.bf16.mxu0 %v5641
    %6733 = vmatpush2.bf16.msra.mxu0 %v5640
    %6734 = vmatprep.subr.bf16.mxu0 %v5633
    %6735 = vmatpush2.bf16.msra.mxu0 %v5632
    %6736 = vmatprep.subr.bf16.mxu0 %v5625
    %6737 = vmatpush2.bf16.msra.mxu0 %v5624
    %6738 = vmatprep.subr.bf16.mxu0 %v5617
    %6739 = vmatpush2.bf16.msra.mxu0 %v5616
    %6740 = vmatprep.subr.bf16.mxu0 %v5609
    %6741 = vmatpush2.bf16.msra.mxu0 %v5608
    %6742 = vmatprep.subr.bf16.mxu0 %v5601
    %6743 = vmatpush2.bf16.msra.mxu0 %v5600
    %6744 = vmatprep.subr.bf16.mxu0 %v5593
    %6745 = vmatpush2.bf16.msra.mxu0 %v5592
    %6746 = vmatprep.mubr.bf16.mxu0 %v3429
    %6747 = vmatmul.mubr.bf16.gmra.mxu0 %v3428
    %v6748 = vpop.f32.mrf.mxu0
    %v6749 = vadd.f32 %v3961, %v6748
    %v6750 = vpop.f32.mrf.mxu0
    %v6751 = vadd.f32 %v3965, %v6750
    %v6752 = vpop.f32.mrf.mxu0
    %v6753 = vpop.f32.mrf.mxu0
    %6754 = vdwg.mxu0
    %6755 = vmatprep.subr.bf16.mxu0 %v5713
    %6756 = vmatpush1.bf16.msra.mxu0 %v5712
    %6757 = vmatprep.subr.bf16.mxu0 %v5705
    %6758 = vmatpush1.bf16.msra.mxu0 %v5704
    %6759 = vmatprep.subr.bf16.mxu0 %v5697
    %6760 = vmatpush1.bf16.msra.mxu0 %v5696
    %6761 = vmatprep.subr.bf16.mxu0 %v5689
    %6762 = vmatpush1.bf16.msra.mxu0 %v5688
    %6763 = vmatprep.subr.bf16.mxu0 %v5681
    %6764 = vmatpush1.bf16.msra.mxu0 %v5680
    %6765 = vmatprep.subr.bf16.mxu0 %v5673
    %6766 = vmatpush1.bf16.msra.mxu0 %v5672
    %6767 = vmatprep.subr.bf16.mxu0 %v5665
    %6768 = vmatpush1.bf16.msra.mxu0 %v5664
    %6769 = vmatprep.subr.bf16.mxu0 %v5657
    %6770 = vmatpush1.bf16.msra.mxu0 %v5656
    %6771 = vmatprep.subr.bf16.mxu0 %v5777
    %6772 = vmatpush2.bf16.msra.mxu0 %v5776
    %6773 = vmatprep.subr.bf16.mxu0 %v5769
    %6774 = vmatpush2.bf16.msra.mxu0 %v5768
    %6775 = vmatprep.subr.bf16.mxu0 %v5761
    %6776 = vmatpush2.bf16.msra.mxu0 %v5760
    %6777 = vmatprep.subr.bf16.mxu0 %v5753
    %6778 = vmatpush2.bf16.msra.mxu0 %v5752
    %6779 = vmatprep.subr.bf16.mxu0 %v5745
    %6780 = vmatpush2.bf16.msra.mxu0 %v5744
    %6781 = vmatprep.subr.bf16.mxu0 %v5737
    %6782 = vmatpush2.bf16.msra.mxu0 %v5736
    %6783 = vmatprep.subr.bf16.mxu0 %v5729
    %6784 = vmatpush2.bf16.msra.mxu0 %v5728
    %6785 = vmatprep.subr.bf16.mxu0 %v5721
    %6786 = vmatpush2.bf16.msra.mxu0 %v5720
    %6787 = vmatprep.mubr.bf16.mxu0 %v3431
    %6788 = vmatmul.mubr.bf16.gmra.mxu0 %v3430
    %v6789 = vpop.f32.mrf.mxu0
    %v6790 = vadd.f32 %v6749, %v6789
    %v6791 = vpop.f32.mrf.mxu0
    %v6792 = vadd.f32 %v6751, %v6791
    %v6793 = vpop.f32.mrf.mxu0
    %v6794 = vpop.f32.mrf.mxu0
    %6795 = vdwg.mxu0
    %6796 = vmatprep.subr.bf16.mxu0 %v5841
    %6797 = vmatpush1.bf16.msra.mxu0 %v5840
    %6798 = vmatprep.subr.bf16.mxu0 %v5833
    %6799 = vmatpush1.bf16.msra.mxu0 %v5832
    %6800 = vmatprep.subr.bf16.mxu0 %v5825
    %6801 = vmatpush1.bf16.msra.mxu0 %v5824
    %6802 = vmatprep.subr.bf16.mxu0 %v5817
    %6803 = vmatpush1.bf16.msra.mxu0 %v5816
    %6804 = vmatprep.subr.bf16.mxu0 %v5809
    %6805 = vmatpush1.bf16.msra.mxu0 %v5808
    %6806 = vmatprep.subr.bf16.mxu0 %v5801
    %6807 = vmatpush1.bf16.msra.mxu0 %v5800
    %6808 = vmatprep.subr.bf16.mxu0 %v5793
    %6809 = vmatpush1.bf16.msra.mxu0 %v5792
    %6810 = vmatprep.subr.bf16.mxu0 %v5785
    %6811 = vmatpush1.bf16.msra.mxu0 %v5784
    %6812 = vmatprep.subr.bf16.mxu0 %v5905
    %6813 = vmatpush2.bf16.msra.mxu0 %v5904
    %6814 = vmatprep.subr.bf16.mxu0 %v5897
    %6815 = vmatpush2.bf16.msra.mxu0 %v5896
    %6816 = vmatprep.subr.bf16.mxu0 %v5889
    %6817 = vmatpush2.bf16.msra.mxu0 %v5888
    %6818 = vmatprep.subr.bf16.mxu0 %v5881
    %6819 = vmatpush2.bf16.msra.mxu0 %v5880
    %6820 = vmatprep.subr.bf16.mxu0 %v5873
    %6821 = vmatpush2.bf16.msra.mxu0 %v5872
    %6822 = vmatprep.subr.bf16.mxu0 %v5865
    %6823 = vmatpush2.bf16.msra.mxu0 %v5864
    %6824 = vmatprep.subr.bf16.mxu0 %v5857
    %6825 = vmatpush2.bf16.msra.mxu0 %v5856
    %6826 = vmatprep.subr.bf16.mxu0 %v5849
    %6827 = vmatpush2.bf16.msra.mxu0 %v5848
    %6828 = vmatprep.mubr.bf16.mxu0 %v3433
    %6829 = vmatmul.mubr.bf16.gmra.mxu0 %v3432
    %v6830 = vpop.f32.mrf.mxu0
    %v6831 = vadd.f32 %v6790, %v6830
    %v6832 = vpop.f32.mrf.mxu0
    %v6833 = vadd.f32 %v6792, %v6832
    %v6834 = vpop.f32.mrf.mxu0
    %v6835 = vpop.f32.mrf.mxu0
    %6836 = vdwg.mxu0
    %6837 = vmatprep.subr.bf16.mxu0 %v5969
    %6838 = vmatpush1.bf16.msra.mxu0 %v5968
    %6839 = vmatprep.subr.bf16.mxu0 %v5961
    %6840 = vmatpush1.bf16.msra.mxu0 %v5960
    %6841 = vmatprep.subr.bf16.mxu0 %v5953
    %6842 = vmatpush1.bf16.msra.mxu0 %v5952
    %6843 = vmatprep.subr.bf16.mxu0 %v5945
    %6844 = vmatpush1.bf16.msra.mxu0 %v5944
    %6845 = vmatprep.subr.bf16.mxu0 %v5937
    %6846 = vmatpush1.bf16.msra.mxu0 %v5936
    %6847 = vmatprep.subr.bf16.mxu0 %v5929
    %6848 = vmatpush1.bf16.msra.mxu0 %v5928
    %6849 = vmatprep.subr.bf16.mxu0 %v5921
    %6850 = vmatpush1.bf16.msra.mxu0 %v5920
    %6851 = vmatprep.subr.bf16.mxu0 %v5913
    %6852 = vmatpush1.bf16.msra.mxu0 %v5912
    %6853 = vmatprep.subr.bf16.mxu0 %v6033
    %6854 = vmatpush2.bf16.msra.mxu0 %v6032
    %6855 = vmatprep.subr.bf16.mxu0 %v6025
    %6856 = vmatpush2.bf16.msra.mxu0 %v6024
    %6857 = vmatprep.subr.bf16.mxu0 %v6017
    %6858 = vmatpush2.bf16.msra.mxu0 %v6016
    %6859 = vmatprep.subr.bf16.mxu0 %v6009
    %6860 = vmatpush2.bf16.msra.mxu0 %v6008
    %6861 = vmatprep.subr.bf16.mxu0 %v6001
    %6862 = vmatpush2.bf16.msra.mxu0 %v6000
    %6863 = vmatprep.subr.bf16.mxu0 %v5993
    %6864 = vmatpush2.bf16.msra.mxu0 %v5992
    %6865 = vmatprep.subr.bf16.mxu0 %v5985
    %6866 = vmatpush2.bf16.msra.mxu0 %v5984
    %6867 = vmatprep.subr.bf16.mxu0 %v5977
    %6868 = vmatpush2.bf16.msra.mxu0 %v5976
    %6869 = vmatprep.mubr.bf16.mxu0 %v3435
    %6870 = vmatmul.mubr.bf16.gmra.mxu0 %v3434
    %v6871 = vpop.f32.mrf.mxu0
    %v6872 = vadd.f32 %v6831, %v6871
    %v6873 = vpop.f32.mrf.mxu0
    %v6874 = vadd.f32 %v6833, %v6873
    %v6875 = vpop.f32.mrf.mxu0
    %v6876 = vpop.f32.mrf.mxu0
    %6877 = vdwg.mxu0
    %6878 = vmatprep.subr.bf16.mxu0 %v5587
    %6879 = vmatpush1.bf16.msra.mxu0 %v5586
    %6880 = vmatprep.subr.bf16.mxu0 %v5579
    %6881 = vmatpush1.bf16.msra.mxu0 %v5578
    %6882 = vmatprep.subr.bf16.mxu0 %v5571
    %6883 = vmatpush1.bf16.msra.mxu0 %v5570
    %6884 = vmatprep.subr.bf16.mxu0 %v5563
    %6885 = vmatpush1.bf16.msra.mxu0 %v5562
    %6886 = vmatprep.subr.bf16.mxu0 %v5555
    %6887 = vmatpush1.bf16.msra.mxu0 %v5554
    %6888 = vmatprep.subr.bf16.mxu0 %v5547
    %6889 = vmatpush1.bf16.msra.mxu0 %v5546
    %6890 = vmatprep.subr.bf16.mxu0 %v5539
    %6891 = vmatpush1.bf16.msra.mxu0 %v5538
    %6892 = vmatprep.subr.bf16.mxu0 %v5531
    %6893 = vmatpush1.bf16.msra.mxu0 %v5530
    %6894 = vmatprep.subr.bf16.mxu0 %v5651
    %6895 = vmatpush2.bf16.msra.mxu0 %v5650
    %6896 = vmatprep.subr.bf16.mxu0 %v5643
    %6897 = vmatpush2.bf16.msra.mxu0 %v5642
    %6898 = vmatprep.subr.bf16.mxu0 %v5635
    %6899 = vmatpush2.bf16.msra.mxu0 %v5634
    %6900 = vmatprep.subr.bf16.mxu0 %v5627
    %6901 = vmatpush2.bf16.msra.mxu0 %v5626
    %6902 = vmatprep.subr.bf16.mxu0 %v5619
    %6903 = vmatpush2.bf16.msra.mxu0 %v5618
    %6904 = vmatprep.subr.bf16.mxu0 %v5611
    %6905 = vmatpush2.bf16.msra.mxu0 %v5610
    %6906 = vmatprep.subr.bf16.mxu0 %v5603
    %6907 = vmatpush2.bf16.msra.mxu0 %v5602
    %6908 = vmatprep.subr.bf16.mxu0 %v5595
    %6909 = vmatpush2.bf16.msra.mxu0 %v5594
    %6910 = vmatprep.mubr.bf16.mxu0 %v3429
    %6911 = vmatmul.mubr.bf16.gmra.mxu0 %v3428
    %v6912 = vpop.f32.mrf.mxu0
    %v6913 = vadd.f32 %v3969, %v6912
    %v6914 = vpop.f32.mrf.mxu0
    %v6915 = vadd.f32 %v3973, %v6914
    %v6916 = vpop.f32.mrf.mxu0
    %v6917 = vpop.f32.mrf.mxu0
    %6918 = vdwg.mxu0
    %6919 = vmatprep.subr.bf16.mxu0 %v5715
    %6920 = vmatpush1.bf16.msra.mxu0 %v5714
    %6921 = vmatprep.subr.bf16.mxu0 %v5707
    %6922 = vmatpush1.bf16.msra.mxu0 %v5706
    %6923 = vmatprep.subr.bf16.mxu0 %v5699
    %6924 = vmatpush1.bf16.msra.mxu0 %v5698
    %6925 = vmatprep.subr.bf16.mxu0 %v5691
    %6926 = vmatpush1.bf16.msra.mxu0 %v5690
    %6927 = vmatprep.subr.bf16.mxu0 %v5683
    %6928 = vmatpush1.bf16.msra.mxu0 %v5682
    %6929 = vmatprep.subr.bf16.mxu0 %v5675
    %6930 = vmatpush1.bf16.msra.mxu0 %v5674
    %6931 = vmatprep.subr.bf16.mxu0 %v5667
    %6932 = vmatpush1.bf16.msra.mxu0 %v5666
    %6933 = vmatprep.subr.bf16.mxu0 %v5659
    %6934 = vmatpush1.bf16.msra.mxu0 %v5658
    %6935 = vmatprep.subr.bf16.mxu0 %v5779
    %6936 = vmatpush2.bf16.msra.mxu0 %v5778
    %6937 = vmatprep.subr.bf16.mxu0 %v5771
    %6938 = vmatpush2.bf16.msra.mxu0 %v5770
    %6939 = vmatprep.subr.bf16.mxu0 %v5763
    %6940 = vmatpush2.bf16.msra.mxu0 %v5762
    %6941 = vmatprep.subr.bf16.mxu0 %v5755
    %6942 = vmatpush2.bf16.msra.mxu0 %v5754
    %6943 = vmatprep.subr.bf16.mxu0 %v5747
    %6944 = vmatpush2.bf16.msra.mxu0 %v5746
    %6945 = vmatprep.subr.bf16.mxu0 %v5739
    %6946 = vmatpush2.bf16.msra.mxu0 %v5738
    %6947 = vmatprep.subr.bf16.mxu0 %v5731
    %6948 = vmatpush2.bf16.msra.mxu0 %v5730
    %6949 = vmatprep.subr.bf16.mxu0 %v5723
    %6950 = vmatpush2.bf16.msra.mxu0 %v5722
    %6951 = vmatprep.mubr.bf16.mxu0 %v3431
    %6952 = vmatmul.mubr.bf16.gmra.mxu0 %v3430
    %v6953 = vpop.f32.mrf.mxu0
    %v6954 = vadd.f32 %v6913, %v6953
    %v6955 = vpop.f32.mrf.mxu0
    %v6956 = vadd.f32 %v6915, %v6955
    %v6957 = vpop.f32.mrf.mxu0
    %v6958 = vpop.f32.mrf.mxu0
    %6959 = vdwg.mxu0
    %6960 = vmatprep.subr.bf16.mxu0 %v5843
    %6961 = vmatpush1.bf16.msra.mxu0 %v5842
    %6962 = vmatprep.subr.bf16.mxu0 %v5835
    %6963 = vmatpush1.bf16.msra.mxu0 %v5834
    %6964 = vmatprep.subr.bf16.mxu0 %v5827
    %6965 = vmatpush1.bf16.msra.mxu0 %v5826
    %6966 = vmatprep.subr.bf16.mxu0 %v5819
    %6967 = vmatpush1.bf16.msra.mxu0 %v5818
    %6968 = vmatprep.subr.bf16.mxu0 %v5811
    %6969 = vmatpush1.bf16.msra.mxu0 %v5810
    %6970 = vmatprep.subr.bf16.mxu0 %v5803
    %6971 = vmatpush1.bf16.msra.mxu0 %v5802
    %6972 = vmatprep.subr.bf16.mxu0 %v5795
    %6973 = vmatpush1.bf16.msra.mxu0 %v5794
    %6974 = vmatprep.subr.bf16.mxu0 %v5787
    %6975 = vmatpush1.bf16.msra.mxu0 %v5786
    %6976 = vmatprep.subr.bf16.mxu0 %v5907
    %6977 = vmatpush2.bf16.msra.mxu0 %v5906
    %6978 = vmatprep.subr.bf16.mxu0 %v5899
    %6979 = vmatpush2.bf16.msra.mxu0 %v5898
    %6980 = vmatprep.subr.bf16.mxu0 %v5891
    %6981 = vmatpush2.bf16.msra.mxu0 %v5890
    %6982 = vmatprep.subr.bf16.mxu0 %v5883
    %6983 = vmatpush2.bf16.msra.mxu0 %v5882
    %6984 = vmatprep.subr.bf16.mxu0 %v5875
    %6985 = vmatpush2.bf16.msra.mxu0 %v5874
    %6986 = vmatprep.subr.bf16.mxu0 %v5867
    %6987 = vmatpush2.bf16.msra.mxu0 %v5866
    %6988 = vmatprep.subr.bf16.mxu0 %v5859
    %6989 = vmatpush2.bf16.msra.mxu0 %v5858
    %6990 = vmatprep.subr.bf16.mxu0 %v5851
    %6991 = vmatpush2.bf16.msra.mxu0 %v5850
    %6992 = vmatprep.mubr.bf16.mxu0 %v3433
    %6993 = vmatmul.mubr.bf16.gmra.mxu0 %v3432
    %v6994 = vpop.f32.mrf.mxu0
    %v6995 = vadd.f32 %v6954, %v6994
    %v6996 = vpop.f32.mrf.mxu0
    %v6997 = vadd.f32 %v6956, %v6996
    %v6998 = vpop.f32.mrf.mxu0
    %v6999 = vpop.f32.mrf.mxu0
    %7000 = vdwg.mxu0
    %7001 = vmatprep.subr.bf16.mxu0 %v5971
    %7002 = vmatpush1.bf16.msra.mxu0 %v5970
    %7003 = vmatprep.subr.bf16.mxu0 %v5963
    %7004 = vmatpush1.bf16.msra.mxu0 %v5962
    %7005 = vmatprep.subr.bf16.mxu0 %v5955
    %7006 = vmatpush1.bf16.msra.mxu0 %v5954
    %7007 = vmatprep.subr.bf16.mxu0 %v5947
    %7008 = vmatpush1.bf16.msra.mxu0 %v5946
    %7009 = vmatprep.subr.bf16.mxu0 %v5939
    %7010 = vmatpush1.bf16.msra.mxu0 %v5938
    %7011 = vmatprep.subr.bf16.mxu0 %v5931
    %7012 = vmatpush1.bf16.msra.mxu0 %v5930
    %7013 = vmatprep.subr.bf16.mxu0 %v5923
    %7014 = vmatpush1.bf16.msra.mxu0 %v5922
    %7015 = vmatprep.subr.bf16.mxu0 %v5915
    %7016 = vmatpush1.bf16.msra.mxu0 %v5914
    %7017 = vmatprep.subr.bf16.mxu0 %v6035
    %7018 = vmatpush2.bf16.msra.mxu0 %v6034
    %7019 = vmatprep.subr.bf16.mxu0 %v6027
    %7020 = vmatpush2.bf16.msra.mxu0 %v6026
    %7021 = vmatprep.subr.bf16.mxu0 %v6019
    %7022 = vmatpush2.bf16.msra.mxu0 %v6018
    %7023 = vmatprep.subr.bf16.mxu0 %v6011
    %7024 = vmatpush2.bf16.msra.mxu0 %v6010
    %7025 = vmatprep.subr.bf16.mxu0 %v6003
    %7026 = vmatpush2.bf16.msra.mxu0 %v6002
    %7027 = vmatprep.subr.bf16.mxu0 %v5995
    %7028 = vmatpush2.bf16.msra.mxu0 %v5994
    %7029 = vmatprep.subr.bf16.mxu0 %v5987
    %7030 = vmatpush2.bf16.msra.mxu0 %v5986
    %7031 = vmatprep.subr.bf16.mxu0 %v5979
    %7032 = vmatpush2.bf16.msra.mxu0 %v5978
    %7033 = vmatprep.mubr.bf16.mxu0 %v3435
    %7034 = vmatmul.mubr.bf16.gmra.mxu0 %v3434
    %v7035 = vpop.f32.mrf.mxu0
    %v7036 = vadd.f32 %v6995, %v7035
    %v7037 = vpop.f32.mrf.mxu0
    %v7038 = vadd.f32 %v6997, %v7037
    %v7039 = vpop.f32.mrf.mxu0
    %v7040 = vpop.f32.mrf.mxu0
    %7041 = vdwg.mxu0
    %7042 = vmatprep.subr.bf16.mxu0 %v5589
    %7043 = vmatpush1.bf16.msra.mxu0 %v5588
    %7044 = vmatprep.subr.bf16.mxu0 %v5581
    %7045 = vmatpush1.bf16.msra.mxu0 %v5580
    %7046 = vmatprep.subr.bf16.mxu0 %v5573
    %7047 = vmatpush1.bf16.msra.mxu0 %v5572
    %7048 = vmatprep.subr.bf16.mxu0 %v5565
    %7049 = vmatpush1.bf16.msra.mxu0 %v5564
    %7050 = vmatprep.subr.bf16.mxu0 %v5557
    %7051 = vmatpush1.bf16.msra.mxu0 %v5556
    %7052 = vmatprep.subr.bf16.mxu0 %v5549
    %7053 = vmatpush1.bf16.msra.mxu0 %v5548
    %7054 = vmatprep.subr.bf16.mxu0 %v5541
    %7055 = vmatpush1.bf16.msra.mxu0 %v5540
    %7056 = vmatprep.subr.bf16.mxu0 %v5533
    %7057 = vmatpush1.bf16.msra.mxu0 %v5532
    %7058 = vmatprep.subr.bf16.mxu0 %v5653
    %7059 = vmatpush2.bf16.msra.mxu0 %v5652
    %7060 = vmatprep.subr.bf16.mxu0 %v5645
    %7061 = vmatpush2.bf16.msra.mxu0 %v5644
    %7062 = vmatprep.subr.bf16.mxu0 %v5637
    %7063 = vmatpush2.bf16.msra.mxu0 %v5636
    %7064 = vmatprep.subr.bf16.mxu0 %v5629
    %7065 = vmatpush2.bf16.msra.mxu0 %v5628
    %7066 = vmatprep.subr.bf16.mxu0 %v5621
    %7067 = vmatpush2.bf16.msra.mxu0 %v5620
    %7068 = vmatprep.subr.bf16.mxu0 %v5613
    %7069 = vmatpush2.bf16.msra.mxu0 %v5612
    %7070 = vmatprep.subr.bf16.mxu0 %v5605
    %7071 = vmatpush2.bf16.msra.mxu0 %v5604
    %7072 = vmatprep.subr.bf16.mxu0 %v5597
    %7073 = vmatpush2.bf16.msra.mxu0 %v5596
    %7074 = vmatprep.mubr.bf16.mxu0 %v3429
    %7075 = vmatmul.mubr.bf16.gmra.mxu0 %v3428
    %v7076 = vpop.f32.mrf.mxu0
    %v7077 = vadd.f32 %v3977, %v7076
    %v7078 = vpop.f32.mrf.mxu0
    %v7079 = vadd.f32 %v3981, %v7078
    %v7080 = vpop.f32.mrf.mxu0
    %v7081 = vpop.f32.mrf.mxu0
    %7082 = vdwg.mxu0
    %7083 = vmatprep.subr.bf16.mxu0 %v5717
    %7084 = vmatpush1.bf16.msra.mxu0 %v5716
    %7085 = vmatprep.subr.bf16.mxu0 %v5709
    %7086 = vmatpush1.bf16.msra.mxu0 %v5708
    %7087 = vmatprep.subr.bf16.mxu0 %v5701
    %7088 = vmatpush1.bf16.msra.mxu0 %v5700
    %7089 = vmatprep.subr.bf16.mxu0 %v5693
    %7090 = vmatpush1.bf16.msra.mxu0 %v5692
    %7091 = vmatprep.subr.bf16.mxu0 %v5685
    %7092 = vmatpush1.bf16.msra.mxu0 %v5684
    %7093 = vmatprep.subr.bf16.mxu0 %v5677
    %7094 = vmatpush1.bf16.msra.mxu0 %v5676
    %7095 = vmatprep.subr.bf16.mxu0 %v5669
    %7096 = vmatpush1.bf16.msra.mxu0 %v5668
    %7097 = vmatprep.subr.bf16.mxu0 %v5661
    %7098 = vmatpush1.bf16.msra.mxu0 %v5660
    %7099 = vmatprep.subr.bf16.mxu0 %v5781
    %7100 = vmatpush2.bf16.msra.mxu0 %v5780
    %7101 = vmatprep.subr.bf16.mxu0 %v5773
    %7102 = vmatpush2.bf16.msra.mxu0 %v5772
    %7103 = vmatprep.subr.bf16.mxu0 %v5765
    %7104 = vmatpush2.bf16.msra.mxu0 %v5764
    %7105 = vmatprep.subr.bf16.mxu0 %v5757
    %7106 = vmatpush2.bf16.msra.mxu0 %v5756
    %7107 = vmatprep.subr.bf16.mxu0 %v5749
    %7108 = vmatpush2.bf16.msra.mxu0 %v5748
    %7109 = vmatprep.subr.bf16.mxu0 %v5741
    %7110 = vmatpush2.bf16.msra.mxu0 %v5740
    %7111 = vmatprep.subr.bf16.mxu0 %v5733
    %7112 = vmatpush2.bf16.msra.mxu0 %v5732
    %7113 = vmatprep.subr.bf16.mxu0 %v5725
    %7114 = vmatpush2.bf16.msra.mxu0 %v5724
    %7115 = vmatprep.mubr.bf16.mxu0 %v3431
    %7116 = vmatmul.mubr.bf16.gmra.mxu0 %v3430
    %v7117 = vpop.f32.mrf.mxu0
    %v7118 = vadd.f32 %v7077, %v7117
    %v7119 = vpop.f32.mrf.mxu0
    %v7120 = vadd.f32 %v7079, %v7119
    %v7121 = vpop.f32.mrf.mxu0
    %v7122 = vpop.f32.mrf.mxu0
    %7123 = vdwg.mxu0
    %7124 = vmatprep.subr.bf16.mxu0 %v5845
    %7125 = vmatpush1.bf16.msra.mxu0 %v5844
    %7126 = vmatprep.subr.bf16.mxu0 %v5837
    %7127 = vmatpush1.bf16.msra.mxu0 %v5836
    %7128 = vmatprep.subr.bf16.mxu0 %v5829
    %7129 = vmatpush1.bf16.msra.mxu0 %v5828
    %7130 = vmatprep.subr.bf16.mxu0 %v5821
    %7131 = vmatpush1.bf16.msra.mxu0 %v5820
    %7132 = vmatprep.subr.bf16.mxu0 %v5813
    %7133 = vmatpush1.bf16.msra.mxu0 %v5812
    %7134 = vmatprep.subr.bf16.mxu0 %v5805
    %7135 = vmatpush1.bf16.msra.mxu0 %v5804
    %7136 = vmatprep.subr.bf16.mxu0 %v5797
    %7137 = vmatpush1.bf16.msra.mxu0 %v5796
    %7138 = vmatprep.subr.bf16.mxu0 %v5789
    %7139 = vmatpush1.bf16.msra.mxu0 %v5788
    %7140 = vmatprep.subr.bf16.mxu0 %v5909
    %7141 = vmatpush2.bf16.msra.mxu0 %v5908
    %7142 = vmatprep.subr.bf16.mxu0 %v5901
    %7143 = vmatpush2.bf16.msra.mxu0 %v5900
    %7144 = vmatprep.subr.bf16.mxu0 %v5893
    %7145 = vmatpush2.bf16.msra.mxu0 %v5892
    %7146 = vmatprep.subr.bf16.mxu0 %v5885
    %7147 = vmatpush2.bf16.msra.mxu0 %v5884
    %7148 = vmatprep.subr.bf16.mxu0 %v5877
    %7149 = vmatpush2.bf16.msra.mxu0 %v5876
    %7150 = vmatprep.subr.bf16.mxu0 %v5869
    %7151 = vmatpush2.bf16.msra.mxu0 %v5868
    %7152 = vmatprep.subr.bf16.mxu0 %v5861
    %7153 = vmatpush2.bf16.msra.mxu0 %v5860
    %7154 = vmatprep.subr.bf16.mxu0 %v5853
    %7155 = vmatpush2.bf16.msra.mxu0 %v5852
    %7156 = vmatprep.mubr.bf16.mxu0 %v3433
    %7157 = vmatmul.mubr.bf16.gmra.mxu0 %v3432
    %v7158 = vpop.f32.mrf.mxu0
    %v7159 = vadd.f32 %v7118, %v7158
    %v7160 = vpop.f32.mrf.mxu0
    %v7161 = vadd.f32 %v7120, %v7160
    %v7162 = vpop.f32.mrf.mxu0
    %v7163 = vpop.f32.mrf.mxu0
    %7164 = vdwg.mxu0
    %7165 = vmatprep.subr.bf16.mxu0 %v5973
    %7166 = vmatpush1.bf16.msra.mxu0 %v5972
    %7167 = vmatprep.subr.bf16.mxu0 %v5965
    %7168 = vmatpush1.bf16.msra.mxu0 %v5964
    %7169 = vmatprep.subr.bf16.mxu0 %v5957
    %7170 = vmatpush1.bf16.msra.mxu0 %v5956
    %7171 = vmatprep.subr.bf16.mxu0 %v5949
    %7172 = vmatpush1.bf16.msra.mxu0 %v5948
    %7173 = vmatprep.subr.bf16.mxu0 %v5941
    %7174 = vmatpush1.bf16.msra.mxu0 %v5940
    %7175 = vmatprep.subr.bf16.mxu0 %v5933
    %7176 = vmatpush1.bf16.msra.mxu0 %v5932
    %7177 = vmatprep.subr.bf16.mxu0 %v5925
    %7178 = vmatpush1.bf16.msra.mxu0 %v5924
    %7179 = vmatprep.subr.bf16.mxu0 %v5917
    %7180 = vmatpush1.bf16.msra.mxu0 %v5916
    %7181 = vmatprep.subr.bf16.mxu0 %v6037
    %7182 = vmatpush2.bf16.msra.mxu0 %v6036
    %7183 = vmatprep.subr.bf16.mxu0 %v6029
    %7184 = vmatpush2.bf16.msra.mxu0 %v6028
    %7185 = vmatprep.subr.bf16.mxu0 %v6021
    %7186 = vmatpush2.bf16.msra.mxu0 %v6020
    %7187 = vmatprep.subr.bf16.mxu0 %v6013
    %7188 = vmatpush2.bf16.msra.mxu0 %v6012
    %7189 = vmatprep.subr.bf16.mxu0 %v6005
    %7190 = vmatpush2.bf16.msra.mxu0 %v6004
    %7191 = vmatprep.subr.bf16.mxu0 %v5997
    %7192 = vmatpush2.bf16.msra.mxu0 %v5996
    %7193 = vmatprep.subr.bf16.mxu0 %v5989
    %7194 = vmatpush2.bf16.msra.mxu0 %v5988
    %7195 = vmatprep.subr.bf16.mxu0 %v5981
    %7196 = vmatpush2.bf16.msra.mxu0 %v5980
    %7197 = vmatprep.mubr.bf16.mxu0 %v3435
    %7198 = vmatmul.mubr.bf16.gmra.mxu0 %v3434
    %v7199 = vpop.f32.mrf.mxu0
    %v7200 = vadd.f32 %v7159, %v7199
    %v7201 = vpop.f32.mrf.mxu0
    %v7202 = vadd.f32 %v7161, %v7201
    %v7203 = vpop.f32.mrf.mxu0
    %v7204 = vpop.f32.mrf.mxu0
    %7205 = vdwg.mxu0
    %v7206 = vmax.f32 %v6708, 0.0
    %v7207 = vmax.f32 %v6710, 0.0
    %v7208 = vmax.f32 %v6872, 0.0
    %v7209 = vmax.f32 %v6874, 0.0
    %v7210 = vmax.f32 %v7036, 0.0
    %v7211 = vmax.f32 %v7038, 0.0
    %v7212 = vmax.f32 %v7200, 0.0
    %v7213 = vmax.f32 %v7202, 0.0
    %v7214 = vpack.c.bf16 %v7206, %v7206
    %v7215 = vpack.c.bf16 %v7207, %v7207
    %v7216 = vpack.c.bf16 %v7208, %v7208
    %v7217 = vpack.c.bf16 %v7209, %v7209
    %v7218 = vpack.c.bf16 %v7210, %v7210
    %v7219 = vpack.c.bf16 %v7211, %v7211
    %v7220 = vpack.c.bf16 %v7212, %v7212
    %v7221 = vpack.c.bf16 %v7213, %v7213
    %v7222 = vld [vmem:[#allocation38] sm:$0xff]
    %v7223 = vld [vmem:[#allocation38 + $0x8] sm:$0xff]
    %v7224 = vld [vmem:[#allocation38 + $0x10] sm:$0xff]
    %v7225 = vld [vmem:[#allocation38 + $0x18] sm:$0xff]
    %v7226 = vld [vmem:[#allocation38 + $0x20] sm:$0xff]
    %v7227 = vld [vmem:[#allocation38 + $0x28] sm:$0xff]
    %v7228 = vld [vmem:[#allocation38 + $0x30] sm:$0xff]
    %v7229 = vld [vmem:[#allocation38 + $0x38] sm:$0xff]
    %v7230 = vld [vmem:[#allocation38 + $0x40] sm:$0xff]
    %v7231 = vld [vmem:[#allocation38 + $0x48] sm:$0xff]
    %v7232 = vld [vmem:[#allocation38 + $0x50] sm:$0xff]
    %v7233 = vld [vmem:[#allocation38 + $0x58] sm:$0xff]
    %v7234 = vld [vmem:[#allocation38 + $0x60] sm:$0xff]
    %v7235 = vld [vmem:[#allocation38 + $0x68] sm:$0xff]
    %v7236 = vld [vmem:[#allocation38 + $0x70] sm:$0xff]
    %v7237 = vld [vmem:[#allocation38 + $0x78] sm:$0xff]
    %v7238 = vld [vmem:[#allocation38 + $0x80] sm:$0xff]
    %v7239 = vld [vmem:[#allocation38 + $0x88] sm:$0xff]
    %v7240 = vld [vmem:[#allocation38 + $0x90] sm:$0xff]
    %v7241 = vld [vmem:[#allocation38 + $0x98] sm:$0xff]
    %v7242 = vld [vmem:[#allocation38 + $0xa0] sm:$0xff]
    %v7243 = vld [vmem:[#allocation38 + $0xa8] sm:$0xff]
    %v7244 = vld [vmem:[#allocation38 + $0xb0] sm:$0xff]
    %v7245 = vld [vmem:[#allocation38 + $0xb8] sm:$0xff]
    %v7246 = vld [vmem:[#allocation38 + $0xc0] sm:$0xff]
    %v7247 = vld [vmem:[#allocation38 + $0xc8] sm:$0xff]
    %v7248 = vld [vmem:[#allocation38 + $0xd0] sm:$0xff]
    %v7249 = vld [vmem:[#allocation38 + $0xd8] sm:$0xff]
    %v7250 = vld [vmem:[#allocation38 + $0xe0] sm:$0xff]
    %v7251 = vld [vmem:[#allocation38 + $0xe8] sm:$0xff]
    %v7252 = vld [vmem:[#allocation38 + $0xf0] sm:$0xff]
    %v7253 = vld [vmem:[#allocation38 + $0xf8] sm:$0xff]
    %v7254 = vld [vmem:[#allocation38 + $0x100] sm:$0xff]
    %v7255 = vld [vmem:[#allocation38 + $0x108] sm:$0xff]
    %v7256 = vld [vmem:[#allocation38 + $0x110] sm:$0xff]
    %v7257 = vld [vmem:[#allocation38 + $0x118] sm:$0xff]
    %v7258 = vld [vmem:[#allocation38 + $0x120] sm:$0xff]
    %v7259 = vld [vmem:[#allocation38 + $0x128] sm:$0xff]
    %v7260 = vld [vmem:[#allocation38 + $0x130] sm:$0xff]
    %v7261 = vld [vmem:[#allocation38 + $0x138] sm:$0xff]
    %v7262 = vld [vmem:[#allocation38 + $0x140] sm:$0xff]
    %v7263 = vld [vmem:[#allocation38 + $0x148] sm:$0xff]
    %v7264 = vld [vmem:[#allocation38 + $0x150] sm:$0xff]
    %v7265 = vld [vmem:[#allocation38 + $0x158] sm:$0xff]
    %v7266 = vld [vmem:[#allocation38 + $0x160] sm:$0xff]
    %v7267 = vld [vmem:[#allocation38 + $0x168] sm:$0xff]
    %v7268 = vld [vmem:[#allocation38 + $0x170] sm:$0xff]
    %v7269 = vld [vmem:[#allocation38 + $0x178] sm:$0xff]
    %v7270 = vld [vmem:[#allocation38 + $0x180] sm:$0xff]
    %v7271 = vld [vmem:[#allocation38 + $0x188] sm:$0xff]
    %v7272 = vld [vmem:[#allocation38 + $0x190] sm:$0xff]
    %v7273 = vld [vmem:[#allocation38 + $0x198] sm:$0xff]
    %v7274 = vld [vmem:[#allocation38 + $0x1a0] sm:$0xff]
    %v7275 = vld [vmem:[#allocation38 + $0x1a8] sm:$0xff]
    %v7276 = vld [vmem:[#allocation38 + $0x1b0] sm:$0xff]
    %v7277 = vld [vmem:[#allocation38 + $0x1b8] sm:$0xff]
    %v7278 = vld [vmem:[#allocation38 + $0x1c0] sm:$0xff]
    %v7279 = vld [vmem:[#allocation38 + $0x1c8] sm:$0xff]
    %v7280 = vld [vmem:[#allocation38 + $0x1d0] sm:$0xff]
    %v7281 = vld [vmem:[#allocation38 + $0x1d8] sm:$0xff]
    %v7282 = vld [vmem:[#allocation38 + $0x1e0] sm:$0xff]
    %v7283 = vld [vmem:[#allocation38 + $0x1e8] sm:$0xff]
    %v7284 = vld [vmem:[#allocation38 + $0x1f0] sm:$0xff]
    %v7285 = vld [vmem:[#allocation38 + $0x1f8] sm:$0xff]
    %v7286 = vld [vmem:[#allocation38 + $0x200] sm:$0xff]
    %v7287 = vld [vmem:[#allocation38 + $0x208] sm:$0xff]
    %v7288 = vld [vmem:[#allocation38 + $0x210] sm:$0xff]
    %v7289 = vld [vmem:[#allocation38 + $0x218] sm:$0xff]
    %v7290 = vld [vmem:[#allocation38 + $0x220] sm:$0xff]
    %v7291 = vld [vmem:[#allocation38 + $0x228] sm:$0xff]
    %v7292 = vld [vmem:[#allocation38 + $0x230] sm:$0xff]
    %v7293 = vld [vmem:[#allocation38 + $0x238] sm:$0xff]
    %v7294 = vld [vmem:[#allocation38 + $0x240] sm:$0xff]
    %v7295 = vld [vmem:[#allocation38 + $0x248] sm:$0xff]
    %v7296 = vld [vmem:[#allocation38 + $0x250] sm:$0xff]
    %v7297 = vld [vmem:[#allocation38 + $0x258] sm:$0xff]
    %v7298 = vld [vmem:[#allocation38 + $0x260] sm:$0xff]
    %v7299 = vld [vmem:[#allocation38 + $0x268] sm:$0xff]
    %v7300 = vld [vmem:[#allocation38 + $0x270] sm:$0xff]
    %v7301 = vld [vmem:[#allocation38 + $0x278] sm:$0xff]
    %v7302 = vld [vmem:[#allocation38 + $0x280] sm:$0xff]
    %v7303 = vld [vmem:[#allocation38 + $0x288] sm:$0xff]
    %v7304 = vld [vmem:[#allocation38 + $0x290] sm:$0xff]
    %v7305 = vld [vmem:[#allocation38 + $0x298] sm:$0xff]
    %v7306 = vld [vmem:[#allocation38 + $0x2a0] sm:$0xff]
    %v7307 = vld [vmem:[#allocation38 + $0x2a8] sm:$0xff]
    %v7308 = vld [vmem:[#allocation38 + $0x2b0] sm:$0xff]
    %v7309 = vld [vmem:[#allocation38 + $0x2b8] sm:$0xff]
    %v7310 = vld [vmem:[#allocation38 + $0x2c0] sm:$0xff]
    %v7311 = vld [vmem:[#allocation38 + $0x2c8] sm:$0xff]
    %v7312 = vld [vmem:[#allocation38 + $0x2d0] sm:$0xff]
    %v7313 = vld [vmem:[#allocation38 + $0x2d8] sm:$0xff]
    %v7314 = vld [vmem:[#allocation38 + $0x2e0] sm:$0xff]
    %v7315 = vld [vmem:[#allocation38 + $0x2e8] sm:$0xff]
    %v7316 = vld [vmem:[#allocation38 + $0x2f0] sm:$0xff]
    %v7317 = vld [vmem:[#allocation38 + $0x2f8] sm:$0xff]
    %v7318 = vld [vmem:[#allocation38 + $0x300] sm:$0xff]
    %v7319 = vld [vmem:[#allocation38 + $0x308] sm:$0xff]
    %v7320 = vld [vmem:[#allocation38 + $0x310] sm:$0xff]
    %v7321 = vld [vmem:[#allocation38 + $0x318] sm:$0xff]
    %v7322 = vld [vmem:[#allocation38 + $0x320] sm:$0xff]
    %v7323 = vld [vmem:[#allocation38 + $0x328] sm:$0xff]
    %v7324 = vld [vmem:[#allocation38 + $0x330] sm:$0xff]
    %v7325 = vld [vmem:[#allocation38 + $0x338] sm:$0xff]
    %v7326 = vld [vmem:[#allocation38 + $0x340] sm:$0xff]
    %v7327 = vld [vmem:[#allocation38 + $0x348] sm:$0xff]
    %v7328 = vld [vmem:[#allocation38 + $0x350] sm:$0xff]
    %v7329 = vld [vmem:[#allocation38 + $0x358] sm:$0xff]
    %v7330 = vld [vmem:[#allocation38 + $0x360] sm:$0xff]
    %v7331 = vld [vmem:[#allocation38 + $0x368] sm:$0xff]
    %v7332 = vld [vmem:[#allocation38 + $0x370] sm:$0xff]
    %v7333 = vld [vmem:[#allocation38 + $0x378] sm:$0xff]
    %v7334 = vld [vmem:[#allocation38 + $0x380] sm:$0xff]
    %v7335 = vld [vmem:[#allocation38 + $0x388] sm:$0xff]
    %v7336 = vld [vmem:[#allocation38 + $0x390] sm:$0xff]
    %v7337 = vld [vmem:[#allocation38 + $0x398] sm:$0xff]
    %v7338 = vld [vmem:[#allocation38 + $0x3a0] sm:$0xff]
    %v7339 = vld [vmem:[#allocation38 + $0x3a8] sm:$0xff]
    %v7340 = vld [vmem:[#allocation38 + $0x3b0] sm:$0xff]
    %v7341 = vld [vmem:[#allocation38 + $0x3b8] sm:$0xff]
    %v7342 = vld [vmem:[#allocation38 + $0x3c0] sm:$0xff]
    %v7343 = vld [vmem:[#allocation38 + $0x3c8] sm:$0xff]
    %v7344 = vld [vmem:[#allocation38 + $0x3d0] sm:$0xff]
    %v7345 = vld [vmem:[#allocation38 + $0x3d8] sm:$0xff]
    %v7346 = vld [vmem:[#allocation38 + $0x3e0] sm:$0xff]
    %v7347 = vld [vmem:[#allocation38 + $0x3e8] sm:$0xff]
    %v7348 = vld [vmem:[#allocation38 + $0x3f0] sm:$0xff]
    %v7349 = vld [vmem:[#allocation38 + $0x3f8] sm:$0xff]
    %v7350 = vld [vmem:[#allocation40] sm:$0x3]
    %v7352 = vlaneseq
    %v7353 = vshrl.u32 %v7352, 7
    %v7354 = vsub.s32 0, %v7353
    %v7355 = vrot.slane %v7350, %v7354
    %v7356 = vlaneseq
    %v7357 = vshrl.u32 %v7356, 7
    %v7358 = vsub.s32 1, %v7357
    %v7359 = vrot.slane %v7350, %v7358
    %v7490 = vunpack.c.l.b16 %v7222
    %v7491 = vunpack.c.h.b16 %v7222
    %v7492 = vunpack.c.l.b16 %v7223
    %v7493 = vunpack.c.h.b16 %v7223
    %v7494 = vunpack.c.l.b16 %v7224
    %v7495 = vunpack.c.h.b16 %v7224
    %v7496 = vunpack.c.l.b16 %v7225
    %v7497 = vunpack.c.h.b16 %v7225
    %v7498 = vunpack.c.l.b16 %v7226
    %v7499 = vunpack.c.h.b16 %v7226
    %v7500 = vunpack.c.l.b16 %v7227
    %v7501 = vunpack.c.h.b16 %v7227
    %v7502 = vunpack.c.l.b16 %v7228
    %v7503 = vunpack.c.h.b16 %v7228
    %v7504 = vunpack.c.l.b16 %v7229
    %v7505 = vunpack.c.h.b16 %v7229
    %v7506 = vunpack.c.l.b16 %v7230
    %v7507 = vunpack.c.h.b16 %v7230
    %v7508 = vunpack.c.l.b16 %v7231
    %v7509 = vunpack.c.h.b16 %v7231
    %v7510 = vunpack.c.l.b16 %v7232
    %v7511 = vunpack.c.h.b16 %v7232
    %v7512 = vunpack.c.l.b16 %v7233
    %v7513 = vunpack.c.h.b16 %v7233
    %v7514 = vunpack.c.l.b16 %v7234
    %v7515 = vunpack.c.h.b16 %v7234
    %v7516 = vunpack.c.l.b16 %v7235
    %v7517 = vunpack.c.h.b16 %v7235
    %v7518 = vunpack.c.l.b16 %v7236
    %v7519 = vunpack.c.h.b16 %v7236
    %v7520 = vunpack.c.l.b16 %v7237
    %v7521 = vunpack.c.h.b16 %v7237
    %v7522 = vunpack.c.l.b16 %v7238
    %v7523 = vunpack.c.h.b16 %v7238
    %v7524 = vunpack.c.l.b16 %v7239
    %v7525 = vunpack.c.h.b16 %v7239
    %v7526 = vunpack.c.l.b16 %v7240
    %v7527 = vunpack.c.h.b16 %v7240
    %v7528 = vunpack.c.l.b16 %v7241
    %v7529 = vunpack.c.h.b16 %v7241
    %v7530 = vunpack.c.l.b16 %v7242
    %v7531 = vunpack.c.h.b16 %v7242
    %v7532 = vunpack.c.l.b16 %v7243
    %v7533 = vunpack.c.h.b16 %v7243
    %v7534 = vunpack.c.l.b16 %v7244
    %v7535 = vunpack.c.h.b16 %v7244
    %v7536 = vunpack.c.l.b16 %v7245
    %v7537 = vunpack.c.h.b16 %v7245
    %v7538 = vunpack.c.l.b16 %v7246
    %v7539 = vunpack.c.h.b16 %v7246
    %v7540 = vunpack.c.l.b16 %v7247
    %v7541 = vunpack.c.h.b16 %v7247
    %v7542 = vunpack.c.l.b16 %v7248
    %v7543 = vunpack.c.h.b16 %v7248
    %v7544 = vunpack.c.l.b16 %v7249
    %v7545 = vunpack.c.h.b16 %v7249
    %v7546 = vunpack.c.l.b16 %v7250
    %v7547 = vunpack.c.h.b16 %v7250
    %v7548 = vunpack.c.l.b16 %v7251
    %v7549 = vunpack.c.h.b16 %v7251
    %v7550 = vunpack.c.l.b16 %v7252
    %v7551 = vunpack.c.h.b16 %v7252
    %v7552 = vunpack.c.l.b16 %v7253
    %v7553 = vunpack.c.h.b16 %v7253
    %v7554 = vunpack.c.l.b16 %v7254
    %v7555 = vunpack.c.h.b16 %v7254
    %v7556 = vunpack.c.l.b16 %v7255
    %v7557 = vunpack.c.h.b16 %v7255
    %v7558 = vunpack.c.l.b16 %v7256
    %v7559 = vunpack.c.h.b16 %v7256
    %v7560 = vunpack.c.l.b16 %v7257
    %v7561 = vunpack.c.h.b16 %v7257
    %v7562 = vunpack.c.l.b16 %v7258
    %v7563 = vunpack.c.h.b16 %v7258
    %v7564 = vunpack.c.l.b16 %v7259
    %v7565 = vunpack.c.h.b16 %v7259
    %v7566 = vunpack.c.l.b16 %v7260
    %v7567 = vunpack.c.h.b16 %v7260
    %v7568 = vunpack.c.l.b16 %v7261
    %v7569 = vunpack.c.h.b16 %v7261
    %v7570 = vunpack.c.l.b16 %v7262
    %v7571 = vunpack.c.h.b16 %v7262
    %v7572 = vunpack.c.l.b16 %v7263
    %v7573 = vunpack.c.h.b16 %v7263
    %v7574 = vunpack.c.l.b16 %v7264
    %v7575 = vunpack.c.h.b16 %v7264
    %v7576 = vunpack.c.l.b16 %v7265
    %v7577 = vunpack.c.h.b16 %v7265
    %v7578 = vunpack.c.l.b16 %v7266
    %v7579 = vunpack.c.h.b16 %v7266
    %v7580 = vunpack.c.l.b16 %v7267
    %v7581 = vunpack.c.h.b16 %v7267
    %v7582 = vunpack.c.l.b16 %v7268
    %v7583 = vunpack.c.h.b16 %v7268
    %v7584 = vunpack.c.l.b16 %v7269
    %v7585 = vunpack.c.h.b16 %v7269
    %v7586 = vunpack.c.l.b16 %v7270
    %v7587 = vunpack.c.h.b16 %v7270
    %v7588 = vunpack.c.l.b16 %v7271
    %v7589 = vunpack.c.h.b16 %v7271
    %v7590 = vunpack.c.l.b16 %v7272
    %v7591 = vunpack.c.h.b16 %v7272
    %v7592 = vunpack.c.l.b16 %v7273
    %v7593 = vunpack.c.h.b16 %v7273
    %v7594 = vunpack.c.l.b16 %v7274
    %v7595 = vunpack.c.h.b16 %v7274
    %v7596 = vunpack.c.l.b16 %v7275
    %v7597 = vunpack.c.h.b16 %v7275
    %v7598 = vunpack.c.l.b16 %v7276
    %v7599 = vunpack.c.h.b16 %v7276
    %v7600 = vunpack.c.l.b16 %v7277
    %v7601 = vunpack.c.h.b16 %v7277
    %v7602 = vunpack.c.l.b16 %v7278
    %v7603 = vunpack.c.h.b16 %v7278
    %v7604 = vunpack.c.l.b16 %v7279
    %v7605 = vunpack.c.h.b16 %v7279
    %v7606 = vunpack.c.l.b16 %v7280
    %v7607 = vunpack.c.h.b16 %v7280
    %v7608 = vunpack.c.l.b16 %v7281
    %v7609 = vunpack.c.h.b16 %v7281
    %v7610 = vunpack.c.l.b16 %v7282
    %v7611 = vunpack.c.h.b16 %v7282
    %v7612 = vunpack.c.l.b16 %v7283
    %v7613 = vunpack.c.h.b16 %v7283
    %v7614 = vunpack.c.l.b16 %v7284
    %v7615 = vunpack.c.h.b16 %v7284
    %v7616 = vunpack.c.l.b16 %v7285
    %v7617 = vunpack.c.h.b16 %v7285
    %v7618 = vunpack.c.l.b16 %v7286
    %v7619 = vunpack.c.h.b16 %v7286
    %v7620 = vunpack.c.l.b16 %v7287
    %v7621 = vunpack.c.h.b16 %v7287
    %v7622 = vunpack.c.l.b16 %v7288
    %v7623 = vunpack.c.h.b16 %v7288
    %v7624 = vunpack.c.l.b16 %v7289
    %v7625 = vunpack.c.h.b16 %v7289
    %v7626 = vunpack.c.l.b16 %v7290
    %v7627 = vunpack.c.h.b16 %v7290
    %v7628 = vunpack.c.l.b16 %v7291
    %v7629 = vunpack.c.h.b16 %v7291
    %v7630 = vunpack.c.l.b16 %v7292
    %v7631 = vunpack.c.h.b16 %v7292
    %v7632 = vunpack.c.l.b16 %v7293
    %v7633 = vunpack.c.h.b16 %v7293
    %v7634 = vunpack.c.l.b16 %v7294
    %v7635 = vunpack.c.h.b16 %v7294
    %v7636 = vunpack.c.l.b16 %v7295
    %v7637 = vunpack.c.h.b16 %v7295
    %v7638 = vunpack.c.l.b16 %v7296
    %v7639 = vunpack.c.h.b16 %v7296
    %v7640 = vunpack.c.l.b16 %v7297
    %v7641 = vunpack.c.h.b16 %v7297
    %v7642 = vunpack.c.l.b16 %v7298
    %v7643 = vunpack.c.h.b16 %v7298
    %v7644 = vunpack.c.l.b16 %v7299
    %v7645 = vunpack.c.h.b16 %v7299
    %v7646 = vunpack.c.l.b16 %v7300
    %v7647 = vunpack.c.h.b16 %v7300
    %v7648 = vunpack.c.l.b16 %v7301
    %v7649 = vunpack.c.h.b16 %v7301
    %v7650 = vunpack.c.l.b16 %v7302
    %v7651 = vunpack.c.h.b16 %v7302
    %v7652 = vunpack.c.l.b16 %v7303
    %v7653 = vunpack.c.h.b16 %v7303
    %v7654 = vunpack.c.l.b16 %v7304
    %v7655 = vunpack.c.h.b16 %v7304
    %v7656 = vunpack.c.l.b16 %v7305
    %v7657 = vunpack.c.h.b16 %v7305
    %v7658 = vunpack.c.l.b16 %v7306
    %v7659 = vunpack.c.h.b16 %v7306
    %v7660 = vunpack.c.l.b16 %v7307
    %v7661 = vunpack.c.h.b16 %v7307
    %v7662 = vunpack.c.l.b16 %v7308
    %v7663 = vunpack.c.h.b16 %v7308
    %v7664 = vunpack.c.l.b16 %v7309
    %v7665 = vunpack.c.h.b16 %v7309
    %v7666 = vunpack.c.l.b16 %v7310
    %v7667 = vunpack.c.h.b16 %v7310
    %v7668 = vunpack.c.l.b16 %v7311
    %v7669 = vunpack.c.h.b16 %v7311
    %v7670 = vunpack.c.l.b16 %v7312
    %v7671 = vunpack.c.h.b16 %v7312
    %v7672 = vunpack.c.l.b16 %v7313
    %v7673 = vunpack.c.h.b16 %v7313
    %v7674 = vunpack.c.l.b16 %v7314
    %v7675 = vunpack.c.h.b16 %v7314
    %v7676 = vunpack.c.l.b16 %v7315
    %v7677 = vunpack.c.h.b16 %v7315
    %v7678 = vunpack.c.l.b16 %v7316
    %v7679 = vunpack.c.h.b16 %v7316
    %v7680 = vunpack.c.l.b16 %v7317
    %v7681 = vunpack.c.h.b16 %v7317
    %v7682 = vunpack.c.l.b16 %v7318
    %v7683 = vunpack.c.h.b16 %v7318
    %v7684 = vunpack.c.l.b16 %v7319
    %v7685 = vunpack.c.h.b16 %v7319
    %v7686 = vunpack.c.l.b16 %v7320
    %v7687 = vunpack.c.h.b16 %v7320
    %v7688 = vunpack.c.l.b16 %v7321
    %v7689 = vunpack.c.h.b16 %v7321
    %v7690 = vunpack.c.l.b16 %v7322
    %v7691 = vunpack.c.h.b16 %v7322
    %v7692 = vunpack.c.l.b16 %v7323
    %v7693 = vunpack.c.h.b16 %v7323
    %v7694 = vunpack.c.l.b16 %v7324
    %v7695 = vunpack.c.h.b16 %v7324
    %v7696 = vunpack.c.l.b16 %v7325
    %v7697 = vunpack.c.h.b16 %v7325
    %v7698 = vunpack.c.l.b16 %v7326
    %v7699 = vunpack.c.h.b16 %v7326
    %v7700 = vunpack.c.l.b16 %v7327
    %v7701 = vunpack.c.h.b16 %v7327
    %v7702 = vunpack.c.l.b16 %v7328
    %v7703 = vunpack.c.h.b16 %v7328
    %v7704 = vunpack.c.l.b16 %v7329
    %v7705 = vunpack.c.h.b16 %v7329
    %v7706 = vunpack.c.l.b16 %v7330
    %v7707 = vunpack.c.h.b16 %v7330
    %v7708 = vunpack.c.l.b16 %v7331
    %v7709 = vunpack.c.h.b16 %v7331
    %v7710 = vunpack.c.l.b16 %v7332
    %v7711 = vunpack.c.h.b16 %v7332
    %v7712 = vunpack.c.l.b16 %v7333
    %v7713 = vunpack.c.h.b16 %v7333
    %v7714 = vunpack.c.l.b16 %v7334
    %v7715 = vunpack.c.h.b16 %v7334
    %v7716 = vunpack.c.l.b16 %v7335
    %v7717 = vunpack.c.h.b16 %v7335
    %v7718 = vunpack.c.l.b16 %v7336
    %v7719 = vunpack.c.h.b16 %v7336
    %v7720 = vunpack.c.l.b16 %v7337
    %v7721 = vunpack.c.h.b16 %v7337
    %v7722 = vunpack.c.l.b16 %v7338
    %v7723 = vunpack.c.h.b16 %v7338
    %v7724 = vunpack.c.l.b16 %v7339
    %v7725 = vunpack.c.h.b16 %v7339
    %v7726 = vunpack.c.l.b16 %v7340
    %v7727 = vunpack.c.h.b16 %v7340
    %v7728 = vunpack.c.l.b16 %v7341
    %v7729 = vunpack.c.h.b16 %v7341
    %v7730 = vunpack.c.l.b16 %v7342
    %v7731 = vunpack.c.h.b16 %v7342
    %v7732 = vunpack.c.l.b16 %v7343
    %v7733 = vunpack.c.h.b16 %v7343
    %v7734 = vunpack.c.l.b16 %v7344
    %v7735 = vunpack.c.h.b16 %v7344
    %v7736 = vunpack.c.l.b16 %v7345
    %v7737 = vunpack.c.h.b16 %v7345
    %v7738 = vunpack.c.l.b16 %v7346
    %v7739 = vunpack.c.h.b16 %v7346
    %v7740 = vunpack.c.l.b16 %v7347
    %v7741 = vunpack.c.h.b16 %v7347
    %v7742 = vunpack.c.l.b16 %v7348
    %v7743 = vunpack.c.h.b16 %v7348
    %v7744 = vunpack.c.l.b16 %v7349
    %v7745 = vunpack.c.h.b16 %v7349
    %v7746 = vpack.c.b16 %v7492, %v7490
    %v7747 = vpack.c.b16 %v7493, %v7491
    %v7748 = vpack.c.b16 %v7496, %v7494
    %v7749 = vpack.c.b16 %v7497, %v7495
    %v7750 = vpack.c.b16 %v7500, %v7498
    %v7751 = vpack.c.b16 %v7501, %v7499
    %v7752 = vpack.c.b16 %v7504, %v7502
    %v7753 = vpack.c.b16 %v7505, %v7503
    %v7754 = vpack.c.b16 %v7508, %v7506
    %v7755 = vpack.c.b16 %v7509, %v7507
    %v7756 = vpack.c.b16 %v7512, %v7510
    %v7757 = vpack.c.b16 %v7513, %v7511
    %v7758 = vpack.c.b16 %v7516, %v7514
    %v7759 = vpack.c.b16 %v7517, %v7515
    %v7760 = vpack.c.b16 %v7520, %v7518
    %v7761 = vpack.c.b16 %v7521, %v7519
    %v7762 = vpack.c.b16 %v7524, %v7522
    %v7763 = vpack.c.b16 %v7525, %v7523
    %v7764 = vpack.c.b16 %v7528, %v7526
    %v7765 = vpack.c.b16 %v7529, %v7527
    %v7766 = vpack.c.b16 %v7532, %v7530
    %v7767 = vpack.c.b16 %v7533, %v7531
    %v7768 = vpack.c.b16 %v7536, %v7534
    %v7769 = vpack.c.b16 %v7537, %v7535
    %v7770 = vpack.c.b16 %v7540, %v7538
    %v7771 = vpack.c.b16 %v7541, %v7539
    %v7772 = vpack.c.b16 %v7544, %v7542
    %v7773 = vpack.c.b16 %v7545, %v7543
    %v7774 = vpack.c.b16 %v7548, %v7546
    %v7775 = vpack.c.b16 %v7549, %v7547
    %v7776 = vpack.c.b16 %v7552, %v7550
    %v7777 = vpack.c.b16 %v7553, %v7551
    %v7778 = vpack.c.b16 %v7556, %v7554
    %v7779 = vpack.c.b16 %v7557, %v7555
    %v7780 = vpack.c.b16 %v7560, %v7558
    %v7781 = vpack.c.b16 %v7561, %v7559
    %v7782 = vpack.c.b16 %v7564, %v7562
    %v7783 = vpack.c.b16 %v7565, %v7563
    %v7784 = vpack.c.b16 %v7568, %v7566
    %v7785 = vpack.c.b16 %v7569, %v7567
    %v7786 = vpack.c.b16 %v7572, %v7570
    %v7787 = vpack.c.b16 %v7573, %v7571
    %v7788 = vpack.c.b16 %v7576, %v7574
    %v7789 = vpack.c.b16 %v7577, %v7575
    %v7790 = vpack.c.b16 %v7580, %v7578
    %v7791 = vpack.c.b16 %v7581, %v7579
    %v7792 = vpack.c.b16 %v7584, %v7582
    %v7793 = vpack.c.b16 %v7585, %v7583
    %v7794 = vpack.c.b16 %v7588, %v7586
    %v7795 = vpack.c.b16 %v7589, %v7587
    %v7796 = vpack.c.b16 %v7592, %v7590
    %v7797 = vpack.c.b16 %v7593, %v7591
    %v7798 = vpack.c.b16 %v7596, %v7594
    %v7799 = vpack.c.b16 %v7597, %v7595
    %v7800 = vpack.c.b16 %v7600, %v7598
    %v7801 = vpack.c.b16 %v7601, %v7599
    %v7802 = vpack.c.b16 %v7604, %v7602
    %v7803 = vpack.c.b16 %v7605, %v7603
    %v7804 = vpack.c.b16 %v7608, %v7606
    %v7805 = vpack.c.b16 %v7609, %v7607
    %v7806 = vpack.c.b16 %v7612, %v7610
    %v7807 = vpack.c.b16 %v7613, %v7611
    %v7808 = vpack.c.b16 %v7616, %v7614
    %v7809 = vpack.c.b16 %v7617, %v7615
    %v7810 = vpack.c.b16 %v7620, %v7618
    %v7811 = vpack.c.b16 %v7621, %v7619
    %v7812 = vpack.c.b16 %v7624, %v7622
    %v7813 = vpack.c.b16 %v7625, %v7623
    %v7814 = vpack.c.b16 %v7628, %v7626
    %v7815 = vpack.c.b16 %v7629, %v7627
    %v7816 = vpack.c.b16 %v7632, %v7630
    %v7817 = vpack.c.b16 %v7633, %v7631
    %v7818 = vpack.c.b16 %v7636, %v7634
    %v7819 = vpack.c.b16 %v7637, %v7635
    %v7820 = vpack.c.b16 %v7640, %v7638
    %v7821 = vpack.c.b16 %v7641, %v7639
    %v7822 = vpack.c.b16 %v7644, %v7642
    %v7823 = vpack.c.b16 %v7645, %v7643
    %v7824 = vpack.c.b16 %v7648, %v7646
    %v7825 = vpack.c.b16 %v7649, %v7647
    %v7826 = vpack.c.b16 %v7652, %v7650
    %v7827 = vpack.c.b16 %v7653, %v7651
    %v7828 = vpack.c.b16 %v7656, %v7654
    %v7829 = vpack.c.b16 %v7657, %v7655
    %v7830 = vpack.c.b16 %v7660, %v7658
    %v7831 = vpack.c.b16 %v7661, %v7659
    %v7832 = vpack.c.b16 %v7664, %v7662
    %v7833 = vpack.c.b16 %v7665, %v7663
    %v7834 = vpack.c.b16 %v7668, %v7666
    %v7835 = vpack.c.b16 %v7669, %v7667
    %v7836 = vpack.c.b16 %v7672, %v7670
    %v7837 = vpack.c.b16 %v7673, %v7671
    %v7838 = vpack.c.b16 %v7676, %v7674
    %v7839 = vpack.c.b16 %v7677, %v7675
    %v7840 = vpack.c.b16 %v7680, %v7678
    %v7841 = vpack.c.b16 %v7681, %v7679
    %v7842 = vpack.c.b16 %v7684, %v7682
    %v7843 = vpack.c.b16 %v7685, %v7683
    %v7844 = vpack.c.b16 %v7688, %v7686
    %v7845 = vpack.c.b16 %v7689, %v7687
    %v7846 = vpack.c.b16 %v7692, %v7690
    %v7847 = vpack.c.b16 %v7693, %v7691
    %v7848 = vpack.c.b16 %v7696, %v7694
    %v7849 = vpack.c.b16 %v7697, %v7695
    %v7850 = vpack.c.b16 %v7700, %v7698
    %v7851 = vpack.c.b16 %v7701, %v7699
    %v7852 = vpack.c.b16 %v7704, %v7702
    %v7853 = vpack.c.b16 %v7705, %v7703
    %v7854 = vpack.c.b16 %v7708, %v7706
    %v7855 = vpack.c.b16 %v7709, %v7707
    %v7856 = vpack.c.b16 %v7712, %v7710
    %v7857 = vpack.c.b16 %v7713, %v7711
    %v7858 = vpack.c.b16 %v7716, %v7714
    %v7859 = vpack.c.b16 %v7717, %v7715
    %v7860 = vpack.c.b16 %v7720, %v7718
    %v7861 = vpack.c.b16 %v7721, %v7719
    %v7862 = vpack.c.b16 %v7724, %v7722
    %v7863 = vpack.c.b16 %v7725, %v7723
    %v7864 = vpack.c.b16 %v7728, %v7726
    %v7865 = vpack.c.b16 %v7729, %v7727
    %v7866 = vpack.c.b16 %v7732, %v7730
    %v7867 = vpack.c.b16 %v7733, %v7731
    %v7868 = vpack.c.b16 %v7736, %v7734
    %v7869 = vpack.c.b16 %v7737, %v7735
    %v7870 = vpack.c.b16 %v7740, %v7738
    %v7871 = vpack.c.b16 %v7741, %v7739
    %v7872 = vpack.c.b16 %v7744, %v7742
    %v7873 = vpack.c.b16 %v7745, %v7743
    %8002 = vmatprep.subr.bf16.mxu0 %v7761
    %8003 = vmatpush1.bf16.msra.mxu0 %v7760
    %8004 = vmatprep.subr.bf16.mxu0 %v7759
    %8005 = vmatpush1.bf16.msra.mxu0 %v7758
    %8006 = vmatprep.subr.bf16.mxu0 %v7757
    %8007 = vmatpush1.bf16.msra.mxu0 %v7756
    %8008 = vmatprep.subr.bf16.mxu0 %v7755
    %8009 = vmatpush1.bf16.msra.mxu0 %v7754
    %8010 = vmatprep.subr.bf16.mxu0 %v7753
    %8011 = vmatpush1.bf16.msra.mxu0 %v7752
    %8012 = vmatprep.subr.bf16.mxu0 %v7751
    %8013 = vmatpush1.bf16.msra.mxu0 %v7750
    %8014 = vmatprep.subr.bf16.mxu0 %v7749
    %8015 = vmatpush1.bf16.msra.mxu0 %v7748
    %8016 = vmatprep.subr.bf16.mxu0 %v7747
    %8017 = vmatpush1.bf16.msra.mxu0 %v7746
    %8018 = vmatprep.subr.bf16.mxu0 %v7777
    %8019 = vmatpush2.bf16.msra.mxu0 %v7776
    %8020 = vmatprep.subr.bf16.mxu0 %v7775
    %8021 = vmatpush2.bf16.msra.mxu0 %v7774
    %8022 = vmatprep.subr.bf16.mxu0 %v7773
    %8023 = vmatpush2.bf16.msra.mxu0 %v7772
    %8024 = vmatprep.subr.bf16.mxu0 %v7771
    %8025 = vmatpush2.bf16.msra.mxu0 %v7770
    %8026 = vmatprep.subr.bf16.mxu0 %v7769
    %8027 = vmatpush2.bf16.msra.mxu0 %v7768
    %8028 = vmatprep.subr.bf16.mxu0 %v7767
    %8029 = vmatpush2.bf16.msra.mxu0 %v7766
    %8030 = vmatprep.subr.bf16.mxu0 %v7765
    %8031 = vmatpush2.bf16.msra.mxu0 %v7764
    %8032 = vmatprep.subr.bf16.mxu0 %v7763
    %8033 = vmatpush2.bf16.msra.mxu0 %v7762
    %8034 = vmatprep.mubr.bf16.mxu0 %v7215
    %8035 = vmatmul.mubr.bf16.gmra.mxu0 %v7214
    %v8036 = vpop.f32.mrf.mxu0
    %v8037 = vadd.f32 %v7355, %v8036
    %v8038 = vpop.f32.mrf.mxu0
    %v8039 = vadd.f32 %v7359, %v8038
    %v8040 = vpop.f32.mrf.mxu0
    %v8041 = vpop.f32.mrf.mxu0
    %8042 = vdwg.mxu0
    %8043 = vmatprep.subr.bf16.mxu0 %v7793
    %8044 = vmatpush1.bf16.msra.mxu0 %v7792
    %8045 = vmatprep.subr.bf16.mxu0 %v7791
    %8046 = vmatpush1.bf16.msra.mxu0 %v7790
    %8047 = vmatprep.subr.bf16.mxu0 %v7789
    %8048 = vmatpush1.bf16.msra.mxu0 %v7788
    %8049 = vmatprep.subr.bf16.mxu0 %v7787
    %8050 = vmatpush1.bf16.msra.mxu0 %v7786
    %8051 = vmatprep.subr.bf16.mxu0 %v7785
    %8052 = vmatpush1.bf16.msra.mxu0 %v7784
    %8053 = vmatprep.subr.bf16.mxu0 %v7783
    %8054 = vmatpush1.bf16.msra.mxu0 %v7782
    %8055 = vmatprep.subr.bf16.mxu0 %v7781
    %8056 = vmatpush1.bf16.msra.mxu0 %v7780
    %8057 = vmatprep.subr.bf16.mxu0 %v7779
    %8058 = vmatpush1.bf16.msra.mxu0 %v7778
    %8059 = vmatprep.subr.bf16.mxu0 %v7809
    %8060 = vmatpush2.bf16.msra.mxu0 %v7808
    %8061 = vmatprep.subr.bf16.mxu0 %v7807
    %8062 = vmatpush2.bf16.msra.mxu0 %v7806
    %8063 = vmatprep.subr.bf16.mxu0 %v7805
    %8064 = vmatpush2.bf16.msra.mxu0 %v7804
    %8065 = vmatprep.subr.bf16.mxu0 %v7803
    %8066 = vmatpush2.bf16.msra.mxu0 %v7802
    %8067 = vmatprep.subr.bf16.mxu0 %v7801
    %8068 = vmatpush2.bf16.msra.mxu0 %v7800
    %8069 = vmatprep.subr.bf16.mxu0 %v7799
    %8070 = vmatpush2.bf16.msra.mxu0 %v7798
    %8071 = vmatprep.subr.bf16.mxu0 %v7797
    %8072 = vmatpush2.bf16.msra.mxu0 %v7796
    %8073 = vmatprep.subr.bf16.mxu0 %v7795
    %8074 = vmatpush2.bf16.msra.mxu0 %v7794
    %8075 = vmatprep.mubr.bf16.mxu0 %v7217
    %8076 = vmatmul.mubr.bf16.gmra.mxu0 %v7216
    %v8077 = vpop.f32.mrf.mxu0
    %v8078 = vadd.f32 %v8037, %v8077
    %v8079 = vpop.f32.mrf.mxu0
    %v8080 = vadd.f32 %v8039, %v8079
    %v8081 = vpop.f32.mrf.mxu0
    %v8082 = vpop.f32.mrf.mxu0
    %8083 = vdwg.mxu0
    %8084 = vmatprep.subr.bf16.mxu0 %v7825
    %8085 = vmatpush1.bf16.msra.mxu0 %v7824
    %8086 = vmatprep.subr.bf16.mxu0 %v7823
    %8087 = vmatpush1.bf16.msra.mxu0 %v7822
    %8088 = vmatprep.subr.bf16.mxu0 %v7821
    %8089 = vmatpush1.bf16.msra.mxu0 %v7820
    %8090 = vmatprep.subr.bf16.mxu0 %v7819
    %8091 = vmatpush1.bf16.msra.mxu0 %v7818
    %8092 = vmatprep.subr.bf16.mxu0 %v7817
    %8093 = vmatpush1.bf16.msra.mxu0 %v7816
    %8094 = vmatprep.subr.bf16.mxu0 %v7815
    %8095 = vmatpush1.bf16.msra.mxu0 %v7814
    %8096 = vmatprep.subr.bf16.mxu0 %v7813
    %8097 = vmatpush1.bf16.msra.mxu0 %v7812
    %8098 = vmatprep.subr.bf16.mxu0 %v7811
    %8099 = vmatpush1.bf16.msra.mxu0 %v7810
    %8100 = vmatprep.subr.bf16.mxu0 %v7841
    %8101 = vmatpush2.bf16.msra.mxu0 %v7840
    %8102 = vmatprep.subr.bf16.mxu0 %v7839
    %8103 = vmatpush2.bf16.msra.mxu0 %v7838
    %8104 = vmatprep.subr.bf16.mxu0 %v7837
    %8105 = vmatpush2.bf16.msra.mxu0 %v7836
    %8106 = vmatprep.subr.bf16.mxu0 %v7835
    %8107 = vmatpush2.bf16.msra.mxu0 %v7834
    %8108 = vmatprep.subr.bf16.mxu0 %v7833
    %8109 = vmatpush2.bf16.msra.mxu0 %v7832
    %8110 = vmatprep.subr.bf16.mxu0 %v7831
    %8111 = vmatpush2.bf16.msra.mxu0 %v7830
    %8112 = vmatprep.subr.bf16.mxu0 %v7829
    %8113 = vmatpush2.bf16.msra.mxu0 %v7828
    %8114 = vmatprep.subr.bf16.mxu0 %v7827
    %8115 = vmatpush2.bf16.msra.mxu0 %v7826
    %8116 = vmatprep.mubr.bf16.mxu0 %v7219
    %8117 = vmatmul.mubr.bf16.gmra.mxu0 %v7218
    %v8118 = vpop.f32.mrf.mxu0
    %v8119 = vadd.f32 %v8078, %v8118
    %v8120 = vpop.f32.mrf.mxu0
    %v8121 = vadd.f32 %v8080, %v8120
    %v8122 = vpop.f32.mrf.mxu0
    %v8123 = vpop.f32.mrf.mxu0
    %8124 = vdwg.mxu0
    %8125 = vmatprep.subr.bf16.mxu0 %v7857
    %8126 = vmatpush1.bf16.msra.mxu0 %v7856
    %8127 = vmatprep.subr.bf16.mxu0 %v7855
    %8128 = vmatpush1.bf16.msra.mxu0 %v7854
    %8129 = vmatprep.subr.bf16.mxu0 %v7853
    %8130 = vmatpush1.bf16.msra.mxu0 %v7852
    %8131 = vmatprep.subr.bf16.mxu0 %v7851
    %8132 = vmatpush1.bf16.msra.mxu0 %v7850
    %8133 = vmatprep.subr.bf16.mxu0 %v7849
    %8134 = vmatpush1.bf16.msra.mxu0 %v7848
    %8135 = vmatprep.subr.bf16.mxu0 %v7847
    %8136 = vmatpush1.bf16.msra.mxu0 %v7846
    %8137 = vmatprep.subr.bf16.mxu0 %v7845
    %8138 = vmatpush1.bf16.msra.mxu0 %v7844
    %8139 = vmatprep.subr.bf16.mxu0 %v7843
    %8140 = vmatpush1.bf16.msra.mxu0 %v7842
    %8141 = vmatprep.subr.bf16.mxu0 %v7873
    %8142 = vmatpush2.bf16.msra.mxu0 %v7872
    %8143 = vmatprep.subr.bf16.mxu0 %v7871
    %8144 = vmatpush2.bf16.msra.mxu0 %v7870
    %8145 = vmatprep.subr.bf16.mxu0 %v7869
    %8146 = vmatpush2.bf16.msra.mxu0 %v7868
    %8147 = vmatprep.subr.bf16.mxu0 %v7867
    %8148 = vmatpush2.bf16.msra.mxu0 %v7866
    %8149 = vmatprep.subr.bf16.mxu0 %v7865
    %8150 = vmatpush2.bf16.msra.mxu0 %v7864
    %8151 = vmatprep.subr.bf16.mxu0 %v7863
    %8152 = vmatpush2.bf16.msra.mxu0 %v7862
    %8153 = vmatprep.subr.bf16.mxu0 %v7861
    %8154 = vmatpush2.bf16.msra.mxu0 %v7860
    %8155 = vmatprep.subr.bf16.mxu0 %v7859
    %8156 = vmatpush2.bf16.msra.mxu0 %v7858
    %8157 = vmatprep.mubr.bf16.mxu0 %v7221
    %8158 = vmatmul.mubr.bf16.gmra.mxu0 %v7220
    %v8159 = vpop.f32.mrf.mxu0
    %v8160 = vadd.f32 %v8119, %v8159
    %v8161 = vpop.f32.mrf.mxu0
    %v8162 = vadd.f32 %v8121, %v8161
    %v8163 = vpop.f32.mrf.mxu0
    %v8164 = vpop.f32.mrf.mxu0
    %8165 = vdwg.mxu0
    %v8166 = vmax.f32 %v8160, 0.0
    %v8167 = vmax.f32 %v8162, 0.0
    %v8168 = vpack.c.bf16 %v8166, %v8166
    %v8169 = vpack.c.bf16 %v8167, %v8167
    %v8170 = vld [vmem:[#allocation41] sm:$0xf]
    %v8171 = vld [vmem:[#allocation41 + $0x4] sm:$0xf]
    %v8172 = vld [vmem:[#allocation41 + $0x8] sm:$0xf]
    %v8173 = vld [vmem:[#allocation41 + $0xc] sm:$0xf]
    %v8174 = vld [vmem:[#allocation41 + $0x10] sm:$0xf]
    %v8175 = vld [vmem:[#allocation41 + $0x14] sm:$0xf]
    %v8176 = vld [vmem:[#allocation41 + $0x18] sm:$0xf]
    %v8177 = vld [vmem:[#allocation41 + $0x1c] sm:$0xf]
    %v8178 = vld [vmem:[#allocation41 + $0x20] sm:$0xf]
    %v8179 = vld [vmem:[#allocation41 + $0x24] sm:$0xf]
    %v8180 = vld [vmem:[#allocation41 + $0x28] sm:$0xf]
    %v8181 = vld [vmem:[#allocation41 + $0x2c] sm:$0xf]
    %v8182 = vld [vmem:[#allocation41 + $0x30] sm:$0xf]
    %v8183 = vld [vmem:[#allocation41 + $0x34] sm:$0xf]
    %v8184 = vld [vmem:[#allocation41 + $0x38] sm:$0xf]
    %v8185 = vld [vmem:[#allocation41 + $0x3c] sm:$0xf]
    %v8186 = vld [vmem:[#allocation41 + $0x40] sm:$0xf]
    %v8187 = vld [vmem:[#allocation41 + $0x44] sm:$0xf]
    %v8188 = vld [vmem:[#allocation41 + $0x48] sm:$0xf]
    %v8189 = vld [vmem:[#allocation41 + $0x4c] sm:$0xf]
    %v8190 = vld [vmem:[#allocation41 + $0x50] sm:$0xf]
    %v8191 = vld [vmem:[#allocation41 + $0x54] sm:$0xf]
    %v8192 = vld [vmem:[#allocation41 + $0x58] sm:$0xf]
    %v8193 = vld [vmem:[#allocation41 + $0x5c] sm:$0xf]
    %v8194 = vld [vmem:[#allocation41 + $0x60] sm:$0xf]
    %v8195 = vld [vmem:[#allocation41 + $0x64] sm:$0xf]
    %v8196 = vld [vmem:[#allocation41 + $0x68] sm:$0xf]
    %v8197 = vld [vmem:[#allocation41 + $0x6c] sm:$0xf]
    %v8198 = vld [vmem:[#allocation41 + $0x70] sm:$0xf]
    %v8199 = vld [vmem:[#allocation41 + $0x74] sm:$0xf]
    %v8200 = vld [vmem:[#allocation41 + $0x78] sm:$0xf]
    %v8201 = vld [vmem:[#allocation41 + $0x7c] sm:$0xf]
    %v8202 = vld [vmem:[#allocation43] sm:$0x1]
    %v8204 = vlaneseq
    %v8205 = vshrl.u32 %v8204, 7
    %v8206 = vsub.s32 0, %v8205
    %v8207 = vrot.slane %v8202, %v8206
    %v8241 = vunpack.c.l.b16 %v8170
    %v8242 = vunpack.c.l.b16 %v8171
    %v8243 = vunpack.c.l.b16 %v8172
    %v8244 = vunpack.c.l.b16 %v8173
    %v8245 = vunpack.c.l.b16 %v8174
    %v8246 = vunpack.c.l.b16 %v8175
    %v8247 = vunpack.c.l.b16 %v8176
    %v8248 = vunpack.c.l.b16 %v8177
    %v8249 = vunpack.c.l.b16 %v8178
    %v8250 = vunpack.c.l.b16 %v8179
    %v8251 = vunpack.c.l.b16 %v8180
    %v8252 = vunpack.c.l.b16 %v8181
    %v8253 = vunpack.c.l.b16 %v8182
    %v8254 = vunpack.c.l.b16 %v8183
    %v8255 = vunpack.c.l.b16 %v8184
    %v8256 = vunpack.c.l.b16 %v8185
    %v8257 = vunpack.c.l.b16 %v8186
    %v8258 = vunpack.c.l.b16 %v8187
    %v8259 = vunpack.c.l.b16 %v8188
    %v8260 = vunpack.c.l.b16 %v8189
    %v8261 = vunpack.c.l.b16 %v8190
    %v8262 = vunpack.c.l.b16 %v8191
    %v8263 = vunpack.c.l.b16 %v8192
    %v8264 = vunpack.c.l.b16 %v8193
    %v8265 = vunpack.c.l.b16 %v8194
    %v8266 = vunpack.c.l.b16 %v8195
    %v8267 = vunpack.c.l.b16 %v8196
    %v8268 = vunpack.c.l.b16 %v8197
    %v8269 = vunpack.c.l.b16 %v8198
    %v8270 = vunpack.c.l.b16 %v8199
    %v8271 = vunpack.c.l.b16 %v8200
    %v8272 = vunpack.c.l.b16 %v8201
    %v8273 = vpack.c.b16 %v8242, %v8241
    %v8274 = vpack.c.b16 %v8244, %v8243
    %v8275 = vpack.c.b16 %v8246, %v8245
    %v8276 = vpack.c.b16 %v8248, %v8247
    %v8277 = vpack.c.b16 %v8250, %v8249
    %v8278 = vpack.c.b16 %v8252, %v8251
    %v8279 = vpack.c.b16 %v8254, %v8253
    %v8280 = vpack.c.b16 %v8256, %v8255
    %v8281 = vpack.c.b16 %v8258, %v8257
    %v8282 = vpack.c.b16 %v8260, %v8259
    %v8283 = vpack.c.b16 %v8262, %v8261
    %v8284 = vpack.c.b16 %v8264, %v8263
    %v8285 = vpack.c.b16 %v8266, %v8265
    %v8286 = vpack.c.b16 %v8268, %v8267
    %v8287 = vpack.c.b16 %v8270, %v8269
    %v8288 = vpack.c.b16 %v8272, %v8271
    %8305 = vmatprep.subr.bf16.mxu0 0
    %8306 = vmatpush1.bf16.msra.mxu0 %v8280
    %8307 = vmatprep.subr.bf16.mxu0 0
    %8308 = vmatpush1.bf16.msra.mxu0 %v8279
    %8309 = vmatprep.subr.bf16.mxu0 0
    %8310 = vmatpush1.bf16.msra.mxu0 %v8278
    %8311 = vmatprep.subr.bf16.mxu0 0
    %8312 = vmatpush1.bf16.msra.mxu0 %v8277
    %8313 = vmatprep.subr.bf16.mxu0 0
    %8314 = vmatpush1.bf16.msra.mxu0 %v8276
    %8315 = vmatprep.subr.bf16.mxu0 0
    %8316 = vmatpush1.bf16.msra.mxu0 %v8275
    %8317 = vmatprep.subr.bf16.mxu0 0
    %8318 = vmatpush1.bf16.msra.mxu0 %v8274
    %8319 = vmatprep.subr.bf16.mxu0 0
    %8320 = vmatpush1.bf16.msra.mxu0 %v8273
    %8321 = vmatprep.subr.bf16.mxu0 0
    %8322 = vmatpush2.bf16.msra.mxu0 %v8288
    %8323 = vmatprep.subr.bf16.mxu0 0
    %8324 = vmatpush2.bf16.msra.mxu0 %v8287
    %8325 = vmatprep.subr.bf16.mxu0 0
    %8326 = vmatpush2.bf16.msra.mxu0 %v8286
    %8327 = vmatprep.subr.bf16.mxu0 0
    %8328 = vmatpush2.bf16.msra.mxu0 %v8285
    %8329 = vmatprep.subr.bf16.mxu0 0
    %8330 = vmatpush2.bf16.msra.mxu0 %v8284
    %8331 = vmatprep.subr.bf16.mxu0 0
    %8332 = vmatpush2.bf16.msra.mxu0 %v8283
    %8333 = vmatprep.subr.bf16.mxu0 0
    %8334 = vmatpush2.bf16.msra.mxu0 %v8282
    %8335 = vmatprep.subr.bf16.mxu0 0
    %8336 = vmatpush2.bf16.msra.mxu0 %v8281
    %8337 = vmatprep.mubr.bf16.mxu0 %v8169
    %8338 = vmatmul.mubr.bf16.gmra.mxu0 %v8168
    %v8339 = vpop.f32.mrf.mxu0
    %v8340 = vadd.f32 %v8207, %v8339
    %v8341 = vpop.f32.mrf.mxu0
    %v8342 = vpop.f32.mrf.mxu0
    %v8343 = vpop.f32.mrf.mxu0
    %8344 = vdwg.mxu0
    %8345 = vst [vmem:[#allocation47] sm:$0xff] %v8340
    // Predicated region
    $region194: #{tpu_custom_call.1} parent=1 // pred_check
      _
    $region195: #{tpu_custom_call.1} parent=1 // pred_check_branch
      %8347 = sbr.rel (0) target = $region197
    $region196: #{tpu_custom_call.1} parent=1 // pred_region
      %s8349 = ssub.s32 256, 256
      %8350 = vsyncadd [#allocation10], %s8349
      %s8351 = sshll.u32 [#allocation44], 4
      %s8352 = int_to_ptr.vmem [resolvable:$true] %s8351
      %8357 = dma.vmem_to_hbm [thread:$0]  %s8352, 256, %s26, [#allocation10], 128, 128, 8
    $region197: #{tpu_custom_call.1} parent=1 // pred_fallthru
      _
    // Predicated region
    $region198: #{tpu_custom_call.1} parent=1 // pred_check
      _
    $region199: #{tpu_custom_call.1} parent=1 // pred_check_branch
      %8359 = sbr.rel (0) target = $region201
    $region200: #{tpu_custom_call.1} parent=1 // pred_region
      %s8361 = ssub.s32 128, 128
      %8362 = vsyncadd [#allocation46], %s8361
      %s8364 = sshll.u32 [#allocation45], 4
      %s8365 = int_to_ptr.vmem [resolvable:$true] %s8364
      %8367 = dma.vmem_to_hbm [thread:$0]  %s8365, 128, %s27, [#allocation46]
    $region201: #{tpu_custom_call.1} parent=1 // pred_fallthru
      _
    // Predicated region
    $region202: #{tpu_custom_call.1} parent=1 // pred_check
      _
    $region203: #{tpu_custom_call.1} parent=1 // pred_check_branch
      %8369 = sbr.rel (0) target = $region205
    $region204: #{tpu_custom_call.1} parent=1 // pred_region
      %s8371 = ssub.s32 128, 128
      %8372 = vsyncadd [#allocation46], %s8371
      %s8374 = sshll.u32 [#allocation47], 4
      %s8375 = int_to_ptr.vmem [resolvable:$true] %s8374
      %8377 = dma.vmem_to_hbm [thread:$0]  %s8375, 128, %s28, [#allocation46]
    $region205: #{tpu_custom_call.1} parent=1 // pred_fallthru
      _
    // Predicated region
    $region206: #{tpu_custom_call.1} parent=1 // pred_check
      _
    $region207: #{tpu_custom_call.1} parent=1 // pred_check_branch
      %8379 = sbr.rel (0) target = $region209
    $region208: #{tpu_custom_call.1} parent=1 // pred_region
      %8380 = dma.done [#allocation10], 256
    $region209: #{tpu_custom_call.1} parent=1 // pred_fallthru
      _
    // Predicated region
    $region210: #{tpu_custom_call.1} parent=1 // pred_check
      _
    $region211: #{tpu_custom_call.1} parent=1 // pred_check_branch
      %8382 = sbr.rel (0) target = $region213
    $region212: #{tpu_custom_call.1} parent=1 // pred_region
      %8383 = dma.done [#allocation46], 128
    $region213: #{tpu_custom_call.1} parent=1 // pred_fallthru
      _
    // Predicated region
    $region214: #{tpu_custom_call.1} parent=1 // pred_check
      _
    $region215: #{tpu_custom_call.1} parent=1 // pred_check_branch
      %8385 = sbr.rel (0) target = $region217
    $region216: #{tpu_custom_call.1} parent=1 // pred_region
      %8386 = dma.done [#allocation46], 128
    $region217: #{tpu_custom_call.1} parent=1 // pred_fallthru
      _
    %8387 = vsyncpa [#allocation9], 1
    %8388 = vsyncpa [#allocation12], 1
    %8389 = vsyncpa [#allocation15], 1
    %8390 = vsyncpa [#allocation18], 1
    %8391 = vsyncpa [#allocation21], 1
    %8392 = vsyncpa [#allocation24], 1
    %8393 = vsyncpa [#allocation27], 1
    %8394 = vsyncpa [#allocation30], 1
    %8395 = vsyncpa [#allocation33], 1
    %8396 = vsyncpa [#allocation36], 1
    %8397 = vsyncpa [#allocation39], 1
    %8398 = vsyncpa [#allocation42], 1
    %8399 = vsyncpa [#allocation10], 1
    %8400 = vsyncpa [#allocation46], 1

</llo_original>
